<compile_context>
chip_gen: v7x
topology: tpu7x:2x2x1
jax: 0.10.0
libtpu: 0.0.40
codegen_flags: <defaults>
</compile_context>

<pallas_src>
import functools

import jax
import jax.numpy as jnp
from jax.experimental import pallas as pl
from jax.experimental.pallas import tpu as pltpu

# ----- downscaled dims (reference: cbp_out=16000, mid=512) -----
B = 2
CBP_OUT = 64      # netBlock input channels (16000 in the reference)
MID = 32          # hidden channels (512 in the reference)
H = W = 8
HW = H * W        # 64 rows per image -> 8 sublane tiles
PAD = 16          # zero guard rows on each side of the row-flattened activations
                  # (>= 9 = max |tap shift|; 16 keeps interior slices 8-aligned)
_CENTER_TAP = 4   # (ky, kx) = (1, 1)


# ---------------------------- fused netBlock kernel ----------------------------
def _netblock_kernel(x_ref, mb1_ref, mmid_ref, wb1_ref, bb1_ref, wr_ref, br_ref,
                     wb2_ref, bb2_ref, o_ref,
                     acta_ref, acth_ref, slab1_ref, slabm_ref):
    # Zero only the guard rows of the two activation scratches; the interior
    # [PAD, PAD+HW) is always fully overwritten before it is read.
    zero_g = jnp.zeros((PAD, MID), jnp.float32)
    acta_ref[0:PAD, :] = zero_g
    acta_ref[PAD + HW:PAD + 2 * PAD + HW - PAD, :] = zero_g
    acth_ref[0:PAD, :] = zero_g
    acth_ref[PAD + HW:PAD + 2 * PAD + HW - PAD, :] = zero_g

    def build_slab(slab_ref, src_ref, mask_ref, cin):
        """im2col: slab[:, t*cin:(t+1)*cin] = masked, tap-shifted activation slice."""
        for ky in range(3):
            for kx in range(3):
                t = ky * 3 + kx
                d = (ky - 1) * W + (kx - 1)                  # row shift of this tap
                patch = src_ref[PAD + d:PAD + d + HW, :]     # static sublane slice
                if t != _CENTER_TAP:                         # center tap is always valid
                    patch = patch * mask_ref[t]              # hoisted {0,1} mask, 1 vmul
                slab_ref[:, t * cin:(t + 1) * cin] = patch

    # --- conv_b1: CBP_OUT -> MID, ReLU --- (single K=9*CBP_OUT matmul)
    build_slab(slab1_ref, x_ref, mb1_ref, CBP_OUT)
    a = jnp.dot(slab1_ref[...], wb1_ref[...], preferred_element_type=jnp.float32)
    acta_ref[PAD:PAD + HW, :] = jnp.maximum(a + bb1_ref[...], 0.0)

    # --- conv_r1..r3: relu(conv(relu(conv(a))) + a) ---
    for blk in range(3):
        # h = relu(conv(a))
        build_slab(slabm_ref, acta_ref, mmid_ref, MID)
        h = jnp.dot(slabm_ref[...], wr_ref[2 * blk], preferred_element_type=jnp.float32)
        acth_ref[PAD:PAD + HW, :] = jnp.maximum(h + br_ref[2 * blk], 0.0)

        # a = relu(conv(h) + a)   (residual re-loaded from VMEM, not carried in vregs)
        build_slab(slabm_ref, acth_ref, mmid_ref, MID)
        y = jnp.dot(slabm_ref[...], wr_ref[2 * blk + 1], preferred_element_type=jnp.float32)
        y = y + br_ref[2 * blk + 1] + acta_ref[PAD:PAD + HW, :]
        acta_ref[PAD:PAD + HW, :] = jnp.maximum(y, 0.0)

    # --- conv_b2: MID -> 1, ReLU --- (lane-sparse store is tiny; accepted)
    build_slab(slabm_ref, acta_ref, mmid_ref, MID)
    out = jnp.dot(slabm_ref[...], wb2_ref[...], preferred_element_type=jnp.float32)
    o_ref[...] = jnp.maximum(out + bb2_ref[...], 0.0)


# ---------------------------- wrapper ----------------------------
def netblock_forward(params, x_nchw):
    """netBlock forward: x_nchw (B, CBP_OUT, H, W) -> (B, 1, H, W)."""
    b, cin, h, w = x_nchw.shape
    assert (b, cin, h, w) == (B, CBP_OUT, H, W)

    # ---- one-time weight re-layout (XLA glue): (O, I, 3, 3) -> (9*I, O) ----
    def pack(w_oihw):
        o, i = w_oihw.shape[0], w_oihw.shape[1]
        return jnp.transpose(w_oihw, (2, 3, 1, 0)).reshape(9 * i, o)

    wb1 = pack(params['b1_w'])                                        # (9*CIN, MID)
    wr = jnp.stack([pack(params[f'r{k}_w{j}'])                        # (6, 9*MID, MID)
                    for k in (1, 2, 3) for j in (1, 2)])
    wb2 = pack(params['b2_w'])                                        # (9*MID, 1)
    bb1 = params['b1_b'].reshape(1, MID)
    br = jnp.stack([params[f'r{k}_b{j}'].reshape(1, MID)
                    for k in (1, 2, 3) for j in (1, 2)])              # (6, 1, MID)
    bb2 = params['b2_b'].reshape(1, 1)

    # ---- hoisted boundary masks: computed once here, reused by all 8 convs ----
    r = jnp.arange(HW)
    xq, yq = r % W, r // W
    rows = []
    for ky in range(3):
        for kx in range(3):
            oy, ox = ky - 1, kx - 1
            ok = (xq + ox >= 0) & (xq + ox < W) & (yq + oy >= 0) & (yq + oy < H)
            rows.append(ok.astype(jnp.float32))
    m = jnp.stack(rows)                                               # (9, HW)
    mb1 = jnp.broadcast_to(m[:, :, None], (9, HW, CBP_OUT))           # pre-broadcast
    mmid = jnp.broadcast_to(m[:, :, None], (9, HW, MID))

    # NCHW -> per-image row-flattened NHWC with zero guard rows.
    x_rows = jnp.transpose(x_nchw, (0, 2, 3, 1)).reshape(B, HW, CBP_OUT)
    x_rows = jnp.pad(x_rows, ((0, 0), (PAD, PAD), (0, 0)))            # (B, HW+2*PAD, CIN)

    out = pl.pallas_call(
        _netblock_kernel,
        out_shape=jax.ShapeDtypeStruct((B, HW, 1), jnp.float32),
        grid=(B,),
        in_specs=[
            pl.BlockSpec((None, HW + 2 * PAD, CBP_OUT), lambda i: (i, 0, 0)),
            pl.BlockSpec((9, HW, CBP_OUT), lambda i: (0, 0, 0)),
            pl.BlockSpec((9, HW, MID), lambda i: (0, 0, 0)),
            pl.BlockSpec((9 * CBP_OUT, MID), lambda i: (0, 0)),
            pl.BlockSpec((1, MID), lambda i: (0, 0)),
            pl.BlockSpec((6, 9 * MID, MID), lambda i: (0, 0, 0)),
            pl.BlockSpec((6, 1, MID), lambda i: (0, 0, 0)),
            pl.BlockSpec((9 * MID, 1), lambda i: (0, 0)),
            pl.BlockSpec((1, 1), lambda i: (0, 0)),
        ],
        out_specs=pl.BlockSpec((None, HW, 1), lambda i: (i, 0, 0)),
        scratch_shapes=[
            pltpu.VMEM((HW + 2 * PAD, MID), jnp.float32),   # acta (guarded)
            pltpu.VMEM((HW + 2 * PAD, MID), jnp.float32),   # acth (guarded)
            pltpu.VMEM((HW, 9 * CBP_OUT), jnp.float32),     # im2col slab, conv_b1
            pltpu.VMEM((HW, 9 * MID), jnp.float32),         # im2col slab, MID convs
        ],
        compiler_params=pltpu.CompilerParams(
            dimension_semantics=("parallel",)),             # 2nd TC on v7x gets image 1
    )(x_rows, mb1, mmid, wb1, bb1, wr, br, wb2, bb2)

    return out.reshape(B, H, W, 1).transpose(0, 3, 1, 2)              # NCHW like PyTorch


# ---------------------------- params & pure-JAX reference ----------------------------
def init_params(key):
    ks = jax.random.split(key, 16)

    def conv_w(k, cout, cin):
        fan_in = cin * 9
        return jax.random.normal(k, (cout, cin, 3, 3), jnp.float32) * (2.0 / fan_in) ** 0.5

    def conv_b(k, cout):
        return 0.1 * jax.random.normal(k, (cout,), jnp.float32)

    p = {'b1_w': conv_w(ks[0], MID, CBP_OUT), 'b1_b': conv_b(ks[1], MID)}
    idx = 2
    for k in (1, 2, 3):
        for j in (1, 2):
            p[f'r{k}_w{j}'] = conv_w(ks[idx], MID, MID)
            p[f'r{k}_b{j}'] = conv_b(ks[idx + 1], MID)
            idx += 2
    p['b2_w'] = conv_w(ks[idx], 1, MID)
    p['b2_b'] = conv_b(ks[idx + 1], 1)
    return p


def netblock_reference(params, x_nchw):
    def conv(x, wkey, bkey):
        y = jax.lax.conv_general_dilated(
            x, params[wkey], window_strides=(1, 1), padding=((1, 1), (1, 1)),
            dimension_numbers=('NCHW', 'OIHW', 'NCHW'),
            precision=jax.lax.Precision.HIGHEST)
        return y + params[bkey].reshape(1, -1, 1, 1)

    a = jax.nn.relu(conv(x_nchw, 'b1_w', 'b1_b'))
    for k in (1, 2, 3):
        h = jax.nn.relu(conv(a, f'r{k}_w1', f'r{k}_b1'))
        a = jax.nn.relu(conv(h, f'r{k}_w2', f'r{k}_b2') + a)
    return jax.nn.relu(conv(a, 'b2_w', 'b2_b'))


if __name__ == "__main__":
    key = jax.random.PRNGKey(0)
    kp, kx = jax.random.split(key)
    params = init_params(kp)
    x = jax.random.normal(kx, (B, CBP_OUT, H, W), jnp.float32)

    fwd = jax.jit(functools.partial(netblock_forward, params))
    out = fwd(x)
    jax.block_until_ready(out)
    assert out.shape == (B, 1, H, W) and out.dtype == jnp.float32

    ref = netblock_reference(params, x)
    err = float(jnp.max(jnp.abs(out - ref)))
    assert jnp.allclose(out, ref, atol=2e-3, rtol=2e-3), err
    print("KERNEL_OK")
</pallas_src>

<mosaic_0001>
module attributes {stable_mosaic.version = 11 : i64} {
  func.func @_netblock_kernel(%arg0: i32, %arg1: memref<1x96x64xf32, #tpu.memory_space<vmem>>, %arg2: memref<9x64x64xf32, #tpu.memory_space<vmem>>, %arg3: memref<9x64x32xf32, #tpu.memory_space<vmem>>, %arg4: memref<576x32xf32, #tpu.memory_space<vmem>>, %arg5: memref<1x32xf32, #tpu.memory_space<vmem>>, %arg6: memref<6x288x32xf32, #tpu.memory_space<vmem>>, %arg7: memref<6x1x32xf32, #tpu.memory_space<vmem>>, %arg8: memref<288x1xf32, #tpu.memory_space<vmem>>, %arg9: memref<1x1xf32, #tpu.memory_space<vmem>>, %arg10: memref<1x64x1xf32, #tpu.memory_space<vmem>>, %arg11: memref<96x32xf32, #tpu.memory_space<vmem>>, %arg12: memref<96x32xf32, #tpu.memory_space<vmem>>, %arg13: memref<64x576xf32, #tpu.memory_space<vmem>>, %arg14: memref<64x288xf32, #tpu.memory_space<vmem>>) attributes {dimension_semantics = [#tpu.dimension_semantics<parallel>], iteration_bounds = array<i64: 2>, scalar_prefetch = 0 : i64, scratch_operands = 4 : i64, tpu.core_type = #tpu.core_type<tc>, window_params = [{transform_indices = @transform_0, window_bounds = array<i64: 1, 96, 64>}, {pipeline_mode = #tpu.pipeline_mode<synchronous>, transform_indices = @transform_1, window_bounds = array<i64: 9, 64, 64>}, {pipeline_mode = #tpu.pipeline_mode<synchronous>, transform_indices = @transform_2, window_bounds = array<i64: 9, 64, 32>}, {pipeline_mode = #tpu.pipeline_mode<synchronous>, transform_indices = @transform_3, window_bounds = array<i64: 576, 32>}, {pipeline_mode = #tpu.pipeline_mode<synchronous>, transform_indices = @transform_4, window_bounds = array<i64: 1, 32>}, {pipeline_mode = #tpu.pipeline_mode<synchronous>, transform_indices = @transform_5, window_bounds = array<i64: 6, 288, 32>}, {pipeline_mode = #tpu.pipeline_mode<synchronous>, transform_indices = @transform_6, window_bounds = array<i64: 6, 1, 32>}, {pipeline_mode = #tpu.pipeline_mode<synchronous>, transform_indices = @transform_7, window_bounds = array<i64: 288, 1>}, {pipeline_mode = #tpu.pipeline_mode<synchronous>, transform_indices = @transform_8, window_bounds = array<i64: 1, 1>}, {transform_indices = @transform_9, window_bounds = array<i64: 1, 64, 1>}]} {
    %cst = arith.constant 0.000000e+00 : f32
    %0 = vector.broadcast %cst : f32 to vector<16x32xf32>
    %c0 = arith.constant 0 : index
    %c0_0 = arith.constant 0 : index
    %1 = vector.load %arg11[%c0, %c0_0] : memref<96x32xf32, #tpu.memory_space<vmem>>, vector<16x32xf32>
    tpu.vector_store %arg11[%c0, %c0_0], %0 {strides = array<i32>} : memref<96x32xf32, #tpu.memory_space<vmem>>, vector<16x32xf32>,
    %c80 = arith.constant 80 : index
    %c0_1 = arith.constant 0 : index
    %2 = vector.load %arg11[%c80, %c0_1] : memref<96x32xf32, #tpu.memory_space<vmem>>, vector<16x32xf32>
    tpu.vector_store %arg11[%c80, %c0_1], %0 {strides = array<i32>} : memref<96x32xf32, #tpu.memory_space<vmem>>, vector<16x32xf32>,
    %c0_2 = arith.constant 0 : index
    %c0_3 = arith.constant 0 : index
    %3 = vector.load %arg12[%c0_2, %c0_3] : memref<96x32xf32, #tpu.memory_space<vmem>>, vector<16x32xf32>
    tpu.vector_store %arg12[%c0_2, %c0_3], %0 {strides = array<i32>} : memref<96x32xf32, #tpu.memory_space<vmem>>, vector<16x32xf32>,
    %c80_4 = arith.constant 80 : index
    %c0_5 = arith.constant 0 : index
    %4 = vector.load %arg12[%c80_4, %c0_5] : memref<96x32xf32, #tpu.memory_space<vmem>>, vector<16x32xf32>
    tpu.vector_store %arg12[%c80_4, %c0_5], %0 {strides = array<i32>} : memref<96x32xf32, #tpu.memory_space<vmem>>, vector<16x32xf32>,
    %c0_6 = arith.constant 0 : index
    %c7 = arith.constant 7 : index
    %c0_7 = arith.constant 0 : index
    %5 = vector.load %arg1[%c0_6, %c7, %c0_7] : memref<1x96x64xf32, #tpu.memory_space<vmem>>, vector<1x64x64xf32>
    %6 = vector.shape_cast %5 : vector<1x64x64xf32> to vector<64x64xf32>
    %c0_8 = arith.constant 0 : index
    %c0_9 = arith.constant 0 : index
    %c0_10 = arith.constant 0 : index
    %7 = vector.load %arg2[%c0_8, %c0_9, %c0_10] : memref<9x64x64xf32, #tpu.memory_space<vmem>>, vector<1x64x64xf32>
    %8 = vector.shape_cast %7 : vector<1x64x64xf32> to vector<64x64xf32>
    %9 = arith.mulf %6, %8 : vector<64x64xf32>
    %c0_11 = arith.constant 0 : index
    %c0_12 = arith.constant 0 : index
    %10 = vector.load %arg13[%c0_11, %c0_12] : memref<64x576xf32, #tpu.memory_space<vmem>>, vector<64x64xf32>
    tpu.vector_store %arg13[%c0_11, %c0_12], %9 {strides = array<i32>} : memref<64x576xf32, #tpu.memory_space<vmem>>, vector<64x64xf32>,
    %c0_13 = arith.constant 0 : index
    %c8 = arith.constant 8 : index
    %c0_14 = arith.constant 0 : index
    %11 = vector.load %arg1[%c0_13, %c8, %c0_14] : memref<1x96x64xf32, #tpu.memory_space<vmem>>, vector<1x64x64xf32>
    %12 = vector.shape_cast %11 : vector<1x64x64xf32> to vector<64x64xf32>
    %c1 = arith.constant 1 : index
    %c0_15 = arith.constant 0 : index
    %c0_16 = arith.constant 0 : index
    %13 = vector.load %arg2[%c1, %c0_15, %c0_16] : memref<9x64x64xf32, #tpu.memory_space<vmem>>, vector<1x64x64xf32>
    %14 = vector.shape_cast %13 : vector<1x64x64xf32> to vector<64x64xf32>
    %15 = arith.mulf %12, %14 : vector<64x64xf32>
    %c0_17 = arith.constant 0 : index
    %c64 = arith.constant 64 : index
    %16 = vector.load %arg13[%c0_17, %c64] : memref<64x576xf32, #tpu.memory_space<vmem>>, vector<64x64xf32>
    tpu.vector_store %arg13[%c0_17, %c64], %15 {strides = array<i32>} : memref<64x576xf32, #tpu.memory_space<vmem>>, vector<64x64xf32>,
    %c0_18 = arith.constant 0 : index
    %c9 = arith.constant 9 : index
    %c0_19 = arith.constant 0 : index
    %17 = vector.load %arg1[%c0_18, %c9, %c0_19] : memref<1x96x64xf32, #tpu.memory_space<vmem>>, vector<1x64x64xf32>
    %18 = vector.shape_cast %17 : vector<1x64x64xf32> to vector<64x64xf32>
    %c2 = arith.constant 2 : index
    %c0_20 = arith.constant 0 : index
    %c0_21 = arith.constant 0 : index
    %19 = vector.load %arg2[%c2, %c0_20, %c0_21] : memref<9x64x64xf32, #tpu.memory_space<vmem>>, vector<1x64x64xf32>
    %20 = vector.shape_cast %19 : vector<1x64x64xf32> to vector<64x64xf32>
    %21 = arith.mulf %18, %20 : vector<64x64xf32>
    %c0_22 = arith.constant 0 : index
    %c128 = arith.constant 128 : index
    %22 = vector.load %arg13[%c0_22, %c128] : memref<64x576xf32, #tpu.memory_space<vmem>>, vector<64x64xf32>
    tpu.vector_store %arg13[%c0_22, %c128], %21 {strides = array<i32>} : memref<64x576xf32, #tpu.memory_space<vmem>>, vector<64x64xf32>,
    %c0_23 = arith.constant 0 : index
    %c15 = arith.constant 15 : index
    %c0_24 = arith.constant 0 : index
    %23 = vector.load %arg1[%c0_23, %c15, %c0_24] : memref<1x96x64xf32, #tpu.memory_space<vmem>>, vector<1x64x64xf32>
    %24 = vector.shape_cast %23 : vector<1x64x64xf32> to vector<64x64xf32>
    %c3 = arith.constant 3 : index
    %c0_25 = arith.constant 0 : index
    %c0_26 = arith.constant 0 : index
    %25 = vector.load %arg2[%c3, %c0_25, %c0_26] : memref<9x64x64xf32, #tpu.memory_space<vmem>>, vector<1x64x64xf32>
    %26 = vector.shape_cast %25 : vector<1x64x64xf32> to vector<64x64xf32>
    %27 = arith.mulf %24, %26 : vector<64x64xf32>
    %c0_27 = arith.constant 0 : index
    %c192 = arith.constant 192 : index
    %28 = vector.load %arg13[%c0_27, %c192] : memref<64x576xf32, #tpu.memory_space<vmem>>, vector<64x64xf32>
    tpu.vector_store %arg13[%c0_27, %c192], %27 {strides = array<i32>} : memref<64x576xf32, #tpu.memory_space<vmem>>, vector<64x64xf32>,
    %c0_28 = arith.constant 0 : index
    %c16 = arith.constant 16 : index
    %c0_29 = arith.constant 0 : index
    %29 = vector.load %arg1[%c0_28, %c16, %c0_29] : memref<1x96x64xf32, #tpu.memory_space<vmem>>, vector<1x64x64xf32>
    %30 = vector.shape_cast %29 : vector<1x64x64xf32> to vector<64x64xf32>
    %c0_30 = arith.constant 0 : index
    %c256 = arith.constant 256 : index
    %31 = vector.load %arg13[%c0_30, %c256] : memref<64x576xf32, #tpu.memory_space<vmem>>, vector<64x64xf32>
    tpu.vector_store %arg13[%c0_30, %c256], %30 {strides = array<i32>} : memref<64x576xf32, #tpu.memory_space<vmem>>, vector<64x64xf32>,
    %c0_31 = arith.constant 0 : index
    %c17 = arith.constant 17 : index
    %c0_32 = arith.constant 0 : index
    %32 = vector.load %arg1[%c0_31, %c17, %c0_32] : memref<1x96x64xf32, #tpu.memory_space<vmem>>, vector<1x64x64xf32>
    %33 = vector.shape_cast %32 : vector<1x64x64xf32> to vector<64x64xf32>
    %c5 = arith.constant 5 : index
    %c0_33 = arith.constant 0 : index
    %c0_34 = arith.constant 0 : index
    %34 = vector.load %arg2[%c5, %c0_33, %c0_34] : memref<9x64x64xf32, #tpu.memory_space<vmem>>, vector<1x64x64xf32>
    %35 = vector.shape_cast %34 : vector<1x64x64xf32> to vector<64x64xf32>
    %36 = arith.mulf %33, %35 : vector<64x64xf32>
    %c0_35 = arith.constant 0 : index
    %c320 = arith.constant 320 : index
    %37 = vector.load %arg13[%c0_35, %c320] : memref<64x576xf32, #tpu.memory_space<vmem>>, vector<64x64xf32>
    tpu.vector_store %arg13[%c0_35, %c320], %36 {strides = array<i32>} : memref<64x576xf32, #tpu.memory_space<vmem>>, vector<64x64xf32>,
    %c0_36 = arith.constant 0 : index
    %c23 = arith.constant 23 : index
    %c0_37 = arith.constant 0 : index
    %38 = vector.load %arg1[%c0_36, %c23, %c0_37] : memref<1x96x64xf32, #tpu.memory_space<vmem>>, vector<1x64x64xf32>
    %39 = vector.shape_cast %38 : vector<1x64x64xf32> to vector<64x64xf32>
    %c6 = arith.constant 6 : index
    %c0_38 = arith.constant 0 : index
    %c0_39 = arith.constant 0 : index
    %40 = vector.load %arg2[%c6, %c0_38, %c0_39] : memref<9x64x64xf32, #tpu.memory_space<vmem>>, vector<1x64x64xf32>
    %41 = vector.shape_cast %40 : vector<1x64x64xf32> to vector<64x64xf32>
    %42 = arith.mulf %39, %41 : vector<64x64xf32>
    %c0_40 = arith.constant 0 : index
    %c384 = arith.constant 384 : index
    %43 = vector.load %arg13[%c0_40, %c384] : memref<64x576xf32, #tpu.memory_space<vmem>>, vector<64x64xf32>
    tpu.vector_store %arg13[%c0_40, %c384], %42 {strides = array<i32>} : memref<64x576xf32, #tpu.memory_space<vmem>>, vector<64x64xf32>,
    %c0_41 = arith.constant 0 : index
    %c24 = arith.constant 24 : index
    %c0_42 = arith.constant 0 : index
    %44 = vector.load %arg1[%c0_41, %c24, %c0_42] : memref<1x96x64xf32, #tpu.memory_space<vmem>>, vector<1x64x64xf32>
    %45 = vector.shape_cast %44 : vector<1x64x64xf32> to vector<64x64xf32>
    %c7_43 = arith.constant 7 : index
    %c0_44 = arith.constant 0 : index
    %c0_45 = arith.constant 0 : index
    %46 = vector.load %arg2[%c7_43, %c0_44, %c0_45] : memref<9x64x64xf32, #tpu.memory_space<vmem>>, vector<1x64x64xf32>
    %47 = vector.shape_cast %46 : vector<1x64x64xf32> to vector<64x64xf32>
    %48 = arith.mulf %45, %47 : vector<64x64xf32>
    %c0_46 = arith.constant 0 : index
    %c448 = arith.constant 448 : index
    %49 = vector.load %arg13[%c0_46, %c448] : memref<64x576xf32, #tpu.memory_space<vmem>>, vector<64x64xf32>
    tpu.vector_store %arg13[%c0_46, %c448], %48 {strides = array<i32>} : memref<64x576xf32, #tpu.memory_space<vmem>>, vector<64x64xf32>,
    %c0_47 = arith.constant 0 : index
    %c25 = arith.constant 25 : index
    %c0_48 = arith.constant 0 : index
    %50 = vector.load %arg1[%c0_47, %c25, %c0_48] : memref<1x96x64xf32, #tpu.memory_space<vmem>>, vector<1x64x64xf32>
    %51 = vector.shape_cast %50 : vector<1x64x64xf32> to vector<64x64xf32>
    %c8_49 = arith.constant 8 : index
    %c0_50 = arith.constant 0 : index
    %c0_51 = arith.constant 0 : index
    %52 = vector.load %arg2[%c8_49, %c0_50, %c0_51] : memref<9x64x64xf32, #tpu.memory_space<vmem>>, vector<1x64x64xf32>
    %53 = vector.shape_cast %52 : vector<1x64x64xf32> to vector<64x64xf32>
    %54 = arith.mulf %51, %53 : vector<64x64xf32>
    %c0_52 = arith.constant 0 : index
    %c512 = arith.constant 512 : index
    %55 = vector.load %arg13[%c0_52, %c512] : memref<64x576xf32, #tpu.memory_space<vmem>>, vector<64x64xf32>
    tpu.vector_store %arg13[%c0_52, %c512], %54 {strides = array<i32>} : memref<64x576xf32, #tpu.memory_space<vmem>>, vector<64x64xf32>,
    %c0_53 = arith.constant 0 : index
    %c0_54 = arith.constant 0 : index
    %56 = vector.load %arg13[%c0_53, %c0_54] : memref<64x576xf32, #tpu.memory_space<vmem>>, vector<64x576xf32>
    %c0_55 = arith.constant 0 : index
    %c0_56 = arith.constant 0 : index
    %57 = vector.load %arg4[%c0_55, %c0_56] : memref<576x32xf32, #tpu.memory_space<vmem>>, vector<576x32xf32>
    %cst_57 = arith.constant dense<0.000000e+00> : vector<64x32xf32>
    %58 = tpu.matmul %56, %57, %cst_57 {dimension_numbers = #tpu.dot_dimension_numbers<[1], [0], [0], [1], [0, 0, 1, 1], [], []>} : vector<64x576xf32>, vector<576x32xf32>, vector<64x32xf32> -> vector<64x32xf32>
    %c0_58 = arith.constant 0 : index
    %c0_59 = arith.constant 0 : index
    %59 = vector.load %arg5[%c0_58, %c0_59] : memref<1x32xf32, #tpu.memory_space<vmem>>, vector<1x32xf32>
    %60 = vector.broadcast %59 : vector<1x32xf32> to vector<64x32xf32>
    %61 = arith.addf %58, %60 : vector<64x32xf32>
    %cst_60 = arith.constant 0.000000e+00 : f32
    %62 = vector.broadcast %cst_60 : f32 to vector<64x32xf32>
    %63 = arith.maximumf %61, %62 : vector<64x32xf32>
    %c16_61 = arith.constant 16 : index
    %c0_62 = arith.constant 0 : index
    %64 = vector.load %arg11[%c16_61, %c0_62] : memref<96x32xf32, #tpu.memory_space<vmem>>, vector<64x32xf32>
    tpu.vector_store %arg11[%c16_61, %c0_62], %63 {strides = array<i32>} : memref<96x32xf32, #tpu.memory_space<vmem>>, vector<64x32xf32>,
    %c7_63 = arith.constant 7 : index
    %c0_64 = arith.constant 0 : index
    %65 = vector.load %arg11[%c7_63, %c0_64] : memref<96x32xf32, #tpu.memory_space<vmem>>, vector<64x32xf32>
    %c0_65 = arith.constant 0 : index
    %c0_66 = arith.constant 0 : index
    %c0_67 = arith.constant 0 : index
    %66 = vector.load %arg3[%c0_65, %c0_66, %c0_67] : memref<9x64x32xf32, #tpu.memory_space<vmem>>, vector<1x64x32xf32>
    %67 = vector.shape_cast %66 : vector<1x64x32xf32> to vector<64x32xf32>
    %68 = arith.mulf %65, %67 : vector<64x32xf32>
    %c0_68 = arith.constant 0 : index
    %c0_69 = arith.constant 0 : index
    %69 = vector.load %arg14[%c0_68, %c0_69] : memref<64x288xf32, #tpu.memory_space<vmem>>, vector<64x32xf32>
    tpu.vector_store %arg14[%c0_68, %c0_69], %68 {strides = array<i32>} : memref<64x288xf32, #tpu.memory_space<vmem>>, vector<64x32xf32>,
    %c8_70 = arith.constant 8 : index
    %c0_71 = arith.constant 0 : index
    %70 = vector.load %arg11[%c8_70, %c0_71] : memref<96x32xf32, #tpu.memory_space<vmem>>, vector<64x32xf32>
    %c1_72 = arith.constant 1 : index
    %c0_73 = arith.constant 0 : index
    %c0_74 = arith.constant 0 : index
    %71 = vector.load %arg3[%c1_72, %c0_73, %c0_74] : memref<9x64x32xf32, #tpu.memory_space<vmem>>, vector<1x64x32xf32>
    %72 = vector.shape_cast %71 : vector<1x64x32xf32> to vector<64x32xf32>
    %73 = arith.mulf %70, %72 : vector<64x32xf32>
    %c0_75 = arith.constant 0 : index
    %c32 = arith.constant 32 : index
    %74 = vector.load %arg14[%c0_75, %c32] : memref<64x288xf32, #tpu.memory_space<vmem>>, vector<64x32xf32>
    tpu.vector_store %arg14[%c0_75, %c32], %73 {strides = array<i32>} : memref<64x288xf32, #tpu.memory_space<vmem>>, vector<64x32xf32>,
    %c9_76 = arith.constant 9 : index
    %c0_77 = arith.constant 0 : index
    %75 = vector.load %arg11[%c9_76, %c0_77] : memref<96x32xf32, #tpu.memory_space<vmem>>, vector<64x32xf32>
    %c2_78 = arith.constant 2 : index
    %c0_79 = arith.constant 0 : index
    %c0_80 = arith.constant 0 : index
    %76 = vector.load %arg3[%c2_78, %c0_79, %c0_80] : memref<9x64x32xf32, #tpu.memory_space<vmem>>, vector<1x64x32xf32>
    %77 = vector.shape_cast %76 : vector<1x64x32xf32> to vector<64x32xf32>
    %78 = arith.mulf %75, %77 : vector<64x32xf32>
    %c0_81 = arith.constant 0 : index
    %c64_82 = arith.constant 64 : index
    %79 = vector.load %arg14[%c0_81, %c64_82] : memref<64x288xf32, #tpu.memory_space<vmem>>, vector<64x32xf32>
    tpu.vector_store %arg14[%c0_81, %c64_82], %78 {strides = array<i32>} : memref<64x288xf32, #tpu.memory_space<vmem>>, vector<64x32xf32>,
    %c15_83 = arith.constant 15 : index
    %c0_84 = arith.constant 0 : index
    %80 = vector.load %arg11[%c15_83, %c0_84] : memref<96x32xf32, #tpu.memory_space<vmem>>, vector<64x32xf32>
    %c3_85 = arith.constant 3 : index
    %c0_86 = arith.constant 0 : index
    %c0_87 = arith.constant 0 : index
    %81 = vector.load %arg3[%c3_85, %c0_86, %c0_87] : memref<9x64x32xf32, #tpu.memory_space<vmem>>, vector<1x64x32xf32>
    %82 = vector.shape_cast %81 : vector<1x64x32xf32> to vector<64x32xf32>
    %83 = arith.mulf %80, %82 : vector<64x32xf32>
    %c0_88 = arith.constant 0 : index
    %c96 = arith.constant 96 : index
    %84 = vector.load %arg14[%c0_88, %c96] : memref<64x288xf32, #tpu.memory_space<vmem>>, vector<64x32xf32>
    tpu.vector_store %arg14[%c0_88, %c96], %83 {strides = array<i32>} : memref<64x288xf32, #tpu.memory_space<vmem>>, vector<64x32xf32>,
    %c16_89 = arith.constant 16 : index
    %c0_90 = arith.constant 0 : index
    %85 = vector.load %arg11[%c16_89, %c0_90] : memref<96x32xf32, #tpu.memory_space<vmem>>, vector<64x32xf32>
    %c0_91 = arith.constant 0 : index
    %c128_92 = arith.constant 128 : index
    %86 = vector.load %arg14[%c0_91, %c128_92] : memref<64x288xf32, #tpu.memory_space<vmem>>, vector<64x32xf32>
    tpu.vector_store %arg14[%c0_91, %c128_92], %85 {strides = array<i32>} : memref<64x288xf32, #tpu.memory_space<vmem>>, vector<64x32xf32>,
    %c17_93 = arith.constant 17 : index
    %c0_94 = arith.constant 0 : index
    %87 = vector.load %arg11[%c17_93, %c0_94] : memref<96x32xf32, #tpu.memory_space<vmem>>, vector<64x32xf32>
    %c5_95 = arith.constant 5 : index
    %c0_96 = arith.constant 0 : index
    %c0_97 = arith.constant 0 : index
    %88 = vector.load %arg3[%c5_95, %c0_96, %c0_97] : memref<9x64x32xf32, #tpu.memory_space<vmem>>, vector<1x64x32xf32>
    %89 = vector.shape_cast %88 : vector<1x64x32xf32> to vector<64x32xf32>
    %90 = arith.mulf %87, %89 : vector<64x32xf32>
    %c0_98 = arith.constant 0 : index
    %c160 = arith.constant 160 : index
    %91 = vector.load %arg14[%c0_98, %c160] : memref<64x288xf32, #tpu.memory_space<vmem>>, vector<64x32xf32>
    tpu.vector_store %arg14[%c0_98, %c160], %90 {strides = array<i32>} : memref<64x288xf32, #tpu.memory_space<vmem>>, vector<64x32xf32>,
    %c23_99 = arith.constant 23 : index
    %c0_100 = arith.constant 0 : index
    %92 = vector.load %arg11[%c23_99, %c0_100] : memref<96x32xf32, #tpu.memory_space<vmem>>, vector<64x32xf32>
    %c6_101 = arith.constant 6 : index
    %c0_102 = arith.constant 0 : index
    %c0_103 = arith.constant 0 : index
    %93 = vector.load %arg3[%c6_101, %c0_102, %c0_103] : memref<9x64x32xf32, #tpu.memory_space<vmem>>, vector<1x64x32xf32>
    %94 = vector.shape_cast %93 : vector<1x64x32xf32> to vector<64x32xf32>
    %95 = arith.mulf %92, %94 : vector<64x32xf32>
    %c0_104 = arith.constant 0 : index
    %c192_105 = arith.constant 192 : index
    %96 = vector.load %arg14[%c0_104, %c192_105] : memref<64x288xf32, #tpu.memory_space<vmem>>, vector<64x32xf32>
    tpu.vector_store %arg14[%c0_104, %c192_105], %95 {strides = array<i32>} : memref<64x288xf32, #tpu.memory_space<vmem>>, vector<64x32xf32>,
    %c24_106 = arith.constant 24 : index
    %c0_107 = arith.constant 0 : index
    %97 = vector.load %arg11[%c24_106, %c0_107] : memref<96x32xf32, #tpu.memory_space<vmem>>, vector<64x32xf32>
    %c7_108 = arith.constant 7 : index
    %c0_109 = arith.constant 0 : index
    %c0_110 = arith.constant 0 : index
    %98 = vector.load %arg3[%c7_108, %c0_109, %c0_110] : memref<9x64x32xf32, #tpu.memory_space<vmem>>, vector<1x64x32xf32>
    %99 = vector.shape_cast %98 : vector<1x64x32xf32> to vector<64x32xf32>
    %100 = arith.mulf %97, %99 : vector<64x32xf32>
    %c0_111 = arith.constant 0 : index
    %c224 = arith.constant 224 : index
    %101 = vector.load %arg14[%c0_111, %c224] : memref<64x288xf32, #tpu.memory_space<vmem>>, vector<64x32xf32>
    tpu.vector_store %arg14[%c0_111, %c224], %100 {strides = array<i32>} : memref<64x288xf32, #tpu.memory_space<vmem>>, vector<64x32xf32>,
    %c25_112 = arith.constant 25 : index
    %c0_113 = arith.constant 0 : index
    %102 = vector.load %arg11[%c25_112, %c0_113] : memref<96x32xf32, #tpu.memory_space<vmem>>, vector<64x32xf32>
    %c8_114 = arith.constant 8 : index
    %c0_115 = arith.constant 0 : index
    %c0_116 = arith.constant 0 : index
    %103 = vector.load %arg3[%c8_114, %c0_115, %c0_116] : memref<9x64x32xf32, #tpu.memory_space<vmem>>, vector<1x64x32xf32>
    %104 = vector.shape_cast %103 : vector<1x64x32xf32> to vector<64x32xf32>
    %105 = arith.mulf %102, %104 : vector<64x32xf32>
    %c0_117 = arith.constant 0 : index
    %c256_118 = arith.constant 256 : index
    %106 = vector.load %arg14[%c0_117, %c256_118] : memref<64x288xf32, #tpu.memory_space<vmem>>, vector<64x32xf32>
    tpu.vector_store %arg14[%c0_117, %c256_118], %105 {strides = array<i32>} : memref<64x288xf32, #tpu.memory_space<vmem>>, vector<64x32xf32>,
    %c0_119 = arith.constant 0 : index
    %c0_120 = arith.constant 0 : index
    %107 = vector.load %arg14[%c0_119, %c0_120] : memref<64x288xf32, #tpu.memory_space<vmem>>, vector<64x288xf32>
    %c0_121 = arith.constant 0 : index
    %c0_122 = arith.constant 0 : index
    %c0_123 = arith.constant 0 : index
    %108 = vector.load %arg6[%c0_121, %c0_122, %c0_123] : memref<6x288x32xf32, #tpu.memory_space<vmem>>, vector<1x288x32xf32>
    %109 = vector.shape_cast %108 : vector<1x288x32xf32> to vector<288x32xf32>
    %cst_124 = arith.constant dense<0.000000e+00> : vector<64x32xf32>
    %110 = tpu.matmul %107, %109, %cst_124 {dimension_numbers = #tpu.dot_dimension_numbers<[1], [0], [0], [1], [0, 0, 1, 1], [], []>} : vector<64x288xf32>, vector<288x32xf32>, vector<64x32xf32> -> vector<64x32xf32>
    %c0_125 = arith.constant 0 : index
    %c0_126 = arith.constant 0 : index
    %c0_127 = arith.constant 0 : index
    %111 = vector.load %arg7[%c0_125, %c0_126, %c0_127] : memref<6x1x32xf32, #tpu.memory_space<vmem>>, vector<1x1x32xf32>
    %112 = vector.shape_cast %111 : vector<1x1x32xf32> to vector<1x32xf32>
    %113 = vector.broadcast %112 : vector<1x32xf32> to vector<64x32xf32>
    %114 = arith.addf %110, %113 : vector<64x32xf32>
    %cst_128 = arith.constant 0.000000e+00 : f32
    %115 = vector.broadcast %cst_128 : f32 to vector<64x32xf32>
    %116 = arith.maximumf %114, %115 : vector<64x32xf32>
    %c16_129 = arith.constant 16 : index
    %c0_130 = arith.constant 0 : index
    %117 = vector.load %arg12[%c16_129, %c0_130] : memref<96x32xf32, #tpu.memory_space<vmem>>, vector<64x32xf32>
    tpu.vector_store %arg12[%c16_129, %c0_130], %116 {strides = array<i32>} : memref<96x32xf32, #tpu.memory_space<vmem>>, vector<64x32xf32>,
    %c7_131 = arith.constant 7 : index
    %c0_132 = arith.constant 0 : index
    %118 = vector.load %arg12[%c7_131, %c0_132] : memref<96x32xf32, #tpu.memory_space<vmem>>, vector<64x32xf32>
    %c0_133 = arith.constant 0 : index
    %c0_134 = arith.constant 0 : index
    %c0_135 = arith.constant 0 : index
    %119 = vector.load %arg3[%c0_133, %c0_134, %c0_135] : memref<9x64x32xf32, #tpu.memory_space<vmem>>, vector<1x64x32xf32>
    %120 = vector.shape_cast %119 : vector<1x64x32xf32> to vector<64x32xf32>
    %121 = arith.mulf %118, %120 : vector<64x32xf32>
    %c0_136 = arith.constant 0 : index
    %c0_137 = arith.constant 0 : index
    %122 = vector.load %arg14[%c0_136, %c0_137] : memref<64x288xf32, #tpu.memory_space<vmem>>, vector<64x32xf32>
    tpu.vector_store %arg14[%c0_136, %c0_137], %121 {strides = array<i32>} : memref<64x288xf32, #tpu.memory_space<vmem>>, vector<64x32xf32>,
    %c8_138 = arith.constant 8 : index
    %c0_139 = arith.constant 0 : index
    %123 = vector.load %arg12[%c8_138, %c0_139] : memref<96x32xf32, #tpu.memory_space<vmem>>, vector<64x32xf32>
    %c1_140 = arith.constant 1 : index
    %c0_141 = arith.constant 0 : index
    %c0_142 = arith.constant 0 : index
    %124 = vector.load %arg3[%c1_140, %c0_141, %c0_142] : memref<9x64x32xf32, #tpu.memory_space<vmem>>, vector<1x64x32xf32>
    %125 = vector.shape_cast %124 : vector<1x64x32xf32> to vector<64x32xf32>
    %126 = arith.mulf %123, %125 : vector<64x32xf32>
    %c0_143 = arith.constant 0 : index
    %c32_144 = arith.constant 32 : index
    %127 = vector.load %arg14[%c0_143, %c32_144] : memref<64x288xf32, #tpu.memory_space<vmem>>, vector<64x32xf32>
    tpu.vector_store %arg14[%c0_143, %c32_144], %126 {strides = array<i32>} : memref<64x288xf32, #tpu.memory_space<vmem>>, vector<64x32xf32>,
    %c9_145 = arith.constant 9 : index
    %c0_146 = arith.constant 0 : index
    %128 = vector.load %arg12[%c9_145, %c0_146] : memref<96x32xf32, #tpu.memory_space<vmem>>, vector<64x32xf32>
    %c2_147 = arith.constant 2 : index
    %c0_148 = arith.constant 0 : index
    %c0_149 = arith.constant 0 : index
    %129 = vector.load %arg3[%c2_147, %c0_148, %c0_149] : memref<9x64x32xf32, #tpu.memory_space<vmem>>, vector<1x64x32xf32>
    %130 = vector.shape_cast %129 : vector<1x64x32xf32> to vector<64x32xf32>
    %131 = arith.mulf %128, %130 : vector<64x32xf32>
    %c0_150 = arith.constant 0 : index
    %c64_151 = arith.constant 64 : index
    %132 = vector.load %arg14[%c0_150, %c64_151] : memref<64x288xf32, #tpu.memory_space<vmem>>, vector<64x32xf32>
    tpu.vector_store %arg14[%c0_150, %c64_151], %131 {strides = array<i32>} : memref<64x288xf32, #tpu.memory_space<vmem>>, vector<64x32xf32>,
    %c15_152 = arith.constant 15 : index
    %c0_153 = arith.constant 0 : index
    %133 = vector.load %arg12[%c15_152, %c0_153] : memref<96x32xf32, #tpu.memory_space<vmem>>, vector<64x32xf32>
    %c3_154 = arith.constant 3 : index
    %c0_155 = arith.constant 0 : index
    %c0_156 = arith.constant 0 : index
    %134 = vector.load %arg3[%c3_154, %c0_155, %c0_156] : memref<9x64x32xf32, #tpu.memory_space<vmem>>, vector<1x64x32xf32>
    %135 = vector.shape_cast %134 : vector<1x64x32xf32> to vector<64x32xf32>
    %136 = arith.mulf %133, %135 : vector<64x32xf32>
    %c0_157 = arith.constant 0 : index
    %c96_158 = arith.constant 96 : index
    %137 = vector.load %arg14[%c0_157, %c96_158] : memref<64x288xf32, #tpu.memory_space<vmem>>, vector<64x32xf32>
    tpu.vector_store %arg14[%c0_157, %c96_158], %136 {strides = array<i32>} : memref<64x288xf32, #tpu.memory_space<vmem>>, vector<64x32xf32>,
    %c16_159 = arith.constant 16 : index
    %c0_160 = arith.constant 0 : index
    %138 = vector.load %arg12[%c16_159, %c0_160] : memref<96x32xf32, #tpu.memory_space<vmem>>, vector<64x32xf32>
    %c0_161 = arith.constant 0 : index
    %c128_162 = arith.constant 128 : index
    %139 = vector.load %arg14[%c0_161, %c128_162] : memref<64x288xf32, #tpu.memory_space<vmem>>, vector<64x32xf32>
    tpu.vector_store %arg14[%c0_161, %c128_162], %138 {strides = array<i32>} : memref<64x288xf32, #tpu.memory_space<vmem>>, vector<64x32xf32>,
    %c17_163 = arith.constant 17 : index
    %c0_164 = arith.constant 0 : index
    %140 = vector.load %arg12[%c17_163, %c0_164] : memref<96x32xf32, #tpu.memory_space<vmem>>, vector<64x32xf32>
    %c5_165 = arith.constant 5 : index
    %c0_166 = arith.constant 0 : index
    %c0_167 = arith.constant 0 : index
    %141 = vector.load %arg3[%c5_165, %c0_166, %c0_167] : memref<9x64x32xf32, #tpu.memory_space<vmem>>, vector<1x64x32xf32>
    %142 = vector.shape_cast %141 : vector<1x64x32xf32> to vector<64x32xf32>
    %143 = arith.mulf %140, %142 : vector<64x32xf32>
    %c0_168 = arith.constant 0 : index
    %c160_169 = arith.constant 160 : index
    %144 = vector.load %arg14[%c0_168, %c160_169] : memref<64x288xf32, #tpu.memory_space<vmem>>, vector<64x32xf32>
    tpu.vector_store %arg14[%c0_168, %c160_169], %143 {strides = array<i32>} : memref<64x288xf32, #tpu.memory_space<vmem>>, vector<64x32xf32>,
    %c23_170 = arith.constant 23 : index
    %c0_171 = arith.constant 0 : index
    %145 = vector.load %arg12[%c23_170, %c0_171] : memref<96x32xf32, #tpu.memory_space<vmem>>, vector<64x32xf32>
    %c6_172 = arith.constant 6 : index
    %c0_173 = arith.constant 0 : index
    %c0_174 = arith.constant 0 : index
    %146 = vector.load %arg3[%c6_172, %c0_173, %c0_174] : memref<9x64x32xf32, #tpu.memory_space<vmem>>, vector<1x64x32xf32>
    %147 = vector.shape_cast %146 : vector<1x64x32xf32> to vector<64x32xf32>
    %148 = arith.mulf %145, %147 : vector<64x32xf32>
    %c0_175 = arith.constant 0 : index
    %c192_176 = arith.constant 192 : index
    %149 = vector.load %arg14[%c0_175, %c192_176] : memref<64x288xf32, #tpu.memory_space<vmem>>, vector<64x32xf32>
    tpu.vector_store %arg14[%c0_175, %c192_176], %148 {strides = array<i32>} : memref<64x288xf32, #tpu.memory_space<vmem>>, vector<64x32xf32>,
    %c24_177 = arith.constant 24 : index
    %c0_178 = arith.constant 0 : index
    %150 = vector.load %arg12[%c24_177, %c0_178] : memref<96x32xf32, #tpu.memory_space<vmem>>, vector<64x32xf32>
    %c7_179 = arith.constant 7 : index
    %c0_180 = arith.constant 0 : index
    %c0_181 = arith.constant 0 : index
    %151 = vector.load %arg3[%c7_179, %c0_180, %c0_181] : memref<9x64x32xf32, #tpu.memory_space<vmem>>, vector<1x64x32xf32>
    %152 = vector.shape_cast %151 : vector<1x64x32xf32> to vector<64x32xf32>
    %153 = arith.mulf %150, %152 : vector<64x32xf32>
    %c0_182 = arith.constant 0 : index
    %c224_183 = arith.constant 224 : index
    %154 = vector.load %arg14[%c0_182, %c224_183] : memref<64x288xf32, #tpu.memory_space<vmem>>, vector<64x32xf32>
    tpu.vector_store %arg14[%c0_182, %c224_183], %153 {strides = array<i32>} : memref<64x288xf32, #tpu.memory_space<vmem>>, vector<64x32xf32>,
    %c25_184 = arith.constant 25 : index
    %c0_185 = arith.constant 0 : index
    %155 = vector.load %arg12[%c25_184, %c0_185] : memref<96x32xf32, #tpu.memory_space<vmem>>, vector<64x32xf32>
    %c8_186 = arith.constant 8 : index
    %c0_187 = arith.constant 0 : index
    %c0_188 = arith.constant 0 : index
    %156 = vector.load %arg3[%c8_186, %c0_187, %c0_188] : memref<9x64x32xf32, #tpu.memory_space<vmem>>, vector<1x64x32xf32>
    %157 = vector.shape_cast %156 : vector<1x64x32xf32> to vector<64x32xf32>
    %158 = arith.mulf %155, %157 : vector<64x32xf32>
    %c0_189 = arith.constant 0 : index
    %c256_190 = arith.constant 256 : index
    %159 = vector.load %arg14[%c0_189, %c256_190] : memref<64x288xf32, #tpu.memory_space<vmem>>, vector<64x32xf32>
    tpu.vector_store %arg14[%c0_189, %c256_190], %158 {strides = array<i32>} : memref<64x288xf32, #tpu.memory_space<vmem>>, vector<64x32xf32>,
    %c0_191 = arith.constant 0 : index
    %c0_192 = arith.constant 0 : index
    %160 = vector.load %arg14[%c0_191, %c0_192] : memref<64x288xf32, #tpu.memory_space<vmem>>, vector<64x288xf32>
    %c1_193 = arith.constant 1 : index
    %c0_194 = arith.constant 0 : index
    %c0_195 = arith.constant 0 : index
    %161 = vector.load %arg6[%c1_193, %c0_194, %c0_195] : memref<6x288x32xf32, #tpu.memory_space<vmem>>, vector<1x288x32xf32>
    %162 = vector.shape_cast %161 : vector<1x288x32xf32> to vector<288x32xf32>
    %cst_196 = arith.constant dense<0.000000e+00> : vector<64x32xf32>
    %163 = tpu.matmul %160, %162, %cst_196 {dimension_numbers = #tpu.dot_dimension_numbers<[1], [0], [0], [1], [0, 0, 1, 1], [], []>} : vector<64x288xf32>, vector<288x32xf32>, vector<64x32xf32> -> vector<64x32xf32>
    %c1_197 = arith.constant 1 : index
    %c0_198 = arith.constant 0 : index
    %c0_199 = arith.constant 0 : index
    %164 = vector.load %arg7[%c1_197, %c0_198, %c0_199] : memref<6x1x32xf32, #tpu.memory_space<vmem>>, vector<1x1x32xf32>
    %165 = vector.shape_cast %164 : vector<1x1x32xf32> to vector<1x32xf32>
    %166 = vector.broadcast %165 : vector<1x32xf32> to vector<64x32xf32>
    %167 = arith.addf %163, %166 : vector<64x32xf32>
    %c16_200 = arith.constant 16 : index
    %c0_201 = arith.constant 0 : index
    %168 = vector.load %arg11[%c16_200, %c0_201] : memref<96x32xf32, #tpu.memory_space<vmem>>, vector<64x32xf32>
    %169 = arith.addf %167, %168 : vector<64x32xf32>
    %cst_202 = arith.constant 0.000000e+00 : f32
    %170 = vector.broadcast %cst_202 : f32 to vector<64x32xf32>
    %171 = arith.maximumf %169, %170 : vector<64x32xf32>
    %c16_203 = arith.constant 16 : index
    %c0_204 = arith.constant 0 : index
    %172 = vector.load %arg11[%c16_203, %c0_204] : memref<96x32xf32, #tpu.memory_space<vmem>>, vector<64x32xf32>
    tpu.vector_store %arg11[%c16_203, %c0_204], %171 {strides = array<i32>} : memref<96x32xf32, #tpu.memory_space<vmem>>, vector<64x32xf32>,
    %c7_205 = arith.constant 7 : index
    %c0_206 = arith.constant 0 : index
    %173 = vector.load %arg11[%c7_205, %c0_206] : memref<96x32xf32, #tpu.memory_space<vmem>>, vector<64x32xf32>
    %c0_207 = arith.constant 0 : index
    %c0_208 = arith.constant 0 : index
    %c0_209 = arith.constant 0 : index
    %174 = vector.load %arg3[%c0_207, %c0_208, %c0_209] : memref<9x64x32xf32, #tpu.memory_space<vmem>>, vector<1x64x32xf32>
    %175 = vector.shape_cast %174 : vector<1x64x32xf32> to vector<64x32xf32>
    %176 = arith.mulf %173, %175 : vector<64x32xf32>
    %c0_210 = arith.constant 0 : index
    %c0_211 = arith.constant 0 : index
    %177 = vector.load %arg14[%c0_210, %c0_211] : memref<64x288xf32, #tpu.memory_space<vmem>>, vector<64x32xf32>
    tpu.vector_store %arg14[%c0_210, %c0_211], %176 {strides = array<i32>} : memref<64x288xf32, #tpu.memory_space<vmem>>, vector<64x32xf32>,
    %c8_212 = arith.constant 8 : index
    %c0_213 = arith.constant 0 : index
    %178 = vector.load %arg11[%c8_212, %c0_213] : memref<96x32xf32, #tpu.memory_space<vmem>>, vector<64x32xf32>
    %c1_214 = arith.constant 1 : index
    %c0_215 = arith.constant 0 : index
    %c0_216 = arith.constant 0 : index
    %179 = vector.load %arg3[%c1_214, %c0_215, %c0_216] : memref<9x64x32xf32, #tpu.memory_space<vmem>>, vector<1x64x32xf32>
    %180 = vector.shape_cast %179 : vector<1x64x32xf32> to vector<64x32xf32>
    %181 = arith.mulf %178, %180 : vector<64x32xf32>
    %c0_217 = arith.constant 0 : index
    %c32_218 = arith.constant 32 : index
    %182 = vector.load %arg14[%c0_217, %c32_218] : memref<64x288xf32, #tpu.memory_space<vmem>>, vector<64x32xf32>
    tpu.vector_store %arg14[%c0_217, %c32_218], %181 {strides = array<i32>} : memref<64x288xf32, #tpu.memory_space<vmem>>, vector<64x32xf32>,
    %c9_219 = arith.constant 9 : index
    %c0_220 = arith.constant 0 : index
    %183 = vector.load %arg11[%c9_219, %c0_220] : memref<96x32xf32, #tpu.memory_space<vmem>>, vector<64x32xf32>
    %c2_221 = arith.constant 2 : index
    %c0_222 = arith.constant 0 : index
    %c0_223 = arith.constant 0 : index
    %184 = vector.load %arg3[%c2_221, %c0_222, %c0_223] : memref<9x64x32xf32, #tpu.memory_space<vmem>>, vector<1x64x32xf32>
    %185 = vector.shape_cast %184 : vector<1x64x32xf32> to vector<64x32xf32>
    %186 = arith.mulf %183, %185 : vector<64x32xf32>
    %c0_224 = arith.constant 0 : index
    %c64_225 = arith.constant 64 : index
    %187 = vector.load %arg14[%c0_224, %c64_225] : memref<64x288xf32, #tpu.memory_space<vmem>>, vector<64x32xf32>
    tpu.vector_store %arg14[%c0_224, %c64_225], %186 {strides = array<i32>} : memref<64x288xf32, #tpu.memory_space<vmem>>, vector<64x32xf32>,
    %c15_226 = arith.constant 15 : index
    %c0_227 = arith.constant 0 : index
    %188 = vector.load %arg11[%c15_226, %c0_227] : memref<96x32xf32, #tpu.memory_space<vmem>>, vector<64x32xf32>
    %c3_228 = arith.constant 3 : index
    %c0_229 = arith.constant 0 : index
    %c0_230 = arith.constant 0 : index
    %189 = vector.load %arg3[%c3_228, %c0_229, %c0_230] : memref<9x64x32xf32, #tpu.memory_space<vmem>>, vector<1x64x32xf32>
    %190 = vector.shape_cast %189 : vector<1x64x32xf32> to vector<64x32xf32>
    %191 = arith.mulf %188, %190 : vector<64x32xf32>
    %c0_231 = arith.constant 0 : index
    %c96_232 = arith.constant 96 : index
    %192 = vector.load %arg14[%c0_231, %c96_232] : memref<64x288xf32, #tpu.memory_space<vmem>>, vector<64x32xf32>
    tpu.vector_store %arg14[%c0_231, %c96_232], %191 {strides = array<i32>} : memref<64x288xf32, #tpu.memory_space<vmem>>, vector<64x32xf32>,
    %c16_233 = arith.constant 16 : index
    %c0_234 = arith.constant 0 : index
    %193 = vector.load %arg11[%c16_233, %c0_234] : memref<96x32xf32, #tpu.memory_space<vmem>>, vector<64x32xf32>
    %c0_235 = arith.constant 0 : index
    %c128_236 = arith.constant 128 : index
    %194 = vector.load %arg14[%c0_235, %c128_236] : memref<64x288xf32, #tpu.memory_space<vmem>>, vector<64x32xf32>
    tpu.vector_store %arg14[%c0_235, %c128_236], %193 {strides = array<i32>} : memref<64x288xf32, #tpu.memory_space<vmem>>, vector<64x32xf32>,
    %c17_237 = arith.constant 17 : index
    %c0_238 = arith.constant 0 : index
    %195 = vector.load %arg11[%c17_237, %c0_238] : memref<96x32xf32, #tpu.memory_space<vmem>>, vector<64x32xf32>
    %c5_239 = arith.constant 5 : index
    %c0_240 = arith.constant 0 : index
    %c0_241 = arith.constant 0 : index
    %196 = vector.load %arg3[%c5_239, %c0_240, %c0_241] : memref<9x64x32xf32, #tpu.memory_space<vmem>>, vector<1x64x32xf32>
    %197 = vector.shape_cast %196 : vector<1x64x32xf32> to vector<64x32xf32>
    %198 = arith.mulf %195, %197 : vector<64x32xf32>
    %c0_242 = arith.constant 0 : index
    %c160_243 = arith.constant 160 : index
    %199 = vector.load %arg14[%c0_242, %c160_243] : memref<64x288xf32, #tpu.memory_space<vmem>>, vector<64x32xf32>
    tpu.vector_store %arg14[%c0_242, %c160_243], %198 {strides = array<i32>} : memref<64x288xf32, #tpu.memory_space<vmem>>, vector<64x32xf32>,
    %c23_244 = arith.constant 23 : index
    %c0_245 = arith.constant 0 : index
    %200 = vector.load %arg11[%c23_244, %c0_245] : memref<96x32xf32, #tpu.memory_space<vmem>>, vector<64x32xf32>
    %c6_246 = arith.constant 6 : index
    %c0_247 = arith.constant 0 : index
    %c0_248 = arith.constant 0 : index
    %201 = vector.load %arg3[%c6_246, %c0_247, %c0_248] : memref<9x64x32xf32, #tpu.memory_space<vmem>>, vector<1x64x32xf32>
    %202 = vector.shape_cast %201 : vector<1x64x32xf32> to vector<64x32xf32>
    %203 = arith.mulf %200, %202 : vector<64x32xf32>
    %c0_249 = arith.constant 0 : index
    %c192_250 = arith.constant 192 : index
    %204 = vector.load %arg14[%c0_249, %c192_250] : memref<64x288xf32, #tpu.memory_space<vmem>>, vector<64x32xf32>
    tpu.vector_store %arg14[%c0_249, %c192_250], %203 {strides = array<i32>} : memref<64x288xf32, #tpu.memory_space<vmem>>, vector<64x32xf32>,
    %c24_251 = arith.constant 24 : index
    %c0_252 = arith.constant 0 : index
    %205 = vector.load %arg11[%c24_251, %c0_252] : memref<96x32xf32, #tpu.memory_space<vmem>>, vector<64x32xf32>
    %c7_253 = arith.constant 7 : index
    %c0_254 = arith.constant 0 : index
    %c0_255 = arith.constant 0 : index
    %206 = vector.load %arg3[%c7_253, %c0_254, %c0_255] : memref<9x64x32xf32, #tpu.memory_space<vmem>>, vector<1x64x32xf32>
    %207 = vector.shape_cast %206 : vector<1x64x32xf32> to vector<64x32xf32>
    %208 = arith.mulf %205, %207 : vector<64x32xf32>
    %c0_256 = arith.constant 0 : index
    %c224_257 = arith.constant 224 : index
    %209 = vector.load %arg14[%c0_256, %c224_257] : memref<64x288xf32, #tpu.memory_space<vmem>>, vector<64x32xf32>
    tpu.vector_store %arg14[%c0_256, %c224_257], %208 {strides = array<i32>} : memref<64x288xf32, #tpu.memory_space<vmem>>, vector<64x32xf32>,
    %c25_258 = arith.constant 25 : index
    %c0_259 = arith.constant 0 : index
    %210 = vector.load %arg11[%c25_258, %c0_259] : memref<96x32xf32, #tpu.memory_space<vmem>>, vector<64x32xf32>
    %c8_260 = arith.constant 8 : index
    %c0_261 = arith.constant 0 : index
    %c0_262 = arith.constant 0 : index
    %211 = vector.load %arg3[%c8_260, %c0_261, %c0_262] : memref<9x64x32xf32, #tpu.memory_space<vmem>>, vector<1x64x32xf32>
    %212 = vector.shape_cast %211 : vector<1x64x32xf32> to vector<64x32xf32>
    %213 = arith.mulf %210, %212 : vector<64x32xf32>
    %c0_263 = arith.constant 0 : index
    %c256_264 = arith.constant 256 : index
    %214 = vector.load %arg14[%c0_263, %c256_264] : memref<64x288xf32, #tpu.memory_space<vmem>>, vector<64x32xf32>
    tpu.vector_store %arg14[%c0_263, %c256_264], %213 {strides = array<i32>} : memref<64x288xf32, #tpu.memory_space<vmem>>, vector<64x32xf32>,
    %c0_265 = arith.constant 0 : index
    %c0_266 = arith.constant 0 : index
    %215 = vector.load %arg14[%c0_265, %c0_266] : memref<64x288xf32, #tpu.memory_space<vmem>>, vector<64x288xf32>
    %c2_267 = arith.constant 2 : index
    %c0_268 = arith.constant 0 : index
    %c0_269 = arith.constant 0 : index
    %216 = vector.load %arg6[%c2_267, %c0_268, %c0_269] : memref<6x288x32xf32, #tpu.memory_space<vmem>>, vector<1x288x32xf32>
    %217 = vector.shape_cast %216 : vector<1x288x32xf32> to vector<288x32xf32>
    %cst_270 = arith.constant dense<0.000000e+00> : vector<64x32xf32>
    %218 = tpu.matmul %215, %217, %cst_270 {dimension_numbers = #tpu.dot_dimension_numbers<[1], [0], [0], [1], [0, 0, 1, 1], [], []>} : vector<64x288xf32>, vector<288x32xf32>, vector<64x32xf32> -> vector<64x32xf32>
    %c2_271 = arith.constant 2 : index
    %c0_272 = arith.constant 0 : index
    %c0_273 = arith.constant 0 : index
    %219 = vector.load %arg7[%c2_271, %c0_272, %c0_273] : memref<6x1x32xf32, #tpu.memory_space<vmem>>, vector<1x1x32xf32>
    %220 = vector.shape_cast %219 : vector<1x1x32xf32> to vector<1x32xf32>
    %221 = vector.broadcast %220 : vector<1x32xf32> to vector<64x32xf32>
    %222 = arith.addf %218, %221 : vector<64x32xf32>
    %cst_274 = arith.constant 0.000000e+00 : f32
    %223 = vector.broadcast %cst_274 : f32 to vector<64x32xf32>
    %224 = arith.maximumf %222, %223 : vector<64x32xf32>
    %c16_275 = arith.constant 16 : index
    %c0_276 = arith.constant 0 : index
    %225 = vector.load %arg12[%c16_275, %c0_276] : memref<96x32xf32, #tpu.memory_space<vmem>>, vector<64x32xf32>
    tpu.vector_store %arg12[%c16_275, %c0_276], %224 {strides = array<i32>} : memref<96x32xf32, #tpu.memory_space<vmem>>, vector<64x32xf32>,
    %c7_277 = arith.constant 7 : index
    %c0_278 = arith.constant 0 : index
    %226 = vector.load %arg12[%c7_277, %c0_278] : memref<96x32xf32, #tpu.memory_space<vmem>>, vector<64x32xf32>
    %c0_279 = arith.constant 0 : index
    %c0_280 = arith.constant 0 : index
    %c0_281 = arith.constant 0 : index
    %227 = vector.load %arg3[%c0_279, %c0_280, %c0_281] : memref<9x64x32xf32, #tpu.memory_space<vmem>>, vector<1x64x32xf32>
    %228 = vector.shape_cast %227 : vector<1x64x32xf32> to vector<64x32xf32>
    %229 = arith.mulf %226, %228 : vector<64x32xf32>
    %c0_282 = arith.constant 0 : index
    %c0_283 = arith.constant 0 : index
    %230 = vector.load %arg14[%c0_282, %c0_283] : memref<64x288xf32, #tpu.memory_space<vmem>>, vector<64x32xf32>
    tpu.vector_store %arg14[%c0_282, %c0_283], %229 {strides = array<i32>} : memref<64x288xf32, #tpu.memory_space<vmem>>, vector<64x32xf32>,
    %c8_284 = arith.constant 8 : index
    %c0_285 = arith.constant 0 : index
    %231 = vector.load %arg12[%c8_284, %c0_285] : memref<96x32xf32, #tpu.memory_space<vmem>>, vector<64x32xf32>
    %c1_286 = arith.constant 1 : index
    %c0_287 = arith.constant 0 : index
    %c0_288 = arith.constant 0 : index
    %232 = vector.load %arg3[%c1_286, %c0_287, %c0_288] : memref<9x64x32xf32, #tpu.memory_space<vmem>>, vector<1x64x32xf32>
    %233 = vector.shape_cast %232 : vector<1x64x32xf32> to vector<64x32xf32>
    %234 = arith.mulf %231, %233 : vector<64x32xf32>
    %c0_289 = arith.constant 0 : index
    %c32_290 = arith.constant 32 : index
    %235 = vector.load %arg14[%c0_289, %c32_290] : memref<64x288xf32, #tpu.memory_space<vmem>>, vector<64x32xf32>
    tpu.vector_store %arg14[%c0_289, %c32_290], %234 {strides = array<i32>} : memref<64x288xf32, #tpu.memory_space<vmem>>, vector<64x32xf32>,
    %c9_291 = arith.constant 9 : index
    %c0_292 = arith.constant 0 : index
    %236 = vector.load %arg12[%c9_291, %c0_292] : memref<96x32xf32, #tpu.memory_space<vmem>>, vector<64x32xf32>
    %c2_293 = arith.constant 2 : index
    %c0_294 = arith.constant 0 : index
    %c0_295 = arith.constant 0 : index
    %237 = vector.load %arg3[%c2_293, %c0_294, %c0_295] : memref<9x64x32xf32, #tpu.memory_space<vmem>>, vector<1x64x32xf32>
    %238 = vector.shape_cast %237 : vector<1x64x32xf32> to vector<64x32xf32>
    %239 = arith.mulf %236, %238 : vector<64x32xf32>
    %c0_296 = arith.constant 0 : index
    %c64_297 = arith.constant 64 : index
    %240 = vector.load %arg14[%c0_296, %c64_297] : memref<64x288xf32, #tpu.memory_space<vmem>>, vector<64x32xf32>
    tpu.vector_store %arg14[%c0_296, %c64_297], %239 {strides = array<i32>} : memref<64x288xf32, #tpu.memory_space<vmem>>, vector<64x32xf32>,
    %c15_298 = arith.constant 15 : index
    %c0_299 = arith.constant 0 : index
    %241 = vector.load %arg12[%c15_298, %c0_299] : memref<96x32xf32, #tpu.memory_space<vmem>>, vector<64x32xf32>
    %c3_300 = arith.constant 3 : index
    %c0_301 = arith.constant 0 : index
    %c0_302 = arith.constant 0 : index
    %242 = vector.load %arg3[%c3_300, %c0_301, %c0_302] : memref<9x64x32xf32, #tpu.memory_space<vmem>>, vector<1x64x32xf32>
    %243 = vector.shape_cast %242 : vector<1x64x32xf32> to vector<64x32xf32>
    %244 = arith.mulf %241, %243 : vector<64x32xf32>
    %c0_303 = arith.constant 0 : index
    %c96_304 = arith.constant 96 : index
    %245 = vector.load %arg14[%c0_303, %c96_304] : memref<64x288xf32, #tpu.memory_space<vmem>>, vector<64x32xf32>
    tpu.vector_store %arg14[%c0_303, %c96_304], %244 {strides = array<i32>} : memref<64x288xf32, #tpu.memory_space<vmem>>, vector<64x32xf32>,
    %c16_305 = arith.constant 16 : index
    %c0_306 = arith.constant 0 : index
    %246 = vector.load %arg12[%c16_305, %c0_306] : memref<96x32xf32, #tpu.memory_space<vmem>>, vector<64x32xf32>
    %c0_307 = arith.constant 0 : index
    %c128_308 = arith.constant 128 : index
    %247 = vector.load %arg14[%c0_307, %c128_308] : memref<64x288xf32, #tpu.memory_space<vmem>>, vector<64x32xf32>
    tpu.vector_store %arg14[%c0_307, %c128_308], %246 {strides = array<i32>} : memref<64x288xf32, #tpu.memory_space<vmem>>, vector<64x32xf32>,
    %c17_309 = arith.constant 17 : index
    %c0_310 = arith.constant 0 : index
    %248 = vector.load %arg12[%c17_309, %c0_310] : memref<96x32xf32, #tpu.memory_space<vmem>>, vector<64x32xf32>
    %c5_311 = arith.constant 5 : index
    %c0_312 = arith.constant 0 : index
    %c0_313 = arith.constant 0 : index
    %249 = vector.load %arg3[%c5_311, %c0_312, %c0_313] : memref<9x64x32xf32, #tpu.memory_space<vmem>>, vector<1x64x32xf32>
    %250 = vector.shape_cast %249 : vector<1x64x32xf32> to vector<64x32xf32>
    %251 = arith.mulf %248, %250 : vector<64x32xf32>
    %c0_314 = arith.constant 0 : index
    %c160_315 = arith.constant 160 : index
    %252 = vector.load %arg14[%c0_314, %c160_315] : memref<64x288xf32, #tpu.memory_space<vmem>>, vector<64x32xf32>
    tpu.vector_store %arg14[%c0_314, %c160_315], %251 {strides = array<i32>} : memref<64x288xf32, #tpu.memory_space<vmem>>, vector<64x32xf32>,
    %c23_316 = arith.constant 23 : index
    %c0_317 = arith.constant 0 : index
    %253 = vector.load %arg12[%c23_316, %c0_317] : memref<96x32xf32, #tpu.memory_space<vmem>>, vector<64x32xf32>
    %c6_318 = arith.constant 6 : index
    %c0_319 = arith.constant 0 : index
    %c0_320 = arith.constant 0 : index
    %254 = vector.load %arg3[%c6_318, %c0_319, %c0_320] : memref<9x64x32xf32, #tpu.memory_space<vmem>>, vector<1x64x32xf32>
    %255 = vector.shape_cast %254 : vector<1x64x32xf32> to vector<64x32xf32>
    %256 = arith.mulf %253, %255 : vector<64x32xf32>
    %c0_321 = arith.constant 0 : index
    %c192_322 = arith.constant 192 : index
    %257 = vector.load %arg14[%c0_321, %c192_322] : memref<64x288xf32, #tpu.memory_space<vmem>>, vector<64x32xf32>
    tpu.vector_store %arg14[%c0_321, %c192_322], %256 {strides = array<i32>} : memref<64x288xf32, #tpu.memory_space<vmem>>, vector<64x32xf32>,
    %c24_323 = arith.constant 24 : index
    %c0_324 = arith.constant 0 : index
    %258 = vector.load %arg12[%c24_323, %c0_324] : memref<96x32xf32, #tpu.memory_space<vmem>>, vector<64x32xf32>
    %c7_325 = arith.constant 7 : index
    %c0_326 = arith.constant 0 : index
    %c0_327 = arith.constant 0 : index
    %259 = vector.load %arg3[%c7_325, %c0_326, %c0_327] : memref<9x64x32xf32, #tpu.memory_space<vmem>>, vector<1x64x32xf32>
    %260 = vector.shape_cast %259 : vector<1x64x32xf32> to vector<64x32xf32>
    %261 = arith.mulf %258, %260 : vector<64x32xf32>
    %c0_328 = arith.constant 0 : index
    %c224_329 = arith.constant 224 : index
    %262 = vector.load %arg14[%c0_328, %c224_329] : memref<64x288xf32, #tpu.memory_space<vmem>>, vector<64x32xf32>
    tpu.vector_store %arg14[%c0_328, %c224_329], %261 {strides = array<i32>} : memref<64x288xf32, #tpu.memory_space<vmem>>, vector<64x32xf32>,
    %c25_330 = arith.constant 25 : index
    %c0_331 = arith.constant 0 : index
    %263 = vector.load %arg12[%c25_330, %c0_331] : memref<96x32xf32, #tpu.memory_space<vmem>>, vector<64x32xf32>
    %c8_332 = arith.constant 8 : index
    %c0_333 = arith.constant 0 : index
    %c0_334 = arith.constant 0 : index
    %264 = vector.load %arg3[%c8_332, %c0_333, %c0_334] : memref<9x64x32xf32, #tpu.memory_space<vmem>>, vector<1x64x32xf32>
    %265 = vector.shape_cast %264 : vector<1x64x32xf32> to vector<64x32xf32>
    %266 = arith.mulf %263, %265 : vector<64x32xf32>
    %c0_335 = arith.constant 0 : index
    %c256_336 = arith.constant 256 : index
    %267 = vector.load %arg14[%c0_335, %c256_336] : memref<64x288xf32, #tpu.memory_space<vmem>>, vector<64x32xf32>
    tpu.vector_store %arg14[%c0_335, %c256_336], %266 {strides = array<i32>} : memref<64x288xf32, #tpu.memory_space<vmem>>, vector<64x32xf32>,
    %c0_337 = arith.constant 0 : index
    %c0_338 = arith.constant 0 : index
    %268 = vector.load %arg14[%c0_337, %c0_338] : memref<64x288xf32, #tpu.memory_space<vmem>>, vector<64x288xf32>
    %c3_339 = arith.constant 3 : index
    %c0_340 = arith.constant 0 : index
    %c0_341 = arith.constant 0 : index
    %269 = vector.load %arg6[%c3_339, %c0_340, %c0_341] : memref<6x288x32xf32, #tpu.memory_space<vmem>>, vector<1x288x32xf32>
    %270 = vector.shape_cast %269 : vector<1x288x32xf32> to vector<288x32xf32>
    %cst_342 = arith.constant dense<0.000000e+00> : vector<64x32xf32>
    %271 = tpu.matmul %268, %270, %cst_342 {dimension_numbers = #tpu.dot_dimension_numbers<[1], [0], [0], [1], [0, 0, 1, 1], [], []>} : vector<64x288xf32>, vector<288x32xf32>, vector<64x32xf32> -> vector<64x32xf32>
    %c3_343 = arith.constant 3 : index
    %c0_344 = arith.constant 0 : index
    %c0_345 = arith.constant 0 : index
    %272 = vector.load %arg7[%c3_343, %c0_344, %c0_345] : memref<6x1x32xf32, #tpu.memory_space<vmem>>, vector<1x1x32xf32>
    %273 = vector.shape_cast %272 : vector<1x1x32xf32> to vector<1x32xf32>
    %274 = vector.broadcast %273 : vector<1x32xf32> to vector<64x32xf32>
    %275 = arith.addf %271, %274 : vector<64x32xf32>
    %c16_346 = arith.constant 16 : index
    %c0_347 = arith.constant 0 : index
    %276 = vector.load %arg11[%c16_346, %c0_347] : memref<96x32xf32, #tpu.memory_space<vmem>>, vector<64x32xf32>
    %277 = arith.addf %275, %276 : vector<64x32xf32>
    %cst_348 = arith.constant 0.000000e+00 : f32
    %278 = vector.broadcast %cst_348 : f32 to vector<64x32xf32>
    %279 = arith.maximumf %277, %278 : vector<64x32xf32>
    %c16_349 = arith.constant 16 : index
    %c0_350 = arith.constant 0 : index
    %280 = vector.load %arg11[%c16_349, %c0_350] : memref<96x32xf32, #tpu.memory_space<vmem>>, vector<64x32xf32>
    tpu.vector_store %arg11[%c16_349, %c0_350], %279 {strides = array<i32>} : memref<96x32xf32, #tpu.memory_space<vmem>>, vector<64x32xf32>,
    %c7_351 = arith.constant 7 : index
    %c0_352 = arith.constant 0 : index
    %281 = vector.load %arg11[%c7_351, %c0_352] : memref<96x32xf32, #tpu.memory_space<vmem>>, vector<64x32xf32>
    %c0_353 = arith.constant 0 : index
    %c0_354 = arith.constant 0 : index
    %c0_355 = arith.constant 0 : index
    %282 = vector.load %arg3[%c0_353, %c0_354, %c0_355] : memref<9x64x32xf32, #tpu.memory_space<vmem>>, vector<1x64x32xf32>
    %283 = vector.shape_cast %282 : vector<1x64x32xf32> to vector<64x32xf32>
    %284 = arith.mulf %281, %283 : vector<64x32xf32>
    %c0_356 = arith.constant 0 : index
    %c0_357 = arith.constant 0 : index
    %285 = vector.load %arg14[%c0_356, %c0_357] : memref<64x288xf32, #tpu.memory_space<vmem>>, vector<64x32xf32>
    tpu.vector_store %arg14[%c0_356, %c0_357], %284 {strides = array<i32>} : memref<64x288xf32, #tpu.memory_space<vmem>>, vector<64x32xf32>,
    %c8_358 = arith.constant 8 : index
    %c0_359 = arith.constant 0 : index
    %286 = vector.load %arg11[%c8_358, %c0_359] : memref<96x32xf32, #tpu.memory_space<vmem>>, vector<64x32xf32>
    %c1_360 = arith.constant 1 : index
    %c0_361 = arith.constant 0 : index
    %c0_362 = arith.constant 0 : index
    %287 = vector.load %arg3[%c1_360, %c0_361, %c0_362] : memref<9x64x32xf32, #tpu.memory_space<vmem>>, vector<1x64x32xf32>
    %288 = vector.shape_cast %287 : vector<1x64x32xf32> to vector<64x32xf32>
    %289 = arith.mulf %286, %288 : vector<64x32xf32>
    %c0_363 = arith.constant 0 : index
    %c32_364 = arith.constant 32 : index
    %290 = vector.load %arg14[%c0_363, %c32_364] : memref<64x288xf32, #tpu.memory_space<vmem>>, vector<64x32xf32>
    tpu.vector_store %arg14[%c0_363, %c32_364], %289 {strides = array<i32>} : memref<64x288xf32, #tpu.memory_space<vmem>>, vector<64x32xf32>,
    %c9_365 = arith.constant 9 : index
    %c0_366 = arith.constant 0 : index
    %291 = vector.load %arg11[%c9_365, %c0_366] : memref<96x32xf32, #tpu.memory_space<vmem>>, vector<64x32xf32>
    %c2_367 = arith.constant 2 : index
    %c0_368 = arith.constant 0 : index
    %c0_369 = arith.constant 0 : index
    %292 = vector.load %arg3[%c2_367, %c0_368, %c0_369] : memref<9x64x32xf32, #tpu.memory_space<vmem>>, vector<1x64x32xf32>
    %293 = vector.shape_cast %292 : vector<1x64x32xf32> to vector<64x32xf32>
    %294 = arith.mulf %291, %293 : vector<64x32xf32>
    %c0_370 = arith.constant 0 : index
    %c64_371 = arith.constant 64 : index
    %295 = vector.load %arg14[%c0_370, %c64_371] : memref<64x288xf32, #tpu.memory_space<vmem>>, vector<64x32xf32>
    tpu.vector_store %arg14[%c0_370, %c64_371], %294 {strides = array<i32>} : memref<64x288xf32, #tpu.memory_space<vmem>>, vector<64x32xf32>,
    %c15_372 = arith.constant 15 : index
    %c0_373 = arith.constant 0 : index
    %296 = vector.load %arg11[%c15_372, %c0_373] : memref<96x32xf32, #tpu.memory_space<vmem>>, vector<64x32xf32>
    %c3_374 = arith.constant 3 : index
    %c0_375 = arith.constant 0 : index
    %c0_376 = arith.constant 0 : index
    %297 = vector.load %arg3[%c3_374, %c0_375, %c0_376] : memref<9x64x32xf32, #tpu.memory_space<vmem>>, vector<1x64x32xf32>
    %298 = vector.shape_cast %297 : vector<1x64x32xf32> to vector<64x32xf32>
    %299 = arith.mulf %296, %298 : vector<64x32xf32>
    %c0_377 = arith.constant 0 : index
    %c96_378 = arith.constant 96 : index
    %300 = vector.load %arg14[%c0_377, %c96_378] : memref<64x288xf32, #tpu.memory_space<vmem>>, vector<64x32xf32>
    tpu.vector_store %arg14[%c0_377, %c96_378], %299 {strides = array<i32>} : memref<64x288xf32, #tpu.memory_space<vmem>>, vector<64x32xf32>,
    %c16_379 = arith.constant 16 : index
    %c0_380 = arith.constant 0 : index
    %301 = vector.load %arg11[%c16_379, %c0_380] : memref<96x32xf32, #tpu.memory_space<vmem>>, vector<64x32xf32>
    %c0_381 = arith.constant 0 : index
    %c128_382 = arith.constant 128 : index
    %302 = vector.load %arg14[%c0_381, %c128_382] : memref<64x288xf32, #tpu.memory_space<vmem>>, vector<64x32xf32>
    tpu.vector_store %arg14[%c0_381, %c128_382], %301 {strides = array<i32>} : memref<64x288xf32, #tpu.memory_space<vmem>>, vector<64x32xf32>,
    %c17_383 = arith.constant 17 : index
    %c0_384 = arith.constant 0 : index
    %303 = vector.load %arg11[%c17_383, %c0_384] : memref<96x32xf32, #tpu.memory_space<vmem>>, vector<64x32xf32>
    %c5_385 = arith.constant 5 : index
    %c0_386 = arith.constant 0 : index
    %c0_387 = arith.constant 0 : index
    %304 = vector.load %arg3[%c5_385, %c0_386, %c0_387] : memref<9x64x32xf32, #tpu.memory_space<vmem>>, vector<1x64x32xf32>
    %305 = vector.shape_cast %304 : vector<1x64x32xf32> to vector<64x32xf32>
    %306 = arith.mulf %303, %305 : vector<64x32xf32>
    %c0_388 = arith.constant 0 : index
    %c160_389 = arith.constant 160 : index
    %307 = vector.load %arg14[%c0_388, %c160_389] : memref<64x288xf32, #tpu.memory_space<vmem>>, vector<64x32xf32>
    tpu.vector_store %arg14[%c0_388, %c160_389], %306 {strides = array<i32>} : memref<64x288xf32, #tpu.memory_space<vmem>>, vector<64x32xf32>,
    %c23_390 = arith.constant 23 : index
    %c0_391 = arith.constant 0 : index
    %308 = vector.load %arg11[%c23_390, %c0_391] : memref<96x32xf32, #tpu.memory_space<vmem>>, vector<64x32xf32>
    %c6_392 = arith.constant 6 : index
    %c0_393 = arith.constant 0 : index
    %c0_394 = arith.constant 0 : index
    %309 = vector.load %arg3[%c6_392, %c0_393, %c0_394] : memref<9x64x32xf32, #tpu.memory_space<vmem>>, vector<1x64x32xf32>
    %310 = vector.shape_cast %309 : vector<1x64x32xf32> to vector<64x32xf32>
    %311 = arith.mulf %308, %310 : vector<64x32xf32>
    %c0_395 = arith.constant 0 : index
    %c192_396 = arith.constant 192 : index
    %312 = vector.load %arg14[%c0_395, %c192_396] : memref<64x288xf32, #tpu.memory_space<vmem>>, vector<64x32xf32>
    tpu.vector_store %arg14[%c0_395, %c192_396], %311 {strides = array<i32>} : memref<64x288xf32, #tpu.memory_space<vmem>>, vector<64x32xf32>,
    %c24_397 = arith.constant 24 : index
    %c0_398 = arith.constant 0 : index
    %313 = vector.load %arg11[%c24_397, %c0_398] : memref<96x32xf32, #tpu.memory_space<vmem>>, vector<64x32xf32>
    %c7_399 = arith.constant 7 : index
    %c0_400 = arith.constant 0 : index
    %c0_401 = arith.constant 0 : index
    %314 = vector.load %arg3[%c7_399, %c0_400, %c0_401] : memref<9x64x32xf32, #tpu.memory_space<vmem>>, vector<1x64x32xf32>
    %315 = vector.shape_cast %314 : vector<1x64x32xf32> to vector<64x32xf32>
    %316 = arith.mulf %313, %315 : vector<64x32xf32>
    %c0_402 = arith.constant 0 : index
    %c224_403 = arith.constant 224 : index
    %317 = vector.load %arg14[%c0_402, %c224_403] : memref<64x288xf32, #tpu.memory_space<vmem>>, vector<64x32xf32>
    tpu.vector_store %arg14[%c0_402, %c224_403], %316 {strides = array<i32>} : memref<64x288xf32, #tpu.memory_space<vmem>>, vector<64x32xf32>,
    %c25_404 = arith.constant 25 : index
    %c0_405 = arith.constant 0 : index
    %318 = vector.load %arg11[%c25_404, %c0_405] : memref<96x32xf32, #tpu.memory_space<vmem>>, vector<64x32xf32>
    %c8_406 = arith.constant 8 : index
    %c0_407 = arith.constant 0 : index
    %c0_408 = arith.constant 0 : index
    %319 = vector.load %arg3[%c8_406, %c0_407, %c0_408] : memref<9x64x32xf32, #tpu.memory_space<vmem>>, vector<1x64x32xf32>
    %320 = vector.shape_cast %319 : vector<1x64x32xf32> to vector<64x32xf32>
    %321 = arith.mulf %318, %320 : vector<64x32xf32>
    %c0_409 = arith.constant 0 : index
    %c256_410 = arith.constant 256 : index
    %322 = vector.load %arg14[%c0_409, %c256_410] : memref<64x288xf32, #tpu.memory_space<vmem>>, vector<64x32xf32>
    tpu.vector_store %arg14[%c0_409, %c256_410], %321 {strides = array<i32>} : memref<64x288xf32, #tpu.memory_space<vmem>>, vector<64x32xf32>,
    %c0_411 = arith.constant 0 : index
    %c0_412 = arith.constant 0 : index
    %323 = vector.load %arg14[%c0_411, %c0_412] : memref<64x288xf32, #tpu.memory_space<vmem>>, vector<64x288xf32>
    %c4 = arith.constant 4 : index
    %c0_413 = arith.constant 0 : index
    %c0_414 = arith.constant 0 : index
    %324 = vector.load %arg6[%c4, %c0_413, %c0_414] : memref<6x288x32xf32, #tpu.memory_space<vmem>>, vector<1x288x32xf32>
    %325 = vector.shape_cast %324 : vector<1x288x32xf32> to vector<288x32xf32>
    %cst_415 = arith.constant dense<0.000000e+00> : vector<64x32xf32>
    %326 = tpu.matmul %323, %325, %cst_415 {dimension_numbers = #tpu.dot_dimension_numbers<[1], [0], [0], [1], [0, 0, 1, 1], [], []>} : vector<64x288xf32>, vector<288x32xf32>, vector<64x32xf32> -> vector<64x32xf32>
    %c4_416 = arith.constant 4 : index
    %c0_417 = arith.constant 0 : index
    %c0_418 = arith.constant 0 : index
    %327 = vector.load %arg7[%c4_416, %c0_417, %c0_418] : memref<6x1x32xf32, #tpu.memory_space<vmem>>, vector<1x1x32xf32>
    %328 = vector.shape_cast %327 : vector<1x1x32xf32> to vector<1x32xf32>
    %329 = vector.broadcast %328 : vector<1x32xf32> to vector<64x32xf32>
    %330 = arith.addf %326, %329 : vector<64x32xf32>
    %cst_419 = arith.constant 0.000000e+00 : f32
    %331 = vector.broadcast %cst_419 : f32 to vector<64x32xf32>
    %332 = arith.maximumf %330, %331 : vector<64x32xf32>
    %c16_420 = arith.constant 16 : index
    %c0_421 = arith.constant 0 : index
    %333 = vector.load %arg12[%c16_420, %c0_421] : memref<96x32xf32, #tpu.memory_space<vmem>>, vector<64x32xf32>
    tpu.vector_store %arg12[%c16_420, %c0_421], %332 {strides = array<i32>} : memref<96x32xf32, #tpu.memory_space<vmem>>, vector<64x32xf32>,
    %c7_422 = arith.constant 7 : index
    %c0_423 = arith.constant 0 : index
    %334 = vector.load %arg12[%c7_422, %c0_423] : memref<96x32xf32, #tpu.memory_space<vmem>>, vector<64x32xf32>
    %c0_424 = arith.constant 0 : index
    %c0_425 = arith.constant 0 : index
    %c0_426 = arith.constant 0 : index
    %335 = vector.load %arg3[%c0_424, %c0_425, %c0_426] : memref<9x64x32xf32, #tpu.memory_space<vmem>>, vector<1x64x32xf32>
    %336 = vector.shape_cast %335 : vector<1x64x32xf32> to vector<64x32xf32>
    %337 = arith.mulf %334, %336 : vector<64x32xf32>
    %c0_427 = arith.constant 0 : index
    %c0_428 = arith.constant 0 : index
    %338 = vector.load %arg14[%c0_427, %c0_428] : memref<64x288xf32, #tpu.memory_space<vmem>>, vector<64x32xf32>
    tpu.vector_store %arg14[%c0_427, %c0_428], %337 {strides = array<i32>} : memref<64x288xf32, #tpu.memory_space<vmem>>, vector<64x32xf32>,
    %c8_429 = arith.constant 8 : index
    %c0_430 = arith.constant 0 : index
    %339 = vector.load %arg12[%c8_429, %c0_430] : memref<96x32xf32, #tpu.memory_space<vmem>>, vector<64x32xf32>
    %c1_431 = arith.constant 1 : index
    %c0_432 = arith.constant 0 : index
    %c0_433 = arith.constant 0 : index
    %340 = vector.load %arg3[%c1_431, %c0_432, %c0_433] : memref<9x64x32xf32, #tpu.memory_space<vmem>>, vector<1x64x32xf32>
    %341 = vector.shape_cast %340 : vector<1x64x32xf32> to vector<64x32xf32>
    %342 = arith.mulf %339, %341 : vector<64x32xf32>
    %c0_434 = arith.constant 0 : index
    %c32_435 = arith.constant 32 : index
    %343 = vector.load %arg14[%c0_434, %c32_435] : memref<64x288xf32, #tpu.memory_space<vmem>>, vector<64x32xf32>
    tpu.vector_store %arg14[%c0_434, %c32_435], %342 {strides = array<i32>} : memref<64x288xf32, #tpu.memory_space<vmem>>, vector<64x32xf32>,
    %c9_436 = arith.constant 9 : index
    %c0_437 = arith.constant 0 : index
    %344 = vector.load %arg12[%c9_436, %c0_437] : memref<96x32xf32, #tpu.memory_space<vmem>>, vector<64x32xf32>
    %c2_438 = arith.constant 2 : index
    %c0_439 = arith.constant 0 : index
    %c0_440 = arith.constant 0 : index
    %345 = vector.load %arg3[%c2_438, %c0_439, %c0_440] : memref<9x64x32xf32, #tpu.memory_space<vmem>>, vector<1x64x32xf32>
    %346 = vector.shape_cast %345 : vector<1x64x32xf32> to vector<64x32xf32>
    %347 = arith.mulf %344, %346 : vector<64x32xf32>
    %c0_441 = arith.constant 0 : index
    %c64_442 = arith.constant 64 : index
    %348 = vector.load %arg14[%c0_441, %c64_442] : memref<64x288xf32, #tpu.memory_space<vmem>>, vector<64x32xf32>
    tpu.vector_store %arg14[%c0_441, %c64_442], %347 {strides = array<i32>} : memref<64x288xf32, #tpu.memory_space<vmem>>, vector<64x32xf32>,
    %c15_443 = arith.constant 15 : index
    %c0_444 = arith.constant 0 : index
    %349 = vector.load %arg12[%c15_443, %c0_444] : memref<96x32xf32, #tpu.memory_space<vmem>>, vector<64x32xf32>
    %c3_445 = arith.constant 3 : index
    %c0_446 = arith.constant 0 : index
    %c0_447 = arith.constant 0 : index
    %350 = vector.load %arg3[%c3_445, %c0_446, %c0_447] : memref<9x64x32xf32, #tpu.memory_space<vmem>>, vector<1x64x32xf32>
    %351 = vector.shape_cast %350 : vector<1x64x32xf32> to vector<64x32xf32>
    %352 = arith.mulf %349, %351 : vector<64x32xf32>
    %c0_448 = arith.constant 0 : index
    %c96_449 = arith.constant 96 : index
    %353 = vector.load %arg14[%c0_448, %c96_449] : memref<64x288xf32, #tpu.memory_space<vmem>>, vector<64x32xf32>
    tpu.vector_store %arg14[%c0_448, %c96_449], %352 {strides = array<i32>} : memref<64x288xf32, #tpu.memory_space<vmem>>, vector<64x32xf32>,
    %c16_450 = arith.constant 16 : index
    %c0_451 = arith.constant 0 : index
    %354 = vector.load %arg12[%c16_450, %c0_451] : memref<96x32xf32, #tpu.memory_space<vmem>>, vector<64x32xf32>
    %c0_452 = arith.constant 0 : index
    %c128_453 = arith.constant 128 : index
    %355 = vector.load %arg14[%c0_452, %c128_453] : memref<64x288xf32, #tpu.memory_space<vmem>>, vector<64x32xf32>
    tpu.vector_store %arg14[%c0_452, %c128_453], %354 {strides = array<i32>} : memref<64x288xf32, #tpu.memory_space<vmem>>, vector<64x32xf32>,
    %c17_454 = arith.constant 17 : index
    %c0_455 = arith.constant 0 : index
    %356 = vector.load %arg12[%c17_454, %c0_455] : memref<96x32xf32, #tpu.memory_space<vmem>>, vector<64x32xf32>
    %c5_456 = arith.constant 5 : index
    %c0_457 = arith.constant 0 : index
    %c0_458 = arith.constant 0 : index
    %357 = vector.load %arg3[%c5_456, %c0_457, %c0_458] : memref<9x64x32xf32, #tpu.memory_space<vmem>>, vector<1x64x32xf32>
    %358 = vector.shape_cast %357 : vector<1x64x32xf32> to vector<64x32xf32>
    %359 = arith.mulf %356, %358 : vector<64x32xf32>
    %c0_459 = arith.constant 0 : index
    %c160_460 = arith.constant 160 : index
    %360 = vector.load %arg14[%c0_459, %c160_460] : memref<64x288xf32, #tpu.memory_space<vmem>>, vector<64x32xf32>
    tpu.vector_store %arg14[%c0_459, %c160_460], %359 {strides = array<i32>} : memref<64x288xf32, #tpu.memory_space<vmem>>, vector<64x32xf32>,
    %c23_461 = arith.constant 23 : index
    %c0_462 = arith.constant 0 : index
    %361 = vector.load %arg12[%c23_461, %c0_462] : memref<96x32xf32, #tpu.memory_space<vmem>>, vector<64x32xf32>
    %c6_463 = arith.constant 6 : index
    %c0_464 = arith.constant 0 : index
    %c0_465 = arith.constant 0 : index
    %362 = vector.load %arg3[%c6_463, %c0_464, %c0_465] : memref<9x64x32xf32, #tpu.memory_space<vmem>>, vector<1x64x32xf32>
    %363 = vector.shape_cast %362 : vector<1x64x32xf32> to vector<64x32xf32>
    %364 = arith.mulf %361, %363 : vector<64x32xf32>
    %c0_466 = arith.constant 0 : index
    %c192_467 = arith.constant 192 : index
    %365 = vector.load %arg14[%c0_466, %c192_467] : memref<64x288xf32, #tpu.memory_space<vmem>>, vector<64x32xf32>
    tpu.vector_store %arg14[%c0_466, %c192_467], %364 {strides = array<i32>} : memref<64x288xf32, #tpu.memory_space<vmem>>, vector<64x32xf32>,
    %c24_468 = arith.constant 24 : index
    %c0_469 = arith.constant 0 : index
    %366 = vector.load %arg12[%c24_468, %c0_469] : memref<96x32xf32, #tpu.memory_space<vmem>>, vector<64x32xf32>
    %c7_470 = arith.constant 7 : index
    %c0_471 = arith.constant 0 : index
    %c0_472 = arith.constant 0 : index
    %367 = vector.load %arg3[%c7_470, %c0_471, %c0_472] : memref<9x64x32xf32, #tpu.memory_space<vmem>>, vector<1x64x32xf32>
    %368 = vector.shape_cast %367 : vector<1x64x32xf32> to vector<64x32xf32>
    %369 = arith.mulf %366, %368 : vector<64x32xf32>
    %c0_473 = arith.constant 0 : index
    %c224_474 = arith.constant 224 : index
    %370 = vector.load %arg14[%c0_473, %c224_474] : memref<64x288xf32, #tpu.memory_space<vmem>>, vector<64x32xf32>
    tpu.vector_store %arg14[%c0_473, %c224_474], %369 {strides = array<i32>} : memref<64x288xf32, #tpu.memory_space<vmem>>, vector<64x32xf32>,
    %c25_475 = arith.constant 25 : index
    %c0_476 = arith.constant 0 : index
    %371 = vector.load %arg12[%c25_475, %c0_476] : memref<96x32xf32, #tpu.memory_space<vmem>>, vector<64x32xf32>
    %c8_477 = arith.constant 8 : index
    %c0_478 = arith.constant 0 : index
    %c0_479 = arith.constant 0 : index
    %372 = vector.load %arg3[%c8_477, %c0_478, %c0_479] : memref<9x64x32xf32, #tpu.memory_space<vmem>>, vector<1x64x32xf32>
    %373 = vector.shape_cast %372 : vector<1x64x32xf32> to vector<64x32xf32>
    %374 = arith.mulf %371, %373 : vector<64x32xf32>
    %c0_480 = arith.constant 0 : index
    %c256_481 = arith.constant 256 : index
    %375 = vector.load %arg14[%c0_480, %c256_481] : memref<64x288xf32, #tpu.memory_space<vmem>>, vector<64x32xf32>
    tpu.vector_store %arg14[%c0_480, %c256_481], %374 {strides = array<i32>} : memref<64x288xf32, #tpu.memory_space<vmem>>, vector<64x32xf32>,
    %c0_482 = arith.constant 0 : index
    %c0_483 = arith.constant 0 : index
    %376 = vector.load %arg14[%c0_482, %c0_483] : memref<64x288xf32, #tpu.memory_space<vmem>>, vector<64x288xf32>
    %c5_484 = arith.constant 5 : index
    %c0_485 = arith.constant 0 : index
    %c0_486 = arith.constant 0 : index
    %377 = vector.load %arg6[%c5_484, %c0_485, %c0_486] : memref<6x288x32xf32, #tpu.memory_space<vmem>>, vector<1x288x32xf32>
    %378 = vector.shape_cast %377 : vector<1x288x32xf32> to vector<288x32xf32>
    %cst_487 = arith.constant dense<0.000000e+00> : vector<64x32xf32>
    %379 = tpu.matmul %376, %378, %cst_487 {dimension_numbers = #tpu.dot_dimension_numbers<[1], [0], [0], [1], [0, 0, 1, 1], [], []>} : vector<64x288xf32>, vector<288x32xf32>, vector<64x32xf32> -> vector<64x32xf32>
    %c5_488 = arith.constant 5 : index
    %c0_489 = arith.constant 0 : index
    %c0_490 = arith.constant 0 : index
    %380 = vector.load %arg7[%c5_488, %c0_489, %c0_490] : memref<6x1x32xf32, #tpu.memory_space<vmem>>, vector<1x1x32xf32>
    %381 = vector.shape_cast %380 : vector<1x1x32xf32> to vector<1x32xf32>
    %382 = vector.broadcast %381 : vector<1x32xf32> to vector<64x32xf32>
    %383 = arith.addf %379, %382 : vector<64x32xf32>
    %c16_491 = arith.constant 16 : index
    %c0_492 = arith.constant 0 : index
    %384 = vector.load %arg11[%c16_491, %c0_492] : memref<96x32xf32, #tpu.memory_space<vmem>>, vector<64x32xf32>
    %385 = arith.addf %383, %384 : vector<64x32xf32>
    %cst_493 = arith.constant 0.000000e+00 : f32
    %386 = vector.broadcast %cst_493 : f32 to vector<64x32xf32>
    %387 = arith.maximumf %385, %386 : vector<64x32xf32>
    %c16_494 = arith.constant 16 : index
    %c0_495 = arith.constant 0 : index
    %388 = vector.load %arg11[%c16_494, %c0_495] : memref<96x32xf32, #tpu.memory_space<vmem>>, vector<64x32xf32>
    tpu.vector_store %arg11[%c16_494, %c0_495], %387 {strides = array<i32>} : memref<96x32xf32, #tpu.memory_space<vmem>>, vector<64x32xf32>,
    %c7_496 = arith.constant 7 : index
    %c0_497 = arith.constant 0 : index
    %389 = vector.load %arg11[%c7_496, %c0_497] : memref<96x32xf32, #tpu.memory_space<vmem>>, vector<64x32xf32>
    %c0_498 = arith.constant 0 : index
    %c0_499 = arith.constant 0 : index
    %c0_500 = arith.constant 0 : index
    %390 = vector.load %arg3[%c0_498, %c0_499, %c0_500] : memref<9x64x32xf32, #tpu.memory_space<vmem>>, vector<1x64x32xf32>
    %391 = vector.shape_cast %390 : vector<1x64x32xf32> to vector<64x32xf32>
    %392 = arith.mulf %389, %391 : vector<64x32xf32>
    %c0_501 = arith.constant 0 : index
    %c0_502 = arith.constant 0 : index
    %393 = vector.load %arg14[%c0_501, %c0_502] : memref<64x288xf32, #tpu.memory_space<vmem>>, vector<64x32xf32>
    tpu.vector_store %arg14[%c0_501, %c0_502], %392 {strides = array<i32>} : memref<64x288xf32, #tpu.memory_space<vmem>>, vector<64x32xf32>,
    %c8_503 = arith.constant 8 : index
    %c0_504 = arith.constant 0 : index
    %394 = vector.load %arg11[%c8_503, %c0_504] : memref<96x32xf32, #tpu.memory_space<vmem>>, vector<64x32xf32>
    %c1_505 = arith.constant 1 : index
    %c0_506 = arith.constant 0 : index
    %c0_507 = arith.constant 0 : index
    %395 = vector.load %arg3[%c1_505, %c0_506, %c0_507] : memref<9x64x32xf32, #tpu.memory_space<vmem>>, vector<1x64x32xf32>
    %396 = vector.shape_cast %395 : vector<1x64x32xf32> to vector<64x32xf32>
    %397 = arith.mulf %394, %396 : vector<64x32xf32>
    %c0_508 = arith.constant 0 : index
    %c32_509 = arith.constant 32 : index
    %398 = vector.load %arg14[%c0_508, %c32_509] : memref<64x288xf32, #tpu.memory_space<vmem>>, vector<64x32xf32>
    tpu.vector_store %arg14[%c0_508, %c32_509], %397 {strides = array<i32>} : memref<64x288xf32, #tpu.memory_space<vmem>>, vector<64x32xf32>,
    %c9_510 = arith.constant 9 : index
    %c0_511 = arith.constant 0 : index
    %399 = vector.load %arg11[%c9_510, %c0_511] : memref<96x32xf32, #tpu.memory_space<vmem>>, vector<64x32xf32>
    %c2_512 = arith.constant 2 : index
    %c0_513 = arith.constant 0 : index
    %c0_514 = arith.constant 0 : index
    %400 = vector.load %arg3[%c2_512, %c0_513, %c0_514] : memref<9x64x32xf32, #tpu.memory_space<vmem>>, vector<1x64x32xf32>
    %401 = vector.shape_cast %400 : vector<1x64x32xf32> to vector<64x32xf32>
    %402 = arith.mulf %399, %401 : vector<64x32xf32>
    %c0_515 = arith.constant 0 : index
    %c64_516 = arith.constant 64 : index
    %403 = vector.load %arg14[%c0_515, %c64_516] : memref<64x288xf32, #tpu.memory_space<vmem>>, vector<64x32xf32>
    tpu.vector_store %arg14[%c0_515, %c64_516], %402 {strides = array<i32>} : memref<64x288xf32, #tpu.memory_space<vmem>>, vector<64x32xf32>,
    %c15_517 = arith.constant 15 : index
    %c0_518 = arith.constant 0 : index
    %404 = vector.load %arg11[%c15_517, %c0_518] : memref<96x32xf32, #tpu.memory_space<vmem>>, vector<64x32xf32>
    %c3_519 = arith.constant 3 : index
    %c0_520 = arith.constant 0 : index
    %c0_521 = arith.constant 0 : index
    %405 = vector.load %arg3[%c3_519, %c0_520, %c0_521] : memref<9x64x32xf32, #tpu.memory_space<vmem>>, vector<1x64x32xf32>
    %406 = vector.shape_cast %405 : vector<1x64x32xf32> to vector<64x32xf32>
    %407 = arith.mulf %404, %406 : vector<64x32xf32>
    %c0_522 = arith.constant 0 : index
    %c96_523 = arith.constant 96 : index
    %408 = vector.load %arg14[%c0_522, %c96_523] : memref<64x288xf32, #tpu.memory_space<vmem>>, vector<64x32xf32>
    tpu.vector_store %arg14[%c0_522, %c96_523], %407 {strides = array<i32>} : memref<64x288xf32, #tpu.memory_space<vmem>>, vector<64x32xf32>,
    %c16_524 = arith.constant 16 : index
    %c0_525 = arith.constant 0 : index
    %409 = vector.load %arg11[%c16_524, %c0_525] : memref<96x32xf32, #tpu.memory_space<vmem>>, vector<64x32xf32>
    %c0_526 = arith.constant 0 : index
    %c128_527 = arith.constant 128 : index
    %410 = vector.load %arg14[%c0_526, %c128_527] : memref<64x288xf32, #tpu.memory_space<vmem>>, vector<64x32xf32>
    tpu.vector_store %arg14[%c0_526, %c128_527], %409 {strides = array<i32>} : memref<64x288xf32, #tpu.memory_space<vmem>>, vector<64x32xf32>,
    %c17_528 = arith.constant 17 : index
    %c0_529 = arith.constant 0 : index
    %411 = vector.load %arg11[%c17_528, %c0_529] : memref<96x32xf32, #tpu.memory_space<vmem>>, vector<64x32xf32>
    %c5_530 = arith.constant 5 : index
    %c0_531 = arith.constant 0 : index
    %c0_532 = arith.constant 0 : index
    %412 = vector.load %arg3[%c5_530, %c0_531, %c0_532] : memref<9x64x32xf32, #tpu.memory_space<vmem>>, vector<1x64x32xf32>
    %413 = vector.shape_cast %412 : vector<1x64x32xf32> to vector<64x32xf32>
    %414 = arith.mulf %411, %413 : vector<64x32xf32>
    %c0_533 = arith.constant 0 : index
    %c160_534 = arith.constant 160 : index
    %415 = vector.load %arg14[%c0_533, %c160_534] : memref<64x288xf32, #tpu.memory_space<vmem>>, vector<64x32xf32>
    tpu.vector_store %arg14[%c0_533, %c160_534], %414 {strides = array<i32>} : memref<64x288xf32, #tpu.memory_space<vmem>>, vector<64x32xf32>,
    %c23_535 = arith.constant 23 : index
    %c0_536 = arith.constant 0 : index
    %416 = vector.load %arg11[%c23_535, %c0_536] : memref<96x32xf32, #tpu.memory_space<vmem>>, vector<64x32xf32>
    %c6_537 = arith.constant 6 : index
    %c0_538 = arith.constant 0 : index
    %c0_539 = arith.constant 0 : index
    %417 = vector.load %arg3[%c6_537, %c0_538, %c0_539] : memref<9x64x32xf32, #tpu.memory_space<vmem>>, vector<1x64x32xf32>
    %418 = vector.shape_cast %417 : vector<1x64x32xf32> to vector<64x32xf32>
    %419 = arith.mulf %416, %418 : vector<64x32xf32>
    %c0_540 = arith.constant 0 : index
    %c192_541 = arith.constant 192 : index
    %420 = vector.load %arg14[%c0_540, %c192_541] : memref<64x288xf32, #tpu.memory_space<vmem>>, vector<64x32xf32>
    tpu.vector_store %arg14[%c0_540, %c192_541], %419 {strides = array<i32>} : memref<64x288xf32, #tpu.memory_space<vmem>>, vector<64x32xf32>,
    %c24_542 = arith.constant 24 : index
    %c0_543 = arith.constant 0 : index
    %421 = vector.load %arg11[%c24_542, %c0_543] : memref<96x32xf32, #tpu.memory_space<vmem>>, vector<64x32xf32>
    %c7_544 = arith.constant 7 : index
    %c0_545 = arith.constant 0 : index
    %c0_546 = arith.constant 0 : index
    %422 = vector.load %arg3[%c7_544, %c0_545, %c0_546] : memref<9x64x32xf32, #tpu.memory_space<vmem>>, vector<1x64x32xf32>
    %423 = vector.shape_cast %422 : vector<1x64x32xf32> to vector<64x32xf32>
    %424 = arith.mulf %421, %423 : vector<64x32xf32>
    %c0_547 = arith.constant 0 : index
    %c224_548 = arith.constant 224 : index
    %425 = vector.load %arg14[%c0_547, %c224_548] : memref<64x288xf32, #tpu.memory_space<vmem>>, vector<64x32xf32>
    tpu.vector_store %arg14[%c0_547, %c224_548], %424 {strides = array<i32>} : memref<64x288xf32, #tpu.memory_space<vmem>>, vector<64x32xf32>,
    %c25_549 = arith.constant 25 : index
    %c0_550 = arith.constant 0 : index
    %426 = vector.load %arg11[%c25_549, %c0_550] : memref<96x32xf32, #tpu.memory_space<vmem>>, vector<64x32xf32>
    %c8_551 = arith.constant 8 : index
    %c0_552 = arith.constant 0 : index
    %c0_553 = arith.constant 0 : index
    %427 = vector.load %arg3[%c8_551, %c0_552, %c0_553] : memref<9x64x32xf32, #tpu.memory_space<vmem>>, vector<1x64x32xf32>
    %428 = vector.shape_cast %427 : vector<1x64x32xf32> to vector<64x32xf32>
    %429 = arith.mulf %426, %428 : vector<64x32xf32>
    %c0_554 = arith.constant 0 : index
    %c256_555 = arith.constant 256 : index
    %430 = vector.load %arg14[%c0_554, %c256_555] : memref<64x288xf32, #tpu.memory_space<vmem>>, vector<64x32xf32>
    tpu.vector_store %arg14[%c0_554, %c256_555], %429 {strides = array<i32>} : memref<64x288xf32, #tpu.memory_space<vmem>>, vector<64x32xf32>,
    %c0_556 = arith.constant 0 : index
    %c0_557 = arith.constant 0 : index
    %431 = vector.load %arg14[%c0_556, %c0_557] : memref<64x288xf32, #tpu.memory_space<vmem>>, vector<64x288xf32>
    %c0_558 = arith.constant 0 : index
    %c0_559 = arith.constant 0 : index
    %432 = vector.load %arg8[%c0_558, %c0_559] : memref<288x1xf32, #tpu.memory_space<vmem>>, vector<288x1xf32>
    %cst_560 = arith.constant dense<0.000000e+00> : vector<64x1xf32>
    %433 = tpu.matmul %431, %432, %cst_560 {dimension_numbers = #tpu.dot_dimension_numbers<[1], [0], [0], [1], [0, 0, 1, 1], [], []>} : vector<64x288xf32>, vector<288x1xf32>, vector<64x1xf32> -> vector<64x1xf32>
    %c0_561 = arith.constant 0 : index
    %c0_562 = arith.constant 0 : index
    %434 = vector.load %arg9[%c0_561, %c0_562] : memref<1x1xf32, #tpu.memory_space<vmem>>, vector<1x1xf32>
    %435 = vector.broadcast %434 : vector<1x1xf32> to vector<64x1xf32>
    %436 = arith.addf %433, %435 : vector<64x1xf32>
    %cst_563 = arith.constant 0.000000e+00 : f32
    %437 = vector.broadcast %cst_563 : f32 to vector<64x1xf32>
    %438 = arith.maximumf %436, %437 : vector<64x1xf32>
    %c0_564 = arith.constant 0 : index
    %c0_565 = arith.constant 0 : index
    %c0_566 = arith.constant 0 : index
    %439 = vector.load %arg10[%c0_564, %c0_565, %c0_566] : memref<1x64x1xf32, #tpu.memory_space<vmem>>, vector<1x64x1xf32>
    %440 = vector.shape_cast %439 : vector<1x64x1xf32> to vector<64x1xf32>
    %441 = vector.shape_cast %438 : vector<64x1xf32> to vector<1x64x1xf32>
    tpu.vector_store %arg10[%c0_564, %c0_565, %c0_566], %441 {strides = array<i32>} : memref<1x64x1xf32, #tpu.memory_space<vmem>>, vector<1x64x1xf32>,
    return
  }
  func.func @transform_0(%arg0: i32) -> (i32, i32, i32) {
    %c0_i32 = arith.constant 0 : i32
    %c0_i32_0 = arith.constant 0 : i32
    %c0_i32_1 = arith.constant 0 : i32
    return %arg0, %c0_i32, %c0_i32_0 : i32, i32, i32
  }
  func.func @transform_1(%arg0: i32) -> (i32, i32, i32) {
    %c0_i32 = arith.constant 0 : i32
    %c0_i32_0 = arith.constant 0 : i32
    %c0_i32_1 = arith.constant 0 : i32
    %c0_i32_2 = arith.constant 0 : i32
    return %c0_i32, %c0_i32_0, %c0_i32_1 : i32, i32, i32
  }
  func.func @transform_2(%arg0: i32) -> (i32, i32, i32) {
    %c0_i32 = arith.constant 0 : i32
    %c0_i32_0 = arith.constant 0 : i32
    %c0_i32_1 = arith.constant 0 : i32
    %c0_i32_2 = arith.constant 0 : i32
    return %c0_i32, %c0_i32_0, %c0_i32_1 : i32, i32, i32
  }
  func.func @transform_3(%arg0: i32) -> (i32, i32) {
    %c0_i32 = arith.constant 0 : i32
    %c0_i32_0 = arith.constant 0 : i32
    %c0_i32_1 = arith.constant 0 : i32
    return %c0_i32, %c0_i32_0 : i32, i32
  }
  func.func @transform_4(%arg0: i32) -> (i32, i32) {
    %c0_i32 = arith.constant 0 : i32
    %c0_i32_0 = arith.constant 0 : i32
    %c0_i32_1 = arith.constant 0 : i32
    return %c0_i32, %c0_i32_0 : i32, i32
  }
  func.func @transform_5(%arg0: i32) -> (i32, i32, i32) {
    %c0_i32 = arith.constant 0 : i32
    %c0_i32_0 = arith.constant 0 : i32
    %c0_i32_1 = arith.constant 0 : i32
    %c0_i32_2 = arith.constant 0 : i32
    return %c0_i32, %c0_i32_0, %c0_i32_1 : i32, i32, i32
  }
  func.func @transform_6(%arg0: i32) -> (i32, i32, i32) {
    %c0_i32 = arith.constant 0 : i32
    %c0_i32_0 = arith.constant 0 : i32
    %c0_i32_1 = arith.constant 0 : i32
    %c0_i32_2 = arith.constant 0 : i32
    return %c0_i32, %c0_i32_0, %c0_i32_1 : i32, i32, i32
  }
  func.func @transform_7(%arg0: i32) -> (i32, i32) {
    %c0_i32 = arith.constant 0 : i32
    %c0_i32_0 = arith.constant 0 : i32
    %c0_i32_1 = arith.constant 0 : i32
    return %c0_i32, %c0_i32_0 : i32, i32
  }
  func.func @transform_8(%arg0: i32) -> (i32, i32) {
    %c0_i32 = arith.constant 0 : i32
    %c0_i32_0 = arith.constant 0 : i32
    %c0_i32_1 = arith.constant 0 : i32
    return %c0_i32, %c0_i32_0 : i32, i32
  }
  func.func @transform_9(%arg0: i32) -> (i32, i32, i32) {
    %c0_i32 = arith.constant 0 : i32
    %c0_i32_0 = arith.constant 0 : i32
    %c0_i32_1 = arith.constant 0 : i32
    return %arg0, %c0_i32, %c0_i32_0 : i32, i32, i32
  }
}

</mosaic_0001>

<llo_original>
// kernel: netblock_forward.1
$region0: #{netblock_forward.1}
  #allocation0 [shape = 'u32[]', space=smem, size = 0x4, offset = 0x4, fixed_abs, tag = 'smem constant byte address 0x4 - core index']
  #allocation1 [shape = 'u32[144,128]{1,0:T(1,128)}', space=vmem, size = 0x12000, scoped, tag = 'internal scratch']
  #allocation2 [shape = 'f32[96,32]{1,0:T(8,128)}', space=vmem, size = 0xc000, scoped, tag = 'scratch operand']
  #allocation3 [shape = 'f32[96,32]{1,0:T(8,128)}', space=vmem, size = 0xc000, scoped, tag = 'scratch operand']
  #allocation4 [shape = 'f32[64,576]{1,0:T(8,128)}', space=vmem, size = 0x28000, scoped, tag = 'scratch operand']
  #allocation5 [shape = 'f32[64,288]{1,0:T(8,128)}', space=vmem, size = 0x18000, scoped, tag = 'scratch operand']
  #allocation6 [shape = 'f32[1,1]{1,0:T(1,128)S(1)}', space=vmem, size = 0x200, scoped, tag = 'scoped memory for netblock_forward.1']
  %s0 = inlined_call_operand.vmem [shape: f32[2,96,64], index: 0, kind: input, shape index: {}]
  %s1 = inlined_call_operand.vmem [shape: f32[9,64,64], index: 1, kind: input, shape index: {}]
  %s2 = inlined_call_operand.vmem [shape: f32[9,64,32], index: 2, kind: input, shape index: {}]
  %s3 = inlined_call_operand.vmem [shape: f32[576,32], index: 3, kind: input, shape index: {}]
  %s4 = inlined_call_operand.vmem [shape: f32[1,32], index: 4, kind: input, shape index: {}]
  %s5 = inlined_call_operand.hbm [shape: f32[6,288,32], index: 5, kind: input, shape index: {}]
  %s6 = inlined_call_operand.vmem [shape: f32[6,1,32], index: 6, kind: input, shape index: {}]
  %s7 = inlined_call_operand.vmem [shape: f32[288,1], index: 7, kind: input, shape index: {}]
  %s8 = inlined_call_operand.<no memory space> [shape: f32[1,1], index: 8, kind: input, shape index: {}]
  %s9 = inlined_call_operand.vmem [shape: f32[2,64,1], index: 9, kind: output, shape index: {}]
  %s10 = sld [smem:[#allocation0]]
  $region73: #{netblock_forward.1} parent=0
    _
  %s12 = ssub.s32 1, %s10
  %s13 = scalar_select 0, %s12, %s10
  %v14 = vstv %s8
  %15 = vst [vmem:[#allocation6] sm:$0x1] %v14
  $region1: #{netblock_forward.1} parent=0
    #allocation7 [shape = 'u8[884736]{0}', space=vmem, size = 0xd8000, scoped, tag = 'input window, operand 5, single buffered']
    #allocation8 [shape = 's32[2]{0}', space=sflag, size = 0x8, scoped, tag = 'scoped memory for netblock_forward.1']
    %16 = vsyncpa [#allocation8], 0
    loop: start=0, step=1, limit=4
    $region2: #{netblock_forward.1} parent=1 // loop_pre_header
      _
    $region3: #{netblock_forward.1} parent=1 // loop_header
      %s18 = sphi 0, %s22
      %p19 = scmp.ge.s32.totalorder %s18, 4
      %s28 = sphi 0, %s30
      %s31 = sphi 0, %s28
      %s32 = sphi 0, %s31
      %s48 = sphi 0, %s32
      %s52 = sphi 0, %s52
      %s54 = sphi 0, %s52
      %s55 = sphi 0, %s54
      %s69 = sphi 0, %s55
      %s73 = sphi 0, %s73
      %s75 = sphi 0, %s73
      %s76 = sphi 0, %s75
      %s90 = sphi 0, %s76
      %s94 = sphi 0, %s94
      %s96 = sphi 0, %s94
      %s97 = sphi 0, %s96
      %s111 = sphi 0, %s97
      %s115 = sphi 0, %s115
      %s117 = sphi 0, %s115
      %s118 = sphi 0, %s117
      %s132 = sphi 0, %s118
      %s136 = sphi 0, %s136
      %s138 = sphi 0, %s136
      %s139 = sphi 0, %s138
      %s153 = sphi 0, %s139
      %s157 = sphi 0, %s157
      %s159 = sphi 0, %s157
      %s160 = sphi 0, %s159
      %s174 = sphi 0, %s160
      %s178 = sphi 0, %s178
      %s180 = sphi 0, %s178
      %s181 = sphi 0, %s180
      %s195 = sphi 0, %s181
      %s199 = sphi 0, %s199
      %s201 = sphi 0, %s199
      %s202 = sphi 0, %s201
      %s216 = sphi 0, %s202
      %s222 = sphi 0, %s224
      %s225 = sphi 0, %s222
      %s226 = sphi 0, %s225
      %s242 = sphi 0, %s226
    $region4: #{netblock_forward.1} parent=1 // loop_header_branch
      %21 = sbr.rel (%p19) target = $region8
    $region5: #{netblock_forward.1} parent=1 // loop_body
      %s23 = ssub.s32 %s18, 1
      %s24 = ssub.s32 %s18, 2
      %s25 = sadd.s32 %s18, 1
      %s26 = ssub.s32 %s18, %s25
      %p27 = scmp.eq.s32.totalorder %s26, 0
      %s29 = sadd.s32 %s28, 1
      %s30 = scalar_select %p27, %s28, %s29
      %p33 = pneg %p27
      %p34 = scmp.eq.s32.totalorder %s18, 1
      %p35 = por %p33, %p34
      %p36 = scmp.ne.s32.totalorder %s28, %s31
      %p37 = scmp.eq.s32.totalorder %s18, 0
      %p38 = por %p36, %p37
      %p39 = scmp.ne.s32.totalorder %s28, %s31
      %p40 = scmp.eq.s32.totalorder %s23, 1
      %p41 = por %p39, %p40
      %p42 = scmp.ne.s32.totalorder %s31, %s32
      %p43 = scmp.eq.s32.totalorder %s23, 0
      %p44 = por %p42, %p43
      %p45 = scmp.ne.s32.totalorder %s31, %s32
      %p46 = scmp.eq.s32.totalorder %s24, 1
      %p47 = por %p45, %p46
      %p49 = scmp.ne.s32.totalorder %s32, %s48
      %p50 = scmp.eq.s32.totalorder %s24, 0
      %p51 = por %p49, %p50
      %s53 = sadd.s32 %s52, 1
      %p56 = scmp.eq.s32.totalorder %s18, 1
      %p57 = scmp.ne.s32.totalorder %s52, %s54
      %p58 = scmp.eq.s32.totalorder %s18, 0
      %p59 = por %p57, %p58
      %p60 = scmp.ne.s32.totalorder %s52, %s54
      %p61 = scmp.eq.s32.totalorder %s23, 1
      %p62 = por %p60, %p61
      %p63 = scmp.ne.s32.totalorder %s54, %s55
      %p64 = scmp.eq.s32.totalorder %s23, 0
      %p65 = por %p63, %p64
      %p66 = scmp.ne.s32.totalorder %s54, %s55
      %p67 = scmp.eq.s32.totalorder %s24, 1
      %p68 = por %p66, %p67
      %p70 = scmp.ne.s32.totalorder %s55, %s69
      %p71 = scmp.eq.s32.totalorder %s24, 0
      %p72 = por %p70, %p71
      %s74 = sadd.s32 %s73, 1
      %p77 = scmp.eq.s32.totalorder %s18, 1
      %p78 = scmp.ne.s32.totalorder %s73, %s75
      %p79 = scmp.eq.s32.totalorder %s18, 0
      %p80 = por %p78, %p79
      %p81 = scmp.ne.s32.totalorder %s73, %s75
      %p82 = scmp.eq.s32.totalorder %s23, 1
      %p83 = por %p81, %p82
      %p84 = scmp.ne.s32.totalorder %s75, %s76
      %p85 = scmp.eq.s32.totalorder %s23, 0
      %p86 = por %p84, %p85
      %p87 = scmp.ne.s32.totalorder %s75, %s76
      %p88 = scmp.eq.s32.totalorder %s24, 1
      %p89 = por %p87, %p88
      %p91 = scmp.ne.s32.totalorder %s76, %s90
      %p92 = scmp.eq.s32.totalorder %s24, 0
      %p93 = por %p91, %p92
      %s95 = sadd.s32 %s94, 1
      %p98 = scmp.eq.s32.totalorder %s18, 1
      %p99 = scmp.ne.s32.totalorder %s94, %s96
      %p100 = scmp.eq.s32.totalorder %s18, 0
      %p101 = por %p99, %p100
      %p102 = scmp.ne.s32.totalorder %s94, %s96
      %p103 = scmp.eq.s32.totalorder %s23, 1
      %p104 = por %p102, %p103
      %p105 = scmp.ne.s32.totalorder %s96, %s97
      %p106 = scmp.eq.s32.totalorder %s23, 0
      %p107 = por %p105, %p106
      %p108 = scmp.ne.s32.totalorder %s96, %s97
      %p109 = scmp.eq.s32.totalorder %s24, 1
      %p110 = por %p108, %p109
      %p112 = scmp.ne.s32.totalorder %s97, %s111
      %p113 = scmp.eq.s32.totalorder %s24, 0
      %p114 = por %p112, %p113
      %s116 = sadd.s32 %s115, 1
      %p119 = scmp.eq.s32.totalorder %s18, 1
      %p120 = scmp.ne.s32.totalorder %s115, %s117
      %p121 = scmp.eq.s32.totalorder %s18, 0
      %p122 = por %p120, %p121
      %p123 = scmp.ne.s32.totalorder %s115, %s117
      %p124 = scmp.eq.s32.totalorder %s23, 1
      %p125 = por %p123, %p124
      %p126 = scmp.ne.s32.totalorder %s117, %s118
      %p127 = scmp.eq.s32.totalorder %s23, 0
      %p128 = por %p126, %p127
      %p129 = scmp.ne.s32.totalorder %s117, %s118
      %p130 = scmp.eq.s32.totalorder %s24, 1
      %p131 = por %p129, %p130
      %p133 = scmp.ne.s32.totalorder %s118, %s132
      %p134 = scmp.eq.s32.totalorder %s24, 0
      %p135 = por %p133, %p134
      %s137 = sadd.s32 %s136, 1
      %p140 = scmp.eq.s32.totalorder %s18, 1
      %p141 = scmp.ne.s32.totalorder %s136, %s138
      %p142 = scmp.eq.s32.totalorder %s18, 0
      %p143 = por %p141, %p142
      %p144 = scmp.ne.s32.totalorder %s136, %s138
      %p145 = scmp.eq.s32.totalorder %s23, 1
      %p146 = por %p144, %p145
      %p147 = scmp.ne.s32.totalorder %s138, %s139
      %p148 = scmp.eq.s32.totalorder %s23, 0
      %p149 = por %p147, %p148
      %p150 = scmp.ne.s32.totalorder %s138, %s139
      %p151 = scmp.eq.s32.totalorder %s24, 1
      %p152 = por %p150, %p151
      %p154 = scmp.ne.s32.totalorder %s139, %s153
      %p155 = scmp.eq.s32.totalorder %s24, 0
      %p156 = por %p154, %p155
      %s158 = sadd.s32 %s157, 1
      %p161 = scmp.eq.s32.totalorder %s18, 1
      %p162 = scmp.ne.s32.totalorder %s157, %s159
      %p163 = scmp.eq.s32.totalorder %s18, 0
      %p164 = por %p162, %p163
      %p165 = scmp.ne.s32.totalorder %s157, %s159
      %p166 = scmp.eq.s32.totalorder %s23, 1
      %p167 = por %p165, %p166
      %p168 = scmp.ne.s32.totalorder %s159, %s160
      %p169 = scmp.eq.s32.totalorder %s23, 0
      %p170 = por %p168, %p169
      %p171 = scmp.ne.s32.totalorder %s159, %s160
      %p172 = scmp.eq.s32.totalorder %s24, 1
      %p173 = por %p171, %p172
      %p175 = scmp.ne.s32.totalorder %s160, %s174
      %p176 = scmp.eq.s32.totalorder %s24, 0
      %p177 = por %p175, %p176
      %s179 = sadd.s32 %s178, 1
      %p182 = scmp.eq.s32.totalorder %s18, 1
      %p183 = scmp.ne.s32.totalorder %s178, %s180
      %p184 = scmp.eq.s32.totalorder %s18, 0
      %p185 = por %p183, %p184
      %p186 = scmp.ne.s32.totalorder %s178, %s180
      %p187 = scmp.eq.s32.totalorder %s23, 1
      %p188 = por %p186, %p187
      %p189 = scmp.ne.s32.totalorder %s180, %s181
      %p190 = scmp.eq.s32.totalorder %s23, 0
      %p191 = por %p189, %p190
      %p192 = scmp.ne.s32.totalorder %s180, %s181
      %p193 = scmp.eq.s32.totalorder %s24, 1
      %p194 = por %p192, %p193
      %p196 = scmp.ne.s32.totalorder %s181, %s195
      %p197 = scmp.eq.s32.totalorder %s24, 0
      %p198 = por %p196, %p197
      %s200 = sadd.s32 %s199, 1
      %p203 = scmp.eq.s32.totalorder %s18, 1
      %p204 = scmp.ne.s32.totalorder %s199, %s201
      %p205 = scmp.eq.s32.totalorder %s18, 0
      %p206 = por %p204, %p205
      %p207 = scmp.ne.s32.totalorder %s199, %s201
      %p208 = scmp.eq.s32.totalorder %s23, 1
      %p209 = por %p207, %p208
      %p210 = scmp.ne.s32.totalorder %s201, %s202
      %p211 = scmp.eq.s32.totalorder %s23, 0
      %p212 = por %p210, %p211
      %p213 = scmp.ne.s32.totalorder %s201, %s202
      %p214 = scmp.eq.s32.totalorder %s24, 1
      %p215 = por %p213, %p214
      %p217 = scmp.ne.s32.totalorder %s202, %s216
      %p218 = scmp.eq.s32.totalorder %s24, 0
      %p219 = por %p217, %p218
      %s220 = ssub.s32 %s18, %s25
      %p221 = scmp.eq.s32.totalorder %s220, 0
      %s223 = sadd.s32 %s222, 1
      %s224 = scalar_select %p221, %s222, %s223
      %p227 = pneg %p221
      %p228 = scmp.eq.s32.totalorder %s18, 1
      %p229 = por %p227, %p228
      %p230 = scmp.ne.s32.totalorder %s222, %s225
      %p231 = scmp.eq.s32.totalorder %s18, 0
      %p232 = por %p230, %p231
      %p233 = scmp.ne.s32.totalorder %s222, %s225
      %p234 = scmp.eq.s32.totalorder %s23, 1
      %p235 = por %p233, %p234
      %p236 = scmp.ne.s32.totalorder %s225, %s226
      %p237 = scmp.eq.s32.totalorder %s23, 0
      %p238 = por %p236, %p237
      %p239 = scmp.ne.s32.totalorder %s225, %s226
      %p240 = scmp.eq.s32.totalorder %s24, 1
      %p241 = por %p239, %p240
      %p243 = scmp.ne.s32.totalorder %s226, %s242
      %p244 = scmp.eq.s32.totalorder %s24, 0
      %p245 = por %p243, %p244
      %p246 = scmp.le.s32.totalorder 1, %s18
      %p247 = scmp.lt.s32.totalorder %s18, 3
      %p248 = pnand %p246, %p247
      %p249 = pneg %p248
      // Predicated region
      $region9: #{netblock_forward.1} parent=5 // pred_check
        _
      $region10: #{netblock_forward.1} parent=5 // pred_check_branch
        %251 = sbr.rel (%p248) target = $region12
      $region11: #{netblock_forward.1} parent=5 // pred_region
        %s252 = ssub.s32 %s18, 1
        // Predicated region
        $region13: #{netblock_forward.1} parent=11 // pred_check
          %p253 = pneg %p65
        $region14: #{netblock_forward.1} parent=11 // pred_check_branch
          %255 = sbr.rel (%p253) target = $region16
        $region15: #{netblock_forward.1} parent=11 // pred_region
          _
        $region16: #{netblock_forward.1} parent=11 // pred_fallthru
          _
        // Predicated region
        $region17: #{netblock_forward.1} parent=11 // pred_check
          %p256 = pneg %p86
        $region18: #{netblock_forward.1} parent=11 // pred_check_branch
          %258 = sbr.rel (%p256) target = $region20
        $region19: #{netblock_forward.1} parent=11 // pred_region
          _
        $region20: #{netblock_forward.1} parent=11 // pred_fallthru
          _
        // Predicated region
        $region21: #{netblock_forward.1} parent=11 // pred_check
          %p259 = pneg %p107
        $region22: #{netblock_forward.1} parent=11 // pred_check_branch
          %261 = sbr.rel (%p259) target = $region24
        $region23: #{netblock_forward.1} parent=11 // pred_region
          _
        $region24: #{netblock_forward.1} parent=11 // pred_fallthru
          _
        // Predicated region
        $region25: #{netblock_forward.1} parent=11 // pred_check
          %p262 = pneg %p128
        $region26: #{netblock_forward.1} parent=11 // pred_check_branch
          %264 = sbr.rel (%p262) target = $region28
        $region27: #{netblock_forward.1} parent=11 // pred_region
          _
        $region28: #{netblock_forward.1} parent=11 // pred_fallthru
          _
        // Predicated region
        $region29: #{netblock_forward.1} parent=11 // pred_check
          %p265 = pneg %p149
        $region30: #{netblock_forward.1} parent=11 // pred_check_branch
          %267 = sbr.rel (%p265) target = $region32
        $region31: #{netblock_forward.1} parent=11 // pred_region
          %s269 = ssub.s32 27648, 27648
          %270 = vsyncadd [#allocation8], %s269
          %s271 = sshll.u32 [#allocation7], 4
          %s272 = int_to_ptr.vmem [resolvable:$true] %s271
          %277 = dma.hbm_to_vmem [thread:$0]  %s5, 27648, %s272, [#allocation8], 128, 128, 8
        $region32: #{netblock_forward.1} parent=11 // pred_fallthru
          _
        // Predicated region
        $region33: #{netblock_forward.1} parent=11 // pred_check
          %p278 = pneg %p170
        $region34: #{netblock_forward.1} parent=11 // pred_check_branch
          %280 = sbr.rel (%p278) target = $region36
        $region35: #{netblock_forward.1} parent=11 // pred_region
          _
        $region36: #{netblock_forward.1} parent=11 // pred_fallthru
          _
        // Predicated region
        $region37: #{netblock_forward.1} parent=11 // pred_check
          %p281 = pneg %p191
        $region38: #{netblock_forward.1} parent=11 // pred_check_branch
          %283 = sbr.rel (%p281) target = $region40
        $region39: #{netblock_forward.1} parent=11 // pred_region
          _
        $region40: #{netblock_forward.1} parent=11 // pred_fallthru
          _
        // Predicated region
        $region41: #{netblock_forward.1} parent=11 // pred_check
          %p284 = pneg %p212
        $region42: #{netblock_forward.1} parent=11 // pred_check_branch
          %286 = sbr.rel (%p284) target = $region44
        $region43: #{netblock_forward.1} parent=11 // pred_region
          _
        $region44: #{netblock_forward.1} parent=11 // pred_fallthru
          _
      $region12: #{netblock_forward.1} parent=5 // pred_fallthru
        _
      %p287 = scmp.lt.s32.totalorder %s18, 2
      // Predicated region
      $region45: #{netblock_forward.1} parent=5 // pred_check
        %p288 = pneg %p287
      $region46: #{netblock_forward.1} parent=5 // pred_check_branch
        %290 = sbr.rel (%p288) target = $region48
      $region47: #{netblock_forward.1} parent=5 // pred_region
        // Predicated region
        $region49: #{netblock_forward.1} parent=47 // pred_check
          %p291 = pneg %p38
        $region50: #{netblock_forward.1} parent=47 // pred_check_branch
          %293 = sbr.rel (%p291) target = $region52
        $region51: #{netblock_forward.1} parent=47 // pred_region
          %p294 = scmp.lt.s32.totalorder %s18, 1
          %s295 = scalar_select %p294, %s18, 1
          %s296 = smul.addr %s295, 12
          %s297 = smul.addr %s296, 8
          %s298 = scalar_lea.vmem %s0, %s297
        $region52: #{netblock_forward.1} parent=47 // pred_fallthru
          _
      $region48: #{netblock_forward.1} parent=5 // pred_fallthru
        _
      %p299 = scmp.le.s32.totalorder 1, %s18
      %p300 = scmp.lt.s32.totalorder %s18, 3
      %p301 = pnand %p299, %p300
      %p302 = pneg %p301
      // Predicated region
      $region53: #{netblock_forward.1} parent=5 // pred_check
        _
      $region54: #{netblock_forward.1} parent=5 // pred_check_branch
        %304 = sbr.rel (%p301) target = $region56
      $region55: #{netblock_forward.1} parent=5 // pred_region
        %s305 = ssub.s32 %s18, 1
        // Predicated region
        $region57: #{netblock_forward.1} parent=55 // pred_check
          %p306 = pneg %p149
        $region58: #{netblock_forward.1} parent=55 // pred_check_branch
          %308 = sbr.rel (%p306) target = $region60
        $region59: #{netblock_forward.1} parent=55 // pred_region
          %309 = dma.done [#allocation8], 27648
        $region60: #{netblock_forward.1} parent=55 // pred_fallthru
          _
        %p310 = scmp.lt.s32.totalorder %s23, 1
        %s311 = scalar_select %p310, %s23, 1
        %s312 = smul.addr %s311, 12
        %s313 = smul.addr %s312, 8
        %s314 = scalar_lea.vmem %s0, %s313
        %p315 = pneg %p44
        %p316 = pneg %p41
        %p317 = pneg %p65
        %p318 = pneg %p62
        %p319 = pneg %p86
        %p320 = pneg %p83
        %p321 = pneg %p107
        %p322 = pneg %p104
        %p323 = pneg %p128
        %p324 = pneg %p125
        %p325 = pneg %p149
        %p326 = pneg %p146
        %p327 = pneg %p170
        %p328 = pneg %p167
        %p329 = pneg %p191
        %p330 = pneg %p188
        %p331 = pneg %p212
        %p332 = pneg %p209
        %p333 = pneg %p238
        %p334 = pneg %p235
        %p335 = scmp.lt.s32.totalorder %s23, 1
        %s336 = scalar_select %p335, %s23, 1
        %s337 = smul.addr %s336, 8
        %s338 = smul.addr %s337, 8
        %s339 = scalar_lea.vmem %s9, %s338
        %p340 = scmp.lt.s32.totalorder %s23, 1
        %s341 = scalar_select %p340, %s23, 1
        %s342 = smul.addr %s341, 12
        %s343 = smul.addr %s342, 8
        %s344 = scalar_lea.vmem %s0, %s343
        %p345 = scmp.lt.s32.totalorder %s23, 1
        %s346 = scalar_select %p345, %s23, 1
        %s347 = smul.addr %s346, 8
        %s348 = smul.addr %s347, 8
        %s349 = scalar_lea.vmem %s9, %s348
        %vm350 = vcmask 261120
        %351 = vst.msk [vmem:[#allocation2] sm:$0xff] %vm350, 0.0
        %352 = vst.msk [vmem:[#allocation2 + $0x8] sm:$0xff] %vm350, 0.0
        %353 = vst.msk [vmem:[#allocation2 + $0x50] sm:$0xff] %vm350, 0.0
        %354 = vst.msk [vmem:[#allocation2 + $0x58] sm:$0xff] %vm350, 0.0
        %355 = vst.msk [vmem:[#allocation3] sm:$0xff] %vm350, 0.0
        %356 = vst.msk [vmem:[#allocation3 + $0x8] sm:$0xff] %vm350, 0.0
        %357 = vst.msk [vmem:[#allocation3 + $0x50] sm:$0xff] %vm350, 0.0
        %358 = vst.msk [vmem:[#allocation3 + $0x58] sm:$0xff] %vm350, 0.0
        %v359 = vld [vmem:[%s344 + $0x7] sm:$0xff]
        %v360 = vld [vmem:[%s344 + $0xf] sm:$0xff]
        %v361 = vld [vmem:[%s344 + $0x17] sm:$0xff]
        %v362 = vld [vmem:[%s344 + $0x1f] sm:$0xff]
        %v363 = vld [vmem:[%s344 + $0x27] sm:$0xff]
        %v364 = vld [vmem:[%s344 + $0x2f] sm:$0xff]
        %v365 = vld [vmem:[%s344 + $0x37] sm:$0xff]
        %v366 = vld [vmem:[%s344 + $0x3f] sm:$0xff]
        %v367 = vld [vmem:[%s1] sm:$0xff]
        %v368 = vld [vmem:[%s1 + $0x8] sm:$0xff]
        %v369 = vld [vmem:[%s1 + $0x10] sm:$0xff]
        %v370 = vld [vmem:[%s1 + $0x18] sm:$0xff]
        %v371 = vld [vmem:[%s1 + $0x20] sm:$0xff]
        %v372 = vld [vmem:[%s1 + $0x28] sm:$0xff]
        %v373 = vld [vmem:[%s1 + $0x30] sm:$0xff]
        %v374 = vld [vmem:[%s1 + $0x38] sm:$0xff]
        %v375 = vmul.f32 %v359, %v367
        %v376 = vmul.f32 %v360, %v368
        %v377 = vmul.f32 %v361, %v369
        %v378 = vmul.f32 %v362, %v370
        %v379 = vmul.f32 %v363, %v371
        %v380 = vmul.f32 %v364, %v372
        %v381 = vmul.f32 %v365, %v373
        %v382 = vmul.f32 %v366, %v374
        %vm383 = vcmask 523264
        %384 = vst.msk [vmem:[#allocation4] sm:$0xff] %vm383, %v375
        %385 = vst.msk [vmem:[#allocation4 + $0x28] sm:$0xff] %vm383, %v376
        %386 = vst.msk [vmem:[#allocation4 + $0x50] sm:$0xff] %vm383, %v377
        %387 = vst.msk [vmem:[#allocation4 + $0x78] sm:$0xff] %vm383, %v378
        %388 = vst.msk [vmem:[#allocation4 + $0xa0] sm:$0xff] %vm383, %v379
        %389 = vst.msk [vmem:[#allocation4 + $0xc8] sm:$0xff] %vm383, %v380
        %390 = vst.msk [vmem:[#allocation4 + $0xf0] sm:$0xff] %vm383, %v381
        %391 = vst.msk [vmem:[#allocation4 + $0x118] sm:$0xff] %vm383, %v382
        %v392 = vld [vmem:[%s344 + $0x8] sm:$0xff]
        %v393 = vld [vmem:[%s344 + $0x10] sm:$0xff]
        %v394 = vld [vmem:[%s344 + $0x18] sm:$0xff]
        %v395 = vld [vmem:[%s344 + $0x20] sm:$0xff]
        %v396 = vld [vmem:[%s344 + $0x28] sm:$0xff]
        %v397 = vld [vmem:[%s344 + $0x30] sm:$0xff]
        %v398 = vld [vmem:[%s344 + $0x38] sm:$0xff]
        %v399 = vld [vmem:[%s344 + $0x40] sm:$0xff]
        %s400 = scalar_lea.vmem %s1, 64
        %v401 = vld [vmem:[%s400] sm:$0xff]
        %v402 = vld [vmem:[%s400 + $0x8] sm:$0xff]
        %v403 = vld [vmem:[%s400 + $0x10] sm:$0xff]
        %v404 = vld [vmem:[%s400 + $0x18] sm:$0xff]
        %v405 = vld [vmem:[%s400 + $0x20] sm:$0xff]
        %v406 = vld [vmem:[%s400 + $0x28] sm:$0xff]
        %v407 = vld [vmem:[%s400 + $0x30] sm:$0xff]
        %v408 = vld [vmem:[%s400 + $0x38] sm:$0xff]
        %v409 = vmul.f32 %v392, %v401
        %v410 = vmul.f32 %v393, %v402
        %v411 = vmul.f32 %v394, %v403
        %v412 = vmul.f32 %v395, %v404
        %v413 = vmul.f32 %v396, %v405
        %v414 = vmul.f32 %v397, %v406
        %v415 = vmul.f32 %v398, %v407
        %v416 = vmul.f32 %v399, %v408
        %425 = vrot.lane.b32.xlu0 %v409, 64
        %v426 = vpop.permute.xlu0 %425
        %427 = vrot.lane.b32.xlu0 %v410, 64
        %v428 = vpop.permute.xlu0 %427
        %429 = vrot.lane.b32.xlu0 %v411, 64
        %v430 = vpop.permute.xlu0 %429
        %431 = vrot.lane.b32.xlu0 %v412, 64
        %v432 = vpop.permute.xlu0 %431
        %433 = vrot.lane.b32.xlu0 %v413, 64
        %v434 = vpop.permute.xlu0 %433
        %435 = vrot.lane.b32.xlu0 %v414, 64
        %v436 = vpop.permute.xlu0 %435
        %437 = vrot.lane.b32.xlu0 %v415, 64
        %v438 = vpop.permute.xlu0 %437
        %439 = vrot.lane.b32.xlu0 %v416, 64
        %v440 = vpop.permute.xlu0 %439
        %vm449 = vcmask 1048064
        %450 = vst.msk [vmem:[#allocation4] sm:$0xff] %vm449, %v426
        %451 = vst.msk [vmem:[#allocation4 + $0x28] sm:$0xff] %vm449, %v428
        %452 = vst.msk [vmem:[#allocation4 + $0x50] sm:$0xff] %vm449, %v430
        %453 = vst.msk [vmem:[#allocation4 + $0x78] sm:$0xff] %vm449, %v432
        %454 = vst.msk [vmem:[#allocation4 + $0xa0] sm:$0xff] %vm449, %v434
        %455 = vst.msk [vmem:[#allocation4 + $0xc8] sm:$0xff] %vm449, %v436
        %456 = vst.msk [vmem:[#allocation4 + $0xf0] sm:$0xff] %vm449, %v438
        %457 = vst.msk [vmem:[#allocation4 + $0x118] sm:$0xff] %vm449, %v440
        %v458 = vld [vmem:[%s344 + $0x9] sm:$0xff]
        %v459 = vld [vmem:[%s344 + $0x11] sm:$0xff]
        %v460 = vld [vmem:[%s344 + $0x19] sm:$0xff]
        %v461 = vld [vmem:[%s344 + $0x21] sm:$0xff]
        %v462 = vld [vmem:[%s344 + $0x29] sm:$0xff]
        %v463 = vld [vmem:[%s344 + $0x31] sm:$0xff]
        %v464 = vld [vmem:[%s344 + $0x39] sm:$0xff]
        %v465 = vld [vmem:[%s344 + $0x41] sm:$0xff]
        %s466 = scalar_lea.vmem %s1, 128
        %v467 = vld [vmem:[%s466] sm:$0xff]
        %v468 = vld [vmem:[%s466 + $0x8] sm:$0xff]
        %v469 = vld [vmem:[%s466 + $0x10] sm:$0xff]
        %v470 = vld [vmem:[%s466 + $0x18] sm:$0xff]
        %v471 = vld [vmem:[%s466 + $0x20] sm:$0xff]
        %v472 = vld [vmem:[%s466 + $0x28] sm:$0xff]
        %v473 = vld [vmem:[%s466 + $0x30] sm:$0xff]
        %v474 = vld [vmem:[%s466 + $0x38] sm:$0xff]
        %v475 = vmul.f32 %v458, %v467
        %v476 = vmul.f32 %v459, %v468
        %v477 = vmul.f32 %v460, %v469
        %v478 = vmul.f32 %v461, %v470
        %v479 = vmul.f32 %v462, %v471
        %v480 = vmul.f32 %v463, %v472
        %v481 = vmul.f32 %v464, %v473
        %v482 = vmul.f32 %v465, %v474
        %483 = vst.msk [vmem:[#allocation4 + $0x8] sm:$0xff] %vm383, %v475
        %484 = vst.msk [vmem:[#allocation4 + $0x30] sm:$0xff] %vm383, %v476
        %485 = vst.msk [vmem:[#allocation4 + $0x58] sm:$0xff] %vm383, %v477
        %486 = vst.msk [vmem:[#allocation4 + $0x80] sm:$0xff] %vm383, %v478
        %487 = vst.msk [vmem:[#allocation4 + $0xa8] sm:$0xff] %vm383, %v479
        %488 = vst.msk [vmem:[#allocation4 + $0xd0] sm:$0xff] %vm383, %v480
        %489 = vst.msk [vmem:[#allocation4 + $0xf8] sm:$0xff] %vm383, %v481
        %490 = vst.msk [vmem:[#allocation4 + $0x120] sm:$0xff] %vm383, %v482
        %v491 = vld [vmem:[%s344 + $0xf] sm:$0xff]
        %v492 = vld [vmem:[%s344 + $0x17] sm:$0xff]
        %v493 = vld [vmem:[%s344 + $0x1f] sm:$0xff]
        %v494 = vld [vmem:[%s344 + $0x27] sm:$0xff]
        %v495 = vld [vmem:[%s344 + $0x2f] sm:$0xff]
        %v496 = vld [vmem:[%s344 + $0x37] sm:$0xff]
        %v497 = vld [vmem:[%s344 + $0x3f] sm:$0xff]
        %v498 = vld [vmem:[%s344 + $0x47] sm:$0xff]
        %s499 = scalar_lea.vmem %s1, 192
        %v500 = vld [vmem:[%s499] sm:$0xff]
        %v501 = vld [vmem:[%s499 + $0x8] sm:$0xff]
        %v502 = vld [vmem:[%s499 + $0x10] sm:$0xff]
        %v503 = vld [vmem:[%s499 + $0x18] sm:$0xff]
        %v504 = vld [vmem:[%s499 + $0x20] sm:$0xff]
        %v505 = vld [vmem:[%s499 + $0x28] sm:$0xff]
        %v506 = vld [vmem:[%s499 + $0x30] sm:$0xff]
        %v507 = vld [vmem:[%s499 + $0x38] sm:$0xff]
        %v508 = vmul.f32 %v491, %v500
        %v509 = vmul.f32 %v492, %v501
        %v510 = vmul.f32 %v493, %v502
        %v511 = vmul.f32 %v494, %v503
        %v512 = vmul.f32 %v495, %v504
        %v513 = vmul.f32 %v496, %v505
        %v514 = vmul.f32 %v497, %v506
        %v515 = vmul.f32 %v498, %v507
        %524 = vrot.lane.b32.xlu0 %v508, 64
        %v525 = vpop.permute.xlu0 %524
        %526 = vrot.lane.b32.xlu0 %v509, 64
        %v527 = vpop.permute.xlu0 %526
        %528 = vrot.lane.b32.xlu0 %v510, 64
        %v529 = vpop.permute.xlu0 %528
        %530 = vrot.lane.b32.xlu0 %v511, 64
        %v531 = vpop.permute.xlu0 %530
        %532 = vrot.lane.b32.xlu0 %v512, 64
        %v533 = vpop.permute.xlu0 %532
        %534 = vrot.lane.b32.xlu0 %v513, 64
        %v535 = vpop.permute.xlu0 %534
        %536 = vrot.lane.b32.xlu0 %v514, 64
        %v537 = vpop.permute.xlu0 %536
        %538 = vrot.lane.b32.xlu0 %v515, 64
        %v539 = vpop.permute.xlu0 %538
        %548 = vst.msk [vmem:[#allocation4 + $0x8] sm:$0xff] %vm449, %v525
        %549 = vst.msk [vmem:[#allocation4 + $0x30] sm:$0xff] %vm449, %v527
        %550 = vst.msk [vmem:[#allocation4 + $0x58] sm:$0xff] %vm449, %v529
        %551 = vst.msk [vmem:[#allocation4 + $0x80] sm:$0xff] %vm449, %v531
        %552 = vst.msk [vmem:[#allocation4 + $0xa8] sm:$0xff] %vm449, %v533
        %553 = vst.msk [vmem:[#allocation4 + $0xd0] sm:$0xff] %vm449, %v535
        %554 = vst.msk [vmem:[#allocation4 + $0xf8] sm:$0xff] %vm449, %v537
        %555 = vst.msk [vmem:[#allocation4 + $0x120] sm:$0xff] %vm449, %v539
        %v556 = vld [vmem:[%s344 + $0x10] sm:$0xff]
        %v557 = vld [vmem:[%s344 + $0x18] sm:$0xff]
        %v558 = vld [vmem:[%s344 + $0x20] sm:$0xff]
        %v559 = vld [vmem:[%s344 + $0x28] sm:$0xff]
        %v560 = vld [vmem:[%s344 + $0x30] sm:$0xff]
        %v561 = vld [vmem:[%s344 + $0x38] sm:$0xff]
        %v562 = vld [vmem:[%s344 + $0x40] sm:$0xff]
        %v563 = vld [vmem:[%s344 + $0x48] sm:$0xff]
        %564 = vst.msk [vmem:[#allocation4 + $0x10] sm:$0xff] %vm383, %v556
        %565 = vst.msk [vmem:[#allocation4 + $0x38] sm:$0xff] %vm383, %v557
        %566 = vst.msk [vmem:[#allocation4 + $0x60] sm:$0xff] %vm383, %v558
        %567 = vst.msk [vmem:[#allocation4 + $0x88] sm:$0xff] %vm383, %v559
        %568 = vst.msk [vmem:[#allocation4 + $0xb0] sm:$0xff] %vm383, %v560
        %569 = vst.msk [vmem:[#allocation4 + $0xd8] sm:$0xff] %vm383, %v561
        %570 = vst.msk [vmem:[#allocation4 + $0x100] sm:$0xff] %vm383, %v562
        %571 = vst.msk [vmem:[#allocation4 + $0x128] sm:$0xff] %vm383, %v563
        %v572 = vld [vmem:[%s344 + $0x11] sm:$0xff]
        %v573 = vld [vmem:[%s344 + $0x19] sm:$0xff]
        %v574 = vld [vmem:[%s344 + $0x21] sm:$0xff]
        %v575 = vld [vmem:[%s344 + $0x29] sm:$0xff]
        %v576 = vld [vmem:[%s344 + $0x31] sm:$0xff]
        %v577 = vld [vmem:[%s344 + $0x39] sm:$0xff]
        %v578 = vld [vmem:[%s344 + $0x41] sm:$0xff]
        %v579 = vld [vmem:[%s344 + $0x49] sm:$0xff]
        %s580 = scalar_lea.vmem %s1, 320
        %v581 = vld [vmem:[%s580] sm:$0xff]
        %v582 = vld [vmem:[%s580 + $0x8] sm:$0xff]
        %v583 = vld [vmem:[%s580 + $0x10] sm:$0xff]
        %v584 = vld [vmem:[%s580 + $0x18] sm:$0xff]
        %v585 = vld [vmem:[%s580 + $0x20] sm:$0xff]
        %v586 = vld [vmem:[%s580 + $0x28] sm:$0xff]
        %v587 = vld [vmem:[%s580 + $0x30] sm:$0xff]
        %v588 = vld [vmem:[%s580 + $0x38] sm:$0xff]
        %v589 = vmul.f32 %v572, %v581
        %v590 = vmul.f32 %v573, %v582
        %v591 = vmul.f32 %v574, %v583
        %v592 = vmul.f32 %v575, %v584
        %v593 = vmul.f32 %v576, %v585
        %v594 = vmul.f32 %v577, %v586
        %v595 = vmul.f32 %v578, %v587
        %v596 = vmul.f32 %v579, %v588
        %605 = vrot.lane.b32.xlu0 %v589, 64
        %v606 = vpop.permute.xlu0 %605
        %607 = vrot.lane.b32.xlu0 %v590, 64
        %v608 = vpop.permute.xlu0 %607
        %609 = vrot.lane.b32.xlu0 %v591, 64
        %v610 = vpop.permute.xlu0 %609
        %611 = vrot.lane.b32.xlu0 %v592, 64
        %v612 = vpop.permute.xlu0 %611
        %613 = vrot.lane.b32.xlu0 %v593, 64
        %v614 = vpop.permute.xlu0 %613
        %615 = vrot.lane.b32.xlu0 %v594, 64
        %v616 = vpop.permute.xlu0 %615
        %617 = vrot.lane.b32.xlu0 %v595, 64
        %v618 = vpop.permute.xlu0 %617
        %619 = vrot.lane.b32.xlu0 %v596, 64
        %v620 = vpop.permute.xlu0 %619
        %629 = vst.msk [vmem:[#allocation4 + $0x10] sm:$0xff] %vm449, %v606
        %630 = vst.msk [vmem:[#allocation4 + $0x38] sm:$0xff] %vm449, %v608
        %631 = vst.msk [vmem:[#allocation4 + $0x60] sm:$0xff] %vm449, %v610
        %632 = vst.msk [vmem:[#allocation4 + $0x88] sm:$0xff] %vm449, %v612
        %633 = vst.msk [vmem:[#allocation4 + $0xb0] sm:$0xff] %vm449, %v614
        %634 = vst.msk [vmem:[#allocation4 + $0xd8] sm:$0xff] %vm449, %v616
        %635 = vst.msk [vmem:[#allocation4 + $0x100] sm:$0xff] %vm449, %v618
        %636 = vst.msk [vmem:[#allocation4 + $0x128] sm:$0xff] %vm449, %v620
        %v637 = vld [vmem:[%s344 + $0x17] sm:$0xff]
        %v638 = vld [vmem:[%s344 + $0x1f] sm:$0xff]
        %v639 = vld [vmem:[%s344 + $0x27] sm:$0xff]
        %v640 = vld [vmem:[%s344 + $0x2f] sm:$0xff]
        %v641 = vld [vmem:[%s344 + $0x37] sm:$0xff]
        %v642 = vld [vmem:[%s344 + $0x3f] sm:$0xff]
        %v643 = vld [vmem:[%s344 + $0x47] sm:$0xff]
        %v644 = vld [vmem:[%s344 + $0x4f] sm:$0xff]
        %s645 = scalar_lea.vmem %s1, 384
        %v646 = vld [vmem:[%s645] sm:$0xff]
        %v647 = vld [vmem:[%s645 + $0x8] sm:$0xff]
        %v648 = vld [vmem:[%s645 + $0x10] sm:$0xff]
        %v649 = vld [vmem:[%s645 + $0x18] sm:$0xff]
        %v650 = vld [vmem:[%s645 + $0x20] sm:$0xff]
        %v651 = vld [vmem:[%s645 + $0x28] sm:$0xff]
        %v652 = vld [vmem:[%s645 + $0x30] sm:$0xff]
        %v653 = vld [vmem:[%s645 + $0x38] sm:$0xff]
        %v654 = vmul.f32 %v637, %v646
        %v655 = vmul.f32 %v638, %v647
        %v656 = vmul.f32 %v639, %v648
        %v657 = vmul.f32 %v640, %v649
        %v658 = vmul.f32 %v641, %v650
        %v659 = vmul.f32 %v642, %v651
        %v660 = vmul.f32 %v643, %v652
        %v661 = vmul.f32 %v644, %v653
        %662 = vst.msk [vmem:[#allocation4 + $0x18] sm:$0xff] %vm383, %v654
        %663 = vst.msk [vmem:[#allocation4 + $0x40] sm:$0xff] %vm383, %v655
        %664 = vst.msk [vmem:[#allocation4 + $0x68] sm:$0xff] %vm383, %v656
        %665 = vst.msk [vmem:[#allocation4 + $0x90] sm:$0xff] %vm383, %v657
        %666 = vst.msk [vmem:[#allocation4 + $0xb8] sm:$0xff] %vm383, %v658
        %667 = vst.msk [vmem:[#allocation4 + $0xe0] sm:$0xff] %vm383, %v659
        %668 = vst.msk [vmem:[#allocation4 + $0x108] sm:$0xff] %vm383, %v660
        %669 = vst.msk [vmem:[#allocation4 + $0x130] sm:$0xff] %vm383, %v661
        %v670 = vld [vmem:[%s344 + $0x18] sm:$0xff]
        %v671 = vld [vmem:[%s344 + $0x20] sm:$0xff]
        %v672 = vld [vmem:[%s344 + $0x28] sm:$0xff]
        %v673 = vld [vmem:[%s344 + $0x30] sm:$0xff]
        %v674 = vld [vmem:[%s344 + $0x38] sm:$0xff]
        %v675 = vld [vmem:[%s344 + $0x40] sm:$0xff]
        %v676 = vld [vmem:[%s344 + $0x48] sm:$0xff]
        %v677 = vld [vmem:[%s344 + $0x50] sm:$0xff]
        %s678 = scalar_lea.vmem %s1, 448
        %v679 = vld [vmem:[%s678] sm:$0xff]
        %v680 = vld [vmem:[%s678 + $0x8] sm:$0xff]
        %v681 = vld [vmem:[%s678 + $0x10] sm:$0xff]
        %v682 = vld [vmem:[%s678 + $0x18] sm:$0xff]
        %v683 = vld [vmem:[%s678 + $0x20] sm:$0xff]
        %v684 = vld [vmem:[%s678 + $0x28] sm:$0xff]
        %v685 = vld [vmem:[%s678 + $0x30] sm:$0xff]
        %v686 = vld [vmem:[%s678 + $0x38] sm:$0xff]
        %v687 = vmul.f32 %v670, %v679
        %v688 = vmul.f32 %v671, %v680
        %v689 = vmul.f32 %v672, %v681
        %v690 = vmul.f32 %v673, %v682
        %v691 = vmul.f32 %v674, %v683
        %v692 = vmul.f32 %v675, %v684
        %v693 = vmul.f32 %v676, %v685
        %v694 = vmul.f32 %v677, %v686
        %703 = vrot.lane.b32.xlu0 %v687, 64
        %v704 = vpop.permute.xlu0 %703
        %705 = vrot.lane.b32.xlu0 %v688, 64
        %v706 = vpop.permute.xlu0 %705
        %707 = vrot.lane.b32.xlu0 %v689, 64
        %v708 = vpop.permute.xlu0 %707
        %709 = vrot.lane.b32.xlu0 %v690, 64
        %v710 = vpop.permute.xlu0 %709
        %711 = vrot.lane.b32.xlu0 %v691, 64
        %v712 = vpop.permute.xlu0 %711
        %713 = vrot.lane.b32.xlu0 %v692, 64
        %v714 = vpop.permute.xlu0 %713
        %715 = vrot.lane.b32.xlu0 %v693, 64
        %v716 = vpop.permute.xlu0 %715
        %717 = vrot.lane.b32.xlu0 %v694, 64
        %v718 = vpop.permute.xlu0 %717
        %727 = vst.msk [vmem:[#allocation4 + $0x18] sm:$0xff] %vm449, %v704
        %728 = vst.msk [vmem:[#allocation4 + $0x40] sm:$0xff] %vm449, %v706
        %729 = vst.msk [vmem:[#allocation4 + $0x68] sm:$0xff] %vm449, %v708
        %730 = vst.msk [vmem:[#allocation4 + $0x90] sm:$0xff] %vm449, %v710
        %731 = vst.msk [vmem:[#allocation4 + $0xb8] sm:$0xff] %vm449, %v712
        %732 = vst.msk [vmem:[#allocation4 + $0xe0] sm:$0xff] %vm449, %v714
        %733 = vst.msk [vmem:[#allocation4 + $0x108] sm:$0xff] %vm449, %v716
        %734 = vst.msk [vmem:[#allocation4 + $0x130] sm:$0xff] %vm449, %v718
        %v735 = vld [vmem:[%s344 + $0x19] sm:$0xff]
        %v736 = vld [vmem:[%s344 + $0x21] sm:$0xff]
        %v737 = vld [vmem:[%s344 + $0x29] sm:$0xff]
        %v738 = vld [vmem:[%s344 + $0x31] sm:$0xff]
        %v739 = vld [vmem:[%s344 + $0x39] sm:$0xff]
        %v740 = vld [vmem:[%s344 + $0x41] sm:$0xff]
        %v741 = vld [vmem:[%s344 + $0x49] sm:$0xff]
        %v742 = vld [vmem:[%s344 + $0x51] sm:$0xff]
        %s743 = scalar_lea.vmem %s1, 512
        %v744 = vld [vmem:[%s743] sm:$0xff]
        %v745 = vld [vmem:[%s743 + $0x8] sm:$0xff]
        %v746 = vld [vmem:[%s743 + $0x10] sm:$0xff]
        %v747 = vld [vmem:[%s743 + $0x18] sm:$0xff]
        %v748 = vld [vmem:[%s743 + $0x20] sm:$0xff]
        %v749 = vld [vmem:[%s743 + $0x28] sm:$0xff]
        %v750 = vld [vmem:[%s743 + $0x30] sm:$0xff]
        %v751 = vld [vmem:[%s743 + $0x38] sm:$0xff]
        %v752 = vmul.f32 %v735, %v744
        %v753 = vmul.f32 %v736, %v745
        %v754 = vmul.f32 %v737, %v746
        %v755 = vmul.f32 %v738, %v747
        %v756 = vmul.f32 %v739, %v748
        %v757 = vmul.f32 %v740, %v749
        %v758 = vmul.f32 %v741, %v750
        %v759 = vmul.f32 %v742, %v751
        %760 = vst.msk [vmem:[#allocation4 + $0x20] sm:$0xff] %vm383, %v752
        %761 = vst.msk [vmem:[#allocation4 + $0x48] sm:$0xff] %vm383, %v753
        %762 = vst.msk [vmem:[#allocation4 + $0x70] sm:$0xff] %vm383, %v754
        %763 = vst.msk [vmem:[#allocation4 + $0x98] sm:$0xff] %vm383, %v755
        %764 = vst.msk [vmem:[#allocation4 + $0xc0] sm:$0xff] %vm383, %v756
        %765 = vst.msk [vmem:[#allocation4 + $0xe8] sm:$0xff] %vm383, %v757
        %766 = vst.msk [vmem:[#allocation4 + $0x110] sm:$0xff] %vm383, %v758
        %767 = vst.msk [vmem:[#allocation4 + $0x138] sm:$0xff] %vm383, %v759
        %v768 = vld [vmem:[#allocation4] sm:$0xff]
        %v769 = vld [vmem:[#allocation4 + $0x8] sm:$0xff]
        %v770 = vld [vmem:[#allocation4 + $0x10] sm:$0xff]
        %v771 = vld [vmem:[#allocation4 + $0x18] sm:$0xff]
        %v772 = vld [vmem:[#allocation4 + $0x20] sm:$0xff]
        %v773 = vld [vmem:[#allocation4 + $0x28] sm:$0xff]
        %v774 = vld [vmem:[#allocation4 + $0x30] sm:$0xff]
        %v775 = vld [vmem:[#allocation4 + $0x38] sm:$0xff]
        %v776 = vld [vmem:[#allocation4 + $0x40] sm:$0xff]
        %v777 = vld [vmem:[#allocation4 + $0x48] sm:$0xff]
        %v778 = vld [vmem:[#allocation4 + $0x50] sm:$0xff]
        %v779 = vld [vmem:[#allocation4 + $0x58] sm:$0xff]
        %v780 = vld [vmem:[#allocation4 + $0x60] sm:$0xff]
        %v781 = vld [vmem:[#allocation4 + $0x68] sm:$0xff]
        %v782 = vld [vmem:[#allocation4 + $0x70] sm:$0xff]
        %v783 = vld [vmem:[#allocation4 + $0x78] sm:$0xff]
        %v784 = vld [vmem:[#allocation4 + $0x80] sm:$0xff]
        %v785 = vld [vmem:[#allocation4 + $0x88] sm:$0xff]
        %v786 = vld [vmem:[#allocation4 + $0x90] sm:$0xff]
        %v787 = vld [vmem:[#allocation4 + $0x98] sm:$0xff]
        %v788 = vld [vmem:[#allocation4 + $0xa0] sm:$0xff]
        %v789 = vld [vmem:[#allocation4 + $0xa8] sm:$0xff]
        %v790 = vld [vmem:[#allocation4 + $0xb0] sm:$0xff]
        %v791 = vld [vmem:[#allocation4 + $0xb8] sm:$0xff]
        %v792 = vld [vmem:[#allocation4 + $0xc0] sm:$0xff]
        %v793 = vld [vmem:[#allocation4 + $0xc8] sm:$0xff]
        %v794 = vld [vmem:[#allocation4 + $0xd0] sm:$0xff]
        %v795 = vld [vmem:[#allocation4 + $0xd8] sm:$0xff]
        %v796 = vld [vmem:[#allocation4 + $0xe0] sm:$0xff]
        %v797 = vld [vmem:[#allocation4 + $0xe8] sm:$0xff]
        %v798 = vld [vmem:[#allocation4 + $0xf0] sm:$0xff]
        %v799 = vld [vmem:[#allocation4 + $0xf8] sm:$0xff]
        %v800 = vld [vmem:[#allocation4 + $0x100] sm:$0xff]
        %v801 = vld [vmem:[#allocation4 + $0x108] sm:$0xff]
        %v802 = vld [vmem:[#allocation4 + $0x110] sm:$0xff]
        %v803 = vld [vmem:[#allocation4 + $0x118] sm:$0xff]
        %v804 = vld [vmem:[#allocation4 + $0x120] sm:$0xff]
        %v805 = vld [vmem:[#allocation4 + $0x128] sm:$0xff]
        %v806 = vld [vmem:[#allocation4 + $0x130] sm:$0xff]
        %v807 = vld [vmem:[#allocation4 + $0x138] sm:$0xff]
        %v808 = vld [vmem:[%s3] sm:$0xff]
        %v809 = vld [vmem:[%s3 + $0x8] sm:$0xff]
        %v810 = vld [vmem:[%s3 + $0x10] sm:$0xff]
        %v811 = vld [vmem:[%s3 + $0x18] sm:$0xff]
        %v812 = vld [vmem:[%s3 + $0x20] sm:$0xff]
        %v813 = vld [vmem:[%s3 + $0x28] sm:$0xff]
        %v814 = vld [vmem:[%s3 + $0x30] sm:$0xff]
        %v815 = vld [vmem:[%s3 + $0x38] sm:$0xff]
        %v816 = vld [vmem:[%s3 + $0x40] sm:$0xff]
        %v817 = vld [vmem:[%s3 + $0x48] sm:$0xff]
        %v818 = vld [vmem:[%s3 + $0x50] sm:$0xff]
        %v819 = vld [vmem:[%s3 + $0x58] sm:$0xff]
        %v820 = vld [vmem:[%s3 + $0x60] sm:$0xff]
        %v821 = vld [vmem:[%s3 + $0x68] sm:$0xff]
        %v822 = vld [vmem:[%s3 + $0x70] sm:$0xff]
        %v823 = vld [vmem:[%s3 + $0x78] sm:$0xff]
        %v824 = vld [vmem:[%s3 + $0x80] sm:$0xff]
        %v825 = vld [vmem:[%s3 + $0x88] sm:$0xff]
        %v826 = vld [vmem:[%s3 + $0x90] sm:$0xff]
        %v827 = vld [vmem:[%s3 + $0x98] sm:$0xff]
        %v828 = vld [vmem:[%s3 + $0xa0] sm:$0xff]
        %v829 = vld [vmem:[%s3 + $0xa8] sm:$0xff]
        %v830 = vld [vmem:[%s3 + $0xb0] sm:$0xff]
        %v831 = vld [vmem:[%s3 + $0xb8] sm:$0xff]
        %v832 = vld [vmem:[%s3 + $0xc0] sm:$0xff]
        %v833 = vld [vmem:[%s3 + $0xc8] sm:$0xff]
        %v834 = vld [vmem:[%s3 + $0xd0] sm:$0xff]
        %v835 = vld [vmem:[%s3 + $0xd8] sm:$0xff]
        %v836 = vld [vmem:[%s3 + $0xe0] sm:$0xff]
        %v837 = vld [vmem:[%s3 + $0xe8] sm:$0xff]
        %v838 = vld [vmem:[%s3 + $0xf0] sm:$0xff]
        %v839 = vld [vmem:[%s3 + $0xf8] sm:$0xff]
        %v840 = vld [vmem:[%s3 + $0x100] sm:$0xff]
        %v841 = vld [vmem:[%s3 + $0x108] sm:$0xff]
        %v842 = vld [vmem:[%s3 + $0x110] sm:$0xff]
        %v843 = vld [vmem:[%s3 + $0x118] sm:$0xff]
        %v844 = vld [vmem:[%s3 + $0x120] sm:$0xff]
        %v845 = vld [vmem:[%s3 + $0x128] sm:$0xff]
        %v846 = vld [vmem:[%s3 + $0x130] sm:$0xff]
        %v847 = vld [vmem:[%s3 + $0x138] sm:$0xff]
        %v848 = vld [vmem:[%s3 + $0x140] sm:$0xff]
        %v849 = vld [vmem:[%s3 + $0x148] sm:$0xff]
        %v850 = vld [vmem:[%s3 + $0x150] sm:$0xff]
        %v851 = vld [vmem:[%s3 + $0x158] sm:$0xff]
        %v852 = vld [vmem:[%s3 + $0x160] sm:$0xff]
        %v853 = vld [vmem:[%s3 + $0x168] sm:$0xff]
        %v854 = vld [vmem:[%s3 + $0x170] sm:$0xff]
        %v855 = vld [vmem:[%s3 + $0x178] sm:$0xff]
        %v856 = vld [vmem:[%s3 + $0x180] sm:$0xff]
        %v857 = vld [vmem:[%s3 + $0x188] sm:$0xff]
        %v858 = vld [vmem:[%s3 + $0x190] sm:$0xff]
        %v859 = vld [vmem:[%s3 + $0x198] sm:$0xff]
        %v860 = vld [vmem:[%s3 + $0x1a0] sm:$0xff]
        %v861 = vld [vmem:[%s3 + $0x1a8] sm:$0xff]
        %v862 = vld [vmem:[%s3 + $0x1b0] sm:$0xff]
        %v863 = vld [vmem:[%s3 + $0x1b8] sm:$0xff]
        %v864 = vld [vmem:[%s3 + $0x1c0] sm:$0xff]
        %v865 = vld [vmem:[%s3 + $0x1c8] sm:$0xff]
        %v866 = vld [vmem:[%s3 + $0x1d0] sm:$0xff]
        %v867 = vld [vmem:[%s3 + $0x1d8] sm:$0xff]
        %v868 = vld [vmem:[%s3 + $0x1e0] sm:$0xff]
        %v869 = vld [vmem:[%s3 + $0x1e8] sm:$0xff]
        %v870 = vld [vmem:[%s3 + $0x1f0] sm:$0xff]
        %v871 = vld [vmem:[%s3 + $0x1f8] sm:$0xff]
        %v872 = vld [vmem:[%s3 + $0x200] sm:$0xff]
        %v873 = vld [vmem:[%s3 + $0x208] sm:$0xff]
        %v874 = vld [vmem:[%s3 + $0x210] sm:$0xff]
        %v875 = vld [vmem:[%s3 + $0x218] sm:$0xff]
        %v876 = vld [vmem:[%s3 + $0x220] sm:$0xff]
        %v877 = vld [vmem:[%s3 + $0x228] sm:$0xff]
        %v878 = vld [vmem:[%s3 + $0x230] sm:$0xff]
        %v879 = vld [vmem:[%s3 + $0x238] sm:$0xff]
        %v880 = vld [vmem:[%s4] sm:$0x1]
        %v882 = vlaneseq
        %v883 = vshrl.u32 %v882, 7
        %v884 = vsub.s32 0, %v883
        %v885 = vrot.slane %v880, %v884
        %v888 = vsel %vm383, %v772, 0
        %v891 = vsel %vm383, %v777, 0
        %v894 = vsel %vm383, %v782, 0
        %v897 = vsel %vm383, %v787, 0
        %v900 = vsel %vm383, %v792, 0
        %v903 = vsel %vm383, %v797, 0
        %v906 = vsel %vm383, %v802, 0
        %v909 = vsel %vm383, %v807, 0
        %911 = vmatprep.subr.mxu0 0.0
        %912 = vmatpush1.msra.mxu0 %v808
        %913 = vmatprep.subr.mxu0 0.0
        %914 = vmatpush1.msra.mxu0 %v809
        %915 = vmatprep.subr.mxu0 0.0
        %916 = vmatpush1.msra.mxu0 %v810
        %917 = vmatprep.subr.mxu0 0.0
        %918 = vmatpush1.msra.mxu0 %v811
        %919 = vmatprep.subr.mxu0 0.0
        %920 = vmatpush1.msra.mxu0 %v812
        %921 = vmatprep.subr.mxu0 0.0
        %922 = vmatpush1.msra.mxu0 %v813
        %923 = vmatprep.subr.mxu0 0.0
        %924 = vmatpush1.msra.mxu0 %v814
        %925 = vmatprep.subr.mxu0 0.0
        %926 = vmatpush1.msra.mxu0 %v815
        %927 = vmatprep.subr.mxu0 0.0
        %928 = vmatpush1.msra.mxu0 %v816
        %929 = vmatprep.subr.mxu0 0.0
        %930 = vmatpush1.msra.mxu0 %v817
        %931 = vmatprep.subr.mxu0 0.0
        %932 = vmatpush1.msra.mxu0 %v818
        %933 = vmatprep.subr.mxu0 0.0
        %934 = vmatpush1.msra.mxu0 %v819
        %935 = vmatprep.subr.mxu0 0.0
        %936 = vmatpush1.msra.mxu0 %v820
        %937 = vmatprep.subr.mxu0 0.0
        %938 = vmatpush1.msra.mxu0 %v821
        %939 = vmatprep.subr.mxu0 0.0
        %940 = vmatpush1.msra.mxu0 %v822
        %941 = vmatprep.subr.mxu0 0.0
        %942 = vmatpush1.msra.mxu0 %v823
        %943 = vmatprep.subr.mxu0 0.0
        %944 = vmatpush1.msra.mxu0 %v824
        %945 = vmatprep.subr.mxu0 0.0
        %946 = vmatpush1.msra.mxu0 %v825
        %947 = vmatprep.subr.mxu0 0.0
        %948 = vmatpush1.msra.mxu0 %v826
        %949 = vmatprep.subr.mxu0 0.0
        %950 = vmatpush1.msra.mxu0 %v827
        %951 = vmatprep.subr.mxu0 0.0
        %952 = vmatpush1.msra.mxu0 %v828
        %953 = vmatprep.subr.mxu0 0.0
        %954 = vmatpush1.msra.mxu0 %v829
        %955 = vmatprep.subr.mxu0 0.0
        %956 = vmatpush1.msra.mxu0 %v830
        %957 = vmatprep.subr.mxu0 0.0
        %958 = vmatpush1.msra.mxu0 %v831
        %959 = vmatprep.subr.mxu0 0.0
        %960 = vmatpush1.msra.mxu0 %v832
        %961 = vmatprep.subr.mxu0 0.0
        %962 = vmatpush1.msra.mxu0 %v833
        %963 = vmatprep.subr.mxu0 0.0
        %964 = vmatpush1.msra.mxu0 %v834
        %965 = vmatprep.subr.mxu0 0.0
        %966 = vmatpush1.msra.mxu0 %v835
        %967 = vmatprep.subr.mxu0 0.0
        %968 = vmatpush1.msra.mxu0 %v836
        %969 = vmatprep.subr.mxu0 0.0
        %970 = vmatpush1.msra.mxu0 %v837
        %971 = vmatprep.subr.mxu0 0.0
        %972 = vmatpush1.msra.mxu0 %v838
        %973 = vmatprep.subr.mxu0 0.0
        %974 = vmatpush1.msra.mxu0 %v839
        %975 = vmatprep.mubr.f32.mxu0 %v769
        %976 = vmatmul.mubr.f32.gmra.mrb[0].mxu0 %v768
        %v977 = vpop.f32.mrb[0].mxu0
        %v978 = vadd.f32 %v885, %v977
        %v979 = vpop.f32.mrb[0].mxu0
        %980 = vmatprep.mubr.f32.mxu0 %v774
        %981 = vmatmul.mubr.f32.gmra.mrb[0].mxu0 %v773
        %v982 = vpop.f32.mrb[0].mxu0
        %v983 = vadd.f32 %v885, %v982
        %v984 = vpop.f32.mrb[0].mxu0
        %985 = vmatprep.mubr.f32.mxu0 %v779
        %986 = vmatmul.mubr.f32.gmra.mrb[0].mxu0 %v778
        %v987 = vpop.f32.mrb[0].mxu0
        %v988 = vadd.f32 %v885, %v987
        %v989 = vpop.f32.mrb[0].mxu0
        %990 = vmatprep.mubr.f32.mxu0 %v784
        %991 = vmatmul.mubr.f32.gmra.mrb[0].mxu0 %v783
        %v992 = vpop.f32.mrb[0].mxu0
        %v993 = vadd.f32 %v885, %v992
        %v994 = vpop.f32.mrb[0].mxu0
        %995 = vmatprep.mubr.f32.mxu0 %v789
        %996 = vmatmul.mubr.f32.gmra.mrb[0].mxu0 %v788
        %v997 = vpop.f32.mrb[0].mxu0
        %v998 = vadd.f32 %v885, %v997
        %v999 = vpop.f32.mrb[0].mxu0
        %1000 = vmatprep.mubr.f32.mxu0 %v794
        %1001 = vmatmul.mubr.f32.gmra.mrb[0].mxu0 %v793
        %v1002 = vpop.f32.mrb[0].mxu0
        %v1003 = vadd.f32 %v885, %v1002
        %v1004 = vpop.f32.mrb[0].mxu0
        %1005 = vmatprep.mubr.f32.mxu0 %v799
        %1006 = vmatmul.mubr.f32.gmra.mrb[0].mxu0 %v798
        %v1007 = vpop.f32.mrb[0].mxu0
        %v1008 = vadd.f32 %v885, %v1007
        %v1009 = vpop.f32.mrb[0].mxu0
        %1010 = vmatprep.mubr.f32.mxu0 %v804
        %1011 = vmatmul.mubr.f32.gmra.mrb[0].mxu0 %v803
        %v1012 = vpop.f32.mrb[0].mxu0
        %v1013 = vadd.f32 %v885, %v1012
        %v1014 = vpop.f32.mrb[0].mxu0
        %1015 = vdwg.mxu0
        %1016 = vmatprep.subr.mxu0 0.0
        %1017 = vmatpush1.msra.mxu0 %v840
        %1018 = vmatprep.subr.mxu0 0.0
        %1019 = vmatpush1.msra.mxu0 %v841
        %1020 = vmatprep.subr.mxu0 0.0
        %1021 = vmatpush1.msra.mxu0 %v842
        %1022 = vmatprep.subr.mxu0 0.0
        %1023 = vmatpush1.msra.mxu0 %v843
        %1024 = vmatprep.subr.mxu0 0.0
        %1025 = vmatpush1.msra.mxu0 %v844
        %1026 = vmatprep.subr.mxu0 0.0
        %1027 = vmatpush1.msra.mxu0 %v845
        %1028 = vmatprep.subr.mxu0 0.0
        %1029 = vmatpush1.msra.mxu0 %v846
        %1030 = vmatprep.subr.mxu0 0.0
        %1031 = vmatpush1.msra.mxu0 %v847
        %1032 = vmatprep.subr.mxu0 0.0
        %1033 = vmatpush1.msra.mxu0 %v848
        %1034 = vmatprep.subr.mxu0 0.0
        %1035 = vmatpush1.msra.mxu0 %v849
        %1036 = vmatprep.subr.mxu0 0.0
        %1037 = vmatpush1.msra.mxu0 %v850
        %1038 = vmatprep.subr.mxu0 0.0
        %1039 = vmatpush1.msra.mxu0 %v851
        %1040 = vmatprep.subr.mxu0 0.0
        %1041 = vmatpush1.msra.mxu0 %v852
        %1042 = vmatprep.subr.mxu0 0.0
        %1043 = vmatpush1.msra.mxu0 %v853
        %1044 = vmatprep.subr.mxu0 0.0
        %1045 = vmatpush1.msra.mxu0 %v854
        %1046 = vmatprep.subr.mxu0 0.0
        %1047 = vmatpush1.msra.mxu0 %v855
        %1048 = vmatprep.subr.mxu0 0.0
        %1049 = vmatpush1.msra.mxu0 %v856
        %1050 = vmatprep.subr.mxu0 0.0
        %1051 = vmatpush1.msra.mxu0 %v857
        %1052 = vmatprep.subr.mxu0 0.0
        %1053 = vmatpush1.msra.mxu0 %v858
        %1054 = vmatprep.subr.mxu0 0.0
        %1055 = vmatpush1.msra.mxu0 %v859
        %1056 = vmatprep.subr.mxu0 0.0
        %1057 = vmatpush1.msra.mxu0 %v860
        %1058 = vmatprep.subr.mxu0 0.0
        %1059 = vmatpush1.msra.mxu0 %v861
        %1060 = vmatprep.subr.mxu0 0.0
        %1061 = vmatpush1.msra.mxu0 %v862
        %1062 = vmatprep.subr.mxu0 0.0
        %1063 = vmatpush1.msra.mxu0 %v863
        %1064 = vmatprep.subr.mxu0 0.0
        %1065 = vmatpush1.msra.mxu0 %v864
        %1066 = vmatprep.subr.mxu0 0.0
        %1067 = vmatpush1.msra.mxu0 %v865
        %1068 = vmatprep.subr.mxu0 0.0
        %1069 = vmatpush1.msra.mxu0 %v866
        %1070 = vmatprep.subr.mxu0 0.0
        %1071 = vmatpush1.msra.mxu0 %v867
        %1072 = vmatprep.subr.mxu0 0.0
        %1073 = vmatpush1.msra.mxu0 %v868
        %1074 = vmatprep.subr.mxu0 0.0
        %1075 = vmatpush1.msra.mxu0 %v869
        %1076 = vmatprep.subr.mxu0 0.0
        %1077 = vmatpush1.msra.mxu0 %v870
        %1078 = vmatprep.subr.mxu0 0.0
        %1079 = vmatpush1.msra.mxu0 %v871
        %1080 = vmatprep.mubr.f32.mxu0 %v771
        %1081 = vmatmul.mubr.f32.gmra.mrb[0].mxu0 %v770
        %v1082 = vpop.f32.mrb[0].mxu0
        %v1083 = vadd.f32 %v978, %v1082
        %v1084 = vpop.f32.mrb[0].mxu0
        %1085 = vmatprep.mubr.f32.mxu0 %v776
        %1086 = vmatmul.mubr.f32.gmra.mrb[0].mxu0 %v775
        %v1087 = vpop.f32.mrb[0].mxu0
        %v1088 = vadd.f32 %v983, %v1087
        %v1089 = vpop.f32.mrb[0].mxu0
        %1090 = vmatprep.mubr.f32.mxu0 %v781
        %1091 = vmatmul.mubr.f32.gmra.mrb[0].mxu0 %v780
        %v1092 = vpop.f32.mrb[0].mxu0
        %v1093 = vadd.f32 %v988, %v1092
        %v1094 = vpop.f32.mrb[0].mxu0
        %1095 = vmatprep.mubr.f32.mxu0 %v786
        %1096 = vmatmul.mubr.f32.gmra.mrb[0].mxu0 %v785
        %v1097 = vpop.f32.mrb[0].mxu0
        %v1098 = vadd.f32 %v993, %v1097
        %v1099 = vpop.f32.mrb[0].mxu0
        %1100 = vmatprep.mubr.f32.mxu0 %v791
        %1101 = vmatmul.mubr.f32.gmra.mrb[0].mxu0 %v790
        %v1102 = vpop.f32.mrb[0].mxu0
        %v1103 = vadd.f32 %v998, %v1102
        %v1104 = vpop.f32.mrb[0].mxu0
        %1105 = vmatprep.mubr.f32.mxu0 %v796
        %1106 = vmatmul.mubr.f32.gmra.mrb[0].mxu0 %v795
        %v1107 = vpop.f32.mrb[0].mxu0
        %v1108 = vadd.f32 %v1003, %v1107
        %v1109 = vpop.f32.mrb[0].mxu0
        %1110 = vmatprep.mubr.f32.mxu0 %v801
        %1111 = vmatmul.mubr.f32.gmra.mrb[0].mxu0 %v800
        %v1112 = vpop.f32.mrb[0].mxu0
        %v1113 = vadd.f32 %v1008, %v1112
        %v1114 = vpop.f32.mrb[0].mxu0
        %1115 = vmatprep.mubr.f32.mxu0 %v806
        %1116 = vmatmul.mubr.f32.gmra.mrb[0].mxu0 %v805
        %v1117 = vpop.f32.mrb[0].mxu0
        %v1118 = vadd.f32 %v1013, %v1117
        %v1119 = vpop.f32.mrb[0].mxu0
        %1120 = vdwg.mxu0
        %1121 = vmatprep.subr.mxu0 0.0
        %1122 = vmatpush1.msra.mxu0 %v872
        %1123 = vmatprep.subr.mxu0 0.0
        %1124 = vmatpush1.msra.mxu0 %v873
        %1125 = vmatprep.subr.mxu0 0.0
        %1126 = vmatpush1.msra.mxu0 %v874
        %1127 = vmatprep.subr.mxu0 0.0
        %1128 = vmatpush1.msra.mxu0 %v875
        %1129 = vmatprep.subr.mxu0 0.0
        %1130 = vmatpush1.msra.mxu0 %v876
        %1131 = vmatprep.subr.mxu0 0.0
        %1132 = vmatpush1.msra.mxu0 %v877
        %1133 = vmatprep.subr.mxu0 0.0
        %1134 = vmatpush1.msra.mxu0 %v878
        %1135 = vmatprep.subr.mxu0 0.0
        %1136 = vmatpush1.msra.mxu0 %v879
        %1137 = vmatprep.subr.mxu0 0.0
        %1138 = vmatpush1.msra.mxu0 0.0
        %1139 = vmatprep.subr.mxu0 0.0
        %1140 = vmatpush1.msra.mxu0 0.0
        %1141 = vmatprep.subr.mxu0 0.0
        %1142 = vmatpush1.msra.mxu0 0.0
        %1143 = vmatprep.subr.mxu0 0.0
        %1144 = vmatpush1.msra.mxu0 0.0
        %1145 = vmatprep.subr.mxu0 0.0
        %1146 = vmatpush1.msra.mxu0 0.0
        %1147 = vmatprep.subr.mxu0 0.0
        %1148 = vmatpush1.msra.mxu0 0.0
        %1149 = vmatprep.subr.mxu0 0.0
        %1150 = vmatpush1.msra.mxu0 0.0
        %1151 = vmatprep.subr.mxu0 0.0
        %1152 = vmatpush1.msra.mxu0 0.0
        %1153 = vmatprep.subr.mxu0 0.0
        %1154 = vmatpush1.msra.mxu0 0.0
        %1155 = vmatprep.subr.mxu0 0.0
        %1156 = vmatpush1.msra.mxu0 0.0
        %1157 = vmatprep.subr.mxu0 0.0
        %1158 = vmatpush1.msra.mxu0 0.0
        %1159 = vmatprep.subr.mxu0 0.0
        %1160 = vmatpush1.msra.mxu0 0.0
        %1161 = vmatprep.subr.mxu0 0.0
        %1162 = vmatpush1.msra.mxu0 0.0
        %1163 = vmatprep.subr.mxu0 0.0
        %1164 = vmatpush1.msra.mxu0 0.0
        %1165 = vmatprep.subr.mxu0 0.0
        %1166 = vmatpush1.msra.mxu0 0.0
        %1167 = vmatprep.subr.mxu0 0.0
        %1168 = vmatpush1.msra.mxu0 0.0
        %1169 = vmatprep.subr.mxu0 0.0
        %1170 = vmatpush1.msra.mxu0 0.0
        %1171 = vmatprep.subr.mxu0 0.0
        %1172 = vmatpush1.msra.mxu0 0.0
        %1173 = vmatprep.subr.mxu0 0.0
        %1174 = vmatpush1.msra.mxu0 0.0
        %1175 = vmatprep.subr.mxu0 0.0
        %1176 = vmatpush1.msra.mxu0 0.0
        %1177 = vmatprep.subr.mxu0 0.0
        %1178 = vmatpush1.msra.mxu0 0.0
        %1179 = vmatprep.subr.mxu0 0.0
        %1180 = vmatpush1.msra.mxu0 0.0
        %1181 = vmatprep.subr.mxu0 0.0
        %1182 = vmatpush1.msra.mxu0 0.0
        %1183 = vmatprep.subr.mxu0 0.0
        %1184 = vmatpush1.msra.mxu0 0.0
        %1185 = vmatprep.mubr.f32.mxu0 0.0
        %1186 = vmatmul.mubr.f32.gmra.mrb[0].mxu0 %v888
        %v1187 = vpop.f32.mrb[0].mxu0
        %v1188 = vadd.f32 %v1083, %v1187
        %v1189 = vpop.f32.mrb[0].mxu0
        %1190 = vmatprep.mubr.f32.mxu0 0.0
        %1191 = vmatmul.mubr.f32.gmra.mrb[0].mxu0 %v891
        %v1192 = vpop.f32.mrb[0].mxu0
        %v1193 = vadd.f32 %v1088, %v1192
        %v1194 = vpop.f32.mrb[0].mxu0
        %1195 = vmatprep.mubr.f32.mxu0 0.0
        %1196 = vmatmul.mubr.f32.gmra.mrb[0].mxu0 %v894
        %v1197 = vpop.f32.mrb[0].mxu0
        %v1198 = vadd.f32 %v1093, %v1197
        %v1199 = vpop.f32.mrb[0].mxu0
        %1200 = vmatprep.mubr.f32.mxu0 0.0
        %1201 = vmatmul.mubr.f32.gmra.mrb[0].mxu0 %v897
        %v1202 = vpop.f32.mrb[0].mxu0
        %v1203 = vadd.f32 %v1098, %v1202
        %v1204 = vpop.f32.mrb[0].mxu0
        %1205 = vmatprep.mubr.f32.mxu0 0.0
        %1206 = vmatmul.mubr.f32.gmra.mrb[0].mxu0 %v900
        %v1207 = vpop.f32.mrb[0].mxu0
        %v1208 = vadd.f32 %v1103, %v1207
        %v1209 = vpop.f32.mrb[0].mxu0
        %1210 = vmatprep.mubr.f32.mxu0 0.0
        %1211 = vmatmul.mubr.f32.gmra.mrb[0].mxu0 %v903
        %v1212 = vpop.f32.mrb[0].mxu0
        %v1213 = vadd.f32 %v1108, %v1212
        %v1214 = vpop.f32.mrb[0].mxu0
        %1215 = vmatprep.mubr.f32.mxu0 0.0
        %1216 = vmatmul.mubr.f32.gmra.mrb[0].mxu0 %v906
        %v1217 = vpop.f32.mrb[0].mxu0
        %v1218 = vadd.f32 %v1113, %v1217
        %v1219 = vpop.f32.mrb[0].mxu0
        %1220 = vmatprep.mubr.f32.mxu0 0.0
        %1221 = vmatmul.mubr.f32.gmra.mrb[0].mxu0 %v909
        %v1222 = vpop.f32.mrb[0].mxu0
        %v1223 = vadd.f32 %v1118, %v1222
        %v1224 = vpop.f32.mrb[0].mxu0
        %1225 = vdwg.mxu0
        %v1226 = vmax.f32 %v1188, 0.0
        %v1227 = vmax.f32 %v1193, 0.0
        %v1228 = vmax.f32 %v1198, 0.0
        %v1229 = vmax.f32 %v1203, 0.0
        %v1230 = vmax.f32 %v1208, 0.0
        %v1231 = vmax.f32 %v1213, 0.0
        %v1232 = vmax.f32 %v1218, 0.0
        %v1233 = vmax.f32 %v1223, 0.0
        %1234 = vst.msk [vmem:[#allocation2 + $0x10] sm:$0xff] %vm350, %v1226
        %1235 = vst.msk [vmem:[#allocation2 + $0x18] sm:$0xff] %vm350, %v1227
        %1236 = vst.msk [vmem:[#allocation2 + $0x20] sm:$0xff] %vm350, %v1228
        %1237 = vst.msk [vmem:[#allocation2 + $0x28] sm:$0xff] %vm350, %v1229
        %1238 = vst.msk [vmem:[#allocation2 + $0x30] sm:$0xff] %vm350, %v1230
        %1239 = vst.msk [vmem:[#allocation2 + $0x38] sm:$0xff] %vm350, %v1231
        %1240 = vst.msk [vmem:[#allocation2 + $0x40] sm:$0xff] %vm350, %v1232
        %1241 = vst.msk [vmem:[#allocation2 + $0x48] sm:$0xff] %vm350, %v1233
        %v1242 = vld [vmem:[#allocation2 + $0x7] sm:$0xff]
        %v1243 = vld [vmem:[#allocation2 + $0xf] sm:$0xff]
        %v1244 = vld [vmem:[#allocation2 + $0x17] sm:$0xff]
        %v1245 = vld [vmem:[#allocation2 + $0x1f] sm:$0xff]
        %v1246 = vld [vmem:[#allocation2 + $0x27] sm:$0xff]
        %v1247 = vld [vmem:[#allocation2 + $0x2f] sm:$0xff]
        %v1248 = vld [vmem:[#allocation2 + $0x37] sm:$0xff]
        %v1249 = vld [vmem:[#allocation2 + $0x3f] sm:$0xff]
        %v1250 = vld [vmem:[%s2] sm:$0xff]
        %v1251 = vld [vmem:[%s2 + $0x8] sm:$0xff]
        %v1252 = vld [vmem:[%s2 + $0x10] sm:$0xff]
        %v1253 = vld [vmem:[%s2 + $0x18] sm:$0xff]
        %v1254 = vld [vmem:[%s2 + $0x20] sm:$0xff]
        %v1255 = vld [vmem:[%s2 + $0x28] sm:$0xff]
        %v1256 = vld [vmem:[%s2 + $0x30] sm:$0xff]
        %v1257 = vld [vmem:[%s2 + $0x38] sm:$0xff]
        %v1258 = vmul.f32 %v1242, %v1250
        %v1259 = vmul.f32 %v1243, %v1251
        %v1260 = vmul.f32 %v1244, %v1252
        %v1261 = vmul.f32 %v1245, %v1253
        %v1262 = vmul.f32 %v1246, %v1254
        %v1263 = vmul.f32 %v1247, %v1255
        %v1264 = vmul.f32 %v1248, %v1256
        %v1265 = vmul.f32 %v1249, %v1257
        %1266 = vst.msk [vmem:[#allocation5] sm:$0xff] %vm350, %v1258
        %1267 = vst.msk [vmem:[#allocation5 + $0x18] sm:$0xff] %vm350, %v1259
        %1268 = vst.msk [vmem:[#allocation5 + $0x30] sm:$0xff] %vm350, %v1260
        %1269 = vst.msk [vmem:[#allocation5 + $0x48] sm:$0xff] %vm350, %v1261
        %1270 = vst.msk [vmem:[#allocation5 + $0x60] sm:$0xff] %vm350, %v1262
        %1271 = vst.msk [vmem:[#allocation5 + $0x78] sm:$0xff] %vm350, %v1263
        %1272 = vst.msk [vmem:[#allocation5 + $0x90] sm:$0xff] %vm350, %v1264
        %1273 = vst.msk [vmem:[#allocation5 + $0xa8] sm:$0xff] %vm350, %v1265
        %v1274 = vld [vmem:[#allocation2 + $0x8] sm:$0xff]
        %v1275 = vld [vmem:[#allocation2 + $0x10] sm:$0xff]
        %v1276 = vld [vmem:[#allocation2 + $0x18] sm:$0xff]
        %v1277 = vld [vmem:[#allocation2 + $0x20] sm:$0xff]
        %v1278 = vld [vmem:[#allocation2 + $0x28] sm:$0xff]
        %v1279 = vld [vmem:[#allocation2 + $0x30] sm:$0xff]
        %v1280 = vld [vmem:[#allocation2 + $0x38] sm:$0xff]
        %v1281 = vld [vmem:[#allocation2 + $0x40] sm:$0xff]
        %s1282 = scalar_lea.vmem %s2, 64
        %v1283 = vld [vmem:[%s1282] sm:$0xff]
        %v1284 = vld [vmem:[%s1282 + $0x8] sm:$0xff]
        %v1285 = vld [vmem:[%s1282 + $0x10] sm:$0xff]
        %v1286 = vld [vmem:[%s1282 + $0x18] sm:$0xff]
        %v1287 = vld [vmem:[%s1282 + $0x20] sm:$0xff]
        %v1288 = vld [vmem:[%s1282 + $0x28] sm:$0xff]
        %v1289 = vld [vmem:[%s1282 + $0x30] sm:$0xff]
        %v1290 = vld [vmem:[%s1282 + $0x38] sm:$0xff]
        %v1291 = vmul.f32 %v1274, %v1283
        %v1292 = vmul.f32 %v1275, %v1284
        %v1293 = vmul.f32 %v1276, %v1285
        %v1294 = vmul.f32 %v1277, %v1286
        %v1295 = vmul.f32 %v1278, %v1287
        %v1296 = vmul.f32 %v1279, %v1288
        %v1297 = vmul.f32 %v1280, %v1289
        %v1298 = vmul.f32 %v1281, %v1290
        %1307 = vrot.lane.b32.xlu0 %v1291, 32
        %v1308 = vpop.permute.xlu0 %1307
        %1309 = vrot.lane.b32.xlu0 %v1292, 32
        %v1310 = vpop.permute.xlu0 %1309
        %1311 = vrot.lane.b32.xlu0 %v1293, 32
        %v1312 = vpop.permute.xlu0 %1311
        %1313 = vrot.lane.b32.xlu0 %v1294, 32
        %v1314 = vpop.permute.xlu0 %1313
        %1315 = vrot.lane.b32.xlu0 %v1295, 32
        %v1316 = vpop.permute.xlu0 %1315
        %1317 = vrot.lane.b32.xlu0 %v1296, 32
        %v1318 = vpop.permute.xlu0 %1317
        %1319 = vrot.lane.b32.xlu0 %v1297, 32
        %v1320 = vpop.permute.xlu0 %1319
        %1321 = vrot.lane.b32.xlu0 %v1298, 32
        %v1322 = vpop.permute.xlu0 %1321
        %vm1331 = vcmask 523520
        %1332 = vst.msk [vmem:[#allocation5] sm:$0xff] %vm1331, %v1308
        %1333 = vst.msk [vmem:[#allocation5 + $0x18] sm:$0xff] %vm1331, %v1310
        %1334 = vst.msk [vmem:[#allocation5 + $0x30] sm:$0xff] %vm1331, %v1312
        %1335 = vst.msk [vmem:[#allocation5 + $0x48] sm:$0xff] %vm1331, %v1314
        %1336 = vst.msk [vmem:[#allocation5 + $0x60] sm:$0xff] %vm1331, %v1316
        %1337 = vst.msk [vmem:[#allocation5 + $0x78] sm:$0xff] %vm1331, %v1318
        %1338 = vst.msk [vmem:[#allocation5 + $0x90] sm:$0xff] %vm1331, %v1320
        %1339 = vst.msk [vmem:[#allocation5 + $0xa8] sm:$0xff] %vm1331, %v1322
        %v1340 = vld [vmem:[#allocation2 + $0x9] sm:$0xff]
        %v1341 = vld [vmem:[#allocation2 + $0x11] sm:$0xff]
        %v1342 = vld [vmem:[#allocation2 + $0x19] sm:$0xff]
        %v1343 = vld [vmem:[#allocation2 + $0x21] sm:$0xff]
        %v1344 = vld [vmem:[#allocation2 + $0x29] sm:$0xff]
        %v1345 = vld [vmem:[#allocation2 + $0x31] sm:$0xff]
        %v1346 = vld [vmem:[#allocation2 + $0x39] sm:$0xff]
        %v1347 = vld [vmem:[#allocation2 + $0x41] sm:$0xff]
        %s1348 = scalar_lea.vmem %s2, 128
        %v1349 = vld [vmem:[%s1348] sm:$0xff]
        %v1350 = vld [vmem:[%s1348 + $0x8] sm:$0xff]
        %v1351 = vld [vmem:[%s1348 + $0x10] sm:$0xff]
        %v1352 = vld [vmem:[%s1348 + $0x18] sm:$0xff]
        %v1353 = vld [vmem:[%s1348 + $0x20] sm:$0xff]
        %v1354 = vld [vmem:[%s1348 + $0x28] sm:$0xff]
        %v1355 = vld [vmem:[%s1348 + $0x30] sm:$0xff]
        %v1356 = vld [vmem:[%s1348 + $0x38] sm:$0xff]
        %v1357 = vmul.f32 %v1340, %v1349
        %v1358 = vmul.f32 %v1341, %v1350
        %v1359 = vmul.f32 %v1342, %v1351
        %v1360 = vmul.f32 %v1343, %v1352
        %v1361 = vmul.f32 %v1344, %v1353
        %v1362 = vmul.f32 %v1345, %v1354
        %v1363 = vmul.f32 %v1346, %v1355
        %v1364 = vmul.f32 %v1347, %v1356
        %1373 = vrot.lane.b32.xlu0 %v1357, 64
        %v1374 = vpop.permute.xlu0 %1373
        %1375 = vrot.lane.b32.xlu0 %v1358, 64
        %v1376 = vpop.permute.xlu0 %1375
        %1377 = vrot.lane.b32.xlu0 %v1359, 64
        %v1378 = vpop.permute.xlu0 %1377
        %1379 = vrot.lane.b32.xlu0 %v1360, 64
        %v1380 = vpop.permute.xlu0 %1379
        %1381 = vrot.lane.b32.xlu0 %v1361, 64
        %v1382 = vpop.permute.xlu0 %1381
        %1383 = vrot.lane.b32.xlu0 %v1362, 64
        %v1384 = vpop.permute.xlu0 %1383
        %1385 = vrot.lane.b32.xlu0 %v1363, 64
        %v1386 = vpop.permute.xlu0 %1385
        %1387 = vrot.lane.b32.xlu0 %v1364, 64
        %v1388 = vpop.permute.xlu0 %1387
        %vm1397 = vcmask 785920
        %1398 = vst.msk [vmem:[#allocation5] sm:$0xff] %vm1397, %v1374
        %1399 = vst.msk [vmem:[#allocation5 + $0x18] sm:$0xff] %vm1397, %v1376
        %1400 = vst.msk [vmem:[#allocation5 + $0x30] sm:$0xff] %vm1397, %v1378
        %1401 = vst.msk [vmem:[#allocation5 + $0x48] sm:$0xff] %vm1397, %v1380
        %1402 = vst.msk [vmem:[#allocation5 + $0x60] sm:$0xff] %vm1397, %v1382
        %1403 = vst.msk [vmem:[#allocation5 + $0x78] sm:$0xff] %vm1397, %v1384
        %1404 = vst.msk [vmem:[#allocation5 + $0x90] sm:$0xff] %vm1397, %v1386
        %1405 = vst.msk [vmem:[#allocation5 + $0xa8] sm:$0xff] %vm1397, %v1388
        %v1406 = vld [vmem:[#allocation2 + $0xf] sm:$0xff]
        %v1407 = vld [vmem:[#allocation2 + $0x17] sm:$0xff]
        %v1408 = vld [vmem:[#allocation2 + $0x1f] sm:$0xff]
        %v1409 = vld [vmem:[#allocation2 + $0x27] sm:$0xff]
        %v1410 = vld [vmem:[#allocation2 + $0x2f] sm:$0xff]
        %v1411 = vld [vmem:[#allocation2 + $0x37] sm:$0xff]
        %v1412 = vld [vmem:[#allocation2 + $0x3f] sm:$0xff]
        %v1413 = vld [vmem:[#allocation2 + $0x47] sm:$0xff]
        %s1414 = scalar_lea.vmem %s2, 192
        %v1415 = vld [vmem:[%s1414] sm:$0xff]
        %v1416 = vld [vmem:[%s1414 + $0x8] sm:$0xff]
        %v1417 = vld [vmem:[%s1414 + $0x10] sm:$0xff]
        %v1418 = vld [vmem:[%s1414 + $0x18] sm:$0xff]
        %v1419 = vld [vmem:[%s1414 + $0x20] sm:$0xff]
        %v1420 = vld [vmem:[%s1414 + $0x28] sm:$0xff]
        %v1421 = vld [vmem:[%s1414 + $0x30] sm:$0xff]
        %v1422 = vld [vmem:[%s1414 + $0x38] sm:$0xff]
        %v1423 = vmul.f32 %v1406, %v1415
        %v1424 = vmul.f32 %v1407, %v1416
        %v1425 = vmul.f32 %v1408, %v1417
        %v1426 = vmul.f32 %v1409, %v1418
        %v1427 = vmul.f32 %v1410, %v1419
        %v1428 = vmul.f32 %v1411, %v1420
        %v1429 = vmul.f32 %v1412, %v1421
        %v1430 = vmul.f32 %v1413, %v1422
        %1439 = vrot.lane.b32.xlu0 %v1423, 96
        %v1440 = vpop.permute.xlu0 %1439
        %1441 = vrot.lane.b32.xlu0 %v1424, 96
        %v1442 = vpop.permute.xlu0 %1441
        %1443 = vrot.lane.b32.xlu0 %v1425, 96
        %v1444 = vpop.permute.xlu0 %1443
        %1445 = vrot.lane.b32.xlu0 %v1426, 96
        %v1446 = vpop.permute.xlu0 %1445
        %1447 = vrot.lane.b32.xlu0 %v1427, 96
        %v1448 = vpop.permute.xlu0 %1447
        %1449 = vrot.lane.b32.xlu0 %v1428, 96
        %v1450 = vpop.permute.xlu0 %1449
        %1451 = vrot.lane.b32.xlu0 %v1429, 96
        %v1452 = vpop.permute.xlu0 %1451
        %1453 = vrot.lane.b32.xlu0 %v1430, 96
        %v1454 = vpop.permute.xlu0 %1453
        %vm1463 = vcmask 1048320
        %1464 = vst.msk [vmem:[#allocation5] sm:$0xff] %vm1463, %v1440
        %1465 = vst.msk [vmem:[#allocation5 + $0x18] sm:$0xff] %vm1463, %v1442
        %1466 = vst.msk [vmem:[#allocation5 + $0x30] sm:$0xff] %vm1463, %v1444
        %1467 = vst.msk [vmem:[#allocation5 + $0x48] sm:$0xff] %vm1463, %v1446
        %1468 = vst.msk [vmem:[#allocation5 + $0x60] sm:$0xff] %vm1463, %v1448
        %1469 = vst.msk [vmem:[#allocation5 + $0x78] sm:$0xff] %vm1463, %v1450
        %1470 = vst.msk [vmem:[#allocation5 + $0x90] sm:$0xff] %vm1463, %v1452
        %1471 = vst.msk [vmem:[#allocation5 + $0xa8] sm:$0xff] %vm1463, %v1454
        %v1472 = vld [vmem:[#allocation2 + $0x10] sm:$0xff]
        %v1473 = vld [vmem:[#allocation2 + $0x18] sm:$0xff]
        %v1474 = vld [vmem:[#allocation2 + $0x20] sm:$0xff]
        %v1475 = vld [vmem:[#allocation2 + $0x28] sm:$0xff]
        %v1476 = vld [vmem:[#allocation2 + $0x30] sm:$0xff]
        %v1477 = vld [vmem:[#allocation2 + $0x38] sm:$0xff]
        %v1478 = vld [vmem:[#allocation2 + $0x40] sm:$0xff]
        %v1479 = vld [vmem:[#allocation2 + $0x48] sm:$0xff]
        %1480 = vst.msk [vmem:[#allocation5 + $0x8] sm:$0xff] %vm350, %v1472
        %1481 = vst.msk [vmem:[#allocation5 + $0x20] sm:$0xff] %vm350, %v1473
        %1482 = vst.msk [vmem:[#allocation5 + $0x38] sm:$0xff] %vm350, %v1474
        %1483 = vst.msk [vmem:[#allocation5 + $0x50] sm:$0xff] %vm350, %v1475
        %1484 = vst.msk [vmem:[#allocation5 + $0x68] sm:$0xff] %vm350, %v1476
        %1485 = vst.msk [vmem:[#allocation5 + $0x80] sm:$0xff] %vm350, %v1477
        %1486 = vst.msk [vmem:[#allocation5 + $0x98] sm:$0xff] %vm350, %v1478
        %1487 = vst.msk [vmem:[#allocation5 + $0xb0] sm:$0xff] %vm350, %v1479
        %v1488 = vld [vmem:[#allocation2 + $0x11] sm:$0xff]
        %v1489 = vld [vmem:[#allocation2 + $0x19] sm:$0xff]
        %v1490 = vld [vmem:[#allocation2 + $0x21] sm:$0xff]
        %v1491 = vld [vmem:[#allocation2 + $0x29] sm:$0xff]
        %v1492 = vld [vmem:[#allocation2 + $0x31] sm:$0xff]
        %v1493 = vld [vmem:[#allocation2 + $0x39] sm:$0xff]
        %v1494 = vld [vmem:[#allocation2 + $0x41] sm:$0xff]
        %v1495 = vld [vmem:[#allocation2 + $0x49] sm:$0xff]
        %s1496 = scalar_lea.vmem %s2, 320
        %v1497 = vld [vmem:[%s1496] sm:$0xff]
        %v1498 = vld [vmem:[%s1496 + $0x8] sm:$0xff]
        %v1499 = vld [vmem:[%s1496 + $0x10] sm:$0xff]
        %v1500 = vld [vmem:[%s1496 + $0x18] sm:$0xff]
        %v1501 = vld [vmem:[%s1496 + $0x20] sm:$0xff]
        %v1502 = vld [vmem:[%s1496 + $0x28] sm:$0xff]
        %v1503 = vld [vmem:[%s1496 + $0x30] sm:$0xff]
        %v1504 = vld [vmem:[%s1496 + $0x38] sm:$0xff]
        %v1505 = vmul.f32 %v1488, %v1497
        %v1506 = vmul.f32 %v1489, %v1498
        %v1507 = vmul.f32 %v1490, %v1499
        %v1508 = vmul.f32 %v1491, %v1500
        %v1509 = vmul.f32 %v1492, %v1501
        %v1510 = vmul.f32 %v1493, %v1502
        %v1511 = vmul.f32 %v1494, %v1503
        %v1512 = vmul.f32 %v1495, %v1504
        %1521 = vrot.lane.b32.xlu0 %v1505, 32
        %v1522 = vpop.permute.xlu0 %1521
        %1523 = vrot.lane.b32.xlu0 %v1506, 32
        %v1524 = vpop.permute.xlu0 %1523
        %1525 = vrot.lane.b32.xlu0 %v1507, 32
        %v1526 = vpop.permute.xlu0 %1525
        %1527 = vrot.lane.b32.xlu0 %v1508, 32
        %v1528 = vpop.permute.xlu0 %1527
        %1529 = vrot.lane.b32.xlu0 %v1509, 32
        %v1530 = vpop.permute.xlu0 %1529
        %1531 = vrot.lane.b32.xlu0 %v1510, 32
        %v1532 = vpop.permute.xlu0 %1531
        %1533 = vrot.lane.b32.xlu0 %v1511, 32
        %v1534 = vpop.permute.xlu0 %1533
        %1535 = vrot.lane.b32.xlu0 %v1512, 32
        %v1536 = vpop.permute.xlu0 %1535
        %1545 = vst.msk [vmem:[#allocation5 + $0x8] sm:$0xff] %vm1331, %v1522
        %1546 = vst.msk [vmem:[#allocation5 + $0x20] sm:$0xff] %vm1331, %v1524
        %1547 = vst.msk [vmem:[#allocation5 + $0x38] sm:$0xff] %vm1331, %v1526
        %1548 = vst.msk [vmem:[#allocation5 + $0x50] sm:$0xff] %vm1331, %v1528
        %1549 = vst.msk [vmem:[#allocation5 + $0x68] sm:$0xff] %vm1331, %v1530
        %1550 = vst.msk [vmem:[#allocation5 + $0x80] sm:$0xff] %vm1331, %v1532
        %1551 = vst.msk [vmem:[#allocation5 + $0x98] sm:$0xff] %vm1331, %v1534
        %1552 = vst.msk [vmem:[#allocation5 + $0xb0] sm:$0xff] %vm1331, %v1536
        %v1553 = vld [vmem:[#allocation2 + $0x17] sm:$0xff]
        %v1554 = vld [vmem:[#allocation2 + $0x1f] sm:$0xff]
        %v1555 = vld [vmem:[#allocation2 + $0x27] sm:$0xff]
        %v1556 = vld [vmem:[#allocation2 + $0x2f] sm:$0xff]
        %v1557 = vld [vmem:[#allocation2 + $0x37] sm:$0xff]
        %v1558 = vld [vmem:[#allocation2 + $0x3f] sm:$0xff]
        %v1559 = vld [vmem:[#allocation2 + $0x47] sm:$0xff]
        %v1560 = vld [vmem:[#allocation2 + $0x4f] sm:$0xff]
        %s1561 = scalar_lea.vmem %s2, 384
        %v1562 = vld [vmem:[%s1561] sm:$0xff]
        %v1563 = vld [vmem:[%s1561 + $0x8] sm:$0xff]
        %v1564 = vld [vmem:[%s1561 + $0x10] sm:$0xff]
        %v1565 = vld [vmem:[%s1561 + $0x18] sm:$0xff]
        %v1566 = vld [vmem:[%s1561 + $0x20] sm:$0xff]
        %v1567 = vld [vmem:[%s1561 + $0x28] sm:$0xff]
        %v1568 = vld [vmem:[%s1561 + $0x30] sm:$0xff]
        %v1569 = vld [vmem:[%s1561 + $0x38] sm:$0xff]
        %v1570 = vmul.f32 %v1553, %v1562
        %v1571 = vmul.f32 %v1554, %v1563
        %v1572 = vmul.f32 %v1555, %v1564
        %v1573 = vmul.f32 %v1556, %v1565
        %v1574 = vmul.f32 %v1557, %v1566
        %v1575 = vmul.f32 %v1558, %v1567
        %v1576 = vmul.f32 %v1559, %v1568
        %v1577 = vmul.f32 %v1560, %v1569
        %1586 = vrot.lane.b32.xlu0 %v1570, 64
        %v1587 = vpop.permute.xlu0 %1586
        %1588 = vrot.lane.b32.xlu0 %v1571, 64
        %v1589 = vpop.permute.xlu0 %1588
        %1590 = vrot.lane.b32.xlu0 %v1572, 64
        %v1591 = vpop.permute.xlu0 %1590
        %1592 = vrot.lane.b32.xlu0 %v1573, 64
        %v1593 = vpop.permute.xlu0 %1592
        %1594 = vrot.lane.b32.xlu0 %v1574, 64
        %v1595 = vpop.permute.xlu0 %1594
        %1596 = vrot.lane.b32.xlu0 %v1575, 64
        %v1597 = vpop.permute.xlu0 %1596
        %1598 = vrot.lane.b32.xlu0 %v1576, 64
        %v1599 = vpop.permute.xlu0 %1598
        %1600 = vrot.lane.b32.xlu0 %v1577, 64
        %v1601 = vpop.permute.xlu0 %1600
        %1610 = vst.msk [vmem:[#allocation5 + $0x8] sm:$0xff] %vm1397, %v1587
        %1611 = vst.msk [vmem:[#allocation5 + $0x20] sm:$0xff] %vm1397, %v1589
        %1612 = vst.msk [vmem:[#allocation5 + $0x38] sm:$0xff] %vm1397, %v1591
        %1613 = vst.msk [vmem:[#allocation5 + $0x50] sm:$0xff] %vm1397, %v1593
        %1614 = vst.msk [vmem:[#allocation5 + $0x68] sm:$0xff] %vm1397, %v1595
        %1615 = vst.msk [vmem:[#allocation5 + $0x80] sm:$0xff] %vm1397, %v1597
        %1616 = vst.msk [vmem:[#allocation5 + $0x98] sm:$0xff] %vm1397, %v1599
        %1617 = vst.msk [vmem:[#allocation5 + $0xb0] sm:$0xff] %vm1397, %v1601
        %v1618 = vld [vmem:[#allocation2 + $0x18] sm:$0xff]
        %v1619 = vld [vmem:[#allocation2 + $0x20] sm:$0xff]
        %v1620 = vld [vmem:[#allocation2 + $0x28] sm:$0xff]
        %v1621 = vld [vmem:[#allocation2 + $0x30] sm:$0xff]
        %v1622 = vld [vmem:[#allocation2 + $0x38] sm:$0xff]
        %v1623 = vld [vmem:[#allocation2 + $0x40] sm:$0xff]
        %v1624 = vld [vmem:[#allocation2 + $0x48] sm:$0xff]
        %v1625 = vld [vmem:[#allocation2 + $0x50] sm:$0xff]
        %s1626 = scalar_lea.vmem %s2, 448
        %v1627 = vld [vmem:[%s1626] sm:$0xff]
        %v1628 = vld [vmem:[%s1626 + $0x8] sm:$0xff]
        %v1629 = vld [vmem:[%s1626 + $0x10] sm:$0xff]
        %v1630 = vld [vmem:[%s1626 + $0x18] sm:$0xff]
        %v1631 = vld [vmem:[%s1626 + $0x20] sm:$0xff]
        %v1632 = vld [vmem:[%s1626 + $0x28] sm:$0xff]
        %v1633 = vld [vmem:[%s1626 + $0x30] sm:$0xff]
        %v1634 = vld [vmem:[%s1626 + $0x38] sm:$0xff]
        %v1635 = vmul.f32 %v1618, %v1627
        %v1636 = vmul.f32 %v1619, %v1628
        %v1637 = vmul.f32 %v1620, %v1629
        %v1638 = vmul.f32 %v1621, %v1630
        %v1639 = vmul.f32 %v1622, %v1631
        %v1640 = vmul.f32 %v1623, %v1632
        %v1641 = vmul.f32 %v1624, %v1633
        %v1642 = vmul.f32 %v1625, %v1634
        %1651 = vrot.lane.b32.xlu0 %v1635, 96
        %v1652 = vpop.permute.xlu0 %1651
        %1653 = vrot.lane.b32.xlu0 %v1636, 96
        %v1654 = vpop.permute.xlu0 %1653
        %1655 = vrot.lane.b32.xlu0 %v1637, 96
        %v1656 = vpop.permute.xlu0 %1655
        %1657 = vrot.lane.b32.xlu0 %v1638, 96
        %v1658 = vpop.permute.xlu0 %1657
        %1659 = vrot.lane.b32.xlu0 %v1639, 96
        %v1660 = vpop.permute.xlu0 %1659
        %1661 = vrot.lane.b32.xlu0 %v1640, 96
        %v1662 = vpop.permute.xlu0 %1661
        %1663 = vrot.lane.b32.xlu0 %v1641, 96
        %v1664 = vpop.permute.xlu0 %1663
        %1665 = vrot.lane.b32.xlu0 %v1642, 96
        %v1666 = vpop.permute.xlu0 %1665
        %1675 = vst.msk [vmem:[#allocation5 + $0x8] sm:$0xff] %vm1463, %v1652
        %1676 = vst.msk [vmem:[#allocation5 + $0x20] sm:$0xff] %vm1463, %v1654
        %1677 = vst.msk [vmem:[#allocation5 + $0x38] sm:$0xff] %vm1463, %v1656
        %1678 = vst.msk [vmem:[#allocation5 + $0x50] sm:$0xff] %vm1463, %v1658
        %1679 = vst.msk [vmem:[#allocation5 + $0x68] sm:$0xff] %vm1463, %v1660
        %1680 = vst.msk [vmem:[#allocation5 + $0x80] sm:$0xff] %vm1463, %v1662
        %1681 = vst.msk [vmem:[#allocation5 + $0x98] sm:$0xff] %vm1463, %v1664
        %1682 = vst.msk [vmem:[#allocation5 + $0xb0] sm:$0xff] %vm1463, %v1666
        %v1683 = vld [vmem:[#allocation2 + $0x19] sm:$0xff]
        %v1684 = vld [vmem:[#allocation2 + $0x21] sm:$0xff]
        %v1685 = vld [vmem:[#allocation2 + $0x29] sm:$0xff]
        %v1686 = vld [vmem:[#allocation2 + $0x31] sm:$0xff]
        %v1687 = vld [vmem:[#allocation2 + $0x39] sm:$0xff]
        %v1688 = vld [vmem:[#allocation2 + $0x41] sm:$0xff]
        %v1689 = vld [vmem:[#allocation2 + $0x49] sm:$0xff]
        %v1690 = vld [vmem:[#allocation2 + $0x51] sm:$0xff]
        %s1691 = scalar_lea.vmem %s2, 512
        %v1692 = vld [vmem:[%s1691] sm:$0xff]
        %v1693 = vld [vmem:[%s1691 + $0x8] sm:$0xff]
        %v1694 = vld [vmem:[%s1691 + $0x10] sm:$0xff]
        %v1695 = vld [vmem:[%s1691 + $0x18] sm:$0xff]
        %v1696 = vld [vmem:[%s1691 + $0x20] sm:$0xff]
        %v1697 = vld [vmem:[%s1691 + $0x28] sm:$0xff]
        %v1698 = vld [vmem:[%s1691 + $0x30] sm:$0xff]
        %v1699 = vld [vmem:[%s1691 + $0x38] sm:$0xff]
        %v1700 = vmul.f32 %v1683, %v1692
        %v1701 = vmul.f32 %v1684, %v1693
        %v1702 = vmul.f32 %v1685, %v1694
        %v1703 = vmul.f32 %v1686, %v1695
        %v1704 = vmul.f32 %v1687, %v1696
        %v1705 = vmul.f32 %v1688, %v1697
        %v1706 = vmul.f32 %v1689, %v1698
        %v1707 = vmul.f32 %v1690, %v1699
        %1708 = vst.msk [vmem:[#allocation5 + $0x10] sm:$0xff] %vm350, %v1700
        %1709 = vst.msk [vmem:[#allocation5 + $0x28] sm:$0xff] %vm350, %v1701
        %1710 = vst.msk [vmem:[#allocation5 + $0x40] sm:$0xff] %vm350, %v1702
        %1711 = vst.msk [vmem:[#allocation5 + $0x58] sm:$0xff] %vm350, %v1703
        %1712 = vst.msk [vmem:[#allocation5 + $0x70] sm:$0xff] %vm350, %v1704
        %1713 = vst.msk [vmem:[#allocation5 + $0x88] sm:$0xff] %vm350, %v1705
        %1714 = vst.msk [vmem:[#allocation5 + $0xa0] sm:$0xff] %vm350, %v1706
        %1715 = vst.msk [vmem:[#allocation5 + $0xb8] sm:$0xff] %vm350, %v1707
        %v1716 = vld [vmem:[#allocation5] sm:$0xff]
        %v1717 = vld [vmem:[#allocation5 + $0x8] sm:$0xff]
        %v1718 = vld [vmem:[#allocation5 + $0x10] sm:$0xff]
        %v1719 = vld [vmem:[#allocation5 + $0x18] sm:$0xff]
        %v1720 = vld [vmem:[#allocation5 + $0x20] sm:$0xff]
        %v1721 = vld [vmem:[#allocation5 + $0x28] sm:$0xff]
        %v1722 = vld [vmem:[#allocation5 + $0x30] sm:$0xff]
        %v1723 = vld [vmem:[#allocation5 + $0x38] sm:$0xff]
        %v1724 = vld [vmem:[#allocation5 + $0x40] sm:$0xff]
        %v1725 = vld [vmem:[#allocation5 + $0x48] sm:$0xff]
        %v1726 = vld [vmem:[#allocation5 + $0x50] sm:$0xff]
        %v1727 = vld [vmem:[#allocation5 + $0x58] sm:$0xff]
        %v1728 = vld [vmem:[#allocation5 + $0x60] sm:$0xff]
        %v1729 = vld [vmem:[#allocation5 + $0x68] sm:$0xff]
        %v1730 = vld [vmem:[#allocation5 + $0x70] sm:$0xff]
        %v1731 = vld [vmem:[#allocation5 + $0x78] sm:$0xff]
        %v1732 = vld [vmem:[#allocation5 + $0x80] sm:$0xff]
        %v1733 = vld [vmem:[#allocation5 + $0x88] sm:$0xff]
        %v1734 = vld [vmem:[#allocation5 + $0x90] sm:$0xff]
        %v1735 = vld [vmem:[#allocation5 + $0x98] sm:$0xff]
        %v1736 = vld [vmem:[#allocation5 + $0xa0] sm:$0xff]
        %v1737 = vld [vmem:[#allocation5 + $0xa8] sm:$0xff]
        %v1738 = vld [vmem:[#allocation5 + $0xb0] sm:$0xff]
        %v1739 = vld [vmem:[#allocation5 + $0xb8] sm:$0xff]
        %v1740 = vld [vmem:[#allocation7] sm:$0xff]
        %v1741 = vld [vmem:[#allocation7 + $0x8] sm:$0xff]
        %v1742 = vld [vmem:[#allocation7 + $0x10] sm:$0xff]
        %v1743 = vld [vmem:[#allocation7 + $0x18] sm:$0xff]
        %v1744 = vld [vmem:[#allocation7 + $0x20] sm:$0xff]
        %v1745 = vld [vmem:[#allocation7 + $0x28] sm:$0xff]
        %v1746 = vld [vmem:[#allocation7 + $0x30] sm:$0xff]
        %v1747 = vld [vmem:[#allocation7 + $0x38] sm:$0xff]
        %v1748 = vld [vmem:[#allocation7 + $0x40] sm:$0xff]
        %v1749 = vld [vmem:[#allocation7 + $0x48] sm:$0xff]
        %v1750 = vld [vmem:[#allocation7 + $0x50] sm:$0xff]
        %v1751 = vld [vmem:[#allocation7 + $0x58] sm:$0xff]
        %v1752 = vld [vmem:[#allocation7 + $0x60] sm:$0xff]
        %v1753 = vld [vmem:[#allocation7 + $0x68] sm:$0xff]
        %v1754 = vld [vmem:[#allocation7 + $0x70] sm:$0xff]
        %v1755 = vld [vmem:[#allocation7 + $0x78] sm:$0xff]
        %v1756 = vld [vmem:[#allocation7 + $0x80] sm:$0xff]
        %v1757 = vld [vmem:[#allocation7 + $0x88] sm:$0xff]
        %v1758 = vld [vmem:[#allocation7 + $0x90] sm:$0xff]
        %v1759 = vld [vmem:[#allocation7 + $0x98] sm:$0xff]
        %v1760 = vld [vmem:[#allocation7 + $0xa0] sm:$0xff]
        %v1761 = vld [vmem:[#allocation7 + $0xa8] sm:$0xff]
        %v1762 = vld [vmem:[#allocation7 + $0xb0] sm:$0xff]
        %v1763 = vld [vmem:[#allocation7 + $0xb8] sm:$0xff]
        %v1764 = vld [vmem:[#allocation7 + $0xc0] sm:$0xff]
        %v1765 = vld [vmem:[#allocation7 + $0xc8] sm:$0xff]
        %v1766 = vld [vmem:[#allocation7 + $0xd0] sm:$0xff]
        %v1767 = vld [vmem:[#allocation7 + $0xd8] sm:$0xff]
        %v1768 = vld [vmem:[#allocation7 + $0xe0] sm:$0xff]
        %v1769 = vld [vmem:[#allocation7 + $0xe8] sm:$0xff]
        %v1770 = vld [vmem:[#allocation7 + $0xf0] sm:$0xff]
        %v1771 = vld [vmem:[#allocation7 + $0xf8] sm:$0xff]
        %v1772 = vld [vmem:[#allocation7 + $0x100] sm:$0xff]
        %v1773 = vld [vmem:[#allocation7 + $0x108] sm:$0xff]
        %v1774 = vld [vmem:[#allocation7 + $0x110] sm:$0xff]
        %v1775 = vld [vmem:[#allocation7 + $0x118] sm:$0xff]
        %v1776 = vld [vmem:[%s6] sm:$0x1]
        %v1778 = vlaneseq
        %v1779 = vshrl.u32 %v1778, 7
        %v1780 = vsub.s32 0, %v1779
        %v1781 = vrot.slane %v1776, %v1780
        %v1784 = vsel %vm350, %v1718, 0
        %v1787 = vsel %vm350, %v1721, 0
        %v1790 = vsel %vm350, %v1724, 0
        %v1793 = vsel %vm350, %v1727, 0
        %v1796 = vsel %vm350, %v1730, 0
        %v1799 = vsel %vm350, %v1733, 0
        %v1802 = vsel %vm350, %v1736, 0
        %v1805 = vsel %vm350, %v1739, 0
        %1807 = vmatprep.subr.mxu0 0.0
        %1808 = vmatpush1.msra.mxu0 %v1740
        %1809 = vmatprep.subr.mxu0 0.0
        %1810 = vmatpush1.msra.mxu0 %v1741
        %1811 = vmatprep.subr.mxu0 0.0
        %1812 = vmatpush1.msra.mxu0 %v1742
        %1813 = vmatprep.subr.mxu0 0.0
        %1814 = vmatpush1.msra.mxu0 %v1743
        %1815 = vmatprep.subr.mxu0 0.0
        %1816 = vmatpush1.msra.mxu0 %v1744
        %1817 = vmatprep.subr.mxu0 0.0
        %1818 = vmatpush1.msra.mxu0 %v1745
        %1819 = vmatprep.subr.mxu0 0.0
        %1820 = vmatpush1.msra.mxu0 %v1746
        %1821 = vmatprep.subr.mxu0 0.0
        %1822 = vmatpush1.msra.mxu0 %v1747
        %1823 = vmatprep.subr.mxu0 0.0
        %1824 = vmatpush1.msra.mxu0 %v1748
        %1825 = vmatprep.subr.mxu0 0.0
        %1826 = vmatpush1.msra.mxu0 %v1749
        %1827 = vmatprep.subr.mxu0 0.0
        %1828 = vmatpush1.msra.mxu0 %v1750
        %1829 = vmatprep.subr.mxu0 0.0
        %1830 = vmatpush1.msra.mxu0 %v1751
        %1831 = vmatprep.subr.mxu0 0.0
        %1832 = vmatpush1.msra.mxu0 %v1752
        %1833 = vmatprep.subr.mxu0 0.0
        %1834 = vmatpush1.msra.mxu0 %v1753
        %1835 = vmatprep.subr.mxu0 0.0
        %1836 = vmatpush1.msra.mxu0 %v1754
        %1837 = vmatprep.subr.mxu0 0.0
        %1838 = vmatpush1.msra.mxu0 %v1755
        %1839 = vmatprep.subr.mxu0 0.0
        %1840 = vmatpush1.msra.mxu0 %v1756
        %1841 = vmatprep.subr.mxu0 0.0
        %1842 = vmatpush1.msra.mxu0 %v1757
        %1843 = vmatprep.subr.mxu0 0.0
        %1844 = vmatpush1.msra.mxu0 %v1758
        %1845 = vmatprep.subr.mxu0 0.0
        %1846 = vmatpush1.msra.mxu0 %v1759
        %1847 = vmatprep.subr.mxu0 0.0
        %1848 = vmatpush1.msra.mxu0 %v1760
        %1849 = vmatprep.subr.mxu0 0.0
        %1850 = vmatpush1.msra.mxu0 %v1761
        %1851 = vmatprep.subr.mxu0 0.0
        %1852 = vmatpush1.msra.mxu0 %v1762
        %1853 = vmatprep.subr.mxu0 0.0
        %1854 = vmatpush1.msra.mxu0 %v1763
        %1855 = vmatprep.subr.mxu0 0.0
        %1856 = vmatpush1.msra.mxu0 %v1764
        %1857 = vmatprep.subr.mxu0 0.0
        %1858 = vmatpush1.msra.mxu0 %v1765
        %1859 = vmatprep.subr.mxu0 0.0
        %1860 = vmatpush1.msra.mxu0 %v1766
        %1861 = vmatprep.subr.mxu0 0.0
        %1862 = vmatpush1.msra.mxu0 %v1767
        %1863 = vmatprep.subr.mxu0 0.0
        %1864 = vmatpush1.msra.mxu0 %v1768
        %1865 = vmatprep.subr.mxu0 0.0
        %1866 = vmatpush1.msra.mxu0 %v1769
        %1867 = vmatprep.subr.mxu0 0.0
        %1868 = vmatpush1.msra.mxu0 %v1770
        %1869 = vmatprep.subr.mxu0 0.0
        %1870 = vmatpush1.msra.mxu0 %v1771
        %1871 = vmatprep.mubr.f32.mxu0 %v1717
        %1872 = vmatmul.mubr.f32.gmra.mrb[0].mxu0 %v1716
        %v1873 = vpop.f32.mrb[0].mxu0
        %v1874 = vadd.f32 %v1781, %v1873
        %v1875 = vpop.f32.mrb[0].mxu0
        %1876 = vmatprep.mubr.f32.mxu0 %v1720
        %1877 = vmatmul.mubr.f32.gmra.mrb[0].mxu0 %v1719
        %v1878 = vpop.f32.mrb[0].mxu0
        %v1879 = vadd.f32 %v1781, %v1878
        %v1880 = vpop.f32.mrb[0].mxu0
        %1881 = vmatprep.mubr.f32.mxu0 %v1723
        %1882 = vmatmul.mubr.f32.gmra.mrb[0].mxu0 %v1722
        %v1883 = vpop.f32.mrb[0].mxu0
        %v1884 = vadd.f32 %v1781, %v1883
        %v1885 = vpop.f32.mrb[0].mxu0
        %1886 = vmatprep.mubr.f32.mxu0 %v1726
        %1887 = vmatmul.mubr.f32.gmra.mrb[0].mxu0 %v1725
        %v1888 = vpop.f32.mrb[0].mxu0
        %v1889 = vadd.f32 %v1781, %v1888
        %v1890 = vpop.f32.mrb[0].mxu0
        %1891 = vmatprep.mubr.f32.mxu0 %v1729
        %1892 = vmatmul.mubr.f32.gmra.mrb[0].mxu0 %v1728
        %v1893 = vpop.f32.mrb[0].mxu0
        %v1894 = vadd.f32 %v1781, %v1893
        %v1895 = vpop.f32.mrb[0].mxu0
        %1896 = vmatprep.mubr.f32.mxu0 %v1732
        %1897 = vmatmul.mubr.f32.gmra.mrb[0].mxu0 %v1731
        %v1898 = vpop.f32.mrb[0].mxu0
        %v1899 = vadd.f32 %v1781, %v1898
        %v1900 = vpop.f32.mrb[0].mxu0
        %1901 = vmatprep.mubr.f32.mxu0 %v1735
        %1902 = vmatmul.mubr.f32.gmra.mrb[0].mxu0 %v1734
        %v1903 = vpop.f32.mrb[0].mxu0
        %v1904 = vadd.f32 %v1781, %v1903
        %v1905 = vpop.f32.mrb[0].mxu0
        %1906 = vmatprep.mubr.f32.mxu0 %v1738
        %1907 = vmatmul.mubr.f32.gmra.mrb[0].mxu0 %v1737
        %v1908 = vpop.f32.mrb[0].mxu0
        %v1909 = vadd.f32 %v1781, %v1908
        %v1910 = vpop.f32.mrb[0].mxu0
        %1911 = vdwg.mxu0
        %1912 = vmatprep.subr.mxu0 0.0
        %1913 = vmatpush1.msra.mxu0 %v1772
        %1914 = vmatprep.subr.mxu0 0.0
        %1915 = vmatpush1.msra.mxu0 %v1773
        %1916 = vmatprep.subr.mxu0 0.0
        %1917 = vmatpush1.msra.mxu0 %v1774
        %1918 = vmatprep.subr.mxu0 0.0
        %1919 = vmatpush1.msra.mxu0 %v1775
        %1920 = vmatprep.subr.mxu0 0.0
        %1921 = vmatpush1.msra.mxu0 0.0
        %1922 = vmatprep.subr.mxu0 0.0
        %1923 = vmatpush1.msra.mxu0 0.0
        %1924 = vmatprep.subr.mxu0 0.0
        %1925 = vmatpush1.msra.mxu0 0.0
        %1926 = vmatprep.subr.mxu0 0.0
        %1927 = vmatpush1.msra.mxu0 0.0
        %1928 = vmatprep.subr.mxu0 0.0
        %1929 = vmatpush1.msra.mxu0 0.0
        %1930 = vmatprep.subr.mxu0 0.0
        %1931 = vmatpush1.msra.mxu0 0.0
        %1932 = vmatprep.subr.mxu0 0.0
        %1933 = vmatpush1.msra.mxu0 0.0
        %1934 = vmatprep.subr.mxu0 0.0
        %1935 = vmatpush1.msra.mxu0 0.0
        %1936 = vmatprep.subr.mxu0 0.0
        %1937 = vmatpush1.msra.mxu0 0.0
        %1938 = vmatprep.subr.mxu0 0.0
        %1939 = vmatpush1.msra.mxu0 0.0
        %1940 = vmatprep.subr.mxu0 0.0
        %1941 = vmatpush1.msra.mxu0 0.0
        %1942 = vmatprep.subr.mxu0 0.0
        %1943 = vmatpush1.msra.mxu0 0.0
        %1944 = vmatprep.subr.mxu0 0.0
        %1945 = vmatpush1.msra.mxu0 0.0
        %1946 = vmatprep.subr.mxu0 0.0
        %1947 = vmatpush1.msra.mxu0 0.0
        %1948 = vmatprep.subr.mxu0 0.0
        %1949 = vmatpush1.msra.mxu0 0.0
        %1950 = vmatprep.subr.mxu0 0.0
        %1951 = vmatpush1.msra.mxu0 0.0
        %1952 = vmatprep.subr.mxu0 0.0
        %1953 = vmatpush1.msra.mxu0 0.0
        %1954 = vmatprep.subr.mxu0 0.0
        %1955 = vmatpush1.msra.mxu0 0.0
        %1956 = vmatprep.subr.mxu0 0.0
        %1957 = vmatpush1.msra.mxu0 0.0
        %1958 = vmatprep.subr.mxu0 0.0
        %1959 = vmatpush1.msra.mxu0 0.0
        %1960 = vmatprep.subr.mxu0 0.0
        %1961 = vmatpush1.msra.mxu0 0.0
        %1962 = vmatprep.subr.mxu0 0.0
        %1963 = vmatpush1.msra.mxu0 0.0
        %1964 = vmatprep.subr.mxu0 0.0
        %1965 = vmatpush1.msra.mxu0 0.0
        %1966 = vmatprep.subr.mxu0 0.0
        %1967 = vmatpush1.msra.mxu0 0.0
        %1968 = vmatprep.subr.mxu0 0.0
        %1969 = vmatpush1.msra.mxu0 0.0
        %1970 = vmatprep.subr.mxu0 0.0
        %1971 = vmatpush1.msra.mxu0 0.0
        %1972 = vmatprep.subr.mxu0 0.0
        %1973 = vmatpush1.msra.mxu0 0.0
        %1974 = vmatprep.subr.mxu0 0.0
        %1975 = vmatpush1.msra.mxu0 0.0
        %1976 = vmatprep.mubr.f32.mxu0 0.0
        %1977 = vmatmul.mubr.f32.gmra.mrb[0].mxu0 %v1784
        %v1978 = vpop.f32.mrb[0].mxu0
        %v1979 = vadd.f32 %v1874, %v1978
        %v1980 = vpop.f32.mrb[0].mxu0
        %1981 = vmatprep.mubr.f32.mxu0 0.0
        %1982 = vmatmul.mubr.f32.gmra.mrb[0].mxu0 %v1787
        %v1983 = vpop.f32.mrb[0].mxu0
        %v1984 = vadd.f32 %v1879, %v1983
        %v1985 = vpop.f32.mrb[0].mxu0
        %1986 = vmatprep.mubr.f32.mxu0 0.0
        %1987 = vmatmul.mubr.f32.gmra.mrb[0].mxu0 %v1790
        %v1988 = vpop.f32.mrb[0].mxu0
        %v1989 = vadd.f32 %v1884, %v1988
        %v1990 = vpop.f32.mrb[0].mxu0
        %1991 = vmatprep.mubr.f32.mxu0 0.0
        %1992 = vmatmul.mubr.f32.gmra.mrb[0].mxu0 %v1793
        %v1993 = vpop.f32.mrb[0].mxu0
        %v1994 = vadd.f32 %v1889, %v1993
        %v1995 = vpop.f32.mrb[0].mxu0
        %1996 = vmatprep.mubr.f32.mxu0 0.0
        %1997 = vmatmul.mubr.f32.gmra.mrb[0].mxu0 %v1796
        %v1998 = vpop.f32.mrb[0].mxu0
        %v1999 = vadd.f32 %v1894, %v1998
        %v2000 = vpop.f32.mrb[0].mxu0
        %2001 = vmatprep.mubr.f32.mxu0 0.0
        %2002 = vmatmul.mubr.f32.gmra.mrb[0].mxu0 %v1799
        %v2003 = vpop.f32.mrb[0].mxu0
        %v2004 = vadd.f32 %v1899, %v2003
        %v2005 = vpop.f32.mrb[0].mxu0
        %2006 = vmatprep.mubr.f32.mxu0 0.0
        %2007 = vmatmul.mubr.f32.gmra.mrb[0].mxu0 %v1802
        %v2008 = vpop.f32.mrb[0].mxu0
        %v2009 = vadd.f32 %v1904, %v2008
        %v2010 = vpop.f32.mrb[0].mxu0
        %2011 = vmatprep.mubr.f32.mxu0 0.0
        %2012 = vmatmul.mubr.f32.gmra.mrb[0].mxu0 %v1805
        %v2013 = vpop.f32.mrb[0].mxu0
        %v2014 = vadd.f32 %v1909, %v2013
        %v2015 = vpop.f32.mrb[0].mxu0
        %2016 = vdwg.mxu0
        %v2017 = vmax.f32 %v1979, 0.0
        %v2018 = vmax.f32 %v1984, 0.0
        %v2019 = vmax.f32 %v1989, 0.0
        %v2020 = vmax.f32 %v1994, 0.0
        %v2021 = vmax.f32 %v1999, 0.0
        %v2022 = vmax.f32 %v2004, 0.0
        %v2023 = vmax.f32 %v2009, 0.0
        %v2024 = vmax.f32 %v2014, 0.0
        %2025 = vst.msk [vmem:[#allocation3 + $0x10] sm:$0xff] %vm350, %v2017
        %2026 = vst.msk [vmem:[#allocation3 + $0x18] sm:$0xff] %vm350, %v2018
        %2027 = vst.msk [vmem:[#allocation3 + $0x20] sm:$0xff] %vm350, %v2019
        %2028 = vst.msk [vmem:[#allocation3 + $0x28] sm:$0xff] %vm350, %v2020
        %2029 = vst.msk [vmem:[#allocation3 + $0x30] sm:$0xff] %vm350, %v2021
        %2030 = vst.msk [vmem:[#allocation3 + $0x38] sm:$0xff] %vm350, %v2022
        %2031 = vst.msk [vmem:[#allocation3 + $0x40] sm:$0xff] %vm350, %v2023
        %2032 = vst.msk [vmem:[#allocation3 + $0x48] sm:$0xff] %vm350, %v2024
        %v2033 = vld [vmem:[#allocation3 + $0x7] sm:$0xff]
        %v2034 = vld [vmem:[#allocation3 + $0xf] sm:$0xff]
        %v2035 = vld [vmem:[#allocation3 + $0x17] sm:$0xff]
        %v2036 = vld [vmem:[#allocation3 + $0x1f] sm:$0xff]
        %v2037 = vld [vmem:[#allocation3 + $0x27] sm:$0xff]
        %v2038 = vld [vmem:[#allocation3 + $0x2f] sm:$0xff]
        %v2039 = vld [vmem:[#allocation3 + $0x37] sm:$0xff]
        %v2040 = vld [vmem:[#allocation3 + $0x3f] sm:$0xff]
        %v2041 = vld [vmem:[%s2] sm:$0xff]
        %v2042 = vld [vmem:[%s2 + $0x8] sm:$0xff]
        %v2043 = vld [vmem:[%s2 + $0x10] sm:$0xff]
        %v2044 = vld [vmem:[%s2 + $0x18] sm:$0xff]
        %v2045 = vld [vmem:[%s2 + $0x20] sm:$0xff]
        %v2046 = vld [vmem:[%s2 + $0x28] sm:$0xff]
        %v2047 = vld [vmem:[%s2 + $0x30] sm:$0xff]
        %v2048 = vld [vmem:[%s2 + $0x38] sm:$0xff]
        %v2049 = vmul.f32 %v2033, %v2041
        %v2050 = vmul.f32 %v2034, %v2042
        %v2051 = vmul.f32 %v2035, %v2043
        %v2052 = vmul.f32 %v2036, %v2044
        %v2053 = vmul.f32 %v2037, %v2045
        %v2054 = vmul.f32 %v2038, %v2046
        %v2055 = vmul.f32 %v2039, %v2047
        %v2056 = vmul.f32 %v2040, %v2048
        %2057 = vst.msk [vmem:[#allocation5] sm:$0xff] %vm350, %v2049
        %2058 = vst.msk [vmem:[#allocation5 + $0x18] sm:$0xff] %vm350, %v2050
        %2059 = vst.msk [vmem:[#allocation5 + $0x30] sm:$0xff] %vm350, %v2051
        %2060 = vst.msk [vmem:[#allocation5 + $0x48] sm:$0xff] %vm350, %v2052
        %2061 = vst.msk [vmem:[#allocation5 + $0x60] sm:$0xff] %vm350, %v2053
        %2062 = vst.msk [vmem:[#allocation5 + $0x78] sm:$0xff] %vm350, %v2054
        %2063 = vst.msk [vmem:[#allocation5 + $0x90] sm:$0xff] %vm350, %v2055
        %2064 = vst.msk [vmem:[#allocation5 + $0xa8] sm:$0xff] %vm350, %v2056
        %v2065 = vld [vmem:[#allocation3 + $0x8] sm:$0xff]
        %v2066 = vld [vmem:[#allocation3 + $0x10] sm:$0xff]
        %v2067 = vld [vmem:[#allocation3 + $0x18] sm:$0xff]
        %v2068 = vld [vmem:[#allocation3 + $0x20] sm:$0xff]
        %v2069 = vld [vmem:[#allocation3 + $0x28] sm:$0xff]
        %v2070 = vld [vmem:[#allocation3 + $0x30] sm:$0xff]
        %v2071 = vld [vmem:[#allocation3 + $0x38] sm:$0xff]
        %v2072 = vld [vmem:[#allocation3 + $0x40] sm:$0xff]
        %v2073 = vld [vmem:[%s1282] sm:$0xff]
        %v2074 = vld [vmem:[%s1282 + $0x8] sm:$0xff]
        %v2075 = vld [vmem:[%s1282 + $0x10] sm:$0xff]
        %v2076 = vld [vmem:[%s1282 + $0x18] sm:$0xff]
        %v2077 = vld [vmem:[%s1282 + $0x20] sm:$0xff]
        %v2078 = vld [vmem:[%s1282 + $0x28] sm:$0xff]
        %v2079 = vld [vmem:[%s1282 + $0x30] sm:$0xff]
        %v2080 = vld [vmem:[%s1282 + $0x38] sm:$0xff]
        %v2081 = vmul.f32 %v2065, %v2073
        %v2082 = vmul.f32 %v2066, %v2074
        %v2083 = vmul.f32 %v2067, %v2075
        %v2084 = vmul.f32 %v2068, %v2076
        %v2085 = vmul.f32 %v2069, %v2077
        %v2086 = vmul.f32 %v2070, %v2078
        %v2087 = vmul.f32 %v2071, %v2079
        %v2088 = vmul.f32 %v2072, %v2080
        %2097 = vrot.lane.b32.xlu0 %v2081, 32
        %v2098 = vpop.permute.xlu0 %2097
        %2099 = vrot.lane.b32.xlu0 %v2082, 32
        %v2100 = vpop.permute.xlu0 %2099
        %2101 = vrot.lane.b32.xlu0 %v2083, 32
        %v2102 = vpop.permute.xlu0 %2101
        %2103 = vrot.lane.b32.xlu0 %v2084, 32
        %v2104 = vpop.permute.xlu0 %2103
        %2105 = vrot.lane.b32.xlu0 %v2085, 32
        %v2106 = vpop.permute.xlu0 %2105
        %2107 = vrot.lane.b32.xlu0 %v2086, 32
        %v2108 = vpop.permute.xlu0 %2107
        %2109 = vrot.lane.b32.xlu0 %v2087, 32
        %v2110 = vpop.permute.xlu0 %2109
        %2111 = vrot.lane.b32.xlu0 %v2088, 32
        %v2112 = vpop.permute.xlu0 %2111
        %2121 = vst.msk [vmem:[#allocation5] sm:$0xff] %vm1331, %v2098
        %2122 = vst.msk [vmem:[#allocation5 + $0x18] sm:$0xff] %vm1331, %v2100
        %2123 = vst.msk [vmem:[#allocation5 + $0x30] sm:$0xff] %vm1331, %v2102
        %2124 = vst.msk [vmem:[#allocation5 + $0x48] sm:$0xff] %vm1331, %v2104
        %2125 = vst.msk [vmem:[#allocation5 + $0x60] sm:$0xff] %vm1331, %v2106
        %2126 = vst.msk [vmem:[#allocation5 + $0x78] sm:$0xff] %vm1331, %v2108
        %2127 = vst.msk [vmem:[#allocation5 + $0x90] sm:$0xff] %vm1331, %v2110
        %2128 = vst.msk [vmem:[#allocation5 + $0xa8] sm:$0xff] %vm1331, %v2112
        %v2129 = vld [vmem:[#allocation3 + $0x9] sm:$0xff]
        %v2130 = vld [vmem:[#allocation3 + $0x11] sm:$0xff]
        %v2131 = vld [vmem:[#allocation3 + $0x19] sm:$0xff]
        %v2132 = vld [vmem:[#allocation3 + $0x21] sm:$0xff]
        %v2133 = vld [vmem:[#allocation3 + $0x29] sm:$0xff]
        %v2134 = vld [vmem:[#allocation3 + $0x31] sm:$0xff]
        %v2135 = vld [vmem:[#allocation3 + $0x39] sm:$0xff]
        %v2136 = vld [vmem:[#allocation3 + $0x41] sm:$0xff]
        %v2137 = vld [vmem:[%s1348] sm:$0xff]
        %v2138 = vld [vmem:[%s1348 + $0x8] sm:$0xff]
        %v2139 = vld [vmem:[%s1348 + $0x10] sm:$0xff]
        %v2140 = vld [vmem:[%s1348 + $0x18] sm:$0xff]
        %v2141 = vld [vmem:[%s1348 + $0x20] sm:$0xff]
        %v2142 = vld [vmem:[%s1348 + $0x28] sm:$0xff]
        %v2143 = vld [vmem:[%s1348 + $0x30] sm:$0xff]
        %v2144 = vld [vmem:[%s1348 + $0x38] sm:$0xff]
        %v2145 = vmul.f32 %v2129, %v2137
        %v2146 = vmul.f32 %v2130, %v2138
        %v2147 = vmul.f32 %v2131, %v2139
        %v2148 = vmul.f32 %v2132, %v2140
        %v2149 = vmul.f32 %v2133, %v2141
        %v2150 = vmul.f32 %v2134, %v2142
        %v2151 = vmul.f32 %v2135, %v2143
        %v2152 = vmul.f32 %v2136, %v2144
        %2161 = vrot.lane.b32.xlu0 %v2145, 64
        %v2162 = vpop.permute.xlu0 %2161
        %2163 = vrot.lane.b32.xlu0 %v2146, 64
        %v2164 = vpop.permute.xlu0 %2163
        %2165 = vrot.lane.b32.xlu0 %v2147, 64
        %v2166 = vpop.permute.xlu0 %2165
        %2167 = vrot.lane.b32.xlu0 %v2148, 64
        %v2168 = vpop.permute.xlu0 %2167
        %2169 = vrot.lane.b32.xlu0 %v2149, 64
        %v2170 = vpop.permute.xlu0 %2169
        %2171 = vrot.lane.b32.xlu0 %v2150, 64
        %v2172 = vpop.permute.xlu0 %2171
        %2173 = vrot.lane.b32.xlu0 %v2151, 64
        %v2174 = vpop.permute.xlu0 %2173
        %2175 = vrot.lane.b32.xlu0 %v2152, 64
        %v2176 = vpop.permute.xlu0 %2175
        %2185 = vst.msk [vmem:[#allocation5] sm:$0xff] %vm1397, %v2162
        %2186 = vst.msk [vmem:[#allocation5 + $0x18] sm:$0xff] %vm1397, %v2164
        %2187 = vst.msk [vmem:[#allocation5 + $0x30] sm:$0xff] %vm1397, %v2166
        %2188 = vst.msk [vmem:[#allocation5 + $0x48] sm:$0xff] %vm1397, %v2168
        %2189 = vst.msk [vmem:[#allocation5 + $0x60] sm:$0xff] %vm1397, %v2170
        %2190 = vst.msk [vmem:[#allocation5 + $0x78] sm:$0xff] %vm1397, %v2172
        %2191 = vst.msk [vmem:[#allocation5 + $0x90] sm:$0xff] %vm1397, %v2174
        %2192 = vst.msk [vmem:[#allocation5 + $0xa8] sm:$0xff] %vm1397, %v2176
        %v2193 = vld [vmem:[#allocation3 + $0xf] sm:$0xff]
        %v2194 = vld [vmem:[#allocation3 + $0x17] sm:$0xff]
        %v2195 = vld [vmem:[#allocation3 + $0x1f] sm:$0xff]
        %v2196 = vld [vmem:[#allocation3 + $0x27] sm:$0xff]
        %v2197 = vld [vmem:[#allocation3 + $0x2f] sm:$0xff]
        %v2198 = vld [vmem:[#allocation3 + $0x37] sm:$0xff]
        %v2199 = vld [vmem:[#allocation3 + $0x3f] sm:$0xff]
        %v2200 = vld [vmem:[#allocation3 + $0x47] sm:$0xff]
        %v2201 = vld [vmem:[%s1414] sm:$0xff]
        %v2202 = vld [vmem:[%s1414 + $0x8] sm:$0xff]
        %v2203 = vld [vmem:[%s1414 + $0x10] sm:$0xff]
        %v2204 = vld [vmem:[%s1414 + $0x18] sm:$0xff]
        %v2205 = vld [vmem:[%s1414 + $0x20] sm:$0xff]
        %v2206 = vld [vmem:[%s1414 + $0x28] sm:$0xff]
        %v2207 = vld [vmem:[%s1414 + $0x30] sm:$0xff]
        %v2208 = vld [vmem:[%s1414 + $0x38] sm:$0xff]
        %v2209 = vmul.f32 %v2193, %v2201
        %v2210 = vmul.f32 %v2194, %v2202
        %v2211 = vmul.f32 %v2195, %v2203
        %v2212 = vmul.f32 %v2196, %v2204
        %v2213 = vmul.f32 %v2197, %v2205
        %v2214 = vmul.f32 %v2198, %v2206
        %v2215 = vmul.f32 %v2199, %v2207
        %v2216 = vmul.f32 %v2200, %v2208
        %2225 = vrot.lane.b32.xlu0 %v2209, 96
        %v2226 = vpop.permute.xlu0 %2225
        %2227 = vrot.lane.b32.xlu0 %v2210, 96
        %v2228 = vpop.permute.xlu0 %2227
        %2229 = vrot.lane.b32.xlu0 %v2211, 96
        %v2230 = vpop.permute.xlu0 %2229
        %2231 = vrot.lane.b32.xlu0 %v2212, 96
        %v2232 = vpop.permute.xlu0 %2231
        %2233 = vrot.lane.b32.xlu0 %v2213, 96
        %v2234 = vpop.permute.xlu0 %2233
        %2235 = vrot.lane.b32.xlu0 %v2214, 96
        %v2236 = vpop.permute.xlu0 %2235
        %2237 = vrot.lane.b32.xlu0 %v2215, 96
        %v2238 = vpop.permute.xlu0 %2237
        %2239 = vrot.lane.b32.xlu0 %v2216, 96
        %v2240 = vpop.permute.xlu0 %2239
        %2249 = vst.msk [vmem:[#allocation5] sm:$0xff] %vm1463, %v2226
        %2250 = vst.msk [vmem:[#allocation5 + $0x18] sm:$0xff] %vm1463, %v2228
        %2251 = vst.msk [vmem:[#allocation5 + $0x30] sm:$0xff] %vm1463, %v2230
        %2252 = vst.msk [vmem:[#allocation5 + $0x48] sm:$0xff] %vm1463, %v2232
        %2253 = vst.msk [vmem:[#allocation5 + $0x60] sm:$0xff] %vm1463, %v2234
        %2254 = vst.msk [vmem:[#allocation5 + $0x78] sm:$0xff] %vm1463, %v2236
        %2255 = vst.msk [vmem:[#allocation5 + $0x90] sm:$0xff] %vm1463, %v2238
        %2256 = vst.msk [vmem:[#allocation5 + $0xa8] sm:$0xff] %vm1463, %v2240
        %v2257 = vld [vmem:[#allocation3 + $0x10] sm:$0xff]
        %v2258 = vld [vmem:[#allocation3 + $0x18] sm:$0xff]
        %v2259 = vld [vmem:[#allocation3 + $0x20] sm:$0xff]
        %v2260 = vld [vmem:[#allocation3 + $0x28] sm:$0xff]
        %v2261 = vld [vmem:[#allocation3 + $0x30] sm:$0xff]
        %v2262 = vld [vmem:[#allocation3 + $0x38] sm:$0xff]
        %v2263 = vld [vmem:[#allocation3 + $0x40] sm:$0xff]
        %v2264 = vld [vmem:[#allocation3 + $0x48] sm:$0xff]
        %2265 = vst.msk [vmem:[#allocation5 + $0x8] sm:$0xff] %vm350, %v2257
        %2266 = vst.msk [vmem:[#allocation5 + $0x20] sm:$0xff] %vm350, %v2258
        %2267 = vst.msk [vmem:[#allocation5 + $0x38] sm:$0xff] %vm350, %v2259
        %2268 = vst.msk [vmem:[#allocation5 + $0x50] sm:$0xff] %vm350, %v2260
        %2269 = vst.msk [vmem:[#allocation5 + $0x68] sm:$0xff] %vm350, %v2261
        %2270 = vst.msk [vmem:[#allocation5 + $0x80] sm:$0xff] %vm350, %v2262
        %2271 = vst.msk [vmem:[#allocation5 + $0x98] sm:$0xff] %vm350, %v2263
        %2272 = vst.msk [vmem:[#allocation5 + $0xb0] sm:$0xff] %vm350, %v2264
        %v2273 = vld [vmem:[#allocation3 + $0x11] sm:$0xff]
        %v2274 = vld [vmem:[#allocation3 + $0x19] sm:$0xff]
        %v2275 = vld [vmem:[#allocation3 + $0x21] sm:$0xff]
        %v2276 = vld [vmem:[#allocation3 + $0x29] sm:$0xff]
        %v2277 = vld [vmem:[#allocation3 + $0x31] sm:$0xff]
        %v2278 = vld [vmem:[#allocation3 + $0x39] sm:$0xff]
        %v2279 = vld [vmem:[#allocation3 + $0x41] sm:$0xff]
        %v2280 = vld [vmem:[#allocation3 + $0x49] sm:$0xff]
        %v2281 = vld [vmem:[%s1496] sm:$0xff]
        %v2282 = vld [vmem:[%s1496 + $0x8] sm:$0xff]
        %v2283 = vld [vmem:[%s1496 + $0x10] sm:$0xff]
        %v2284 = vld [vmem:[%s1496 + $0x18] sm:$0xff]
        %v2285 = vld [vmem:[%s1496 + $0x20] sm:$0xff]
        %v2286 = vld [vmem:[%s1496 + $0x28] sm:$0xff]
        %v2287 = vld [vmem:[%s1496 + $0x30] sm:$0xff]
        %v2288 = vld [vmem:[%s1496 + $0x38] sm:$0xff]
        %v2289 = vmul.f32 %v2273, %v2281
        %v2290 = vmul.f32 %v2274, %v2282
        %v2291 = vmul.f32 %v2275, %v2283
        %v2292 = vmul.f32 %v2276, %v2284
        %v2293 = vmul.f32 %v2277, %v2285
        %v2294 = vmul.f32 %v2278, %v2286
        %v2295 = vmul.f32 %v2279, %v2287
        %v2296 = vmul.f32 %v2280, %v2288
        %2305 = vrot.lane.b32.xlu0 %v2289, 32
        %v2306 = vpop.permute.xlu0 %2305
        %2307 = vrot.lane.b32.xlu0 %v2290, 32
        %v2308 = vpop.permute.xlu0 %2307
        %2309 = vrot.lane.b32.xlu0 %v2291, 32
        %v2310 = vpop.permute.xlu0 %2309
        %2311 = vrot.lane.b32.xlu0 %v2292, 32
        %v2312 = vpop.permute.xlu0 %2311
        %2313 = vrot.lane.b32.xlu0 %v2293, 32
        %v2314 = vpop.permute.xlu0 %2313
        %2315 = vrot.lane.b32.xlu0 %v2294, 32
        %v2316 = vpop.permute.xlu0 %2315
        %2317 = vrot.lane.b32.xlu0 %v2295, 32
        %v2318 = vpop.permute.xlu0 %2317
        %2319 = vrot.lane.b32.xlu0 %v2296, 32
        %v2320 = vpop.permute.xlu0 %2319
        %2329 = vst.msk [vmem:[#allocation5 + $0x8] sm:$0xff] %vm1331, %v2306
        %2330 = vst.msk [vmem:[#allocation5 + $0x20] sm:$0xff] %vm1331, %v2308
        %2331 = vst.msk [vmem:[#allocation5 + $0x38] sm:$0xff] %vm1331, %v2310
        %2332 = vst.msk [vmem:[#allocation5 + $0x50] sm:$0xff] %vm1331, %v2312
        %2333 = vst.msk [vmem:[#allocation5 + $0x68] sm:$0xff] %vm1331, %v2314
        %2334 = vst.msk [vmem:[#allocation5 + $0x80] sm:$0xff] %vm1331, %v2316
        %2335 = vst.msk [vmem:[#allocation5 + $0x98] sm:$0xff] %vm1331, %v2318
        %2336 = vst.msk [vmem:[#allocation5 + $0xb0] sm:$0xff] %vm1331, %v2320
        %v2337 = vld [vmem:[#allocation3 + $0x17] sm:$0xff]
        %v2338 = vld [vmem:[#allocation3 + $0x1f] sm:$0xff]
        %v2339 = vld [vmem:[#allocation3 + $0x27] sm:$0xff]
        %v2340 = vld [vmem:[#allocation3 + $0x2f] sm:$0xff]
        %v2341 = vld [vmem:[#allocation3 + $0x37] sm:$0xff]
        %v2342 = vld [vmem:[#allocation3 + $0x3f] sm:$0xff]
        %v2343 = vld [vmem:[#allocation3 + $0x47] sm:$0xff]
        %v2344 = vld [vmem:[#allocation3 + $0x4f] sm:$0xff]
        %v2345 = vld [vmem:[%s1561] sm:$0xff]
        %v2346 = vld [vmem:[%s1561 + $0x8] sm:$0xff]
        %v2347 = vld [vmem:[%s1561 + $0x10] sm:$0xff]
        %v2348 = vld [vmem:[%s1561 + $0x18] sm:$0xff]
        %v2349 = vld [vmem:[%s1561 + $0x20] sm:$0xff]
        %v2350 = vld [vmem:[%s1561 + $0x28] sm:$0xff]
        %v2351 = vld [vmem:[%s1561 + $0x30] sm:$0xff]
        %v2352 = vld [vmem:[%s1561 + $0x38] sm:$0xff]
        %v2353 = vmul.f32 %v2337, %v2345
        %v2354 = vmul.f32 %v2338, %v2346
        %v2355 = vmul.f32 %v2339, %v2347
        %v2356 = vmul.f32 %v2340, %v2348
        %v2357 = vmul.f32 %v2341, %v2349
        %v2358 = vmul.f32 %v2342, %v2350
        %v2359 = vmul.f32 %v2343, %v2351
        %v2360 = vmul.f32 %v2344, %v2352
        %2369 = vrot.lane.b32.xlu0 %v2353, 64
        %v2370 = vpop.permute.xlu0 %2369
        %2371 = vrot.lane.b32.xlu0 %v2354, 64
        %v2372 = vpop.permute.xlu0 %2371
        %2373 = vrot.lane.b32.xlu0 %v2355, 64
        %v2374 = vpop.permute.xlu0 %2373
        %2375 = vrot.lane.b32.xlu0 %v2356, 64
        %v2376 = vpop.permute.xlu0 %2375
        %2377 = vrot.lane.b32.xlu0 %v2357, 64
        %v2378 = vpop.permute.xlu0 %2377
        %2379 = vrot.lane.b32.xlu0 %v2358, 64
        %v2380 = vpop.permute.xlu0 %2379
        %2381 = vrot.lane.b32.xlu0 %v2359, 64
        %v2382 = vpop.permute.xlu0 %2381
        %2383 = vrot.lane.b32.xlu0 %v2360, 64
        %v2384 = vpop.permute.xlu0 %2383
        %2393 = vst.msk [vmem:[#allocation5 + $0x8] sm:$0xff] %vm1397, %v2370
        %2394 = vst.msk [vmem:[#allocation5 + $0x20] sm:$0xff] %vm1397, %v2372
        %2395 = vst.msk [vmem:[#allocation5 + $0x38] sm:$0xff] %vm1397, %v2374
        %2396 = vst.msk [vmem:[#allocation5 + $0x50] sm:$0xff] %vm1397, %v2376
        %2397 = vst.msk [vmem:[#allocation5 + $0x68] sm:$0xff] %vm1397, %v2378
        %2398 = vst.msk [vmem:[#allocation5 + $0x80] sm:$0xff] %vm1397, %v2380
        %2399 = vst.msk [vmem:[#allocation5 + $0x98] sm:$0xff] %vm1397, %v2382
        %2400 = vst.msk [vmem:[#allocation5 + $0xb0] sm:$0xff] %vm1397, %v2384
        %v2401 = vld [vmem:[#allocation3 + $0x18] sm:$0xff]
        %v2402 = vld [vmem:[#allocation3 + $0x20] sm:$0xff]
        %v2403 = vld [vmem:[#allocation3 + $0x28] sm:$0xff]
        %v2404 = vld [vmem:[#allocation3 + $0x30] sm:$0xff]
        %v2405 = vld [vmem:[#allocation3 + $0x38] sm:$0xff]
        %v2406 = vld [vmem:[#allocation3 + $0x40] sm:$0xff]
        %v2407 = vld [vmem:[#allocation3 + $0x48] sm:$0xff]
        %v2408 = vld [vmem:[#allocation3 + $0x50] sm:$0xff]
        %v2409 = vld [vmem:[%s1626] sm:$0xff]
        %v2410 = vld [vmem:[%s1626 + $0x8] sm:$0xff]
        %v2411 = vld [vmem:[%s1626 + $0x10] sm:$0xff]
        %v2412 = vld [vmem:[%s1626 + $0x18] sm:$0xff]
        %v2413 = vld [vmem:[%s1626 + $0x20] sm:$0xff]
        %v2414 = vld [vmem:[%s1626 + $0x28] sm:$0xff]
        %v2415 = vld [vmem:[%s1626 + $0x30] sm:$0xff]
        %v2416 = vld [vmem:[%s1626 + $0x38] sm:$0xff]
        %v2417 = vmul.f32 %v2401, %v2409
        %v2418 = vmul.f32 %v2402, %v2410
        %v2419 = vmul.f32 %v2403, %v2411
        %v2420 = vmul.f32 %v2404, %v2412
        %v2421 = vmul.f32 %v2405, %v2413
        %v2422 = vmul.f32 %v2406, %v2414
        %v2423 = vmul.f32 %v2407, %v2415
        %v2424 = vmul.f32 %v2408, %v2416
        %2433 = vrot.lane.b32.xlu0 %v2417, 96
        %v2434 = vpop.permute.xlu0 %2433
        %2435 = vrot.lane.b32.xlu0 %v2418, 96
        %v2436 = vpop.permute.xlu0 %2435
        %2437 = vrot.lane.b32.xlu0 %v2419, 96
        %v2438 = vpop.permute.xlu0 %2437
        %2439 = vrot.lane.b32.xlu0 %v2420, 96
        %v2440 = vpop.permute.xlu0 %2439
        %2441 = vrot.lane.b32.xlu0 %v2421, 96
        %v2442 = vpop.permute.xlu0 %2441
        %2443 = vrot.lane.b32.xlu0 %v2422, 96
        %v2444 = vpop.permute.xlu0 %2443
        %2445 = vrot.lane.b32.xlu0 %v2423, 96
        %v2446 = vpop.permute.xlu0 %2445
        %2447 = vrot.lane.b32.xlu0 %v2424, 96
        %v2448 = vpop.permute.xlu0 %2447
        %2457 = vst.msk [vmem:[#allocation5 + $0x8] sm:$0xff] %vm1463, %v2434
        %2458 = vst.msk [vmem:[#allocation5 + $0x20] sm:$0xff] %vm1463, %v2436
        %2459 = vst.msk [vmem:[#allocation5 + $0x38] sm:$0xff] %vm1463, %v2438
        %2460 = vst.msk [vmem:[#allocation5 + $0x50] sm:$0xff] %vm1463, %v2440
        %2461 = vst.msk [vmem:[#allocation5 + $0x68] sm:$0xff] %vm1463, %v2442
        %2462 = vst.msk [vmem:[#allocation5 + $0x80] sm:$0xff] %vm1463, %v2444
        %2463 = vst.msk [vmem:[#allocation5 + $0x98] sm:$0xff] %vm1463, %v2446
        %2464 = vst.msk [vmem:[#allocation5 + $0xb0] sm:$0xff] %vm1463, %v2448
        %v2465 = vld [vmem:[#allocation3 + $0x19] sm:$0xff]
        %v2466 = vld [vmem:[#allocation3 + $0x21] sm:$0xff]
        %v2467 = vld [vmem:[#allocation3 + $0x29] sm:$0xff]
        %v2468 = vld [vmem:[#allocation3 + $0x31] sm:$0xff]
        %v2469 = vld [vmem:[#allocation3 + $0x39] sm:$0xff]
        %v2470 = vld [vmem:[#allocation3 + $0x41] sm:$0xff]
        %v2471 = vld [vmem:[#allocation3 + $0x49] sm:$0xff]
        %v2472 = vld [vmem:[#allocation3 + $0x51] sm:$0xff]
        %v2473 = vld [vmem:[%s1691] sm:$0xff]
        %v2474 = vld [vmem:[%s1691 + $0x8] sm:$0xff]
        %v2475 = vld [vmem:[%s1691 + $0x10] sm:$0xff]
        %v2476 = vld [vmem:[%s1691 + $0x18] sm:$0xff]
        %v2477 = vld [vmem:[%s1691 + $0x20] sm:$0xff]
        %v2478 = vld [vmem:[%s1691 + $0x28] sm:$0xff]
        %v2479 = vld [vmem:[%s1691 + $0x30] sm:$0xff]
        %v2480 = vld [vmem:[%s1691 + $0x38] sm:$0xff]
        %v2481 = vmul.f32 %v2465, %v2473
        %v2482 = vmul.f32 %v2466, %v2474
        %v2483 = vmul.f32 %v2467, %v2475
        %v2484 = vmul.f32 %v2468, %v2476
        %v2485 = vmul.f32 %v2469, %v2477
        %v2486 = vmul.f32 %v2470, %v2478
        %v2487 = vmul.f32 %v2471, %v2479
        %v2488 = vmul.f32 %v2472, %v2480
        %2489 = vst.msk [vmem:[#allocation5 + $0x10] sm:$0xff] %vm350, %v2481
        %2490 = vst.msk [vmem:[#allocation5 + $0x28] sm:$0xff] %vm350, %v2482
        %2491 = vst.msk [vmem:[#allocation5 + $0x40] sm:$0xff] %vm350, %v2483
        %2492 = vst.msk [vmem:[#allocation5 + $0x58] sm:$0xff] %vm350, %v2484
        %2493 = vst.msk [vmem:[#allocation5 + $0x70] sm:$0xff] %vm350, %v2485
        %2494 = vst.msk [vmem:[#allocation5 + $0x88] sm:$0xff] %vm350, %v2486
        %2495 = vst.msk [vmem:[#allocation5 + $0xa0] sm:$0xff] %vm350, %v2487
        %2496 = vst.msk [vmem:[#allocation5 + $0xb8] sm:$0xff] %vm350, %v2488
        %v2497 = vld [vmem:[#allocation5] sm:$0xff]
        %v2498 = vld [vmem:[#allocation5 + $0x8] sm:$0xff]
        %v2499 = vld [vmem:[#allocation5 + $0x10] sm:$0xff]
        %v2500 = vld [vmem:[#allocation5 + $0x18] sm:$0xff]
        %v2501 = vld [vmem:[#allocation5 + $0x20] sm:$0xff]
        %v2502 = vld [vmem:[#allocation5 + $0x28] sm:$0xff]
        %v2503 = vld [vmem:[#allocation5 + $0x30] sm:$0xff]
        %v2504 = vld [vmem:[#allocation5 + $0x38] sm:$0xff]
        %v2505 = vld [vmem:[#allocation5 + $0x40] sm:$0xff]
        %v2506 = vld [vmem:[#allocation5 + $0x48] sm:$0xff]
        %v2507 = vld [vmem:[#allocation5 + $0x50] sm:$0xff]
        %v2508 = vld [vmem:[#allocation5 + $0x58] sm:$0xff]
        %v2509 = vld [vmem:[#allocation5 + $0x60] sm:$0xff]
        %v2510 = vld [vmem:[#allocation5 + $0x68] sm:$0xff]
        %v2511 = vld [vmem:[#allocation5 + $0x70] sm:$0xff]
        %v2512 = vld [vmem:[#allocation5 + $0x78] sm:$0xff]
        %v2513 = vld [vmem:[#allocation5 + $0x80] sm:$0xff]
        %v2514 = vld [vmem:[#allocation5 + $0x88] sm:$0xff]
        %v2515 = vld [vmem:[#allocation5 + $0x90] sm:$0xff]
        %v2516 = vld [vmem:[#allocation5 + $0x98] sm:$0xff]
        %v2517 = vld [vmem:[#allocation5 + $0xa0] sm:$0xff]
        %v2518 = vld [vmem:[#allocation5 + $0xa8] sm:$0xff]
        %v2519 = vld [vmem:[#allocation5 + $0xb0] sm:$0xff]
        %v2520 = vld [vmem:[#allocation5 + $0xb8] sm:$0xff]
        %s2521 = scalar_lea.vmem [#allocation7], 288
        %v2522 = vld [vmem:[%s2521] sm:$0xff]
        %v2523 = vld [vmem:[%s2521 + $0x8] sm:$0xff]
        %v2524 = vld [vmem:[%s2521 + $0x10] sm:$0xff]
        %v2525 = vld [vmem:[%s2521 + $0x18] sm:$0xff]
        %v2526 = vld [vmem:[%s2521 + $0x20] sm:$0xff]
        %v2527 = vld [vmem:[%s2521 + $0x28] sm:$0xff]
        %v2528 = vld [vmem:[%s2521 + $0x30] sm:$0xff]
        %v2529 = vld [vmem:[%s2521 + $0x38] sm:$0xff]
        %v2530 = vld [vmem:[%s2521 + $0x40] sm:$0xff]
        %v2531 = vld [vmem:[%s2521 + $0x48] sm:$0xff]
        %v2532 = vld [vmem:[%s2521 + $0x50] sm:$0xff]
        %v2533 = vld [vmem:[%s2521 + $0x58] sm:$0xff]
        %v2534 = vld [vmem:[%s2521 + $0x60] sm:$0xff]
        %v2535 = vld [vmem:[%s2521 + $0x68] sm:$0xff]
        %v2536 = vld [vmem:[%s2521 + $0x70] sm:$0xff]
        %v2537 = vld [vmem:[%s2521 + $0x78] sm:$0xff]
        %v2538 = vld [vmem:[%s2521 + $0x80] sm:$0xff]
        %v2539 = vld [vmem:[%s2521 + $0x88] sm:$0xff]
        %v2540 = vld [vmem:[%s2521 + $0x90] sm:$0xff]
        %v2541 = vld [vmem:[%s2521 + $0x98] sm:$0xff]
        %v2542 = vld [vmem:[%s2521 + $0xa0] sm:$0xff]
        %v2543 = vld [vmem:[%s2521 + $0xa8] sm:$0xff]
        %v2544 = vld [vmem:[%s2521 + $0xb0] sm:$0xff]
        %v2545 = vld [vmem:[%s2521 + $0xb8] sm:$0xff]
        %v2546 = vld [vmem:[%s2521 + $0xc0] sm:$0xff]
        %v2547 = vld [vmem:[%s2521 + $0xc8] sm:$0xff]
        %v2548 = vld [vmem:[%s2521 + $0xd0] sm:$0xff]
        %v2549 = vld [vmem:[%s2521 + $0xd8] sm:$0xff]
        %v2550 = vld [vmem:[%s2521 + $0xe0] sm:$0xff]
        %v2551 = vld [vmem:[%s2521 + $0xe8] sm:$0xff]
        %v2552 = vld [vmem:[%s2521 + $0xf0] sm:$0xff]
        %v2553 = vld [vmem:[%s2521 + $0xf8] sm:$0xff]
        %v2554 = vld [vmem:[%s2521 + $0x100] sm:$0xff]
        %v2555 = vld [vmem:[%s2521 + $0x108] sm:$0xff]
        %v2556 = vld [vmem:[%s2521 + $0x110] sm:$0xff]
        %v2557 = vld [vmem:[%s2521 + $0x118] sm:$0xff]
        %s2558 = scalar_lea.vmem %s6, 1
        %v2559 = vld [vmem:[%s2558] sm:$0x1]
        %v2561 = vlaneseq
        %v2562 = vshrl.u32 %v2561, 7
        %v2563 = vsub.s32 0, %v2562
        %v2564 = vrot.slane %v2559, %v2563
        %v2567 = vsel %vm350, %v2499, 0
        %v2570 = vsel %vm350, %v2502, 0
        %v2573 = vsel %vm350, %v2505, 0
        %v2576 = vsel %vm350, %v2508, 0
        %v2579 = vsel %vm350, %v2511, 0
        %v2582 = vsel %vm350, %v2514, 0
        %v2585 = vsel %vm350, %v2517, 0
        %v2588 = vsel %vm350, %v2520, 0
        %2590 = vmatprep.subr.mxu0 0.0
        %2591 = vmatpush1.msra.mxu0 %v2522
        %2592 = vmatprep.subr.mxu0 0.0
        %2593 = vmatpush1.msra.mxu0 %v2523
        %2594 = vmatprep.subr.mxu0 0.0
        %2595 = vmatpush1.msra.mxu0 %v2524
        %2596 = vmatprep.subr.mxu0 0.0
        %2597 = vmatpush1.msra.mxu0 %v2525
        %2598 = vmatprep.subr.mxu0 0.0
        %2599 = vmatpush1.msra.mxu0 %v2526
        %2600 = vmatprep.subr.mxu0 0.0
        %2601 = vmatpush1.msra.mxu0 %v2527
        %2602 = vmatprep.subr.mxu0 0.0
        %2603 = vmatpush1.msra.mxu0 %v2528
        %2604 = vmatprep.subr.mxu0 0.0
        %2605 = vmatpush1.msra.mxu0 %v2529
        %2606 = vmatprep.subr.mxu0 0.0
        %2607 = vmatpush1.msra.mxu0 %v2530
        %2608 = vmatprep.subr.mxu0 0.0
        %2609 = vmatpush1.msra.mxu0 %v2531
        %2610 = vmatprep.subr.mxu0 0.0
        %2611 = vmatpush1.msra.mxu0 %v2532
        %2612 = vmatprep.subr.mxu0 0.0
        %2613 = vmatpush1.msra.mxu0 %v2533
        %2614 = vmatprep.subr.mxu0 0.0
        %2615 = vmatpush1.msra.mxu0 %v2534
        %2616 = vmatprep.subr.mxu0 0.0
        %2617 = vmatpush1.msra.mxu0 %v2535
        %2618 = vmatprep.subr.mxu0 0.0
        %2619 = vmatpush1.msra.mxu0 %v2536
        %2620 = vmatprep.subr.mxu0 0.0
        %2621 = vmatpush1.msra.mxu0 %v2537
        %2622 = vmatprep.subr.mxu0 0.0
        %2623 = vmatpush1.msra.mxu0 %v2538
        %2624 = vmatprep.subr.mxu0 0.0
        %2625 = vmatpush1.msra.mxu0 %v2539
        %2626 = vmatprep.subr.mxu0 0.0
        %2627 = vmatpush1.msra.mxu0 %v2540
        %2628 = vmatprep.subr.mxu0 0.0
        %2629 = vmatpush1.msra.mxu0 %v2541
        %2630 = vmatprep.subr.mxu0 0.0
        %2631 = vmatpush1.msra.mxu0 %v2542
        %2632 = vmatprep.subr.mxu0 0.0
        %2633 = vmatpush1.msra.mxu0 %v2543
        %2634 = vmatprep.subr.mxu0 0.0
        %2635 = vmatpush1.msra.mxu0 %v2544
        %2636 = vmatprep.subr.mxu0 0.0
        %2637 = vmatpush1.msra.mxu0 %v2545
        %2638 = vmatprep.subr.mxu0 0.0
        %2639 = vmatpush1.msra.mxu0 %v2546
        %2640 = vmatprep.subr.mxu0 0.0
        %2641 = vmatpush1.msra.mxu0 %v2547
        %2642 = vmatprep.subr.mxu0 0.0
        %2643 = vmatpush1.msra.mxu0 %v2548
        %2644 = vmatprep.subr.mxu0 0.0
        %2645 = vmatpush1.msra.mxu0 %v2549
        %2646 = vmatprep.subr.mxu0 0.0
        %2647 = vmatpush1.msra.mxu0 %v2550
        %2648 = vmatprep.subr.mxu0 0.0
        %2649 = vmatpush1.msra.mxu0 %v2551
        %2650 = vmatprep.subr.mxu0 0.0
        %2651 = vmatpush1.msra.mxu0 %v2552
        %2652 = vmatprep.subr.mxu0 0.0
        %2653 = vmatpush1.msra.mxu0 %v2553
        %2654 = vmatprep.mubr.f32.mxu0 %v2498
        %2655 = vmatmul.mubr.f32.gmra.mrb[0].mxu0 %v2497
        %v2656 = vpop.f32.mrb[0].mxu0
        %v2657 = vadd.f32 %v2564, %v2656
        %v2658 = vpop.f32.mrb[0].mxu0
        %2659 = vmatprep.mubr.f32.mxu0 %v2501
        %2660 = vmatmul.mubr.f32.gmra.mrb[0].mxu0 %v2500
        %v2661 = vpop.f32.mrb[0].mxu0
        %v2662 = vadd.f32 %v2564, %v2661
        %v2663 = vpop.f32.mrb[0].mxu0
        %2664 = vmatprep.mubr.f32.mxu0 %v2504
        %2665 = vmatmul.mubr.f32.gmra.mrb[0].mxu0 %v2503
        %v2666 = vpop.f32.mrb[0].mxu0
        %v2667 = vadd.f32 %v2564, %v2666
        %v2668 = vpop.f32.mrb[0].mxu0
        %2669 = vmatprep.mubr.f32.mxu0 %v2507
        %2670 = vmatmul.mubr.f32.gmra.mrb[0].mxu0 %v2506
        %v2671 = vpop.f32.mrb[0].mxu0
        %v2672 = vadd.f32 %v2564, %v2671
        %v2673 = vpop.f32.mrb[0].mxu0
        %2674 = vmatprep.mubr.f32.mxu0 %v2510
        %2675 = vmatmul.mubr.f32.gmra.mrb[0].mxu0 %v2509
        %v2676 = vpop.f32.mrb[0].mxu0
        %v2677 = vadd.f32 %v2564, %v2676
        %v2678 = vpop.f32.mrb[0].mxu0
        %2679 = vmatprep.mubr.f32.mxu0 %v2513
        %2680 = vmatmul.mubr.f32.gmra.mrb[0].mxu0 %v2512
        %v2681 = vpop.f32.mrb[0].mxu0
        %v2682 = vadd.f32 %v2564, %v2681
        %v2683 = vpop.f32.mrb[0].mxu0
        %2684 = vmatprep.mubr.f32.mxu0 %v2516
        %2685 = vmatmul.mubr.f32.gmra.mrb[0].mxu0 %v2515
        %v2686 = vpop.f32.mrb[0].mxu0
        %v2687 = vadd.f32 %v2564, %v2686
        %v2688 = vpop.f32.mrb[0].mxu0
        %2689 = vmatprep.mubr.f32.mxu0 %v2519
        %2690 = vmatmul.mubr.f32.gmra.mrb[0].mxu0 %v2518
        %v2691 = vpop.f32.mrb[0].mxu0
        %v2692 = vadd.f32 %v2564, %v2691
        %v2693 = vpop.f32.mrb[0].mxu0
        %2694 = vdwg.mxu0
        %2695 = vmatprep.subr.mxu0 0.0
        %2696 = vmatpush1.msra.mxu0 %v2554
        %2697 = vmatprep.subr.mxu0 0.0
        %2698 = vmatpush1.msra.mxu0 %v2555
        %2699 = vmatprep.subr.mxu0 0.0
        %2700 = vmatpush1.msra.mxu0 %v2556
        %2701 = vmatprep.subr.mxu0 0.0
        %2702 = vmatpush1.msra.mxu0 %v2557
        %2703 = vmatprep.subr.mxu0 0.0
        %2704 = vmatpush1.msra.mxu0 0.0
        %2705 = vmatprep.subr.mxu0 0.0
        %2706 = vmatpush1.msra.mxu0 0.0
        %2707 = vmatprep.subr.mxu0 0.0
        %2708 = vmatpush1.msra.mxu0 0.0
        %2709 = vmatprep.subr.mxu0 0.0
        %2710 = vmatpush1.msra.mxu0 0.0
        %2711 = vmatprep.subr.mxu0 0.0
        %2712 = vmatpush1.msra.mxu0 0.0
        %2713 = vmatprep.subr.mxu0 0.0
        %2714 = vmatpush1.msra.mxu0 0.0
        %2715 = vmatprep.subr.mxu0 0.0
        %2716 = vmatpush1.msra.mxu0 0.0
        %2717 = vmatprep.subr.mxu0 0.0
        %2718 = vmatpush1.msra.mxu0 0.0
        %2719 = vmatprep.subr.mxu0 0.0
        %2720 = vmatpush1.msra.mxu0 0.0
        %2721 = vmatprep.subr.mxu0 0.0
        %2722 = vmatpush1.msra.mxu0 0.0
        %2723 = vmatprep.subr.mxu0 0.0
        %2724 = vmatpush1.msra.mxu0 0.0
        %2725 = vmatprep.subr.mxu0 0.0
        %2726 = vmatpush1.msra.mxu0 0.0
        %2727 = vmatprep.subr.mxu0 0.0
        %2728 = vmatpush1.msra.mxu0 0.0
        %2729 = vmatprep.subr.mxu0 0.0
        %2730 = vmatpush1.msra.mxu0 0.0
        %2731 = vmatprep.subr.mxu0 0.0
        %2732 = vmatpush1.msra.mxu0 0.0
        %2733 = vmatprep.subr.mxu0 0.0
        %2734 = vmatpush1.msra.mxu0 0.0
        %2735 = vmatprep.subr.mxu0 0.0
        %2736 = vmatpush1.msra.mxu0 0.0
        %2737 = vmatprep.subr.mxu0 0.0
        %2738 = vmatpush1.msra.mxu0 0.0
        %2739 = vmatprep.subr.mxu0 0.0
        %2740 = vmatpush1.msra.mxu0 0.0
        %2741 = vmatprep.subr.mxu0 0.0
        %2742 = vmatpush1.msra.mxu0 0.0
        %2743 = vmatprep.subr.mxu0 0.0
        %2744 = vmatpush1.msra.mxu0 0.0
        %2745 = vmatprep.subr.mxu0 0.0
        %2746 = vmatpush1.msra.mxu0 0.0
        %2747 = vmatprep.subr.mxu0 0.0
        %2748 = vmatpush1.msra.mxu0 0.0
        %2749 = vmatprep.subr.mxu0 0.0
        %2750 = vmatpush1.msra.mxu0 0.0
        %2751 = vmatprep.subr.mxu0 0.0
        %2752 = vmatpush1.msra.mxu0 0.0
        %2753 = vmatprep.subr.mxu0 0.0
        %2754 = vmatpush1.msra.mxu0 0.0
        %2755 = vmatprep.subr.mxu0 0.0
        %2756 = vmatpush1.msra.mxu0 0.0
        %2757 = vmatprep.subr.mxu0 0.0
        %2758 = vmatpush1.msra.mxu0 0.0
        %2759 = vmatprep.mubr.f32.mxu0 0.0
        %2760 = vmatmul.mubr.f32.gmra.mrb[0].mxu0 %v2567
        %v2761 = vpop.f32.mrb[0].mxu0
        %v2762 = vadd.f32 %v2657, %v2761
        %v2763 = vpop.f32.mrb[0].mxu0
        %2764 = vmatprep.mubr.f32.mxu0 0.0
        %2765 = vmatmul.mubr.f32.gmra.mrb[0].mxu0 %v2570
        %v2766 = vpop.f32.mrb[0].mxu0
        %v2767 = vadd.f32 %v2662, %v2766
        %v2768 = vpop.f32.mrb[0].mxu0
        %2769 = vmatprep.mubr.f32.mxu0 0.0
        %2770 = vmatmul.mubr.f32.gmra.mrb[0].mxu0 %v2573
        %v2771 = vpop.f32.mrb[0].mxu0
        %v2772 = vadd.f32 %v2667, %v2771
        %v2773 = vpop.f32.mrb[0].mxu0
        %2774 = vmatprep.mubr.f32.mxu0 0.0
        %2775 = vmatmul.mubr.f32.gmra.mrb[0].mxu0 %v2576
        %v2776 = vpop.f32.mrb[0].mxu0
        %v2777 = vadd.f32 %v2672, %v2776
        %v2778 = vpop.f32.mrb[0].mxu0
        %2779 = vmatprep.mubr.f32.mxu0 0.0
        %2780 = vmatmul.mubr.f32.gmra.mrb[0].mxu0 %v2579
        %v2781 = vpop.f32.mrb[0].mxu0
        %v2782 = vadd.f32 %v2677, %v2781
        %v2783 = vpop.f32.mrb[0].mxu0
        %2784 = vmatprep.mubr.f32.mxu0 0.0
        %2785 = vmatmul.mubr.f32.gmra.mrb[0].mxu0 %v2582
        %v2786 = vpop.f32.mrb[0].mxu0
        %v2787 = vadd.f32 %v2682, %v2786
        %v2788 = vpop.f32.mrb[0].mxu0
        %2789 = vmatprep.mubr.f32.mxu0 0.0
        %2790 = vmatmul.mubr.f32.gmra.mrb[0].mxu0 %v2585
        %v2791 = vpop.f32.mrb[0].mxu0
        %v2792 = vadd.f32 %v2687, %v2791
        %v2793 = vpop.f32.mrb[0].mxu0
        %2794 = vmatprep.mubr.f32.mxu0 0.0
        %2795 = vmatmul.mubr.f32.gmra.mrb[0].mxu0 %v2588
        %v2796 = vpop.f32.mrb[0].mxu0
        %v2797 = vadd.f32 %v2692, %v2796
        %v2798 = vpop.f32.mrb[0].mxu0
        %2799 = vdwg.mxu0
        %v2800 = vld [vmem:[#allocation2 + $0x10] sm:$0xff]
        %v2801 = vld [vmem:[#allocation2 + $0x18] sm:$0xff]
        %v2802 = vld [vmem:[#allocation2 + $0x20] sm:$0xff]
        %v2803 = vld [vmem:[#allocation2 + $0x28] sm:$0xff]
        %v2804 = vld [vmem:[#allocation2 + $0x30] sm:$0xff]
        %v2805 = vld [vmem:[#allocation2 + $0x38] sm:$0xff]
        %v2806 = vld [vmem:[#allocation2 + $0x40] sm:$0xff]
        %v2807 = vld [vmem:[#allocation2 + $0x48] sm:$0xff]
        %v2808 = vadd.f32 %v2762, %v2800
        %v2809 = vadd.f32 %v2767, %v2801
        %v2810 = vadd.f32 %v2772, %v2802
        %v2811 = vadd.f32 %v2777, %v2803
        %v2812 = vadd.f32 %v2782, %v2804
        %v2813 = vadd.f32 %v2787, %v2805
        %v2814 = vadd.f32 %v2792, %v2806
        %v2815 = vadd.f32 %v2797, %v2807
        %v2816 = vmax.f32 %v2808, 0.0
        %v2817 = vmax.f32 %v2809, 0.0
        %v2818 = vmax.f32 %v2810, 0.0
        %v2819 = vmax.f32 %v2811, 0.0
        %v2820 = vmax.f32 %v2812, 0.0
        %v2821 = vmax.f32 %v2813, 0.0
        %v2822 = vmax.f32 %v2814, 0.0
        %v2823 = vmax.f32 %v2815, 0.0
        %2824 = vst.msk [vmem:[#allocation2 + $0x10] sm:$0xff] %vm350, %v2816
        %2825 = vst.msk [vmem:[#allocation2 + $0x18] sm:$0xff] %vm350, %v2817
        %2826 = vst.msk [vmem:[#allocation2 + $0x20] sm:$0xff] %vm350, %v2818
        %2827 = vst.msk [vmem:[#allocation2 + $0x28] sm:$0xff] %vm350, %v2819
        %2828 = vst.msk [vmem:[#allocation2 + $0x30] sm:$0xff] %vm350, %v2820
        %2829 = vst.msk [vmem:[#allocation2 + $0x38] sm:$0xff] %vm350, %v2821
        %2830 = vst.msk [vmem:[#allocation2 + $0x40] sm:$0xff] %vm350, %v2822
        %2831 = vst.msk [vmem:[#allocation2 + $0x48] sm:$0xff] %vm350, %v2823
        %v2832 = vld [vmem:[#allocation2 + $0x7] sm:$0xff]
        %v2833 = vld [vmem:[#allocation2 + $0xf] sm:$0xff]
        %v2834 = vld [vmem:[#allocation2 + $0x17] sm:$0xff]
        %v2835 = vld [vmem:[#allocation2 + $0x1f] sm:$0xff]
        %v2836 = vld [vmem:[#allocation2 + $0x27] sm:$0xff]
        %v2837 = vld [vmem:[#allocation2 + $0x2f] sm:$0xff]
        %v2838 = vld [vmem:[#allocation2 + $0x37] sm:$0xff]
        %v2839 = vld [vmem:[#allocation2 + $0x3f] sm:$0xff]
        %v2840 = vld [vmem:[%s2] sm:$0xff]
        %v2841 = vld [vmem:[%s2 + $0x8] sm:$0xff]
        %v2842 = vld [vmem:[%s2 + $0x10] sm:$0xff]
        %v2843 = vld [vmem:[%s2 + $0x18] sm:$0xff]
        %v2844 = vld [vmem:[%s2 + $0x20] sm:$0xff]
        %v2845 = vld [vmem:[%s2 + $0x28] sm:$0xff]
        %v2846 = vld [vmem:[%s2 + $0x30] sm:$0xff]
        %v2847 = vld [vmem:[%s2 + $0x38] sm:$0xff]
        %v2848 = vmul.f32 %v2832, %v2840
        %v2849 = vmul.f32 %v2833, %v2841
        %v2850 = vmul.f32 %v2834, %v2842
        %v2851 = vmul.f32 %v2835, %v2843
        %v2852 = vmul.f32 %v2836, %v2844
        %v2853 = vmul.f32 %v2837, %v2845
        %v2854 = vmul.f32 %v2838, %v2846
        %v2855 = vmul.f32 %v2839, %v2847
        %2856 = vst.msk [vmem:[#allocation5] sm:$0xff] %vm350, %v2848
        %2857 = vst.msk [vmem:[#allocation5 + $0x18] sm:$0xff] %vm350, %v2849
        %2858 = vst.msk [vmem:[#allocation5 + $0x30] sm:$0xff] %vm350, %v2850
        %2859 = vst.msk [vmem:[#allocation5 + $0x48] sm:$0xff] %vm350, %v2851
        %2860 = vst.msk [vmem:[#allocation5 + $0x60] sm:$0xff] %vm350, %v2852
        %2861 = vst.msk [vmem:[#allocation5 + $0x78] sm:$0xff] %vm350, %v2853
        %2862 = vst.msk [vmem:[#allocation5 + $0x90] sm:$0xff] %vm350, %v2854
        %2863 = vst.msk [vmem:[#allocation5 + $0xa8] sm:$0xff] %vm350, %v2855
        %v2864 = vld [vmem:[#allocation2 + $0x8] sm:$0xff]
        %v2865 = vld [vmem:[#allocation2 + $0x10] sm:$0xff]
        %v2866 = vld [vmem:[#allocation2 + $0x18] sm:$0xff]
        %v2867 = vld [vmem:[#allocation2 + $0x20] sm:$0xff]
        %v2868 = vld [vmem:[#allocation2 + $0x28] sm:$0xff]
        %v2869 = vld [vmem:[#allocation2 + $0x30] sm:$0xff]
        %v2870 = vld [vmem:[#allocation2 + $0x38] sm:$0xff]
        %v2871 = vld [vmem:[#allocation2 + $0x40] sm:$0xff]
        %v2872 = vld [vmem:[%s1282] sm:$0xff]
        %v2873 = vld [vmem:[%s1282 + $0x8] sm:$0xff]
        %v2874 = vld [vmem:[%s1282 + $0x10] sm:$0xff]
        %v2875 = vld [vmem:[%s1282 + $0x18] sm:$0xff]
        %v2876 = vld [vmem:[%s1282 + $0x20] sm:$0xff]
        %v2877 = vld [vmem:[%s1282 + $0x28] sm:$0xff]
        %v2878 = vld [vmem:[%s1282 + $0x30] sm:$0xff]
        %v2879 = vld [vmem:[%s1282 + $0x38] sm:$0xff]
        %v2880 = vmul.f32 %v2864, %v2872
        %v2881 = vmul.f32 %v2865, %v2873
        %v2882 = vmul.f32 %v2866, %v2874
        %v2883 = vmul.f32 %v2867, %v2875
        %v2884 = vmul.f32 %v2868, %v2876
        %v2885 = vmul.f32 %v2869, %v2877
        %v2886 = vmul.f32 %v2870, %v2878
        %v2887 = vmul.f32 %v2871, %v2879
        %2896 = vrot.lane.b32.xlu0 %v2880, 32
        %v2897 = vpop.permute.xlu0 %2896
        %2898 = vrot.lane.b32.xlu0 %v2881, 32
        %v2899 = vpop.permute.xlu0 %2898
        %2900 = vrot.lane.b32.xlu0 %v2882, 32
        %v2901 = vpop.permute.xlu0 %2900
        %2902 = vrot.lane.b32.xlu0 %v2883, 32
        %v2903 = vpop.permute.xlu0 %2902
        %2904 = vrot.lane.b32.xlu0 %v2884, 32
        %v2905 = vpop.permute.xlu0 %2904
        %2906 = vrot.lane.b32.xlu0 %v2885, 32
        %v2907 = vpop.permute.xlu0 %2906
        %2908 = vrot.lane.b32.xlu0 %v2886, 32
        %v2909 = vpop.permute.xlu0 %2908
        %2910 = vrot.lane.b32.xlu0 %v2887, 32
        %v2911 = vpop.permute.xlu0 %2910
        %2920 = vst.msk [vmem:[#allocation5] sm:$0xff] %vm1331, %v2897
        %2921 = vst.msk [vmem:[#allocation5 + $0x18] sm:$0xff] %vm1331, %v2899
        %2922 = vst.msk [vmem:[#allocation5 + $0x30] sm:$0xff] %vm1331, %v2901
        %2923 = vst.msk [vmem:[#allocation5 + $0x48] sm:$0xff] %vm1331, %v2903
        %2924 = vst.msk [vmem:[#allocation5 + $0x60] sm:$0xff] %vm1331, %v2905
        %2925 = vst.msk [vmem:[#allocation5 + $0x78] sm:$0xff] %vm1331, %v2907
        %2926 = vst.msk [vmem:[#allocation5 + $0x90] sm:$0xff] %vm1331, %v2909
        %2927 = vst.msk [vmem:[#allocation5 + $0xa8] sm:$0xff] %vm1331, %v2911
        %v2928 = vld [vmem:[#allocation2 + $0x9] sm:$0xff]
        %v2929 = vld [vmem:[#allocation2 + $0x11] sm:$0xff]
        %v2930 = vld [vmem:[#allocation2 + $0x19] sm:$0xff]
        %v2931 = vld [vmem:[#allocation2 + $0x21] sm:$0xff]
        %v2932 = vld [vmem:[#allocation2 + $0x29] sm:$0xff]
        %v2933 = vld [vmem:[#allocation2 + $0x31] sm:$0xff]
        %v2934 = vld [vmem:[#allocation2 + $0x39] sm:$0xff]
        %v2935 = vld [vmem:[#allocation2 + $0x41] sm:$0xff]
        %v2936 = vld [vmem:[%s1348] sm:$0xff]
        %v2937 = vld [vmem:[%s1348 + $0x8] sm:$0xff]
        %v2938 = vld [vmem:[%s1348 + $0x10] sm:$0xff]
        %v2939 = vld [vmem:[%s1348 + $0x18] sm:$0xff]
        %v2940 = vld [vmem:[%s1348 + $0x20] sm:$0xff]
        %v2941 = vld [vmem:[%s1348 + $0x28] sm:$0xff]
        %v2942 = vld [vmem:[%s1348 + $0x30] sm:$0xff]
        %v2943 = vld [vmem:[%s1348 + $0x38] sm:$0xff]
        %v2944 = vmul.f32 %v2928, %v2936
        %v2945 = vmul.f32 %v2929, %v2937
        %v2946 = vmul.f32 %v2930, %v2938
        %v2947 = vmul.f32 %v2931, %v2939
        %v2948 = vmul.f32 %v2932, %v2940
        %v2949 = vmul.f32 %v2933, %v2941
        %v2950 = vmul.f32 %v2934, %v2942
        %v2951 = vmul.f32 %v2935, %v2943
        %2960 = vrot.lane.b32.xlu0 %v2944, 64
        %v2961 = vpop.permute.xlu0 %2960
        %2962 = vrot.lane.b32.xlu0 %v2945, 64
        %v2963 = vpop.permute.xlu0 %2962
        %2964 = vrot.lane.b32.xlu0 %v2946, 64
        %v2965 = vpop.permute.xlu0 %2964
        %2966 = vrot.lane.b32.xlu0 %v2947, 64
        %v2967 = vpop.permute.xlu0 %2966
        %2968 = vrot.lane.b32.xlu0 %v2948, 64
        %v2969 = vpop.permute.xlu0 %2968
        %2970 = vrot.lane.b32.xlu0 %v2949, 64
        %v2971 = vpop.permute.xlu0 %2970
        %2972 = vrot.lane.b32.xlu0 %v2950, 64
        %v2973 = vpop.permute.xlu0 %2972
        %2974 = vrot.lane.b32.xlu0 %v2951, 64
        %v2975 = vpop.permute.xlu0 %2974
        %2984 = vst.msk [vmem:[#allocation5] sm:$0xff] %vm1397, %v2961
        %2985 = vst.msk [vmem:[#allocation5 + $0x18] sm:$0xff] %vm1397, %v2963
        %2986 = vst.msk [vmem:[#allocation5 + $0x30] sm:$0xff] %vm1397, %v2965
        %2987 = vst.msk [vmem:[#allocation5 + $0x48] sm:$0xff] %vm1397, %v2967
        %2988 = vst.msk [vmem:[#allocation5 + $0x60] sm:$0xff] %vm1397, %v2969
        %2989 = vst.msk [vmem:[#allocation5 + $0x78] sm:$0xff] %vm1397, %v2971
        %2990 = vst.msk [vmem:[#allocation5 + $0x90] sm:$0xff] %vm1397, %v2973
        %2991 = vst.msk [vmem:[#allocation5 + $0xa8] sm:$0xff] %vm1397, %v2975
        %v2992 = vld [vmem:[#allocation2 + $0xf] sm:$0xff]
        %v2993 = vld [vmem:[#allocation2 + $0x17] sm:$0xff]
        %v2994 = vld [vmem:[#allocation2 + $0x1f] sm:$0xff]
        %v2995 = vld [vmem:[#allocation2 + $0x27] sm:$0xff]
        %v2996 = vld [vmem:[#allocation2 + $0x2f] sm:$0xff]
        %v2997 = vld [vmem:[#allocation2 + $0x37] sm:$0xff]
        %v2998 = vld [vmem:[#allocation2 + $0x3f] sm:$0xff]
        %v2999 = vld [vmem:[#allocation2 + $0x47] sm:$0xff]
        %v3000 = vld [vmem:[%s1414] sm:$0xff]
        %v3001 = vld [vmem:[%s1414 + $0x8] sm:$0xff]
        %v3002 = vld [vmem:[%s1414 + $0x10] sm:$0xff]
        %v3003 = vld [vmem:[%s1414 + $0x18] sm:$0xff]
        %v3004 = vld [vmem:[%s1414 + $0x20] sm:$0xff]
        %v3005 = vld [vmem:[%s1414 + $0x28] sm:$0xff]
        %v3006 = vld [vmem:[%s1414 + $0x30] sm:$0xff]
        %v3007 = vld [vmem:[%s1414 + $0x38] sm:$0xff]
        %v3008 = vmul.f32 %v2992, %v3000
        %v3009 = vmul.f32 %v2993, %v3001
        %v3010 = vmul.f32 %v2994, %v3002
        %v3011 = vmul.f32 %v2995, %v3003
        %v3012 = vmul.f32 %v2996, %v3004
        %v3013 = vmul.f32 %v2997, %v3005
        %v3014 = vmul.f32 %v2998, %v3006
        %v3015 = vmul.f32 %v2999, %v3007
        %3024 = vrot.lane.b32.xlu0 %v3008, 96
        %v3025 = vpop.permute.xlu0 %3024
        %3026 = vrot.lane.b32.xlu0 %v3009, 96
        %v3027 = vpop.permute.xlu0 %3026
        %3028 = vrot.lane.b32.xlu0 %v3010, 96
        %v3029 = vpop.permute.xlu0 %3028
        %3030 = vrot.lane.b32.xlu0 %v3011, 96
        %v3031 = vpop.permute.xlu0 %3030
        %3032 = vrot.lane.b32.xlu0 %v3012, 96
        %v3033 = vpop.permute.xlu0 %3032
        %3034 = vrot.lane.b32.xlu0 %v3013, 96
        %v3035 = vpop.permute.xlu0 %3034
        %3036 = vrot.lane.b32.xlu0 %v3014, 96
        %v3037 = vpop.permute.xlu0 %3036
        %3038 = vrot.lane.b32.xlu0 %v3015, 96
        %v3039 = vpop.permute.xlu0 %3038
        %3048 = vst.msk [vmem:[#allocation5] sm:$0xff] %vm1463, %v3025
        %3049 = vst.msk [vmem:[#allocation5 + $0x18] sm:$0xff] %vm1463, %v3027
        %3050 = vst.msk [vmem:[#allocation5 + $0x30] sm:$0xff] %vm1463, %v3029
        %3051 = vst.msk [vmem:[#allocation5 + $0x48] sm:$0xff] %vm1463, %v3031
        %3052 = vst.msk [vmem:[#allocation5 + $0x60] sm:$0xff] %vm1463, %v3033
        %3053 = vst.msk [vmem:[#allocation5 + $0x78] sm:$0xff] %vm1463, %v3035
        %3054 = vst.msk [vmem:[#allocation5 + $0x90] sm:$0xff] %vm1463, %v3037
        %3055 = vst.msk [vmem:[#allocation5 + $0xa8] sm:$0xff] %vm1463, %v3039
        %v3056 = vld [vmem:[#allocation2 + $0x10] sm:$0xff]
        %v3057 = vld [vmem:[#allocation2 + $0x18] sm:$0xff]
        %v3058 = vld [vmem:[#allocation2 + $0x20] sm:$0xff]
        %v3059 = vld [vmem:[#allocation2 + $0x28] sm:$0xff]
        %v3060 = vld [vmem:[#allocation2 + $0x30] sm:$0xff]
        %v3061 = vld [vmem:[#allocation2 + $0x38] sm:$0xff]
        %v3062 = vld [vmem:[#allocation2 + $0x40] sm:$0xff]
        %v3063 = vld [vmem:[#allocation2 + $0x48] sm:$0xff]
        %3064 = vst.msk [vmem:[#allocation5 + $0x8] sm:$0xff] %vm350, %v3056
        %3065 = vst.msk [vmem:[#allocation5 + $0x20] sm:$0xff] %vm350, %v3057
        %3066 = vst.msk [vmem:[#allocation5 + $0x38] sm:$0xff] %vm350, %v3058
        %3067 = vst.msk [vmem:[#allocation5 + $0x50] sm:$0xff] %vm350, %v3059
        %3068 = vst.msk [vmem:[#allocation5 + $0x68] sm:$0xff] %vm350, %v3060
        %3069 = vst.msk [vmem:[#allocation5 + $0x80] sm:$0xff] %vm350, %v3061
        %3070 = vst.msk [vmem:[#allocation5 + $0x98] sm:$0xff] %vm350, %v3062
        %3071 = vst.msk [vmem:[#allocation5 + $0xb0] sm:$0xff] %vm350, %v3063
        %v3072 = vld [vmem:[#allocation2 + $0x11] sm:$0xff]
        %v3073 = vld [vmem:[#allocation2 + $0x19] sm:$0xff]
        %v3074 = vld [vmem:[#allocation2 + $0x21] sm:$0xff]
        %v3075 = vld [vmem:[#allocation2 + $0x29] sm:$0xff]
        %v3076 = vld [vmem:[#allocation2 + $0x31] sm:$0xff]
        %v3077 = vld [vmem:[#allocation2 + $0x39] sm:$0xff]
        %v3078 = vld [vmem:[#allocation2 + $0x41] sm:$0xff]
        %v3079 = vld [vmem:[#allocation2 + $0x49] sm:$0xff]
        %v3080 = vld [vmem:[%s1496] sm:$0xff]
        %v3081 = vld [vmem:[%s1496 + $0x8] sm:$0xff]
        %v3082 = vld [vmem:[%s1496 + $0x10] sm:$0xff]
        %v3083 = vld [vmem:[%s1496 + $0x18] sm:$0xff]
        %v3084 = vld [vmem:[%s1496 + $0x20] sm:$0xff]
        %v3085 = vld [vmem:[%s1496 + $0x28] sm:$0xff]
        %v3086 = vld [vmem:[%s1496 + $0x30] sm:$0xff]
        %v3087 = vld [vmem:[%s1496 + $0x38] sm:$0xff]
        %v3088 = vmul.f32 %v3072, %v3080
        %v3089 = vmul.f32 %v3073, %v3081
        %v3090 = vmul.f32 %v3074, %v3082
        %v3091 = vmul.f32 %v3075, %v3083
        %v3092 = vmul.f32 %v3076, %v3084
        %v3093 = vmul.f32 %v3077, %v3085
        %v3094 = vmul.f32 %v3078, %v3086
        %v3095 = vmul.f32 %v3079, %v3087
        %3104 = vrot.lane.b32.xlu0 %v3088, 32
        %v3105 = vpop.permute.xlu0 %3104
        %3106 = vrot.lane.b32.xlu0 %v3089, 32
        %v3107 = vpop.permute.xlu0 %3106
        %3108 = vrot.lane.b32.xlu0 %v3090, 32
        %v3109 = vpop.permute.xlu0 %3108
        %3110 = vrot.lane.b32.xlu0 %v3091, 32
        %v3111 = vpop.permute.xlu0 %3110
        %3112 = vrot.lane.b32.xlu0 %v3092, 32
        %v3113 = vpop.permute.xlu0 %3112
        %3114 = vrot.lane.b32.xlu0 %v3093, 32
        %v3115 = vpop.permute.xlu0 %3114
        %3116 = vrot.lane.b32.xlu0 %v3094, 32
        %v3117 = vpop.permute.xlu0 %3116
        %3118 = vrot.lane.b32.xlu0 %v3095, 32
        %v3119 = vpop.permute.xlu0 %3118
        %3128 = vst.msk [vmem:[#allocation5 + $0x8] sm:$0xff] %vm1331, %v3105
        %3129 = vst.msk [vmem:[#allocation5 + $0x20] sm:$0xff] %vm1331, %v3107
        %3130 = vst.msk [vmem:[#allocation5 + $0x38] sm:$0xff] %vm1331, %v3109
        %3131 = vst.msk [vmem:[#allocation5 + $0x50] sm:$0xff] %vm1331, %v3111
        %3132 = vst.msk [vmem:[#allocation5 + $0x68] sm:$0xff] %vm1331, %v3113
        %3133 = vst.msk [vmem:[#allocation5 + $0x80] sm:$0xff] %vm1331, %v3115
        %3134 = vst.msk [vmem:[#allocation5 + $0x98] sm:$0xff] %vm1331, %v3117
        %3135 = vst.msk [vmem:[#allocation5 + $0xb0] sm:$0xff] %vm1331, %v3119
        %v3136 = vld [vmem:[#allocation2 + $0x17] sm:$0xff]
        %v3137 = vld [vmem:[#allocation2 + $0x1f] sm:$0xff]
        %v3138 = vld [vmem:[#allocation2 + $0x27] sm:$0xff]
        %v3139 = vld [vmem:[#allocation2 + $0x2f] sm:$0xff]
        %v3140 = vld [vmem:[#allocation2 + $0x37] sm:$0xff]
        %v3141 = vld [vmem:[#allocation2 + $0x3f] sm:$0xff]
        %v3142 = vld [vmem:[#allocation2 + $0x47] sm:$0xff]
        %v3143 = vld [vmem:[#allocation2 + $0x4f] sm:$0xff]
        %v3144 = vld [vmem:[%s1561] sm:$0xff]
        %v3145 = vld [vmem:[%s1561 + $0x8] sm:$0xff]
        %v3146 = vld [vmem:[%s1561 + $0x10] sm:$0xff]
        %v3147 = vld [vmem:[%s1561 + $0x18] sm:$0xff]
        %v3148 = vld [vmem:[%s1561 + $0x20] sm:$0xff]
        %v3149 = vld [vmem:[%s1561 + $0x28] sm:$0xff]
        %v3150 = vld [vmem:[%s1561 + $0x30] sm:$0xff]
        %v3151 = vld [vmem:[%s1561 + $0x38] sm:$0xff]
        %v3152 = vmul.f32 %v3136, %v3144
        %v3153 = vmul.f32 %v3137, %v3145
        %v3154 = vmul.f32 %v3138, %v3146
        %v3155 = vmul.f32 %v3139, %v3147
        %v3156 = vmul.f32 %v3140, %v3148
        %v3157 = vmul.f32 %v3141, %v3149
        %v3158 = vmul.f32 %v3142, %v3150
        %v3159 = vmul.f32 %v3143, %v3151
        %3168 = vrot.lane.b32.xlu0 %v3152, 64
        %v3169 = vpop.permute.xlu0 %3168
        %3170 = vrot.lane.b32.xlu0 %v3153, 64
        %v3171 = vpop.permute.xlu0 %3170
        %3172 = vrot.lane.b32.xlu0 %v3154, 64
        %v3173 = vpop.permute.xlu0 %3172
        %3174 = vrot.lane.b32.xlu0 %v3155, 64
        %v3175 = vpop.permute.xlu0 %3174
        %3176 = vrot.lane.b32.xlu0 %v3156, 64
        %v3177 = vpop.permute.xlu0 %3176
        %3178 = vrot.lane.b32.xlu0 %v3157, 64
        %v3179 = vpop.permute.xlu0 %3178
        %3180 = vrot.lane.b32.xlu0 %v3158, 64
        %v3181 = vpop.permute.xlu0 %3180
        %3182 = vrot.lane.b32.xlu0 %v3159, 64
        %v3183 = vpop.permute.xlu0 %3182
        %3192 = vst.msk [vmem:[#allocation5 + $0x8] sm:$0xff] %vm1397, %v3169
        %3193 = vst.msk [vmem:[#allocation5 + $0x20] sm:$0xff] %vm1397, %v3171
        %3194 = vst.msk [vmem:[#allocation5 + $0x38] sm:$0xff] %vm1397, %v3173
        %3195 = vst.msk [vmem:[#allocation5 + $0x50] sm:$0xff] %vm1397, %v3175
        %3196 = vst.msk [vmem:[#allocation5 + $0x68] sm:$0xff] %vm1397, %v3177
        %3197 = vst.msk [vmem:[#allocation5 + $0x80] sm:$0xff] %vm1397, %v3179
        %3198 = vst.msk [vmem:[#allocation5 + $0x98] sm:$0xff] %vm1397, %v3181
        %3199 = vst.msk [vmem:[#allocation5 + $0xb0] sm:$0xff] %vm1397, %v3183
        %v3200 = vld [vmem:[#allocation2 + $0x18] sm:$0xff]
        %v3201 = vld [vmem:[#allocation2 + $0x20] sm:$0xff]
        %v3202 = vld [vmem:[#allocation2 + $0x28] sm:$0xff]
        %v3203 = vld [vmem:[#allocation2 + $0x30] sm:$0xff]
        %v3204 = vld [vmem:[#allocation2 + $0x38] sm:$0xff]
        %v3205 = vld [vmem:[#allocation2 + $0x40] sm:$0xff]
        %v3206 = vld [vmem:[#allocation2 + $0x48] sm:$0xff]
        %v3207 = vld [vmem:[#allocation2 + $0x50] sm:$0xff]
        %v3208 = vld [vmem:[%s1626] sm:$0xff]
        %v3209 = vld [vmem:[%s1626 + $0x8] sm:$0xff]
        %v3210 = vld [vmem:[%s1626 + $0x10] sm:$0xff]
        %v3211 = vld [vmem:[%s1626 + $0x18] sm:$0xff]
        %v3212 = vld [vmem:[%s1626 + $0x20] sm:$0xff]
        %v3213 = vld [vmem:[%s1626 + $0x28] sm:$0xff]
        %v3214 = vld [vmem:[%s1626 + $0x30] sm:$0xff]
        %v3215 = vld [vmem:[%s1626 + $0x38] sm:$0xff]
        %v3216 = vmul.f32 %v3200, %v3208
        %v3217 = vmul.f32 %v3201, %v3209
        %v3218 = vmul.f32 %v3202, %v3210
        %v3219 = vmul.f32 %v3203, %v3211
        %v3220 = vmul.f32 %v3204, %v3212
        %v3221 = vmul.f32 %v3205, %v3213
        %v3222 = vmul.f32 %v3206, %v3214
        %v3223 = vmul.f32 %v3207, %v3215
        %3232 = vrot.lane.b32.xlu0 %v3216, 96
        %v3233 = vpop.permute.xlu0 %3232
        %3234 = vrot.lane.b32.xlu0 %v3217, 96
        %v3235 = vpop.permute.xlu0 %3234
        %3236 = vrot.lane.b32.xlu0 %v3218, 96
        %v3237 = vpop.permute.xlu0 %3236
        %3238 = vrot.lane.b32.xlu0 %v3219, 96
        %v3239 = vpop.permute.xlu0 %3238
        %3240 = vrot.lane.b32.xlu0 %v3220, 96
        %v3241 = vpop.permute.xlu0 %3240
        %3242 = vrot.lane.b32.xlu0 %v3221, 96
        %v3243 = vpop.permute.xlu0 %3242
        %3244 = vrot.lane.b32.xlu0 %v3222, 96
        %v3245 = vpop.permute.xlu0 %3244
        %3246 = vrot.lane.b32.xlu0 %v3223, 96
        %v3247 = vpop.permute.xlu0 %3246
        %3256 = vst.msk [vmem:[#allocation5 + $0x8] sm:$0xff] %vm1463, %v3233
        %3257 = vst.msk [vmem:[#allocation5 + $0x20] sm:$0xff] %vm1463, %v3235
        %3258 = vst.msk [vmem:[#allocation5 + $0x38] sm:$0xff] %vm1463, %v3237
        %3259 = vst.msk [vmem:[#allocation5 + $0x50] sm:$0xff] %vm1463, %v3239
        %3260 = vst.msk [vmem:[#allocation5 + $0x68] sm:$0xff] %vm1463, %v3241
        %3261 = vst.msk [vmem:[#allocation5 + $0x80] sm:$0xff] %vm1463, %v3243
        %3262 = vst.msk [vmem:[#allocation5 + $0x98] sm:$0xff] %vm1463, %v3245
        %3263 = vst.msk [vmem:[#allocation5 + $0xb0] sm:$0xff] %vm1463, %v3247
        %v3264 = vld [vmem:[#allocation2 + $0x19] sm:$0xff]
        %v3265 = vld [vmem:[#allocation2 + $0x21] sm:$0xff]
        %v3266 = vld [vmem:[#allocation2 + $0x29] sm:$0xff]
        %v3267 = vld [vmem:[#allocation2 + $0x31] sm:$0xff]
        %v3268 = vld [vmem:[#allocation2 + $0x39] sm:$0xff]
        %v3269 = vld [vmem:[#allocation2 + $0x41] sm:$0xff]
        %v3270 = vld [vmem:[#allocation2 + $0x49] sm:$0xff]
        %v3271 = vld [vmem:[#allocation2 + $0x51] sm:$0xff]
        %v3272 = vld [vmem:[%s1691] sm:$0xff]
        %v3273 = vld [vmem:[%s1691 + $0x8] sm:$0xff]
        %v3274 = vld [vmem:[%s1691 + $0x10] sm:$0xff]
        %v3275 = vld [vmem:[%s1691 + $0x18] sm:$0xff]
        %v3276 = vld [vmem:[%s1691 + $0x20] sm:$0xff]
        %v3277 = vld [vmem:[%s1691 + $0x28] sm:$0xff]
        %v3278 = vld [vmem:[%s1691 + $0x30] sm:$0xff]
        %v3279 = vld [vmem:[%s1691 + $0x38] sm:$0xff]
        %v3280 = vmul.f32 %v3264, %v3272
        %v3281 = vmul.f32 %v3265, %v3273
        %v3282 = vmul.f32 %v3266, %v3274
        %v3283 = vmul.f32 %v3267, %v3275
        %v3284 = vmul.f32 %v3268, %v3276
        %v3285 = vmul.f32 %v3269, %v3277
        %v3286 = vmul.f32 %v3270, %v3278
        %v3287 = vmul.f32 %v3271, %v3279
        %3288 = vst.msk [vmem:[#allocation5 + $0x10] sm:$0xff] %vm350, %v3280
        %3289 = vst.msk [vmem:[#allocation5 + $0x28] sm:$0xff] %vm350, %v3281
        %3290 = vst.msk [vmem:[#allocation5 + $0x40] sm:$0xff] %vm350, %v3282
        %3291 = vst.msk [vmem:[#allocation5 + $0x58] sm:$0xff] %vm350, %v3283
        %3292 = vst.msk [vmem:[#allocation5 + $0x70] sm:$0xff] %vm350, %v3284
        %3293 = vst.msk [vmem:[#allocation5 + $0x88] sm:$0xff] %vm350, %v3285
        %3294 = vst.msk [vmem:[#allocation5 + $0xa0] sm:$0xff] %vm350, %v3286
        %3295 = vst.msk [vmem:[#allocation5 + $0xb8] sm:$0xff] %vm350, %v3287
        %v3296 = vld [vmem:[#allocation5] sm:$0xff]
        %v3297 = vld [vmem:[#allocation5 + $0x8] sm:$0xff]
        %v3298 = vld [vmem:[#allocation5 + $0x10] sm:$0xff]
        %v3299 = vld [vmem:[#allocation5 + $0x18] sm:$0xff]
        %v3300 = vld [vmem:[#allocation5 + $0x20] sm:$0xff]
        %v3301 = vld [vmem:[#allocation5 + $0x28] sm:$0xff]
        %v3302 = vld [vmem:[#allocation5 + $0x30] sm:$0xff]
        %v3303 = vld [vmem:[#allocation5 + $0x38] sm:$0xff]
        %v3304 = vld [vmem:[#allocation5 + $0x40] sm:$0xff]
        %v3305 = vld [vmem:[#allocation5 + $0x48] sm:$0xff]
        %v3306 = vld [vmem:[#allocation5 + $0x50] sm:$0xff]
        %v3307 = vld [vmem:[#allocation5 + $0x58] sm:$0xff]
        %v3308 = vld [vmem:[#allocation5 + $0x60] sm:$0xff]
        %v3309 = vld [vmem:[#allocation5 + $0x68] sm:$0xff]
        %v3310 = vld [vmem:[#allocation5 + $0x70] sm:$0xff]
        %v3311 = vld [vmem:[#allocation5 + $0x78] sm:$0xff]
        %v3312 = vld [vmem:[#allocation5 + $0x80] sm:$0xff]
        %v3313 = vld [vmem:[#allocation5 + $0x88] sm:$0xff]
        %v3314 = vld [vmem:[#allocation5 + $0x90] sm:$0xff]
        %v3315 = vld [vmem:[#allocation5 + $0x98] sm:$0xff]
        %v3316 = vld [vmem:[#allocation5 + $0xa0] sm:$0xff]
        %v3317 = vld [vmem:[#allocation5 + $0xa8] sm:$0xff]
        %v3318 = vld [vmem:[#allocation5 + $0xb0] sm:$0xff]
        %v3319 = vld [vmem:[#allocation5 + $0xb8] sm:$0xff]
        %s3320 = scalar_lea.vmem [#allocation7], 576
        %v3321 = vld [vmem:[%s3320] sm:$0xff]
        %v3322 = vld [vmem:[%s3320 + $0x8] sm:$0xff]
        %v3323 = vld [vmem:[%s3320 + $0x10] sm:$0xff]
        %v3324 = vld [vmem:[%s3320 + $0x18] sm:$0xff]
        %v3325 = vld [vmem:[%s3320 + $0x20] sm:$0xff]
        %v3326 = vld [vmem:[%s3320 + $0x28] sm:$0xff]
        %v3327 = vld [vmem:[%s3320 + $0x30] sm:$0xff]
        %v3328 = vld [vmem:[%s3320 + $0x38] sm:$0xff]
        %v3329 = vld [vmem:[%s3320 + $0x40] sm:$0xff]
        %v3330 = vld [vmem:[%s3320 + $0x48] sm:$0xff]
        %v3331 = vld [vmem:[%s3320 + $0x50] sm:$0xff]
        %v3332 = vld [vmem:[%s3320 + $0x58] sm:$0xff]
        %v3333 = vld [vmem:[%s3320 + $0x60] sm:$0xff]
        %v3334 = vld [vmem:[%s3320 + $0x68] sm:$0xff]
        %v3335 = vld [vmem:[%s3320 + $0x70] sm:$0xff]
        %v3336 = vld [vmem:[%s3320 + $0x78] sm:$0xff]
        %v3337 = vld [vmem:[%s3320 + $0x80] sm:$0xff]
        %v3338 = vld [vmem:[%s3320 + $0x88] sm:$0xff]
        %v3339 = vld [vmem:[%s3320 + $0x90] sm:$0xff]
        %v3340 = vld [vmem:[%s3320 + $0x98] sm:$0xff]
        %v3341 = vld [vmem:[%s3320 + $0xa0] sm:$0xff]
        %v3342 = vld [vmem:[%s3320 + $0xa8] sm:$0xff]
        %v3343 = vld [vmem:[%s3320 + $0xb0] sm:$0xff]
        %v3344 = vld [vmem:[%s3320 + $0xb8] sm:$0xff]
        %v3345 = vld [vmem:[%s3320 + $0xc0] sm:$0xff]
        %v3346 = vld [vmem:[%s3320 + $0xc8] sm:$0xff]
        %v3347 = vld [vmem:[%s3320 + $0xd0] sm:$0xff]
        %v3348 = vld [vmem:[%s3320 + $0xd8] sm:$0xff]
        %v3349 = vld [vmem:[%s3320 + $0xe0] sm:$0xff]
        %v3350 = vld [vmem:[%s3320 + $0xe8] sm:$0xff]
        %v3351 = vld [vmem:[%s3320 + $0xf0] sm:$0xff]
        %v3352 = vld [vmem:[%s3320 + $0xf8] sm:$0xff]
        %v3353 = vld [vmem:[%s3320 + $0x100] sm:$0xff]
        %v3354 = vld [vmem:[%s3320 + $0x108] sm:$0xff]
        %v3355 = vld [vmem:[%s3320 + $0x110] sm:$0xff]
        %v3356 = vld [vmem:[%s3320 + $0x118] sm:$0xff]
        %s3357 = scalar_lea.vmem %s6, 2
        %v3358 = vld [vmem:[%s3357] sm:$0x1]
        %v3360 = vlaneseq
        %v3361 = vshrl.u32 %v3360, 7
        %v3362 = vsub.s32 0, %v3361
        %v3363 = vrot.slane %v3358, %v3362
        %v3366 = vsel %vm350, %v3298, 0
        %v3369 = vsel %vm350, %v3301, 0
        %v3372 = vsel %vm350, %v3304, 0
        %v3375 = vsel %vm350, %v3307, 0
        %v3378 = vsel %vm350, %v3310, 0
        %v3381 = vsel %vm350, %v3313, 0
        %v3384 = vsel %vm350, %v3316, 0
        %v3387 = vsel %vm350, %v3319, 0
        %3389 = vmatprep.subr.mxu0 0.0
        %3390 = vmatpush1.msra.mxu0 %v3321
        %3391 = vmatprep.subr.mxu0 0.0
        %3392 = vmatpush1.msra.mxu0 %v3322
        %3393 = vmatprep.subr.mxu0 0.0
        %3394 = vmatpush1.msra.mxu0 %v3323
        %3395 = vmatprep.subr.mxu0 0.0
        %3396 = vmatpush1.msra.mxu0 %v3324
        %3397 = vmatprep.subr.mxu0 0.0
        %3398 = vmatpush1.msra.mxu0 %v3325
        %3399 = vmatprep.subr.mxu0 0.0
        %3400 = vmatpush1.msra.mxu0 %v3326
        %3401 = vmatprep.subr.mxu0 0.0
        %3402 = vmatpush1.msra.mxu0 %v3327
        %3403 = vmatprep.subr.mxu0 0.0
        %3404 = vmatpush1.msra.mxu0 %v3328
        %3405 = vmatprep.subr.mxu0 0.0
        %3406 = vmatpush1.msra.mxu0 %v3329
        %3407 = vmatprep.subr.mxu0 0.0
        %3408 = vmatpush1.msra.mxu0 %v3330
        %3409 = vmatprep.subr.mxu0 0.0
        %3410 = vmatpush1.msra.mxu0 %v3331
        %3411 = vmatprep.subr.mxu0 0.0
        %3412 = vmatpush1.msra.mxu0 %v3332
        %3413 = vmatprep.subr.mxu0 0.0
        %3414 = vmatpush1.msra.mxu0 %v3333
        %3415 = vmatprep.subr.mxu0 0.0
        %3416 = vmatpush1.msra.mxu0 %v3334
        %3417 = vmatprep.subr.mxu0 0.0
        %3418 = vmatpush1.msra.mxu0 %v3335
        %3419 = vmatprep.subr.mxu0 0.0
        %3420 = vmatpush1.msra.mxu0 %v3336
        %3421 = vmatprep.subr.mxu0 0.0
        %3422 = vmatpush1.msra.mxu0 %v3337
        %3423 = vmatprep.subr.mxu0 0.0
        %3424 = vmatpush1.msra.mxu0 %v3338
        %3425 = vmatprep.subr.mxu0 0.0
        %3426 = vmatpush1.msra.mxu0 %v3339
        %3427 = vmatprep.subr.mxu0 0.0
        %3428 = vmatpush1.msra.mxu0 %v3340
        %3429 = vmatprep.subr.mxu0 0.0
        %3430 = vmatpush1.msra.mxu0 %v3341
        %3431 = vmatprep.subr.mxu0 0.0
        %3432 = vmatpush1.msra.mxu0 %v3342
        %3433 = vmatprep.subr.mxu0 0.0
        %3434 = vmatpush1.msra.mxu0 %v3343
        %3435 = vmatprep.subr.mxu0 0.0
        %3436 = vmatpush1.msra.mxu0 %v3344
        %3437 = vmatprep.subr.mxu0 0.0
        %3438 = vmatpush1.msra.mxu0 %v3345
        %3439 = vmatprep.subr.mxu0 0.0
        %3440 = vmatpush1.msra.mxu0 %v3346
        %3441 = vmatprep.subr.mxu0 0.0
        %3442 = vmatpush1.msra.mxu0 %v3347
        %3443 = vmatprep.subr.mxu0 0.0
        %3444 = vmatpush1.msra.mxu0 %v3348
        %3445 = vmatprep.subr.mxu0 0.0
        %3446 = vmatpush1.msra.mxu0 %v3349
        %3447 = vmatprep.subr.mxu0 0.0
        %3448 = vmatpush1.msra.mxu0 %v3350
        %3449 = vmatprep.subr.mxu0 0.0
        %3450 = vmatpush1.msra.mxu0 %v3351
        %3451 = vmatprep.subr.mxu0 0.0
        %3452 = vmatpush1.msra.mxu0 %v3352
        %3453 = vmatprep.mubr.f32.mxu0 %v3297
        %3454 = vmatmul.mubr.f32.gmra.mrb[0].mxu0 %v3296
        %v3455 = vpop.f32.mrb[0].mxu0
        %v3456 = vadd.f32 %v3363, %v3455
        %v3457 = vpop.f32.mrb[0].mxu0
        %3458 = vmatprep.mubr.f32.mxu0 %v3300
        %3459 = vmatmul.mubr.f32.gmra.mrb[0].mxu0 %v3299
        %v3460 = vpop.f32.mrb[0].mxu0
        %v3461 = vadd.f32 %v3363, %v3460
        %v3462 = vpop.f32.mrb[0].mxu0
        %3463 = vmatprep.mubr.f32.mxu0 %v3303
        %3464 = vmatmul.mubr.f32.gmra.mrb[0].mxu0 %v3302
        %v3465 = vpop.f32.mrb[0].mxu0
        %v3466 = vadd.f32 %v3363, %v3465
        %v3467 = vpop.f32.mrb[0].mxu0
        %3468 = vmatprep.mubr.f32.mxu0 %v3306
        %3469 = vmatmul.mubr.f32.gmra.mrb[0].mxu0 %v3305
        %v3470 = vpop.f32.mrb[0].mxu0
        %v3471 = vadd.f32 %v3363, %v3470
        %v3472 = vpop.f32.mrb[0].mxu0
        %3473 = vmatprep.mubr.f32.mxu0 %v3309
        %3474 = vmatmul.mubr.f32.gmra.mrb[0].mxu0 %v3308
        %v3475 = vpop.f32.mrb[0].mxu0
        %v3476 = vadd.f32 %v3363, %v3475
        %v3477 = vpop.f32.mrb[0].mxu0
        %3478 = vmatprep.mubr.f32.mxu0 %v3312
        %3479 = vmatmul.mubr.f32.gmra.mrb[0].mxu0 %v3311
        %v3480 = vpop.f32.mrb[0].mxu0
        %v3481 = vadd.f32 %v3363, %v3480
        %v3482 = vpop.f32.mrb[0].mxu0
        %3483 = vmatprep.mubr.f32.mxu0 %v3315
        %3484 = vmatmul.mubr.f32.gmra.mrb[0].mxu0 %v3314
        %v3485 = vpop.f32.mrb[0].mxu0
        %v3486 = vadd.f32 %v3363, %v3485
        %v3487 = vpop.f32.mrb[0].mxu0
        %3488 = vmatprep.mubr.f32.mxu0 %v3318
        %3489 = vmatmul.mubr.f32.gmra.mrb[0].mxu0 %v3317
        %v3490 = vpop.f32.mrb[0].mxu0
        %v3491 = vadd.f32 %v3363, %v3490
        %v3492 = vpop.f32.mrb[0].mxu0
        %3493 = vdwg.mxu0
        %3494 = vmatprep.subr.mxu0 0.0
        %3495 = vmatpush1.msra.mxu0 %v3353
        %3496 = vmatprep.subr.mxu0 0.0
        %3497 = vmatpush1.msra.mxu0 %v3354
        %3498 = vmatprep.subr.mxu0 0.0
        %3499 = vmatpush1.msra.mxu0 %v3355
        %3500 = vmatprep.subr.mxu0 0.0
        %3501 = vmatpush1.msra.mxu0 %v3356
        %3502 = vmatprep.subr.mxu0 0.0
        %3503 = vmatpush1.msra.mxu0 0.0
        %3504 = vmatprep.subr.mxu0 0.0
        %3505 = vmatpush1.msra.mxu0 0.0
        %3506 = vmatprep.subr.mxu0 0.0
        %3507 = vmatpush1.msra.mxu0 0.0
        %3508 = vmatprep.subr.mxu0 0.0
        %3509 = vmatpush1.msra.mxu0 0.0
        %3510 = vmatprep.subr.mxu0 0.0
        %3511 = vmatpush1.msra.mxu0 0.0
        %3512 = vmatprep.subr.mxu0 0.0
        %3513 = vmatpush1.msra.mxu0 0.0
        %3514 = vmatprep.subr.mxu0 0.0
        %3515 = vmatpush1.msra.mxu0 0.0
        %3516 = vmatprep.subr.mxu0 0.0
        %3517 = vmatpush1.msra.mxu0 0.0
        %3518 = vmatprep.subr.mxu0 0.0
        %3519 = vmatpush1.msra.mxu0 0.0
        %3520 = vmatprep.subr.mxu0 0.0
        %3521 = vmatpush1.msra.mxu0 0.0
        %3522 = vmatprep.subr.mxu0 0.0
        %3523 = vmatpush1.msra.mxu0 0.0
        %3524 = vmatprep.subr.mxu0 0.0
        %3525 = vmatpush1.msra.mxu0 0.0
        %3526 = vmatprep.subr.mxu0 0.0
        %3527 = vmatpush1.msra.mxu0 0.0
        %3528 = vmatprep.subr.mxu0 0.0
        %3529 = vmatpush1.msra.mxu0 0.0
        %3530 = vmatprep.subr.mxu0 0.0
        %3531 = vmatpush1.msra.mxu0 0.0
        %3532 = vmatprep.subr.mxu0 0.0
        %3533 = vmatpush1.msra.mxu0 0.0
        %3534 = vmatprep.subr.mxu0 0.0
        %3535 = vmatpush1.msra.mxu0 0.0
        %3536 = vmatprep.subr.mxu0 0.0
        %3537 = vmatpush1.msra.mxu0 0.0
        %3538 = vmatprep.subr.mxu0 0.0
        %3539 = vmatpush1.msra.mxu0 0.0
        %3540 = vmatprep.subr.mxu0 0.0
        %3541 = vmatpush1.msra.mxu0 0.0
        %3542 = vmatprep.subr.mxu0 0.0
        %3543 = vmatpush1.msra.mxu0 0.0
        %3544 = vmatprep.subr.mxu0 0.0
        %3545 = vmatpush1.msra.mxu0 0.0
        %3546 = vmatprep.subr.mxu0 0.0
        %3547 = vmatpush1.msra.mxu0 0.0
        %3548 = vmatprep.subr.mxu0 0.0
        %3549 = vmatpush1.msra.mxu0 0.0
        %3550 = vmatprep.subr.mxu0 0.0
        %3551 = vmatpush1.msra.mxu0 0.0
        %3552 = vmatprep.subr.mxu0 0.0
        %3553 = vmatpush1.msra.mxu0 0.0
        %3554 = vmatprep.subr.mxu0 0.0
        %3555 = vmatpush1.msra.mxu0 0.0
        %3556 = vmatprep.subr.mxu0 0.0
        %3557 = vmatpush1.msra.mxu0 0.0
        %3558 = vmatprep.mubr.f32.mxu0 0.0
        %3559 = vmatmul.mubr.f32.gmra.mrb[0].mxu0 %v3366
        %v3560 = vpop.f32.mrb[0].mxu0
        %v3561 = vadd.f32 %v3456, %v3560
        %v3562 = vpop.f32.mrb[0].mxu0
        %3563 = vmatprep.mubr.f32.mxu0 0.0
        %3564 = vmatmul.mubr.f32.gmra.mrb[0].mxu0 %v3369
        %v3565 = vpop.f32.mrb[0].mxu0
        %v3566 = vadd.f32 %v3461, %v3565
        %v3567 = vpop.f32.mrb[0].mxu0
        %3568 = vmatprep.mubr.f32.mxu0 0.0
        %3569 = vmatmul.mubr.f32.gmra.mrb[0].mxu0 %v3372
        %v3570 = vpop.f32.mrb[0].mxu0
        %v3571 = vadd.f32 %v3466, %v3570
        %v3572 = vpop.f32.mrb[0].mxu0
        %3573 = vmatprep.mubr.f32.mxu0 0.0
        %3574 = vmatmul.mubr.f32.gmra.mrb[0].mxu0 %v3375
        %v3575 = vpop.f32.mrb[0].mxu0
        %v3576 = vadd.f32 %v3471, %v3575
        %v3577 = vpop.f32.mrb[0].mxu0
        %3578 = vmatprep.mubr.f32.mxu0 0.0
        %3579 = vmatmul.mubr.f32.gmra.mrb[0].mxu0 %v3378
        %v3580 = vpop.f32.mrb[0].mxu0
        %v3581 = vadd.f32 %v3476, %v3580
        %v3582 = vpop.f32.mrb[0].mxu0
        %3583 = vmatprep.mubr.f32.mxu0 0.0
        %3584 = vmatmul.mubr.f32.gmra.mrb[0].mxu0 %v3381
        %v3585 = vpop.f32.mrb[0].mxu0
        %v3586 = vadd.f32 %v3481, %v3585
        %v3587 = vpop.f32.mrb[0].mxu0
        %3588 = vmatprep.mubr.f32.mxu0 0.0
        %3589 = vmatmul.mubr.f32.gmra.mrb[0].mxu0 %v3384
        %v3590 = vpop.f32.mrb[0].mxu0
        %v3591 = vadd.f32 %v3486, %v3590
        %v3592 = vpop.f32.mrb[0].mxu0
        %3593 = vmatprep.mubr.f32.mxu0 0.0
        %3594 = vmatmul.mubr.f32.gmra.mrb[0].mxu0 %v3387
        %v3595 = vpop.f32.mrb[0].mxu0
        %v3596 = vadd.f32 %v3491, %v3595
        %v3597 = vpop.f32.mrb[0].mxu0
        %3598 = vdwg.mxu0
        %v3599 = vmax.f32 %v3561, 0.0
        %v3600 = vmax.f32 %v3566, 0.0
        %v3601 = vmax.f32 %v3571, 0.0
        %v3602 = vmax.f32 %v3576, 0.0
        %v3603 = vmax.f32 %v3581, 0.0
        %v3604 = vmax.f32 %v3586, 0.0
        %v3605 = vmax.f32 %v3591, 0.0
        %v3606 = vmax.f32 %v3596, 0.0
        %3607 = vst.msk [vmem:[#allocation3 + $0x10] sm:$0xff] %vm350, %v3599
        %3608 = vst.msk [vmem:[#allocation3 + $0x18] sm:$0xff] %vm350, %v3600
        %3609 = vst.msk [vmem:[#allocation3 + $0x20] sm:$0xff] %vm350, %v3601
        %3610 = vst.msk [vmem:[#allocation3 + $0x28] sm:$0xff] %vm350, %v3602
        %3611 = vst.msk [vmem:[#allocation3 + $0x30] sm:$0xff] %vm350, %v3603
        %3612 = vst.msk [vmem:[#allocation3 + $0x38] sm:$0xff] %vm350, %v3604
        %3613 = vst.msk [vmem:[#allocation3 + $0x40] sm:$0xff] %vm350, %v3605
        %3614 = vst.msk [vmem:[#allocation3 + $0x48] sm:$0xff] %vm350, %v3606
        %v3615 = vld [vmem:[#allocation3 + $0x7] sm:$0xff]
        %v3616 = vld [vmem:[#allocation3 + $0xf] sm:$0xff]
        %v3617 = vld [vmem:[#allocation3 + $0x17] sm:$0xff]
        %v3618 = vld [vmem:[#allocation3 + $0x1f] sm:$0xff]
        %v3619 = vld [vmem:[#allocation3 + $0x27] sm:$0xff]
        %v3620 = vld [vmem:[#allocation3 + $0x2f] sm:$0xff]
        %v3621 = vld [vmem:[#allocation3 + $0x37] sm:$0xff]
        %v3622 = vld [vmem:[#allocation3 + $0x3f] sm:$0xff]
        %v3623 = vld [vmem:[%s2] sm:$0xff]
        %v3624 = vld [vmem:[%s2 + $0x8] sm:$0xff]
        %v3625 = vld [vmem:[%s2 + $0x10] sm:$0xff]
        %v3626 = vld [vmem:[%s2 + $0x18] sm:$0xff]
        %v3627 = vld [vmem:[%s2 + $0x20] sm:$0xff]
        %v3628 = vld [vmem:[%s2 + $0x28] sm:$0xff]
        %v3629 = vld [vmem:[%s2 + $0x30] sm:$0xff]
        %v3630 = vld [vmem:[%s2 + $0x38] sm:$0xff]
        %v3631 = vmul.f32 %v3615, %v3623
        %v3632 = vmul.f32 %v3616, %v3624
        %v3633 = vmul.f32 %v3617, %v3625
        %v3634 = vmul.f32 %v3618, %v3626
        %v3635 = vmul.f32 %v3619, %v3627
        %v3636 = vmul.f32 %v3620, %v3628
        %v3637 = vmul.f32 %v3621, %v3629
        %v3638 = vmul.f32 %v3622, %v3630
        %3639 = vst.msk [vmem:[#allocation5] sm:$0xff] %vm350, %v3631
        %3640 = vst.msk [vmem:[#allocation5 + $0x18] sm:$0xff] %vm350, %v3632
        %3641 = vst.msk [vmem:[#allocation5 + $0x30] sm:$0xff] %vm350, %v3633
        %3642 = vst.msk [vmem:[#allocation5 + $0x48] sm:$0xff] %vm350, %v3634
        %3643 = vst.msk [vmem:[#allocation5 + $0x60] sm:$0xff] %vm350, %v3635
        %3644 = vst.msk [vmem:[#allocation5 + $0x78] sm:$0xff] %vm350, %v3636
        %3645 = vst.msk [vmem:[#allocation5 + $0x90] sm:$0xff] %vm350, %v3637
        %3646 = vst.msk [vmem:[#allocation5 + $0xa8] sm:$0xff] %vm350, %v3638
        %v3647 = vld [vmem:[#allocation3 + $0x8] sm:$0xff]
        %v3648 = vld [vmem:[#allocation3 + $0x10] sm:$0xff]
        %v3649 = vld [vmem:[#allocation3 + $0x18] sm:$0xff]
        %v3650 = vld [vmem:[#allocation3 + $0x20] sm:$0xff]
        %v3651 = vld [vmem:[#allocation3 + $0x28] sm:$0xff]
        %v3652 = vld [vmem:[#allocation3 + $0x30] sm:$0xff]
        %v3653 = vld [vmem:[#allocation3 + $0x38] sm:$0xff]
        %v3654 = vld [vmem:[#allocation3 + $0x40] sm:$0xff]
        %v3655 = vld [vmem:[%s1282] sm:$0xff]
        %v3656 = vld [vmem:[%s1282 + $0x8] sm:$0xff]
        %v3657 = vld [vmem:[%s1282 + $0x10] sm:$0xff]
        %v3658 = vld [vmem:[%s1282 + $0x18] sm:$0xff]
        %v3659 = vld [vmem:[%s1282 + $0x20] sm:$0xff]
        %v3660 = vld [vmem:[%s1282 + $0x28] sm:$0xff]
        %v3661 = vld [vmem:[%s1282 + $0x30] sm:$0xff]
        %v3662 = vld [vmem:[%s1282 + $0x38] sm:$0xff]
        %v3663 = vmul.f32 %v3647, %v3655
        %v3664 = vmul.f32 %v3648, %v3656
        %v3665 = vmul.f32 %v3649, %v3657
        %v3666 = vmul.f32 %v3650, %v3658
        %v3667 = vmul.f32 %v3651, %v3659
        %v3668 = vmul.f32 %v3652, %v3660
        %v3669 = vmul.f32 %v3653, %v3661
        %v3670 = vmul.f32 %v3654, %v3662
        %3679 = vrot.lane.b32.xlu0 %v3663, 32
        %v3680 = vpop.permute.xlu0 %3679
        %3681 = vrot.lane.b32.xlu0 %v3664, 32
        %v3682 = vpop.permute.xlu0 %3681
        %3683 = vrot.lane.b32.xlu0 %v3665, 32
        %v3684 = vpop.permute.xlu0 %3683
        %3685 = vrot.lane.b32.xlu0 %v3666, 32
        %v3686 = vpop.permute.xlu0 %3685
        %3687 = vrot.lane.b32.xlu0 %v3667, 32
        %v3688 = vpop.permute.xlu0 %3687
        %3689 = vrot.lane.b32.xlu0 %v3668, 32
        %v3690 = vpop.permute.xlu0 %3689
        %3691 = vrot.lane.b32.xlu0 %v3669, 32
        %v3692 = vpop.permute.xlu0 %3691
        %3693 = vrot.lane.b32.xlu0 %v3670, 32
        %v3694 = vpop.permute.xlu0 %3693
        %3703 = vst.msk [vmem:[#allocation5] sm:$0xff] %vm1331, %v3680
        %3704 = vst.msk [vmem:[#allocation5 + $0x18] sm:$0xff] %vm1331, %v3682
        %3705 = vst.msk [vmem:[#allocation5 + $0x30] sm:$0xff] %vm1331, %v3684
        %3706 = vst.msk [vmem:[#allocation5 + $0x48] sm:$0xff] %vm1331, %v3686
        %3707 = vst.msk [vmem:[#allocation5 + $0x60] sm:$0xff] %vm1331, %v3688
        %3708 = vst.msk [vmem:[#allocation5 + $0x78] sm:$0xff] %vm1331, %v3690
        %3709 = vst.msk [vmem:[#allocation5 + $0x90] sm:$0xff] %vm1331, %v3692
        %3710 = vst.msk [vmem:[#allocation5 + $0xa8] sm:$0xff] %vm1331, %v3694
        %v3711 = vld [vmem:[#allocation3 + $0x9] sm:$0xff]
        %v3712 = vld [vmem:[#allocation3 + $0x11] sm:$0xff]
        %v3713 = vld [vmem:[#allocation3 + $0x19] sm:$0xff]
        %v3714 = vld [vmem:[#allocation3 + $0x21] sm:$0xff]
        %v3715 = vld [vmem:[#allocation3 + $0x29] sm:$0xff]
        %v3716 = vld [vmem:[#allocation3 + $0x31] sm:$0xff]
        %v3717 = vld [vmem:[#allocation3 + $0x39] sm:$0xff]
        %v3718 = vld [vmem:[#allocation3 + $0x41] sm:$0xff]
        %v3719 = vld [vmem:[%s1348] sm:$0xff]
        %v3720 = vld [vmem:[%s1348 + $0x8] sm:$0xff]
        %v3721 = vld [vmem:[%s1348 + $0x10] sm:$0xff]
        %v3722 = vld [vmem:[%s1348 + $0x18] sm:$0xff]
        %v3723 = vld [vmem:[%s1348 + $0x20] sm:$0xff]
        %v3724 = vld [vmem:[%s1348 + $0x28] sm:$0xff]
        %v3725 = vld [vmem:[%s1348 + $0x30] sm:$0xff]
        %v3726 = vld [vmem:[%s1348 + $0x38] sm:$0xff]
        %v3727 = vmul.f32 %v3711, %v3719
        %v3728 = vmul.f32 %v3712, %v3720
        %v3729 = vmul.f32 %v3713, %v3721
        %v3730 = vmul.f32 %v3714, %v3722
        %v3731 = vmul.f32 %v3715, %v3723
        %v3732 = vmul.f32 %v3716, %v3724
        %v3733 = vmul.f32 %v3717, %v3725
        %v3734 = vmul.f32 %v3718, %v3726
        %3743 = vrot.lane.b32.xlu0 %v3727, 64
        %v3744 = vpop.permute.xlu0 %3743
        %3745 = vrot.lane.b32.xlu0 %v3728, 64
        %v3746 = vpop.permute.xlu0 %3745
        %3747 = vrot.lane.b32.xlu0 %v3729, 64
        %v3748 = vpop.permute.xlu0 %3747
        %3749 = vrot.lane.b32.xlu0 %v3730, 64
        %v3750 = vpop.permute.xlu0 %3749
        %3751 = vrot.lane.b32.xlu0 %v3731, 64
        %v3752 = vpop.permute.xlu0 %3751
        %3753 = vrot.lane.b32.xlu0 %v3732, 64
        %v3754 = vpop.permute.xlu0 %3753
        %3755 = vrot.lane.b32.xlu0 %v3733, 64
        %v3756 = vpop.permute.xlu0 %3755
        %3757 = vrot.lane.b32.xlu0 %v3734, 64
        %v3758 = vpop.permute.xlu0 %3757
        %3767 = vst.msk [vmem:[#allocation5] sm:$0xff] %vm1397, %v3744
        %3768 = vst.msk [vmem:[#allocation5 + $0x18] sm:$0xff] %vm1397, %v3746
        %3769 = vst.msk [vmem:[#allocation5 + $0x30] sm:$0xff] %vm1397, %v3748
        %3770 = vst.msk [vmem:[#allocation5 + $0x48] sm:$0xff] %vm1397, %v3750
        %3771 = vst.msk [vmem:[#allocation5 + $0x60] sm:$0xff] %vm1397, %v3752
        %3772 = vst.msk [vmem:[#allocation5 + $0x78] sm:$0xff] %vm1397, %v3754
        %3773 = vst.msk [vmem:[#allocation5 + $0x90] sm:$0xff] %vm1397, %v3756
        %3774 = vst.msk [vmem:[#allocation5 + $0xa8] sm:$0xff] %vm1397, %v3758
        %v3775 = vld [vmem:[#allocation3 + $0xf] sm:$0xff]
        %v3776 = vld [vmem:[#allocation3 + $0x17] sm:$0xff]
        %v3777 = vld [vmem:[#allocation3 + $0x1f] sm:$0xff]
        %v3778 = vld [vmem:[#allocation3 + $0x27] sm:$0xff]
        %v3779 = vld [vmem:[#allocation3 + $0x2f] sm:$0xff]
        %v3780 = vld [vmem:[#allocation3 + $0x37] sm:$0xff]
        %v3781 = vld [vmem:[#allocation3 + $0x3f] sm:$0xff]
        %v3782 = vld [vmem:[#allocation3 + $0x47] sm:$0xff]
        %v3783 = vld [vmem:[%s1414] sm:$0xff]
        %v3784 = vld [vmem:[%s1414 + $0x8] sm:$0xff]
        %v3785 = vld [vmem:[%s1414 + $0x10] sm:$0xff]
        %v3786 = vld [vmem:[%s1414 + $0x18] sm:$0xff]
        %v3787 = vld [vmem:[%s1414 + $0x20] sm:$0xff]
        %v3788 = vld [vmem:[%s1414 + $0x28] sm:$0xff]
        %v3789 = vld [vmem:[%s1414 + $0x30] sm:$0xff]
        %v3790 = vld [vmem:[%s1414 + $0x38] sm:$0xff]
        %v3791 = vmul.f32 %v3775, %v3783
        %v3792 = vmul.f32 %v3776, %v3784
        %v3793 = vmul.f32 %v3777, %v3785
        %v3794 = vmul.f32 %v3778, %v3786
        %v3795 = vmul.f32 %v3779, %v3787
        %v3796 = vmul.f32 %v3780, %v3788
        %v3797 = vmul.f32 %v3781, %v3789
        %v3798 = vmul.f32 %v3782, %v3790
        %3807 = vrot.lane.b32.xlu0 %v3791, 96
        %v3808 = vpop.permute.xlu0 %3807
        %3809 = vrot.lane.b32.xlu0 %v3792, 96
        %v3810 = vpop.permute.xlu0 %3809
        %3811 = vrot.lane.b32.xlu0 %v3793, 96
        %v3812 = vpop.permute.xlu0 %3811
        %3813 = vrot.lane.b32.xlu0 %v3794, 96
        %v3814 = vpop.permute.xlu0 %3813
        %3815 = vrot.lane.b32.xlu0 %v3795, 96
        %v3816 = vpop.permute.xlu0 %3815
        %3817 = vrot.lane.b32.xlu0 %v3796, 96
        %v3818 = vpop.permute.xlu0 %3817
        %3819 = vrot.lane.b32.xlu0 %v3797, 96
        %v3820 = vpop.permute.xlu0 %3819
        %3821 = vrot.lane.b32.xlu0 %v3798, 96
        %v3822 = vpop.permute.xlu0 %3821
        %3831 = vst.msk [vmem:[#allocation5] sm:$0xff] %vm1463, %v3808
        %3832 = vst.msk [vmem:[#allocation5 + $0x18] sm:$0xff] %vm1463, %v3810
        %3833 = vst.msk [vmem:[#allocation5 + $0x30] sm:$0xff] %vm1463, %v3812
        %3834 = vst.msk [vmem:[#allocation5 + $0x48] sm:$0xff] %vm1463, %v3814
        %3835 = vst.msk [vmem:[#allocation5 + $0x60] sm:$0xff] %vm1463, %v3816
        %3836 = vst.msk [vmem:[#allocation5 + $0x78] sm:$0xff] %vm1463, %v3818
        %3837 = vst.msk [vmem:[#allocation5 + $0x90] sm:$0xff] %vm1463, %v3820
        %3838 = vst.msk [vmem:[#allocation5 + $0xa8] sm:$0xff] %vm1463, %v3822
        %v3839 = vld [vmem:[#allocation3 + $0x10] sm:$0xff]
        %v3840 = vld [vmem:[#allocation3 + $0x18] sm:$0xff]
        %v3841 = vld [vmem:[#allocation3 + $0x20] sm:$0xff]
        %v3842 = vld [vmem:[#allocation3 + $0x28] sm:$0xff]
        %v3843 = vld [vmem:[#allocation3 + $0x30] sm:$0xff]
        %v3844 = vld [vmem:[#allocation3 + $0x38] sm:$0xff]
        %v3845 = vld [vmem:[#allocation3 + $0x40] sm:$0xff]
        %v3846 = vld [vmem:[#allocation3 + $0x48] sm:$0xff]
        %3847 = vst.msk [vmem:[#allocation5 + $0x8] sm:$0xff] %vm350, %v3839
        %3848 = vst.msk [vmem:[#allocation5 + $0x20] sm:$0xff] %vm350, %v3840
        %3849 = vst.msk [vmem:[#allocation5 + $0x38] sm:$0xff] %vm350, %v3841
        %3850 = vst.msk [vmem:[#allocation5 + $0x50] sm:$0xff] %vm350, %v3842
        %3851 = vst.msk [vmem:[#allocation5 + $0x68] sm:$0xff] %vm350, %v3843
        %3852 = vst.msk [vmem:[#allocation5 + $0x80] sm:$0xff] %vm350, %v3844
        %3853 = vst.msk [vmem:[#allocation5 + $0x98] sm:$0xff] %vm350, %v3845
        %3854 = vst.msk [vmem:[#allocation5 + $0xb0] sm:$0xff] %vm350, %v3846
        %v3855 = vld [vmem:[#allocation3 + $0x11] sm:$0xff]
        %v3856 = vld [vmem:[#allocation3 + $0x19] sm:$0xff]
        %v3857 = vld [vmem:[#allocation3 + $0x21] sm:$0xff]
        %v3858 = vld [vmem:[#allocation3 + $0x29] sm:$0xff]
        %v3859 = vld [vmem:[#allocation3 + $0x31] sm:$0xff]
        %v3860 = vld [vmem:[#allocation3 + $0x39] sm:$0xff]
        %v3861 = vld [vmem:[#allocation3 + $0x41] sm:$0xff]
        %v3862 = vld [vmem:[#allocation3 + $0x49] sm:$0xff]
        %v3863 = vld [vmem:[%s1496] sm:$0xff]
        %v3864 = vld [vmem:[%s1496 + $0x8] sm:$0xff]
        %v3865 = vld [vmem:[%s1496 + $0x10] sm:$0xff]
        %v3866 = vld [vmem:[%s1496 + $0x18] sm:$0xff]
        %v3867 = vld [vmem:[%s1496 + $0x20] sm:$0xff]
        %v3868 = vld [vmem:[%s1496 + $0x28] sm:$0xff]
        %v3869 = vld [vmem:[%s1496 + $0x30] sm:$0xff]
        %v3870 = vld [vmem:[%s1496 + $0x38] sm:$0xff]
        %v3871 = vmul.f32 %v3855, %v3863
        %v3872 = vmul.f32 %v3856, %v3864
        %v3873 = vmul.f32 %v3857, %v3865
        %v3874 = vmul.f32 %v3858, %v3866
        %v3875 = vmul.f32 %v3859, %v3867
        %v3876 = vmul.f32 %v3860, %v3868
        %v3877 = vmul.f32 %v3861, %v3869
        %v3878 = vmul.f32 %v3862, %v3870
        %3887 = vrot.lane.b32.xlu0 %v3871, 32
        %v3888 = vpop.permute.xlu0 %3887
        %3889 = vrot.lane.b32.xlu0 %v3872, 32
        %v3890 = vpop.permute.xlu0 %3889
        %3891 = vrot.lane.b32.xlu0 %v3873, 32
        %v3892 = vpop.permute.xlu0 %3891
        %3893 = vrot.lane.b32.xlu0 %v3874, 32
        %v3894 = vpop.permute.xlu0 %3893
        %3895 = vrot.lane.b32.xlu0 %v3875, 32
        %v3896 = vpop.permute.xlu0 %3895
        %3897 = vrot.lane.b32.xlu0 %v3876, 32
        %v3898 = vpop.permute.xlu0 %3897
        %3899 = vrot.lane.b32.xlu0 %v3877, 32
        %v3900 = vpop.permute.xlu0 %3899
        %3901 = vrot.lane.b32.xlu0 %v3878, 32
        %v3902 = vpop.permute.xlu0 %3901
        %3911 = vst.msk [vmem:[#allocation5 + $0x8] sm:$0xff] %vm1331, %v3888
        %3912 = vst.msk [vmem:[#allocation5 + $0x20] sm:$0xff] %vm1331, %v3890
        %3913 = vst.msk [vmem:[#allocation5 + $0x38] sm:$0xff] %vm1331, %v3892
        %3914 = vst.msk [vmem:[#allocation5 + $0x50] sm:$0xff] %vm1331, %v3894
        %3915 = vst.msk [vmem:[#allocation5 + $0x68] sm:$0xff] %vm1331, %v3896
        %3916 = vst.msk [vmem:[#allocation5 + $0x80] sm:$0xff] %vm1331, %v3898
        %3917 = vst.msk [vmem:[#allocation5 + $0x98] sm:$0xff] %vm1331, %v3900
        %3918 = vst.msk [vmem:[#allocation5 + $0xb0] sm:$0xff] %vm1331, %v3902
        %v3919 = vld [vmem:[#allocation3 + $0x17] sm:$0xff]
        %v3920 = vld [vmem:[#allocation3 + $0x1f] sm:$0xff]
        %v3921 = vld [vmem:[#allocation3 + $0x27] sm:$0xff]
        %v3922 = vld [vmem:[#allocation3 + $0x2f] sm:$0xff]
        %v3923 = vld [vmem:[#allocation3 + $0x37] sm:$0xff]
        %v3924 = vld [vmem:[#allocation3 + $0x3f] sm:$0xff]
        %v3925 = vld [vmem:[#allocation3 + $0x47] sm:$0xff]
        %v3926 = vld [vmem:[#allocation3 + $0x4f] sm:$0xff]
        %v3927 = vld [vmem:[%s1561] sm:$0xff]
        %v3928 = vld [vmem:[%s1561 + $0x8] sm:$0xff]
        %v3929 = vld [vmem:[%s1561 + $0x10] sm:$0xff]
        %v3930 = vld [vmem:[%s1561 + $0x18] sm:$0xff]
        %v3931 = vld [vmem:[%s1561 + $0x20] sm:$0xff]
        %v3932 = vld [vmem:[%s1561 + $0x28] sm:$0xff]
        %v3933 = vld [vmem:[%s1561 + $0x30] sm:$0xff]
        %v3934 = vld [vmem:[%s1561 + $0x38] sm:$0xff]
        %v3935 = vmul.f32 %v3919, %v3927
        %v3936 = vmul.f32 %v3920, %v3928
        %v3937 = vmul.f32 %v3921, %v3929
        %v3938 = vmul.f32 %v3922, %v3930
        %v3939 = vmul.f32 %v3923, %v3931
        %v3940 = vmul.f32 %v3924, %v3932
        %v3941 = vmul.f32 %v3925, %v3933
        %v3942 = vmul.f32 %v3926, %v3934
        %3951 = vrot.lane.b32.xlu0 %v3935, 64
        %v3952 = vpop.permute.xlu0 %3951
        %3953 = vrot.lane.b32.xlu0 %v3936, 64
        %v3954 = vpop.permute.xlu0 %3953
        %3955 = vrot.lane.b32.xlu0 %v3937, 64
        %v3956 = vpop.permute.xlu0 %3955
        %3957 = vrot.lane.b32.xlu0 %v3938, 64
        %v3958 = vpop.permute.xlu0 %3957
        %3959 = vrot.lane.b32.xlu0 %v3939, 64
        %v3960 = vpop.permute.xlu0 %3959
        %3961 = vrot.lane.b32.xlu0 %v3940, 64
        %v3962 = vpop.permute.xlu0 %3961
        %3963 = vrot.lane.b32.xlu0 %v3941, 64
        %v3964 = vpop.permute.xlu0 %3963
        %3965 = vrot.lane.b32.xlu0 %v3942, 64
        %v3966 = vpop.permute.xlu0 %3965
        %3975 = vst.msk [vmem:[#allocation5 + $0x8] sm:$0xff] %vm1397, %v3952
        %3976 = vst.msk [vmem:[#allocation5 + $0x20] sm:$0xff] %vm1397, %v3954
        %3977 = vst.msk [vmem:[#allocation5 + $0x38] sm:$0xff] %vm1397, %v3956
        %3978 = vst.msk [vmem:[#allocation5 + $0x50] sm:$0xff] %vm1397, %v3958
        %3979 = vst.msk [vmem:[#allocation5 + $0x68] sm:$0xff] %vm1397, %v3960
        %3980 = vst.msk [vmem:[#allocation5 + $0x80] sm:$0xff] %vm1397, %v3962
        %3981 = vst.msk [vmem:[#allocation5 + $0x98] sm:$0xff] %vm1397, %v3964
        %3982 = vst.msk [vmem:[#allocation5 + $0xb0] sm:$0xff] %vm1397, %v3966
        %v3983 = vld [vmem:[#allocation3 + $0x18] sm:$0xff]
        %v3984 = vld [vmem:[#allocation3 + $0x20] sm:$0xff]
        %v3985 = vld [vmem:[#allocation3 + $0x28] sm:$0xff]
        %v3986 = vld [vmem:[#allocation3 + $0x30] sm:$0xff]
        %v3987 = vld [vmem:[#allocation3 + $0x38] sm:$0xff]
        %v3988 = vld [vmem:[#allocation3 + $0x40] sm:$0xff]
        %v3989 = vld [vmem:[#allocation3 + $0x48] sm:$0xff]
        %v3990 = vld [vmem:[#allocation3 + $0x50] sm:$0xff]
        %v3991 = vld [vmem:[%s1626] sm:$0xff]
        %v3992 = vld [vmem:[%s1626 + $0x8] sm:$0xff]
        %v3993 = vld [vmem:[%s1626 + $0x10] sm:$0xff]
        %v3994 = vld [vmem:[%s1626 + $0x18] sm:$0xff]
        %v3995 = vld [vmem:[%s1626 + $0x20] sm:$0xff]
        %v3996 = vld [vmem:[%s1626 + $0x28] sm:$0xff]
        %v3997 = vld [vmem:[%s1626 + $0x30] sm:$0xff]
        %v3998 = vld [vmem:[%s1626 + $0x38] sm:$0xff]
        %v3999 = vmul.f32 %v3983, %v3991
        %v4000 = vmul.f32 %v3984, %v3992
        %v4001 = vmul.f32 %v3985, %v3993
        %v4002 = vmul.f32 %v3986, %v3994
        %v4003 = vmul.f32 %v3987, %v3995
        %v4004 = vmul.f32 %v3988, %v3996
        %v4005 = vmul.f32 %v3989, %v3997
        %v4006 = vmul.f32 %v3990, %v3998
        %4015 = vrot.lane.b32.xlu0 %v3999, 96
        %v4016 = vpop.permute.xlu0 %4015
        %4017 = vrot.lane.b32.xlu0 %v4000, 96
        %v4018 = vpop.permute.xlu0 %4017
        %4019 = vrot.lane.b32.xlu0 %v4001, 96
        %v4020 = vpop.permute.xlu0 %4019
        %4021 = vrot.lane.b32.xlu0 %v4002, 96
        %v4022 = vpop.permute.xlu0 %4021
        %4023 = vrot.lane.b32.xlu0 %v4003, 96
        %v4024 = vpop.permute.xlu0 %4023
        %4025 = vrot.lane.b32.xlu0 %v4004, 96
        %v4026 = vpop.permute.xlu0 %4025
        %4027 = vrot.lane.b32.xlu0 %v4005, 96
        %v4028 = vpop.permute.xlu0 %4027
        %4029 = vrot.lane.b32.xlu0 %v4006, 96
        %v4030 = vpop.permute.xlu0 %4029
        %4039 = vst.msk [vmem:[#allocation5 + $0x8] sm:$0xff] %vm1463, %v4016
        %4040 = vst.msk [vmem:[#allocation5 + $0x20] sm:$0xff] %vm1463, %v4018
        %4041 = vst.msk [vmem:[#allocation5 + $0x38] sm:$0xff] %vm1463, %v4020
        %4042 = vst.msk [vmem:[#allocation5 + $0x50] sm:$0xff] %vm1463, %v4022
        %4043 = vst.msk [vmem:[#allocation5 + $0x68] sm:$0xff] %vm1463, %v4024
        %4044 = vst.msk [vmem:[#allocation5 + $0x80] sm:$0xff] %vm1463, %v4026
        %4045 = vst.msk [vmem:[#allocation5 + $0x98] sm:$0xff] %vm1463, %v4028
        %4046 = vst.msk [vmem:[#allocation5 + $0xb0] sm:$0xff] %vm1463, %v4030
        %v4047 = vld [vmem:[#allocation3 + $0x19] sm:$0xff]
        %v4048 = vld [vmem:[#allocation3 + $0x21] sm:$0xff]
        %v4049 = vld [vmem:[#allocation3 + $0x29] sm:$0xff]
        %v4050 = vld [vmem:[#allocation3 + $0x31] sm:$0xff]
        %v4051 = vld [vmem:[#allocation3 + $0x39] sm:$0xff]
        %v4052 = vld [vmem:[#allocation3 + $0x41] sm:$0xff]
        %v4053 = vld [vmem:[#allocation3 + $0x49] sm:$0xff]
        %v4054 = vld [vmem:[#allocation3 + $0x51] sm:$0xff]
        %v4055 = vld [vmem:[%s1691] sm:$0xff]
        %v4056 = vld [vmem:[%s1691 + $0x8] sm:$0xff]
        %v4057 = vld [vmem:[%s1691 + $0x10] sm:$0xff]
        %v4058 = vld [vmem:[%s1691 + $0x18] sm:$0xff]
        %v4059 = vld [vmem:[%s1691 + $0x20] sm:$0xff]
        %v4060 = vld [vmem:[%s1691 + $0x28] sm:$0xff]
        %v4061 = vld [vmem:[%s1691 + $0x30] sm:$0xff]
        %v4062 = vld [vmem:[%s1691 + $0x38] sm:$0xff]
        %v4063 = vmul.f32 %v4047, %v4055
        %v4064 = vmul.f32 %v4048, %v4056
        %v4065 = vmul.f32 %v4049, %v4057
        %v4066 = vmul.f32 %v4050, %v4058
        %v4067 = vmul.f32 %v4051, %v4059
        %v4068 = vmul.f32 %v4052, %v4060
        %v4069 = vmul.f32 %v4053, %v4061
        %v4070 = vmul.f32 %v4054, %v4062
        %4071 = vst.msk [vmem:[#allocation5 + $0x10] sm:$0xff] %vm350, %v4063
        %4072 = vst.msk [vmem:[#allocation5 + $0x28] sm:$0xff] %vm350, %v4064
        %4073 = vst.msk [vmem:[#allocation5 + $0x40] sm:$0xff] %vm350, %v4065
        %4074 = vst.msk [vmem:[#allocation5 + $0x58] sm:$0xff] %vm350, %v4066
        %4075 = vst.msk [vmem:[#allocation5 + $0x70] sm:$0xff] %vm350, %v4067
        %4076 = vst.msk [vmem:[#allocation5 + $0x88] sm:$0xff] %vm350, %v4068
        %4077 = vst.msk [vmem:[#allocation5 + $0xa0] sm:$0xff] %vm350, %v4069
        %4078 = vst.msk [vmem:[#allocation5 + $0xb8] sm:$0xff] %vm350, %v4070
        %v4079 = vld [vmem:[#allocation5] sm:$0xff]
        %v4080 = vld [vmem:[#allocation5 + $0x8] sm:$0xff]
        %v4081 = vld [vmem:[#allocation5 + $0x10] sm:$0xff]
        %v4082 = vld [vmem:[#allocation5 + $0x18] sm:$0xff]
        %v4083 = vld [vmem:[#allocation5 + $0x20] sm:$0xff]
        %v4084 = vld [vmem:[#allocation5 + $0x28] sm:$0xff]
        %v4085 = vld [vmem:[#allocation5 + $0x30] sm:$0xff]
        %v4086 = vld [vmem:[#allocation5 + $0x38] sm:$0xff]
        %v4087 = vld [vmem:[#allocation5 + $0x40] sm:$0xff]
        %v4088 = vld [vmem:[#allocation5 + $0x48] sm:$0xff]
        %v4089 = vld [vmem:[#allocation5 + $0x50] sm:$0xff]
        %v4090 = vld [vmem:[#allocation5 + $0x58] sm:$0xff]
        %v4091 = vld [vmem:[#allocation5 + $0x60] sm:$0xff]
        %v4092 = vld [vmem:[#allocation5 + $0x68] sm:$0xff]
        %v4093 = vld [vmem:[#allocation5 + $0x70] sm:$0xff]
        %v4094 = vld [vmem:[#allocation5 + $0x78] sm:$0xff]
        %v4095 = vld [vmem:[#allocation5 + $0x80] sm:$0xff]
        %v4096 = vld [vmem:[#allocation5 + $0x88] sm:$0xff]
        %v4097 = vld [vmem:[#allocation5 + $0x90] sm:$0xff]
        %v4098 = vld [vmem:[#allocation5 + $0x98] sm:$0xff]
        %v4099 = vld [vmem:[#allocation5 + $0xa0] sm:$0xff]
        %v4100 = vld [vmem:[#allocation5 + $0xa8] sm:$0xff]
        %v4101 = vld [vmem:[#allocation5 + $0xb0] sm:$0xff]
        %v4102 = vld [vmem:[#allocation5 + $0xb8] sm:$0xff]
        %s4103 = scalar_lea.vmem [#allocation7], 864
        %v4104 = vld [vmem:[%s4103] sm:$0xff]
        %v4105 = vld [vmem:[%s4103 + $0x8] sm:$0xff]
        %v4106 = vld [vmem:[%s4103 + $0x10] sm:$0xff]
        %v4107 = vld [vmem:[%s4103 + $0x18] sm:$0xff]
        %v4108 = vld [vmem:[%s4103 + $0x20] sm:$0xff]
        %v4109 = vld [vmem:[%s4103 + $0x28] sm:$0xff]
        %v4110 = vld [vmem:[%s4103 + $0x30] sm:$0xff]
        %v4111 = vld [vmem:[%s4103 + $0x38] sm:$0xff]
        %v4112 = vld [vmem:[%s4103 + $0x40] sm:$0xff]
        %v4113 = vld [vmem:[%s4103 + $0x48] sm:$0xff]
        %v4114 = vld [vmem:[%s4103 + $0x50] sm:$0xff]
        %v4115 = vld [vmem:[%s4103 + $0x58] sm:$0xff]
        %v4116 = vld [vmem:[%s4103 + $0x60] sm:$0xff]
        %v4117 = vld [vmem:[%s4103 + $0x68] sm:$0xff]
        %v4118 = vld [vmem:[%s4103 + $0x70] sm:$0xff]
        %v4119 = vld [vmem:[%s4103 + $0x78] sm:$0xff]
        %v4120 = vld [vmem:[%s4103 + $0x80] sm:$0xff]
        %v4121 = vld [vmem:[%s4103 + $0x88] sm:$0xff]
        %v4122 = vld [vmem:[%s4103 + $0x90] sm:$0xff]
        %v4123 = vld [vmem:[%s4103 + $0x98] sm:$0xff]
        %v4124 = vld [vmem:[%s4103 + $0xa0] sm:$0xff]
        %v4125 = vld [vmem:[%s4103 + $0xa8] sm:$0xff]
        %v4126 = vld [vmem:[%s4103 + $0xb0] sm:$0xff]
        %v4127 = vld [vmem:[%s4103 + $0xb8] sm:$0xff]
        %v4128 = vld [vmem:[%s4103 + $0xc0] sm:$0xff]
        %v4129 = vld [vmem:[%s4103 + $0xc8] sm:$0xff]
        %v4130 = vld [vmem:[%s4103 + $0xd0] sm:$0xff]
        %v4131 = vld [vmem:[%s4103 + $0xd8] sm:$0xff]
        %v4132 = vld [vmem:[%s4103 + $0xe0] sm:$0xff]
        %v4133 = vld [vmem:[%s4103 + $0xe8] sm:$0xff]
        %v4134 = vld [vmem:[%s4103 + $0xf0] sm:$0xff]
        %v4135 = vld [vmem:[%s4103 + $0xf8] sm:$0xff]
        %v4136 = vld [vmem:[%s4103 + $0x100] sm:$0xff]
        %v4137 = vld [vmem:[%s4103 + $0x108] sm:$0xff]
        %v4138 = vld [vmem:[%s4103 + $0x110] sm:$0xff]
        %v4139 = vld [vmem:[%s4103 + $0x118] sm:$0xff]
        %s4140 = scalar_lea.vmem %s6, 3
        %v4141 = vld [vmem:[%s4140] sm:$0x1]
        %v4143 = vlaneseq
        %v4144 = vshrl.u32 %v4143, 7
        %v4145 = vsub.s32 0, %v4144
        %v4146 = vrot.slane %v4141, %v4145
        %v4149 = vsel %vm350, %v4081, 0
        %v4152 = vsel %vm350, %v4084, 0
        %v4155 = vsel %vm350, %v4087, 0
        %v4158 = vsel %vm350, %v4090, 0
        %v4161 = vsel %vm350, %v4093, 0
        %v4164 = vsel %vm350, %v4096, 0
        %v4167 = vsel %vm350, %v4099, 0
        %v4170 = vsel %vm350, %v4102, 0
        %4172 = vmatprep.subr.mxu0 0.0
        %4173 = vmatpush1.msra.mxu0 %v4104
        %4174 = vmatprep.subr.mxu0 0.0
        %4175 = vmatpush1.msra.mxu0 %v4105
        %4176 = vmatprep.subr.mxu0 0.0
        %4177 = vmatpush1.msra.mxu0 %v4106
        %4178 = vmatprep.subr.mxu0 0.0
        %4179 = vmatpush1.msra.mxu0 %v4107
        %4180 = vmatprep.subr.mxu0 0.0
        %4181 = vmatpush1.msra.mxu0 %v4108
        %4182 = vmatprep.subr.mxu0 0.0
        %4183 = vmatpush1.msra.mxu0 %v4109
        %4184 = vmatprep.subr.mxu0 0.0
        %4185 = vmatpush1.msra.mxu0 %v4110
        %4186 = vmatprep.subr.mxu0 0.0
        %4187 = vmatpush1.msra.mxu0 %v4111
        %4188 = vmatprep.subr.mxu0 0.0
        %4189 = vmatpush1.msra.mxu0 %v4112
        %4190 = vmatprep.subr.mxu0 0.0
        %4191 = vmatpush1.msra.mxu0 %v4113
        %4192 = vmatprep.subr.mxu0 0.0
        %4193 = vmatpush1.msra.mxu0 %v4114
        %4194 = vmatprep.subr.mxu0 0.0
        %4195 = vmatpush1.msra.mxu0 %v4115
        %4196 = vmatprep.subr.mxu0 0.0
        %4197 = vmatpush1.msra.mxu0 %v4116
        %4198 = vmatprep.subr.mxu0 0.0
        %4199 = vmatpush1.msra.mxu0 %v4117
        %4200 = vmatprep.subr.mxu0 0.0
        %4201 = vmatpush1.msra.mxu0 %v4118
        %4202 = vmatprep.subr.mxu0 0.0
        %4203 = vmatpush1.msra.mxu0 %v4119
        %4204 = vmatprep.subr.mxu0 0.0
        %4205 = vmatpush1.msra.mxu0 %v4120
        %4206 = vmatprep.subr.mxu0 0.0
        %4207 = vmatpush1.msra.mxu0 %v4121
        %4208 = vmatprep.subr.mxu0 0.0
        %4209 = vmatpush1.msra.mxu0 %v4122
        %4210 = vmatprep.subr.mxu0 0.0
        %4211 = vmatpush1.msra.mxu0 %v4123
        %4212 = vmatprep.subr.mxu0 0.0
        %4213 = vmatpush1.msra.mxu0 %v4124
        %4214 = vmatprep.subr.mxu0 0.0
        %4215 = vmatpush1.msra.mxu0 %v4125
        %4216 = vmatprep.subr.mxu0 0.0
        %4217 = vmatpush1.msra.mxu0 %v4126
        %4218 = vmatprep.subr.mxu0 0.0
        %4219 = vmatpush1.msra.mxu0 %v4127
        %4220 = vmatprep.subr.mxu0 0.0
        %4221 = vmatpush1.msra.mxu0 %v4128
        %4222 = vmatprep.subr.mxu0 0.0
        %4223 = vmatpush1.msra.mxu0 %v4129
        %4224 = vmatprep.subr.mxu0 0.0
        %4225 = vmatpush1.msra.mxu0 %v4130
        %4226 = vmatprep.subr.mxu0 0.0
        %4227 = vmatpush1.msra.mxu0 %v4131
        %4228 = vmatprep.subr.mxu0 0.0
        %4229 = vmatpush1.msra.mxu0 %v4132
        %4230 = vmatprep.subr.mxu0 0.0
        %4231 = vmatpush1.msra.mxu0 %v4133
        %4232 = vmatprep.subr.mxu0 0.0
        %4233 = vmatpush1.msra.mxu0 %v4134
        %4234 = vmatprep.subr.mxu0 0.0
        %4235 = vmatpush1.msra.mxu0 %v4135
        %4236 = vmatprep.mubr.f32.mxu0 %v4080
        %4237 = vmatmul.mubr.f32.gmra.mrb[0].mxu0 %v4079
        %v4238 = vpop.f32.mrb[0].mxu0
        %v4239 = vadd.f32 %v4146, %v4238
        %v4240 = vpop.f32.mrb[0].mxu0
        %4241 = vmatprep.mubr.f32.mxu0 %v4083
        %4242 = vmatmul.mubr.f32.gmra.mrb[0].mxu0 %v4082
        %v4243 = vpop.f32.mrb[0].mxu0
        %v4244 = vadd.f32 %v4146, %v4243
        %v4245 = vpop.f32.mrb[0].mxu0
        %4246 = vmatprep.mubr.f32.mxu0 %v4086
        %4247 = vmatmul.mubr.f32.gmra.mrb[0].mxu0 %v4085
        %v4248 = vpop.f32.mrb[0].mxu0
        %v4249 = vadd.f32 %v4146, %v4248
        %v4250 = vpop.f32.mrb[0].mxu0
        %4251 = vmatprep.mubr.f32.mxu0 %v4089
        %4252 = vmatmul.mubr.f32.gmra.mrb[0].mxu0 %v4088
        %v4253 = vpop.f32.mrb[0].mxu0
        %v4254 = vadd.f32 %v4146, %v4253
        %v4255 = vpop.f32.mrb[0].mxu0
        %4256 = vmatprep.mubr.f32.mxu0 %v4092
        %4257 = vmatmul.mubr.f32.gmra.mrb[0].mxu0 %v4091
        %v4258 = vpop.f32.mrb[0].mxu0
        %v4259 = vadd.f32 %v4146, %v4258
        %v4260 = vpop.f32.mrb[0].mxu0
        %4261 = vmatprep.mubr.f32.mxu0 %v4095
        %4262 = vmatmul.mubr.f32.gmra.mrb[0].mxu0 %v4094
        %v4263 = vpop.f32.mrb[0].mxu0
        %v4264 = vadd.f32 %v4146, %v4263
        %v4265 = vpop.f32.mrb[0].mxu0
        %4266 = vmatprep.mubr.f32.mxu0 %v4098
        %4267 = vmatmul.mubr.f32.gmra.mrb[0].mxu0 %v4097
        %v4268 = vpop.f32.mrb[0].mxu0
        %v4269 = vadd.f32 %v4146, %v4268
        %v4270 = vpop.f32.mrb[0].mxu0
        %4271 = vmatprep.mubr.f32.mxu0 %v4101
        %4272 = vmatmul.mubr.f32.gmra.mrb[0].mxu0 %v4100
        %v4273 = vpop.f32.mrb[0].mxu0
        %v4274 = vadd.f32 %v4146, %v4273
        %v4275 = vpop.f32.mrb[0].mxu0
        %4276 = vdwg.mxu0
        %4277 = vmatprep.subr.mxu0 0.0
        %4278 = vmatpush1.msra.mxu0 %v4136
        %4279 = vmatprep.subr.mxu0 0.0
        %4280 = vmatpush1.msra.mxu0 %v4137
        %4281 = vmatprep.subr.mxu0 0.0
        %4282 = vmatpush1.msra.mxu0 %v4138
        %4283 = vmatprep.subr.mxu0 0.0
        %4284 = vmatpush1.msra.mxu0 %v4139
        %4285 = vmatprep.subr.mxu0 0.0
        %4286 = vmatpush1.msra.mxu0 0.0
        %4287 = vmatprep.subr.mxu0 0.0
        %4288 = vmatpush1.msra.mxu0 0.0
        %4289 = vmatprep.subr.mxu0 0.0
        %4290 = vmatpush1.msra.mxu0 0.0
        %4291 = vmatprep.subr.mxu0 0.0
        %4292 = vmatpush1.msra.mxu0 0.0
        %4293 = vmatprep.subr.mxu0 0.0
        %4294 = vmatpush1.msra.mxu0 0.0
        %4295 = vmatprep.subr.mxu0 0.0
        %4296 = vmatpush1.msra.mxu0 0.0
        %4297 = vmatprep.subr.mxu0 0.0
        %4298 = vmatpush1.msra.mxu0 0.0
        %4299 = vmatprep.subr.mxu0 0.0
        %4300 = vmatpush1.msra.mxu0 0.0
        %4301 = vmatprep.subr.mxu0 0.0
        %4302 = vmatpush1.msra.mxu0 0.0
        %4303 = vmatprep.subr.mxu0 0.0
        %4304 = vmatpush1.msra.mxu0 0.0
        %4305 = vmatprep.subr.mxu0 0.0
        %4306 = vmatpush1.msra.mxu0 0.0
        %4307 = vmatprep.subr.mxu0 0.0
        %4308 = vmatpush1.msra.mxu0 0.0
        %4309 = vmatprep.subr.mxu0 0.0
        %4310 = vmatpush1.msra.mxu0 0.0
        %4311 = vmatprep.subr.mxu0 0.0
        %4312 = vmatpush1.msra.mxu0 0.0
        %4313 = vmatprep.subr.mxu0 0.0
        %4314 = vmatpush1.msra.mxu0 0.0
        %4315 = vmatprep.subr.mxu0 0.0
        %4316 = vmatpush1.msra.mxu0 0.0
        %4317 = vmatprep.subr.mxu0 0.0
        %4318 = vmatpush1.msra.mxu0 0.0
        %4319 = vmatprep.subr.mxu0 0.0
        %4320 = vmatpush1.msra.mxu0 0.0
        %4321 = vmatprep.subr.mxu0 0.0
        %4322 = vmatpush1.msra.mxu0 0.0
        %4323 = vmatprep.subr.mxu0 0.0
        %4324 = vmatpush1.msra.mxu0 0.0
        %4325 = vmatprep.subr.mxu0 0.0
        %4326 = vmatpush1.msra.mxu0 0.0
        %4327 = vmatprep.subr.mxu0 0.0
        %4328 = vmatpush1.msra.mxu0 0.0
        %4329 = vmatprep.subr.mxu0 0.0
        %4330 = vmatpush1.msra.mxu0 0.0
        %4331 = vmatprep.subr.mxu0 0.0
        %4332 = vmatpush1.msra.mxu0 0.0
        %4333 = vmatprep.subr.mxu0 0.0
        %4334 = vmatpush1.msra.mxu0 0.0
        %4335 = vmatprep.subr.mxu0 0.0
        %4336 = vmatpush1.msra.mxu0 0.0
        %4337 = vmatprep.subr.mxu0 0.0
        %4338 = vmatpush1.msra.mxu0 0.0
        %4339 = vmatprep.subr.mxu0 0.0
        %4340 = vmatpush1.msra.mxu0 0.0
        %4341 = vmatprep.mubr.f32.mxu0 0.0
        %4342 = vmatmul.mubr.f32.gmra.mrb[0].mxu0 %v4149
        %v4343 = vpop.f32.mrb[0].mxu0
        %v4344 = vadd.f32 %v4239, %v4343
        %v4345 = vpop.f32.mrb[0].mxu0
        %4346 = vmatprep.mubr.f32.mxu0 0.0
        %4347 = vmatmul.mubr.f32.gmra.mrb[0].mxu0 %v4152
        %v4348 = vpop.f32.mrb[0].mxu0
        %v4349 = vadd.f32 %v4244, %v4348
        %v4350 = vpop.f32.mrb[0].mxu0
        %4351 = vmatprep.mubr.f32.mxu0 0.0
        %4352 = vmatmul.mubr.f32.gmra.mrb[0].mxu0 %v4155
        %v4353 = vpop.f32.mrb[0].mxu0
        %v4354 = vadd.f32 %v4249, %v4353
        %v4355 = vpop.f32.mrb[0].mxu0
        %4356 = vmatprep.mubr.f32.mxu0 0.0
        %4357 = vmatmul.mubr.f32.gmra.mrb[0].mxu0 %v4158
        %v4358 = vpop.f32.mrb[0].mxu0
        %v4359 = vadd.f32 %v4254, %v4358
        %v4360 = vpop.f32.mrb[0].mxu0
        %4361 = vmatprep.mubr.f32.mxu0 0.0
        %4362 = vmatmul.mubr.f32.gmra.mrb[0].mxu0 %v4161
        %v4363 = vpop.f32.mrb[0].mxu0
        %v4364 = vadd.f32 %v4259, %v4363
        %v4365 = vpop.f32.mrb[0].mxu0
        %4366 = vmatprep.mubr.f32.mxu0 0.0
        %4367 = vmatmul.mubr.f32.gmra.mrb[0].mxu0 %v4164
        %v4368 = vpop.f32.mrb[0].mxu0
        %v4369 = vadd.f32 %v4264, %v4368
        %v4370 = vpop.f32.mrb[0].mxu0
        %4371 = vmatprep.mubr.f32.mxu0 0.0
        %4372 = vmatmul.mubr.f32.gmra.mrb[0].mxu0 %v4167
        %v4373 = vpop.f32.mrb[0].mxu0
        %v4374 = vadd.f32 %v4269, %v4373
        %v4375 = vpop.f32.mrb[0].mxu0
        %4376 = vmatprep.mubr.f32.mxu0 0.0
        %4377 = vmatmul.mubr.f32.gmra.mrb[0].mxu0 %v4170
        %v4378 = vpop.f32.mrb[0].mxu0
        %v4379 = vadd.f32 %v4274, %v4378
        %v4380 = vpop.f32.mrb[0].mxu0
        %4381 = vdwg.mxu0
        %v4382 = vld [vmem:[#allocation2 + $0x10] sm:$0xff]
        %v4383 = vld [vmem:[#allocation2 + $0x18] sm:$0xff]
        %v4384 = vld [vmem:[#allocation2 + $0x20] sm:$0xff]
        %v4385 = vld [vmem:[#allocation2 + $0x28] sm:$0xff]
        %v4386 = vld [vmem:[#allocation2 + $0x30] sm:$0xff]
        %v4387 = vld [vmem:[#allocation2 + $0x38] sm:$0xff]
        %v4388 = vld [vmem:[#allocation2 + $0x40] sm:$0xff]
        %v4389 = vld [vmem:[#allocation2 + $0x48] sm:$0xff]
        %v4390 = vadd.f32 %v4344, %v4382
        %v4391 = vadd.f32 %v4349, %v4383
        %v4392 = vadd.f32 %v4354, %v4384
        %v4393 = vadd.f32 %v4359, %v4385
        %v4394 = vadd.f32 %v4364, %v4386
        %v4395 = vadd.f32 %v4369, %v4387
        %v4396 = vadd.f32 %v4374, %v4388
        %v4397 = vadd.f32 %v4379, %v4389
        %v4398 = vmax.f32 %v4390, 0.0
        %v4399 = vmax.f32 %v4391, 0.0
        %v4400 = vmax.f32 %v4392, 0.0
        %v4401 = vmax.f32 %v4393, 0.0
        %v4402 = vmax.f32 %v4394, 0.0
        %v4403 = vmax.f32 %v4395, 0.0
        %v4404 = vmax.f32 %v4396, 0.0
        %v4405 = vmax.f32 %v4397, 0.0
        %4406 = vst.msk [vmem:[#allocation2 + $0x10] sm:$0xff] %vm350, %v4398
        %4407 = vst.msk [vmem:[#allocation2 + $0x18] sm:$0xff] %vm350, %v4399
        %4408 = vst.msk [vmem:[#allocation2 + $0x20] sm:$0xff] %vm350, %v4400
        %4409 = vst.msk [vmem:[#allocation2 + $0x28] sm:$0xff] %vm350, %v4401
        %4410 = vst.msk [vmem:[#allocation2 + $0x30] sm:$0xff] %vm350, %v4402
        %4411 = vst.msk [vmem:[#allocation2 + $0x38] sm:$0xff] %vm350, %v4403
        %4412 = vst.msk [vmem:[#allocation2 + $0x40] sm:$0xff] %vm350, %v4404
        %4413 = vst.msk [vmem:[#allocation2 + $0x48] sm:$0xff] %vm350, %v4405
        %v4414 = vld [vmem:[#allocation2 + $0x7] sm:$0xff]
        %v4415 = vld [vmem:[#allocation2 + $0xf] sm:$0xff]
        %v4416 = vld [vmem:[#allocation2 + $0x17] sm:$0xff]
        %v4417 = vld [vmem:[#allocation2 + $0x1f] sm:$0xff]
        %v4418 = vld [vmem:[#allocation2 + $0x27] sm:$0xff]
        %v4419 = vld [vmem:[#allocation2 + $0x2f] sm:$0xff]
        %v4420 = vld [vmem:[#allocation2 + $0x37] sm:$0xff]
        %v4421 = vld [vmem:[#allocation2 + $0x3f] sm:$0xff]
        %v4422 = vld [vmem:[%s2] sm:$0xff]
        %v4423 = vld [vmem:[%s2 + $0x8] sm:$0xff]
        %v4424 = vld [vmem:[%s2 + $0x10] sm:$0xff]
        %v4425 = vld [vmem:[%s2 + $0x18] sm:$0xff]
        %v4426 = vld [vmem:[%s2 + $0x20] sm:$0xff]
        %v4427 = vld [vmem:[%s2 + $0x28] sm:$0xff]
        %v4428 = vld [vmem:[%s2 + $0x30] sm:$0xff]
        %v4429 = vld [vmem:[%s2 + $0x38] sm:$0xff]
        %v4430 = vmul.f32 %v4414, %v4422
        %v4431 = vmul.f32 %v4415, %v4423
        %v4432 = vmul.f32 %v4416, %v4424
        %v4433 = vmul.f32 %v4417, %v4425
        %v4434 = vmul.f32 %v4418, %v4426
        %v4435 = vmul.f32 %v4419, %v4427
        %v4436 = vmul.f32 %v4420, %v4428
        %v4437 = vmul.f32 %v4421, %v4429
        %4438 = vst.msk [vmem:[#allocation5] sm:$0xff] %vm350, %v4430
        %4439 = vst.msk [vmem:[#allocation5 + $0x18] sm:$0xff] %vm350, %v4431
        %4440 = vst.msk [vmem:[#allocation5 + $0x30] sm:$0xff] %vm350, %v4432
        %4441 = vst.msk [vmem:[#allocation5 + $0x48] sm:$0xff] %vm350, %v4433
        %4442 = vst.msk [vmem:[#allocation5 + $0x60] sm:$0xff] %vm350, %v4434
        %4443 = vst.msk [vmem:[#allocation5 + $0x78] sm:$0xff] %vm350, %v4435
        %4444 = vst.msk [vmem:[#allocation5 + $0x90] sm:$0xff] %vm350, %v4436
        %4445 = vst.msk [vmem:[#allocation5 + $0xa8] sm:$0xff] %vm350, %v4437
        %v4446 = vld [vmem:[#allocation2 + $0x8] sm:$0xff]
        %v4447 = vld [vmem:[#allocation2 + $0x10] sm:$0xff]
        %v4448 = vld [vmem:[#allocation2 + $0x18] sm:$0xff]
        %v4449 = vld [vmem:[#allocation2 + $0x20] sm:$0xff]
        %v4450 = vld [vmem:[#allocation2 + $0x28] sm:$0xff]
        %v4451 = vld [vmem:[#allocation2 + $0x30] sm:$0xff]
        %v4452 = vld [vmem:[#allocation2 + $0x38] sm:$0xff]
        %v4453 = vld [vmem:[#allocation2 + $0x40] sm:$0xff]
        %v4454 = vld [vmem:[%s1282] sm:$0xff]
        %v4455 = vld [vmem:[%s1282 + $0x8] sm:$0xff]
        %v4456 = vld [vmem:[%s1282 + $0x10] sm:$0xff]
        %v4457 = vld [vmem:[%s1282 + $0x18] sm:$0xff]
        %v4458 = vld [vmem:[%s1282 + $0x20] sm:$0xff]
        %v4459 = vld [vmem:[%s1282 + $0x28] sm:$0xff]
        %v4460 = vld [vmem:[%s1282 + $0x30] sm:$0xff]
        %v4461 = vld [vmem:[%s1282 + $0x38] sm:$0xff]
        %v4462 = vmul.f32 %v4446, %v4454
        %v4463 = vmul.f32 %v4447, %v4455
        %v4464 = vmul.f32 %v4448, %v4456
        %v4465 = vmul.f32 %v4449, %v4457
        %v4466 = vmul.f32 %v4450, %v4458
        %v4467 = vmul.f32 %v4451, %v4459
        %v4468 = vmul.f32 %v4452, %v4460
        %v4469 = vmul.f32 %v4453, %v4461
        %4478 = vrot.lane.b32.xlu0 %v4462, 32
        %v4479 = vpop.permute.xlu0 %4478
        %4480 = vrot.lane.b32.xlu0 %v4463, 32
        %v4481 = vpop.permute.xlu0 %4480
        %4482 = vrot.lane.b32.xlu0 %v4464, 32
        %v4483 = vpop.permute.xlu0 %4482
        %4484 = vrot.lane.b32.xlu0 %v4465, 32
        %v4485 = vpop.permute.xlu0 %4484
        %4486 = vrot.lane.b32.xlu0 %v4466, 32
        %v4487 = vpop.permute.xlu0 %4486
        %4488 = vrot.lane.b32.xlu0 %v4467, 32
        %v4489 = vpop.permute.xlu0 %4488
        %4490 = vrot.lane.b32.xlu0 %v4468, 32
        %v4491 = vpop.permute.xlu0 %4490
        %4492 = vrot.lane.b32.xlu0 %v4469, 32
        %v4493 = vpop.permute.xlu0 %4492
        %4502 = vst.msk [vmem:[#allocation5] sm:$0xff] %vm1331, %v4479
        %4503 = vst.msk [vmem:[#allocation5 + $0x18] sm:$0xff] %vm1331, %v4481
        %4504 = vst.msk [vmem:[#allocation5 + $0x30] sm:$0xff] %vm1331, %v4483
        %4505 = vst.msk [vmem:[#allocation5 + $0x48] sm:$0xff] %vm1331, %v4485
        %4506 = vst.msk [vmem:[#allocation5 + $0x60] sm:$0xff] %vm1331, %v4487
        %4507 = vst.msk [vmem:[#allocation5 + $0x78] sm:$0xff] %vm1331, %v4489
        %4508 = vst.msk [vmem:[#allocation5 + $0x90] sm:$0xff] %vm1331, %v4491
        %4509 = vst.msk [vmem:[#allocation5 + $0xa8] sm:$0xff] %vm1331, %v4493
        %v4510 = vld [vmem:[#allocation2 + $0x9] sm:$0xff]
        %v4511 = vld [vmem:[#allocation2 + $0x11] sm:$0xff]
        %v4512 = vld [vmem:[#allocation2 + $0x19] sm:$0xff]
        %v4513 = vld [vmem:[#allocation2 + $0x21] sm:$0xff]
        %v4514 = vld [vmem:[#allocation2 + $0x29] sm:$0xff]
        %v4515 = vld [vmem:[#allocation2 + $0x31] sm:$0xff]
        %v4516 = vld [vmem:[#allocation2 + $0x39] sm:$0xff]
        %v4517 = vld [vmem:[#allocation2 + $0x41] sm:$0xff]
        %v4518 = vld [vmem:[%s1348] sm:$0xff]
        %v4519 = vld [vmem:[%s1348 + $0x8] sm:$0xff]
        %v4520 = vld [vmem:[%s1348 + $0x10] sm:$0xff]
        %v4521 = vld [vmem:[%s1348 + $0x18] sm:$0xff]
        %v4522 = vld [vmem:[%s1348 + $0x20] sm:$0xff]
        %v4523 = vld [vmem:[%s1348 + $0x28] sm:$0xff]
        %v4524 = vld [vmem:[%s1348 + $0x30] sm:$0xff]
        %v4525 = vld [vmem:[%s1348 + $0x38] sm:$0xff]
        %v4526 = vmul.f32 %v4510, %v4518
        %v4527 = vmul.f32 %v4511, %v4519
        %v4528 = vmul.f32 %v4512, %v4520
        %v4529 = vmul.f32 %v4513, %v4521
        %v4530 = vmul.f32 %v4514, %v4522
        %v4531 = vmul.f32 %v4515, %v4523
        %v4532 = vmul.f32 %v4516, %v4524
        %v4533 = vmul.f32 %v4517, %v4525
        %4542 = vrot.lane.b32.xlu0 %v4526, 64
        %v4543 = vpop.permute.xlu0 %4542
        %4544 = vrot.lane.b32.xlu0 %v4527, 64
        %v4545 = vpop.permute.xlu0 %4544
        %4546 = vrot.lane.b32.xlu0 %v4528, 64
        %v4547 = vpop.permute.xlu0 %4546
        %4548 = vrot.lane.b32.xlu0 %v4529, 64
        %v4549 = vpop.permute.xlu0 %4548
        %4550 = vrot.lane.b32.xlu0 %v4530, 64
        %v4551 = vpop.permute.xlu0 %4550
        %4552 = vrot.lane.b32.xlu0 %v4531, 64
        %v4553 = vpop.permute.xlu0 %4552
        %4554 = vrot.lane.b32.xlu0 %v4532, 64
        %v4555 = vpop.permute.xlu0 %4554
        %4556 = vrot.lane.b32.xlu0 %v4533, 64
        %v4557 = vpop.permute.xlu0 %4556
        %4566 = vst.msk [vmem:[#allocation5] sm:$0xff] %vm1397, %v4543
        %4567 = vst.msk [vmem:[#allocation5 + $0x18] sm:$0xff] %vm1397, %v4545
        %4568 = vst.msk [vmem:[#allocation5 + $0x30] sm:$0xff] %vm1397, %v4547
        %4569 = vst.msk [vmem:[#allocation5 + $0x48] sm:$0xff] %vm1397, %v4549
        %4570 = vst.msk [vmem:[#allocation5 + $0x60] sm:$0xff] %vm1397, %v4551
        %4571 = vst.msk [vmem:[#allocation5 + $0x78] sm:$0xff] %vm1397, %v4553
        %4572 = vst.msk [vmem:[#allocation5 + $0x90] sm:$0xff] %vm1397, %v4555
        %4573 = vst.msk [vmem:[#allocation5 + $0xa8] sm:$0xff] %vm1397, %v4557
        %v4574 = vld [vmem:[#allocation2 + $0xf] sm:$0xff]
        %v4575 = vld [vmem:[#allocation2 + $0x17] sm:$0xff]
        %v4576 = vld [vmem:[#allocation2 + $0x1f] sm:$0xff]
        %v4577 = vld [vmem:[#allocation2 + $0x27] sm:$0xff]
        %v4578 = vld [vmem:[#allocation2 + $0x2f] sm:$0xff]
        %v4579 = vld [vmem:[#allocation2 + $0x37] sm:$0xff]
        %v4580 = vld [vmem:[#allocation2 + $0x3f] sm:$0xff]
        %v4581 = vld [vmem:[#allocation2 + $0x47] sm:$0xff]
        %v4582 = vld [vmem:[%s1414] sm:$0xff]
        %v4583 = vld [vmem:[%s1414 + $0x8] sm:$0xff]
        %v4584 = vld [vmem:[%s1414 + $0x10] sm:$0xff]
        %v4585 = vld [vmem:[%s1414 + $0x18] sm:$0xff]
        %v4586 = vld [vmem:[%s1414 + $0x20] sm:$0xff]
        %v4587 = vld [vmem:[%s1414 + $0x28] sm:$0xff]
        %v4588 = vld [vmem:[%s1414 + $0x30] sm:$0xff]
        %v4589 = vld [vmem:[%s1414 + $0x38] sm:$0xff]
        %v4590 = vmul.f32 %v4574, %v4582
        %v4591 = vmul.f32 %v4575, %v4583
        %v4592 = vmul.f32 %v4576, %v4584
        %v4593 = vmul.f32 %v4577, %v4585
        %v4594 = vmul.f32 %v4578, %v4586
        %v4595 = vmul.f32 %v4579, %v4587
        %v4596 = vmul.f32 %v4580, %v4588
        %v4597 = vmul.f32 %v4581, %v4589
        %4606 = vrot.lane.b32.xlu0 %v4590, 96
        %v4607 = vpop.permute.xlu0 %4606
        %4608 = vrot.lane.b32.xlu0 %v4591, 96
        %v4609 = vpop.permute.xlu0 %4608
        %4610 = vrot.lane.b32.xlu0 %v4592, 96
        %v4611 = vpop.permute.xlu0 %4610
        %4612 = vrot.lane.b32.xlu0 %v4593, 96
        %v4613 = vpop.permute.xlu0 %4612
        %4614 = vrot.lane.b32.xlu0 %v4594, 96
        %v4615 = vpop.permute.xlu0 %4614
        %4616 = vrot.lane.b32.xlu0 %v4595, 96
        %v4617 = vpop.permute.xlu0 %4616
        %4618 = vrot.lane.b32.xlu0 %v4596, 96
        %v4619 = vpop.permute.xlu0 %4618
        %4620 = vrot.lane.b32.xlu0 %v4597, 96
        %v4621 = vpop.permute.xlu0 %4620
        %4630 = vst.msk [vmem:[#allocation5] sm:$0xff] %vm1463, %v4607
        %4631 = vst.msk [vmem:[#allocation5 + $0x18] sm:$0xff] %vm1463, %v4609
        %4632 = vst.msk [vmem:[#allocation5 + $0x30] sm:$0xff] %vm1463, %v4611
        %4633 = vst.msk [vmem:[#allocation5 + $0x48] sm:$0xff] %vm1463, %v4613
        %4634 = vst.msk [vmem:[#allocation5 + $0x60] sm:$0xff] %vm1463, %v4615
        %4635 = vst.msk [vmem:[#allocation5 + $0x78] sm:$0xff] %vm1463, %v4617
        %4636 = vst.msk [vmem:[#allocation5 + $0x90] sm:$0xff] %vm1463, %v4619
        %4637 = vst.msk [vmem:[#allocation5 + $0xa8] sm:$0xff] %vm1463, %v4621
        %v4638 = vld [vmem:[#allocation2 + $0x10] sm:$0xff]
        %v4639 = vld [vmem:[#allocation2 + $0x18] sm:$0xff]
        %v4640 = vld [vmem:[#allocation2 + $0x20] sm:$0xff]
        %v4641 = vld [vmem:[#allocation2 + $0x28] sm:$0xff]
        %v4642 = vld [vmem:[#allocation2 + $0x30] sm:$0xff]
        %v4643 = vld [vmem:[#allocation2 + $0x38] sm:$0xff]
        %v4644 = vld [vmem:[#allocation2 + $0x40] sm:$0xff]
        %v4645 = vld [vmem:[#allocation2 + $0x48] sm:$0xff]
        %4646 = vst.msk [vmem:[#allocation5 + $0x8] sm:$0xff] %vm350, %v4638
        %4647 = vst.msk [vmem:[#allocation5 + $0x20] sm:$0xff] %vm350, %v4639
        %4648 = vst.msk [vmem:[#allocation5 + $0x38] sm:$0xff] %vm350, %v4640
        %4649 = vst.msk [vmem:[#allocation5 + $0x50] sm:$0xff] %vm350, %v4641
        %4650 = vst.msk [vmem:[#allocation5 + $0x68] sm:$0xff] %vm350, %v4642
        %4651 = vst.msk [vmem:[#allocation5 + $0x80] sm:$0xff] %vm350, %v4643
        %4652 = vst.msk [vmem:[#allocation5 + $0x98] sm:$0xff] %vm350, %v4644
        %4653 = vst.msk [vmem:[#allocation5 + $0xb0] sm:$0xff] %vm350, %v4645
        %v4654 = vld [vmem:[#allocation2 + $0x11] sm:$0xff]
        %v4655 = vld [vmem:[#allocation2 + $0x19] sm:$0xff]
        %v4656 = vld [vmem:[#allocation2 + $0x21] sm:$0xff]
        %v4657 = vld [vmem:[#allocation2 + $0x29] sm:$0xff]
        %v4658 = vld [vmem:[#allocation2 + $0x31] sm:$0xff]
        %v4659 = vld [vmem:[#allocation2 + $0x39] sm:$0xff]
        %v4660 = vld [vmem:[#allocation2 + $0x41] sm:$0xff]
        %v4661 = vld [vmem:[#allocation2 + $0x49] sm:$0xff]
        %v4662 = vld [vmem:[%s1496] sm:$0xff]
        %v4663 = vld [vmem:[%s1496 + $0x8] sm:$0xff]
        %v4664 = vld [vmem:[%s1496 + $0x10] sm:$0xff]
        %v4665 = vld [vmem:[%s1496 + $0x18] sm:$0xff]
        %v4666 = vld [vmem:[%s1496 + $0x20] sm:$0xff]
        %v4667 = vld [vmem:[%s1496 + $0x28] sm:$0xff]
        %v4668 = vld [vmem:[%s1496 + $0x30] sm:$0xff]
        %v4669 = vld [vmem:[%s1496 + $0x38] sm:$0xff]
        %v4670 = vmul.f32 %v4654, %v4662
        %v4671 = vmul.f32 %v4655, %v4663
        %v4672 = vmul.f32 %v4656, %v4664
        %v4673 = vmul.f32 %v4657, %v4665
        %v4674 = vmul.f32 %v4658, %v4666
        %v4675 = vmul.f32 %v4659, %v4667
        %v4676 = vmul.f32 %v4660, %v4668
        %v4677 = vmul.f32 %v4661, %v4669
        %4686 = vrot.lane.b32.xlu0 %v4670, 32
        %v4687 = vpop.permute.xlu0 %4686
        %4688 = vrot.lane.b32.xlu0 %v4671, 32
        %v4689 = vpop.permute.xlu0 %4688
        %4690 = vrot.lane.b32.xlu0 %v4672, 32
        %v4691 = vpop.permute.xlu0 %4690
        %4692 = vrot.lane.b32.xlu0 %v4673, 32
        %v4693 = vpop.permute.xlu0 %4692
        %4694 = vrot.lane.b32.xlu0 %v4674, 32
        %v4695 = vpop.permute.xlu0 %4694
        %4696 = vrot.lane.b32.xlu0 %v4675, 32
        %v4697 = vpop.permute.xlu0 %4696
        %4698 = vrot.lane.b32.xlu0 %v4676, 32
        %v4699 = vpop.permute.xlu0 %4698
        %4700 = vrot.lane.b32.xlu0 %v4677, 32
        %v4701 = vpop.permute.xlu0 %4700
        %4710 = vst.msk [vmem:[#allocation5 + $0x8] sm:$0xff] %vm1331, %v4687
        %4711 = vst.msk [vmem:[#allocation5 + $0x20] sm:$0xff] %vm1331, %v4689
        %4712 = vst.msk [vmem:[#allocation5 + $0x38] sm:$0xff] %vm1331, %v4691
        %4713 = vst.msk [vmem:[#allocation5 + $0x50] sm:$0xff] %vm1331, %v4693
        %4714 = vst.msk [vmem:[#allocation5 + $0x68] sm:$0xff] %vm1331, %v4695
        %4715 = vst.msk [vmem:[#allocation5 + $0x80] sm:$0xff] %vm1331, %v4697
        %4716 = vst.msk [vmem:[#allocation5 + $0x98] sm:$0xff] %vm1331, %v4699
        %4717 = vst.msk [vmem:[#allocation5 + $0xb0] sm:$0xff] %vm1331, %v4701
        %v4718 = vld [vmem:[#allocation2 + $0x17] sm:$0xff]
        %v4719 = vld [vmem:[#allocation2 + $0x1f] sm:$0xff]
        %v4720 = vld [vmem:[#allocation2 + $0x27] sm:$0xff]
        %v4721 = vld [vmem:[#allocation2 + $0x2f] sm:$0xff]
        %v4722 = vld [vmem:[#allocation2 + $0x37] sm:$0xff]
        %v4723 = vld [vmem:[#allocation2 + $0x3f] sm:$0xff]
        %v4724 = vld [vmem:[#allocation2 + $0x47] sm:$0xff]
        %v4725 = vld [vmem:[#allocation2 + $0x4f] sm:$0xff]
        %v4726 = vld [vmem:[%s1561] sm:$0xff]
        %v4727 = vld [vmem:[%s1561 + $0x8] sm:$0xff]
        %v4728 = vld [vmem:[%s1561 + $0x10] sm:$0xff]
        %v4729 = vld [vmem:[%s1561 + $0x18] sm:$0xff]
        %v4730 = vld [vmem:[%s1561 + $0x20] sm:$0xff]
        %v4731 = vld [vmem:[%s1561 + $0x28] sm:$0xff]
        %v4732 = vld [vmem:[%s1561 + $0x30] sm:$0xff]
        %v4733 = vld [vmem:[%s1561 + $0x38] sm:$0xff]
        %v4734 = vmul.f32 %v4718, %v4726
        %v4735 = vmul.f32 %v4719, %v4727
        %v4736 = vmul.f32 %v4720, %v4728
        %v4737 = vmul.f32 %v4721, %v4729
        %v4738 = vmul.f32 %v4722, %v4730
        %v4739 = vmul.f32 %v4723, %v4731
        %v4740 = vmul.f32 %v4724, %v4732
        %v4741 = vmul.f32 %v4725, %v4733
        %4750 = vrot.lane.b32.xlu0 %v4734, 64
        %v4751 = vpop.permute.xlu0 %4750
        %4752 = vrot.lane.b32.xlu0 %v4735, 64
        %v4753 = vpop.permute.xlu0 %4752
        %4754 = vrot.lane.b32.xlu0 %v4736, 64
        %v4755 = vpop.permute.xlu0 %4754
        %4756 = vrot.lane.b32.xlu0 %v4737, 64
        %v4757 = vpop.permute.xlu0 %4756
        %4758 = vrot.lane.b32.xlu0 %v4738, 64
        %v4759 = vpop.permute.xlu0 %4758
        %4760 = vrot.lane.b32.xlu0 %v4739, 64
        %v4761 = vpop.permute.xlu0 %4760
        %4762 = vrot.lane.b32.xlu0 %v4740, 64
        %v4763 = vpop.permute.xlu0 %4762
        %4764 = vrot.lane.b32.xlu0 %v4741, 64
        %v4765 = vpop.permute.xlu0 %4764
        %4774 = vst.msk [vmem:[#allocation5 + $0x8] sm:$0xff] %vm1397, %v4751
        %4775 = vst.msk [vmem:[#allocation5 + $0x20] sm:$0xff] %vm1397, %v4753
        %4776 = vst.msk [vmem:[#allocation5 + $0x38] sm:$0xff] %vm1397, %v4755
        %4777 = vst.msk [vmem:[#allocation5 + $0x50] sm:$0xff] %vm1397, %v4757
        %4778 = vst.msk [vmem:[#allocation5 + $0x68] sm:$0xff] %vm1397, %v4759
        %4779 = vst.msk [vmem:[#allocation5 + $0x80] sm:$0xff] %vm1397, %v4761
        %4780 = vst.msk [vmem:[#allocation5 + $0x98] sm:$0xff] %vm1397, %v4763
        %4781 = vst.msk [vmem:[#allocation5 + $0xb0] sm:$0xff] %vm1397, %v4765
        %v4782 = vld [vmem:[#allocation2 + $0x18] sm:$0xff]
        %v4783 = vld [vmem:[#allocation2 + $0x20] sm:$0xff]
        %v4784 = vld [vmem:[#allocation2 + $0x28] sm:$0xff]
        %v4785 = vld [vmem:[#allocation2 + $0x30] sm:$0xff]
        %v4786 = vld [vmem:[#allocation2 + $0x38] sm:$0xff]
        %v4787 = vld [vmem:[#allocation2 + $0x40] sm:$0xff]
        %v4788 = vld [vmem:[#allocation2 + $0x48] sm:$0xff]
        %v4789 = vld [vmem:[#allocation2 + $0x50] sm:$0xff]
        %v4790 = vld [vmem:[%s1626] sm:$0xff]
        %v4791 = vld [vmem:[%s1626 + $0x8] sm:$0xff]
        %v4792 = vld [vmem:[%s1626 + $0x10] sm:$0xff]
        %v4793 = vld [vmem:[%s1626 + $0x18] sm:$0xff]
        %v4794 = vld [vmem:[%s1626 + $0x20] sm:$0xff]
        %v4795 = vld [vmem:[%s1626 + $0x28] sm:$0xff]
        %v4796 = vld [vmem:[%s1626 + $0x30] sm:$0xff]
        %v4797 = vld [vmem:[%s1626 + $0x38] sm:$0xff]
        %v4798 = vmul.f32 %v4782, %v4790
        %v4799 = vmul.f32 %v4783, %v4791
        %v4800 = vmul.f32 %v4784, %v4792
        %v4801 = vmul.f32 %v4785, %v4793
        %v4802 = vmul.f32 %v4786, %v4794
        %v4803 = vmul.f32 %v4787, %v4795
        %v4804 = vmul.f32 %v4788, %v4796
        %v4805 = vmul.f32 %v4789, %v4797
        %4814 = vrot.lane.b32.xlu0 %v4798, 96
        %v4815 = vpop.permute.xlu0 %4814
        %4816 = vrot.lane.b32.xlu0 %v4799, 96
        %v4817 = vpop.permute.xlu0 %4816
        %4818 = vrot.lane.b32.xlu0 %v4800, 96
        %v4819 = vpop.permute.xlu0 %4818
        %4820 = vrot.lane.b32.xlu0 %v4801, 96
        %v4821 = vpop.permute.xlu0 %4820
        %4822 = vrot.lane.b32.xlu0 %v4802, 96
        %v4823 = vpop.permute.xlu0 %4822
        %4824 = vrot.lane.b32.xlu0 %v4803, 96
        %v4825 = vpop.permute.xlu0 %4824
        %4826 = vrot.lane.b32.xlu0 %v4804, 96
        %v4827 = vpop.permute.xlu0 %4826
        %4828 = vrot.lane.b32.xlu0 %v4805, 96
        %v4829 = vpop.permute.xlu0 %4828
        %4838 = vst.msk [vmem:[#allocation5 + $0x8] sm:$0xff] %vm1463, %v4815
        %4839 = vst.msk [vmem:[#allocation5 + $0x20] sm:$0xff] %vm1463, %v4817
        %4840 = vst.msk [vmem:[#allocation5 + $0x38] sm:$0xff] %vm1463, %v4819
        %4841 = vst.msk [vmem:[#allocation5 + $0x50] sm:$0xff] %vm1463, %v4821
        %4842 = vst.msk [vmem:[#allocation5 + $0x68] sm:$0xff] %vm1463, %v4823
        %4843 = vst.msk [vmem:[#allocation5 + $0x80] sm:$0xff] %vm1463, %v4825
        %4844 = vst.msk [vmem:[#allocation5 + $0x98] sm:$0xff] %vm1463, %v4827
        %4845 = vst.msk [vmem:[#allocation5 + $0xb0] sm:$0xff] %vm1463, %v4829
        %v4846 = vld [vmem:[#allocation2 + $0x19] sm:$0xff]
        %v4847 = vld [vmem:[#allocation2 + $0x21] sm:$0xff]
        %v4848 = vld [vmem:[#allocation2 + $0x29] sm:$0xff]
        %v4849 = vld [vmem:[#allocation2 + $0x31] sm:$0xff]
        %v4850 = vld [vmem:[#allocation2 + $0x39] sm:$0xff]
        %v4851 = vld [vmem:[#allocation2 + $0x41] sm:$0xff]
        %v4852 = vld [vmem:[#allocation2 + $0x49] sm:$0xff]
        %v4853 = vld [vmem:[#allocation2 + $0x51] sm:$0xff]
        %v4854 = vld [vmem:[%s1691] sm:$0xff]
        %v4855 = vld [vmem:[%s1691 + $0x8] sm:$0xff]
        %v4856 = vld [vmem:[%s1691 + $0x10] sm:$0xff]
        %v4857 = vld [vmem:[%s1691 + $0x18] sm:$0xff]
        %v4858 = vld [vmem:[%s1691 + $0x20] sm:$0xff]
        %v4859 = vld [vmem:[%s1691 + $0x28] sm:$0xff]
        %v4860 = vld [vmem:[%s1691 + $0x30] sm:$0xff]
        %v4861 = vld [vmem:[%s1691 + $0x38] sm:$0xff]
        %v4862 = vmul.f32 %v4846, %v4854
        %v4863 = vmul.f32 %v4847, %v4855
        %v4864 = vmul.f32 %v4848, %v4856
        %v4865 = vmul.f32 %v4849, %v4857
        %v4866 = vmul.f32 %v4850, %v4858
        %v4867 = vmul.f32 %v4851, %v4859
        %v4868 = vmul.f32 %v4852, %v4860
        %v4869 = vmul.f32 %v4853, %v4861
        %4870 = vst.msk [vmem:[#allocation5 + $0x10] sm:$0xff] %vm350, %v4862
        %4871 = vst.msk [vmem:[#allocation5 + $0x28] sm:$0xff] %vm350, %v4863
        %4872 = vst.msk [vmem:[#allocation5 + $0x40] sm:$0xff] %vm350, %v4864
        %4873 = vst.msk [vmem:[#allocation5 + $0x58] sm:$0xff] %vm350, %v4865
        %4874 = vst.msk [vmem:[#allocation5 + $0x70] sm:$0xff] %vm350, %v4866
        %4875 = vst.msk [vmem:[#allocation5 + $0x88] sm:$0xff] %vm350, %v4867
        %4876 = vst.msk [vmem:[#allocation5 + $0xa0] sm:$0xff] %vm350, %v4868
        %4877 = vst.msk [vmem:[#allocation5 + $0xb8] sm:$0xff] %vm350, %v4869
        %v4878 = vld [vmem:[#allocation5] sm:$0xff]
        %v4879 = vld [vmem:[#allocation5 + $0x8] sm:$0xff]
        %v4880 = vld [vmem:[#allocation5 + $0x10] sm:$0xff]
        %v4881 = vld [vmem:[#allocation5 + $0x18] sm:$0xff]
        %v4882 = vld [vmem:[#allocation5 + $0x20] sm:$0xff]
        %v4883 = vld [vmem:[#allocation5 + $0x28] sm:$0xff]
        %v4884 = vld [vmem:[#allocation5 + $0x30] sm:$0xff]
        %v4885 = vld [vmem:[#allocation5 + $0x38] sm:$0xff]
        %v4886 = vld [vmem:[#allocation5 + $0x40] sm:$0xff]
        %v4887 = vld [vmem:[#allocation5 + $0x48] sm:$0xff]
        %v4888 = vld [vmem:[#allocation5 + $0x50] sm:$0xff]
        %v4889 = vld [vmem:[#allocation5 + $0x58] sm:$0xff]
        %v4890 = vld [vmem:[#allocation5 + $0x60] sm:$0xff]
        %v4891 = vld [vmem:[#allocation5 + $0x68] sm:$0xff]
        %v4892 = vld [vmem:[#allocation5 + $0x70] sm:$0xff]
        %v4893 = vld [vmem:[#allocation5 + $0x78] sm:$0xff]
        %v4894 = vld [vmem:[#allocation5 + $0x80] sm:$0xff]
        %v4895 = vld [vmem:[#allocation5 + $0x88] sm:$0xff]
        %v4896 = vld [vmem:[#allocation5 + $0x90] sm:$0xff]
        %v4897 = vld [vmem:[#allocation5 + $0x98] sm:$0xff]
        %v4898 = vld [vmem:[#allocation5 + $0xa0] sm:$0xff]
        %v4899 = vld [vmem:[#allocation5 + $0xa8] sm:$0xff]
        %v4900 = vld [vmem:[#allocation5 + $0xb0] sm:$0xff]
        %v4901 = vld [vmem:[#allocation5 + $0xb8] sm:$0xff]
        %s4902 = scalar_lea.vmem [#allocation7], 1152
        %v4903 = vld [vmem:[%s4902] sm:$0xff]
        %v4904 = vld [vmem:[%s4902 + $0x8] sm:$0xff]
        %v4905 = vld [vmem:[%s4902 + $0x10] sm:$0xff]
        %v4906 = vld [vmem:[%s4902 + $0x18] sm:$0xff]
        %v4907 = vld [vmem:[%s4902 + $0x20] sm:$0xff]
        %v4908 = vld [vmem:[%s4902 + $0x28] sm:$0xff]
        %v4909 = vld [vmem:[%s4902 + $0x30] sm:$0xff]
        %v4910 = vld [vmem:[%s4902 + $0x38] sm:$0xff]
        %v4911 = vld [vmem:[%s4902 + $0x40] sm:$0xff]
        %v4912 = vld [vmem:[%s4902 + $0x48] sm:$0xff]
        %v4913 = vld [vmem:[%s4902 + $0x50] sm:$0xff]
        %v4914 = vld [vmem:[%s4902 + $0x58] sm:$0xff]
        %v4915 = vld [vmem:[%s4902 + $0x60] sm:$0xff]
        %v4916 = vld [vmem:[%s4902 + $0x68] sm:$0xff]
        %v4917 = vld [vmem:[%s4902 + $0x70] sm:$0xff]
        %v4918 = vld [vmem:[%s4902 + $0x78] sm:$0xff]
        %v4919 = vld [vmem:[%s4902 + $0x80] sm:$0xff]
        %v4920 = vld [vmem:[%s4902 + $0x88] sm:$0xff]
        %v4921 = vld [vmem:[%s4902 + $0x90] sm:$0xff]
        %v4922 = vld [vmem:[%s4902 + $0x98] sm:$0xff]
        %v4923 = vld [vmem:[%s4902 + $0xa0] sm:$0xff]
        %v4924 = vld [vmem:[%s4902 + $0xa8] sm:$0xff]
        %v4925 = vld [vmem:[%s4902 + $0xb0] sm:$0xff]
        %v4926 = vld [vmem:[%s4902 + $0xb8] sm:$0xff]
        %v4927 = vld [vmem:[%s4902 + $0xc0] sm:$0xff]
        %v4928 = vld [vmem:[%s4902 + $0xc8] sm:$0xff]
        %v4929 = vld [vmem:[%s4902 + $0xd0] sm:$0xff]
        %v4930 = vld [vmem:[%s4902 + $0xd8] sm:$0xff]
        %v4931 = vld [vmem:[%s4902 + $0xe0] sm:$0xff]
        %v4932 = vld [vmem:[%s4902 + $0xe8] sm:$0xff]
        %v4933 = vld [vmem:[%s4902 + $0xf0] sm:$0xff]
        %v4934 = vld [vmem:[%s4902 + $0xf8] sm:$0xff]
        %v4935 = vld [vmem:[%s4902 + $0x100] sm:$0xff]
        %v4936 = vld [vmem:[%s4902 + $0x108] sm:$0xff]
        %v4937 = vld [vmem:[%s4902 + $0x110] sm:$0xff]
        %v4938 = vld [vmem:[%s4902 + $0x118] sm:$0xff]
        %s4939 = scalar_lea.vmem %s6, 4
        %v4940 = vld [vmem:[%s4939] sm:$0x1]
        %v4942 = vlaneseq
        %v4943 = vshrl.u32 %v4942, 7
        %v4944 = vsub.s32 0, %v4943
        %v4945 = vrot.slane %v4940, %v4944
        %v4948 = vsel %vm350, %v4880, 0
        %v4951 = vsel %vm350, %v4883, 0
        %v4954 = vsel %vm350, %v4886, 0
        %v4957 = vsel %vm350, %v4889, 0
        %v4960 = vsel %vm350, %v4892, 0
        %v4963 = vsel %vm350, %v4895, 0
        %v4966 = vsel %vm350, %v4898, 0
        %v4969 = vsel %vm350, %v4901, 0
        %4971 = vmatprep.subr.mxu0 0.0
        %4972 = vmatpush1.msra.mxu0 %v4903
        %4973 = vmatprep.subr.mxu0 0.0
        %4974 = vmatpush1.msra.mxu0 %v4904
        %4975 = vmatprep.subr.mxu0 0.0
        %4976 = vmatpush1.msra.mxu0 %v4905
        %4977 = vmatprep.subr.mxu0 0.0
        %4978 = vmatpush1.msra.mxu0 %v4906
        %4979 = vmatprep.subr.mxu0 0.0
        %4980 = vmatpush1.msra.mxu0 %v4907
        %4981 = vmatprep.subr.mxu0 0.0
        %4982 = vmatpush1.msra.mxu0 %v4908
        %4983 = vmatprep.subr.mxu0 0.0
        %4984 = vmatpush1.msra.mxu0 %v4909
        %4985 = vmatprep.subr.mxu0 0.0
        %4986 = vmatpush1.msra.mxu0 %v4910
        %4987 = vmatprep.subr.mxu0 0.0
        %4988 = vmatpush1.msra.mxu0 %v4911
        %4989 = vmatprep.subr.mxu0 0.0
        %4990 = vmatpush1.msra.mxu0 %v4912
        %4991 = vmatprep.subr.mxu0 0.0
        %4992 = vmatpush1.msra.mxu0 %v4913
        %4993 = vmatprep.subr.mxu0 0.0
        %4994 = vmatpush1.msra.mxu0 %v4914
        %4995 = vmatprep.subr.mxu0 0.0
        %4996 = vmatpush1.msra.mxu0 %v4915
        %4997 = vmatprep.subr.mxu0 0.0
        %4998 = vmatpush1.msra.mxu0 %v4916
        %4999 = vmatprep.subr.mxu0 0.0
        %5000 = vmatpush1.msra.mxu0 %v4917
        %5001 = vmatprep.subr.mxu0 0.0
        %5002 = vmatpush1.msra.mxu0 %v4918
        %5003 = vmatprep.subr.mxu0 0.0
        %5004 = vmatpush1.msra.mxu0 %v4919
        %5005 = vmatprep.subr.mxu0 0.0
        %5006 = vmatpush1.msra.mxu0 %v4920
        %5007 = vmatprep.subr.mxu0 0.0
        %5008 = vmatpush1.msra.mxu0 %v4921
        %5009 = vmatprep.subr.mxu0 0.0
        %5010 = vmatpush1.msra.mxu0 %v4922
        %5011 = vmatprep.subr.mxu0 0.0
        %5012 = vmatpush1.msra.mxu0 %v4923
        %5013 = vmatprep.subr.mxu0 0.0
        %5014 = vmatpush1.msra.mxu0 %v4924
        %5015 = vmatprep.subr.mxu0 0.0
        %5016 = vmatpush1.msra.mxu0 %v4925
        %5017 = vmatprep.subr.mxu0 0.0
        %5018 = vmatpush1.msra.mxu0 %v4926
        %5019 = vmatprep.subr.mxu0 0.0
        %5020 = vmatpush1.msra.mxu0 %v4927
        %5021 = vmatprep.subr.mxu0 0.0
        %5022 = vmatpush1.msra.mxu0 %v4928
        %5023 = vmatprep.subr.mxu0 0.0
        %5024 = vmatpush1.msra.mxu0 %v4929
        %5025 = vmatprep.subr.mxu0 0.0
        %5026 = vmatpush1.msra.mxu0 %v4930
        %5027 = vmatprep.subr.mxu0 0.0
        %5028 = vmatpush1.msra.mxu0 %v4931
        %5029 = vmatprep.subr.mxu0 0.0
        %5030 = vmatpush1.msra.mxu0 %v4932
        %5031 = vmatprep.subr.mxu0 0.0
        %5032 = vmatpush1.msra.mxu0 %v4933
        %5033 = vmatprep.subr.mxu0 0.0
        %5034 = vmatpush1.msra.mxu0 %v4934
        %5035 = vmatprep.mubr.f32.mxu0 %v4879
        %5036 = vmatmul.mubr.f32.gmra.mrb[0].mxu0 %v4878
        %v5037 = vpop.f32.mrb[0].mxu0
        %v5038 = vadd.f32 %v4945, %v5037
        %v5039 = vpop.f32.mrb[0].mxu0
        %5040 = vmatprep.mubr.f32.mxu0 %v4882
        %5041 = vmatmul.mubr.f32.gmra.mrb[0].mxu0 %v4881
        %v5042 = vpop.f32.mrb[0].mxu0
        %v5043 = vadd.f32 %v4945, %v5042
        %v5044 = vpop.f32.mrb[0].mxu0
        %5045 = vmatprep.mubr.f32.mxu0 %v4885
        %5046 = vmatmul.mubr.f32.gmra.mrb[0].mxu0 %v4884
        %v5047 = vpop.f32.mrb[0].mxu0
        %v5048 = vadd.f32 %v4945, %v5047
        %v5049 = vpop.f32.mrb[0].mxu0
        %5050 = vmatprep.mubr.f32.mxu0 %v4888
        %5051 = vmatmul.mubr.f32.gmra.mrb[0].mxu0 %v4887
        %v5052 = vpop.f32.mrb[0].mxu0
        %v5053 = vadd.f32 %v4945, %v5052
        %v5054 = vpop.f32.mrb[0].mxu0
        %5055 = vmatprep.mubr.f32.mxu0 %v4891
        %5056 = vmatmul.mubr.f32.gmra.mrb[0].mxu0 %v4890
        %v5057 = vpop.f32.mrb[0].mxu0
        %v5058 = vadd.f32 %v4945, %v5057
        %v5059 = vpop.f32.mrb[0].mxu0
        %5060 = vmatprep.mubr.f32.mxu0 %v4894
        %5061 = vmatmul.mubr.f32.gmra.mrb[0].mxu0 %v4893
        %v5062 = vpop.f32.mrb[0].mxu0
        %v5063 = vadd.f32 %v4945, %v5062
        %v5064 = vpop.f32.mrb[0].mxu0
        %5065 = vmatprep.mubr.f32.mxu0 %v4897
        %5066 = vmatmul.mubr.f32.gmra.mrb[0].mxu0 %v4896
        %v5067 = vpop.f32.mrb[0].mxu0
        %v5068 = vadd.f32 %v4945, %v5067
        %v5069 = vpop.f32.mrb[0].mxu0
        %5070 = vmatprep.mubr.f32.mxu0 %v4900
        %5071 = vmatmul.mubr.f32.gmra.mrb[0].mxu0 %v4899
        %v5072 = vpop.f32.mrb[0].mxu0
        %v5073 = vadd.f32 %v4945, %v5072
        %v5074 = vpop.f32.mrb[0].mxu0
        %5075 = vdwg.mxu0
        %5076 = vmatprep.subr.mxu0 0.0
        %5077 = vmatpush1.msra.mxu0 %v4935
        %5078 = vmatprep.subr.mxu0 0.0
        %5079 = vmatpush1.msra.mxu0 %v4936
        %5080 = vmatprep.subr.mxu0 0.0
        %5081 = vmatpush1.msra.mxu0 %v4937
        %5082 = vmatprep.subr.mxu0 0.0
        %5083 = vmatpush1.msra.mxu0 %v4938
        %5084 = vmatprep.subr.mxu0 0.0
        %5085 = vmatpush1.msra.mxu0 0.0
        %5086 = vmatprep.subr.mxu0 0.0
        %5087 = vmatpush1.msra.mxu0 0.0
        %5088 = vmatprep.subr.mxu0 0.0
        %5089 = vmatpush1.msra.mxu0 0.0
        %5090 = vmatprep.subr.mxu0 0.0
        %5091 = vmatpush1.msra.mxu0 0.0
        %5092 = vmatprep.subr.mxu0 0.0
        %5093 = vmatpush1.msra.mxu0 0.0
        %5094 = vmatprep.subr.mxu0 0.0
        %5095 = vmatpush1.msra.mxu0 0.0
        %5096 = vmatprep.subr.mxu0 0.0
        %5097 = vmatpush1.msra.mxu0 0.0
        %5098 = vmatprep.subr.mxu0 0.0
        %5099 = vmatpush1.msra.mxu0 0.0
        %5100 = vmatprep.subr.mxu0 0.0
        %5101 = vmatpush1.msra.mxu0 0.0
        %5102 = vmatprep.subr.mxu0 0.0
        %5103 = vmatpush1.msra.mxu0 0.0
        %5104 = vmatprep.subr.mxu0 0.0
        %5105 = vmatpush1.msra.mxu0 0.0
        %5106 = vmatprep.subr.mxu0 0.0
        %5107 = vmatpush1.msra.mxu0 0.0
        %5108 = vmatprep.subr.mxu0 0.0
        %5109 = vmatpush1.msra.mxu0 0.0
        %5110 = vmatprep.subr.mxu0 0.0
        %5111 = vmatpush1.msra.mxu0 0.0
        %5112 = vmatprep.subr.mxu0 0.0
        %5113 = vmatpush1.msra.mxu0 0.0
        %5114 = vmatprep.subr.mxu0 0.0
        %5115 = vmatpush1.msra.mxu0 0.0
        %5116 = vmatprep.subr.mxu0 0.0
        %5117 = vmatpush1.msra.mxu0 0.0
        %5118 = vmatprep.subr.mxu0 0.0
        %5119 = vmatpush1.msra.mxu0 0.0
        %5120 = vmatprep.subr.mxu0 0.0
        %5121 = vmatpush1.msra.mxu0 0.0
        %5122 = vmatprep.subr.mxu0 0.0
        %5123 = vmatpush1.msra.mxu0 0.0
        %5124 = vmatprep.subr.mxu0 0.0
        %5125 = vmatpush1.msra.mxu0 0.0
        %5126 = vmatprep.subr.mxu0 0.0
        %5127 = vmatpush1.msra.mxu0 0.0
        %5128 = vmatprep.subr.mxu0 0.0
        %5129 = vmatpush1.msra.mxu0 0.0
        %5130 = vmatprep.subr.mxu0 0.0
        %5131 = vmatpush1.msra.mxu0 0.0
        %5132 = vmatprep.subr.mxu0 0.0
        %5133 = vmatpush1.msra.mxu0 0.0
        %5134 = vmatprep.subr.mxu0 0.0
        %5135 = vmatpush1.msra.mxu0 0.0
        %5136 = vmatprep.subr.mxu0 0.0
        %5137 = vmatpush1.msra.mxu0 0.0
        %5138 = vmatprep.subr.mxu0 0.0
        %5139 = vmatpush1.msra.mxu0 0.0
        %5140 = vmatprep.mubr.f32.mxu0 0.0
        %5141 = vmatmul.mubr.f32.gmra.mrb[0].mxu0 %v4948
        %v5142 = vpop.f32.mrb[0].mxu0
        %v5143 = vadd.f32 %v5038, %v5142
        %v5144 = vpop.f32.mrb[0].mxu0
        %5145 = vmatprep.mubr.f32.mxu0 0.0
        %5146 = vmatmul.mubr.f32.gmra.mrb[0].mxu0 %v4951
        %v5147 = vpop.f32.mrb[0].mxu0
        %v5148 = vadd.f32 %v5043, %v5147
        %v5149 = vpop.f32.mrb[0].mxu0
        %5150 = vmatprep.mubr.f32.mxu0 0.0
        %5151 = vmatmul.mubr.f32.gmra.mrb[0].mxu0 %v4954
        %v5152 = vpop.f32.mrb[0].mxu0
        %v5153 = vadd.f32 %v5048, %v5152
        %v5154 = vpop.f32.mrb[0].mxu0
        %5155 = vmatprep.mubr.f32.mxu0 0.0
        %5156 = vmatmul.mubr.f32.gmra.mrb[0].mxu0 %v4957
        %v5157 = vpop.f32.mrb[0].mxu0
        %v5158 = vadd.f32 %v5053, %v5157
        %v5159 = vpop.f32.mrb[0].mxu0
        %5160 = vmatprep.mubr.f32.mxu0 0.0
        %5161 = vmatmul.mubr.f32.gmra.mrb[0].mxu0 %v4960
        %v5162 = vpop.f32.mrb[0].mxu0
        %v5163 = vadd.f32 %v5058, %v5162
        %v5164 = vpop.f32.mrb[0].mxu0
        %5165 = vmatprep.mubr.f32.mxu0 0.0
        %5166 = vmatmul.mubr.f32.gmra.mrb[0].mxu0 %v4963
        %v5167 = vpop.f32.mrb[0].mxu0
        %v5168 = vadd.f32 %v5063, %v5167
        %v5169 = vpop.f32.mrb[0].mxu0
        %5170 = vmatprep.mubr.f32.mxu0 0.0
        %5171 = vmatmul.mubr.f32.gmra.mrb[0].mxu0 %v4966
        %v5172 = vpop.f32.mrb[0].mxu0
        %v5173 = vadd.f32 %v5068, %v5172
        %v5174 = vpop.f32.mrb[0].mxu0
        %5175 = vmatprep.mubr.f32.mxu0 0.0
        %5176 = vmatmul.mubr.f32.gmra.mrb[0].mxu0 %v4969
        %v5177 = vpop.f32.mrb[0].mxu0
        %v5178 = vadd.f32 %v5073, %v5177
        %v5179 = vpop.f32.mrb[0].mxu0
        %5180 = vdwg.mxu0
        %v5181 = vmax.f32 %v5143, 0.0
        %v5182 = vmax.f32 %v5148, 0.0
        %v5183 = vmax.f32 %v5153, 0.0
        %v5184 = vmax.f32 %v5158, 0.0
        %v5185 = vmax.f32 %v5163, 0.0
        %v5186 = vmax.f32 %v5168, 0.0
        %v5187 = vmax.f32 %v5173, 0.0
        %v5188 = vmax.f32 %v5178, 0.0
        %5189 = vst.msk [vmem:[#allocation3 + $0x10] sm:$0xff] %vm350, %v5181
        %5190 = vst.msk [vmem:[#allocation3 + $0x18] sm:$0xff] %vm350, %v5182
        %5191 = vst.msk [vmem:[#allocation3 + $0x20] sm:$0xff] %vm350, %v5183
        %5192 = vst.msk [vmem:[#allocation3 + $0x28] sm:$0xff] %vm350, %v5184
        %5193 = vst.msk [vmem:[#allocation3 + $0x30] sm:$0xff] %vm350, %v5185
        %5194 = vst.msk [vmem:[#allocation3 + $0x38] sm:$0xff] %vm350, %v5186
        %5195 = vst.msk [vmem:[#allocation3 + $0x40] sm:$0xff] %vm350, %v5187
        %5196 = vst.msk [vmem:[#allocation3 + $0x48] sm:$0xff] %vm350, %v5188
        %v5197 = vld [vmem:[#allocation3 + $0x7] sm:$0xff]
        %v5198 = vld [vmem:[#allocation3 + $0xf] sm:$0xff]
        %v5199 = vld [vmem:[#allocation3 + $0x17] sm:$0xff]
        %v5200 = vld [vmem:[#allocation3 + $0x1f] sm:$0xff]
        %v5201 = vld [vmem:[#allocation3 + $0x27] sm:$0xff]
        %v5202 = vld [vmem:[#allocation3 + $0x2f] sm:$0xff]
        %v5203 = vld [vmem:[#allocation3 + $0x37] sm:$0xff]
        %v5204 = vld [vmem:[#allocation3 + $0x3f] sm:$0xff]
        %v5205 = vld [vmem:[%s2] sm:$0xff]
        %v5206 = vld [vmem:[%s2 + $0x8] sm:$0xff]
        %v5207 = vld [vmem:[%s2 + $0x10] sm:$0xff]
        %v5208 = vld [vmem:[%s2 + $0x18] sm:$0xff]
        %v5209 = vld [vmem:[%s2 + $0x20] sm:$0xff]
        %v5210 = vld [vmem:[%s2 + $0x28] sm:$0xff]
        %v5211 = vld [vmem:[%s2 + $0x30] sm:$0xff]
        %v5212 = vld [vmem:[%s2 + $0x38] sm:$0xff]
        %v5213 = vmul.f32 %v5197, %v5205
        %v5214 = vmul.f32 %v5198, %v5206
        %v5215 = vmul.f32 %v5199, %v5207
        %v5216 = vmul.f32 %v5200, %v5208
        %v5217 = vmul.f32 %v5201, %v5209
        %v5218 = vmul.f32 %v5202, %v5210
        %v5219 = vmul.f32 %v5203, %v5211
        %v5220 = vmul.f32 %v5204, %v5212
        %5221 = vst.msk [vmem:[#allocation5] sm:$0xff] %vm350, %v5213
        %5222 = vst.msk [vmem:[#allocation5 + $0x18] sm:$0xff] %vm350, %v5214
        %5223 = vst.msk [vmem:[#allocation5 + $0x30] sm:$0xff] %vm350, %v5215
        %5224 = vst.msk [vmem:[#allocation5 + $0x48] sm:$0xff] %vm350, %v5216
        %5225 = vst.msk [vmem:[#allocation5 + $0x60] sm:$0xff] %vm350, %v5217
        %5226 = vst.msk [vmem:[#allocation5 + $0x78] sm:$0xff] %vm350, %v5218
        %5227 = vst.msk [vmem:[#allocation5 + $0x90] sm:$0xff] %vm350, %v5219
        %5228 = vst.msk [vmem:[#allocation5 + $0xa8] sm:$0xff] %vm350, %v5220
        %v5229 = vld [vmem:[#allocation3 + $0x8] sm:$0xff]
        %v5230 = vld [vmem:[#allocation3 + $0x10] sm:$0xff]
        %v5231 = vld [vmem:[#allocation3 + $0x18] sm:$0xff]
        %v5232 = vld [vmem:[#allocation3 + $0x20] sm:$0xff]
        %v5233 = vld [vmem:[#allocation3 + $0x28] sm:$0xff]
        %v5234 = vld [vmem:[#allocation3 + $0x30] sm:$0xff]
        %v5235 = vld [vmem:[#allocation3 + $0x38] sm:$0xff]
        %v5236 = vld [vmem:[#allocation3 + $0x40] sm:$0xff]
        %v5237 = vld [vmem:[%s1282] sm:$0xff]
        %v5238 = vld [vmem:[%s1282 + $0x8] sm:$0xff]
        %v5239 = vld [vmem:[%s1282 + $0x10] sm:$0xff]
        %v5240 = vld [vmem:[%s1282 + $0x18] sm:$0xff]
        %v5241 = vld [vmem:[%s1282 + $0x20] sm:$0xff]
        %v5242 = vld [vmem:[%s1282 + $0x28] sm:$0xff]
        %v5243 = vld [vmem:[%s1282 + $0x30] sm:$0xff]
        %v5244 = vld [vmem:[%s1282 + $0x38] sm:$0xff]
        %v5245 = vmul.f32 %v5229, %v5237
        %v5246 = vmul.f32 %v5230, %v5238
        %v5247 = vmul.f32 %v5231, %v5239
        %v5248 = vmul.f32 %v5232, %v5240
        %v5249 = vmul.f32 %v5233, %v5241
        %v5250 = vmul.f32 %v5234, %v5242
        %v5251 = vmul.f32 %v5235, %v5243
        %v5252 = vmul.f32 %v5236, %v5244
        %5261 = vrot.lane.b32.xlu0 %v5245, 32
        %v5262 = vpop.permute.xlu0 %5261
        %5263 = vrot.lane.b32.xlu0 %v5246, 32
        %v5264 = vpop.permute.xlu0 %5263
        %5265 = vrot.lane.b32.xlu0 %v5247, 32
        %v5266 = vpop.permute.xlu0 %5265
        %5267 = vrot.lane.b32.xlu0 %v5248, 32
        %v5268 = vpop.permute.xlu0 %5267
        %5269 = vrot.lane.b32.xlu0 %v5249, 32
        %v5270 = vpop.permute.xlu0 %5269
        %5271 = vrot.lane.b32.xlu0 %v5250, 32
        %v5272 = vpop.permute.xlu0 %5271
        %5273 = vrot.lane.b32.xlu0 %v5251, 32
        %v5274 = vpop.permute.xlu0 %5273
        %5275 = vrot.lane.b32.xlu0 %v5252, 32
        %v5276 = vpop.permute.xlu0 %5275
        %5285 = vst.msk [vmem:[#allocation5] sm:$0xff] %vm1331, %v5262
        %5286 = vst.msk [vmem:[#allocation5 + $0x18] sm:$0xff] %vm1331, %v5264
        %5287 = vst.msk [vmem:[#allocation5 + $0x30] sm:$0xff] %vm1331, %v5266
        %5288 = vst.msk [vmem:[#allocation5 + $0x48] sm:$0xff] %vm1331, %v5268
        %5289 = vst.msk [vmem:[#allocation5 + $0x60] sm:$0xff] %vm1331, %v5270
        %5290 = vst.msk [vmem:[#allocation5 + $0x78] sm:$0xff] %vm1331, %v5272
        %5291 = vst.msk [vmem:[#allocation5 + $0x90] sm:$0xff] %vm1331, %v5274
        %5292 = vst.msk [vmem:[#allocation5 + $0xa8] sm:$0xff] %vm1331, %v5276
        %v5293 = vld [vmem:[#allocation3 + $0x9] sm:$0xff]
        %v5294 = vld [vmem:[#allocation3 + $0x11] sm:$0xff]
        %v5295 = vld [vmem:[#allocation3 + $0x19] sm:$0xff]
        %v5296 = vld [vmem:[#allocation3 + $0x21] sm:$0xff]
        %v5297 = vld [vmem:[#allocation3 + $0x29] sm:$0xff]
        %v5298 = vld [vmem:[#allocation3 + $0x31] sm:$0xff]
        %v5299 = vld [vmem:[#allocation3 + $0x39] sm:$0xff]
        %v5300 = vld [vmem:[#allocation3 + $0x41] sm:$0xff]
        %v5301 = vld [vmem:[%s1348] sm:$0xff]
        %v5302 = vld [vmem:[%s1348 + $0x8] sm:$0xff]
        %v5303 = vld [vmem:[%s1348 + $0x10] sm:$0xff]
        %v5304 = vld [vmem:[%s1348 + $0x18] sm:$0xff]
        %v5305 = vld [vmem:[%s1348 + $0x20] sm:$0xff]
        %v5306 = vld [vmem:[%s1348 + $0x28] sm:$0xff]
        %v5307 = vld [vmem:[%s1348 + $0x30] sm:$0xff]
        %v5308 = vld [vmem:[%s1348 + $0x38] sm:$0xff]
        %v5309 = vmul.f32 %v5293, %v5301
        %v5310 = vmul.f32 %v5294, %v5302
        %v5311 = vmul.f32 %v5295, %v5303
        %v5312 = vmul.f32 %v5296, %v5304
        %v5313 = vmul.f32 %v5297, %v5305
        %v5314 = vmul.f32 %v5298, %v5306
        %v5315 = vmul.f32 %v5299, %v5307
        %v5316 = vmul.f32 %v5300, %v5308
        %5325 = vrot.lane.b32.xlu0 %v5309, 64
        %v5326 = vpop.permute.xlu0 %5325
        %5327 = vrot.lane.b32.xlu0 %v5310, 64
        %v5328 = vpop.permute.xlu0 %5327
        %5329 = vrot.lane.b32.xlu0 %v5311, 64
        %v5330 = vpop.permute.xlu0 %5329
        %5331 = vrot.lane.b32.xlu0 %v5312, 64
        %v5332 = vpop.permute.xlu0 %5331
        %5333 = vrot.lane.b32.xlu0 %v5313, 64
        %v5334 = vpop.permute.xlu0 %5333
        %5335 = vrot.lane.b32.xlu0 %v5314, 64
        %v5336 = vpop.permute.xlu0 %5335
        %5337 = vrot.lane.b32.xlu0 %v5315, 64
        %v5338 = vpop.permute.xlu0 %5337
        %5339 = vrot.lane.b32.xlu0 %v5316, 64
        %v5340 = vpop.permute.xlu0 %5339
        %5349 = vst.msk [vmem:[#allocation5] sm:$0xff] %vm1397, %v5326
        %5350 = vst.msk [vmem:[#allocation5 + $0x18] sm:$0xff] %vm1397, %v5328
        %5351 = vst.msk [vmem:[#allocation5 + $0x30] sm:$0xff] %vm1397, %v5330
        %5352 = vst.msk [vmem:[#allocation5 + $0x48] sm:$0xff] %vm1397, %v5332
        %5353 = vst.msk [vmem:[#allocation5 + $0x60] sm:$0xff] %vm1397, %v5334
        %5354 = vst.msk [vmem:[#allocation5 + $0x78] sm:$0xff] %vm1397, %v5336
        %5355 = vst.msk [vmem:[#allocation5 + $0x90] sm:$0xff] %vm1397, %v5338
        %5356 = vst.msk [vmem:[#allocation5 + $0xa8] sm:$0xff] %vm1397, %v5340
        %v5357 = vld [vmem:[#allocation3 + $0xf] sm:$0xff]
        %v5358 = vld [vmem:[#allocation3 + $0x17] sm:$0xff]
        %v5359 = vld [vmem:[#allocation3 + $0x1f] sm:$0xff]
        %v5360 = vld [vmem:[#allocation3 + $0x27] sm:$0xff]
        %v5361 = vld [vmem:[#allocation3 + $0x2f] sm:$0xff]
        %v5362 = vld [vmem:[#allocation3 + $0x37] sm:$0xff]
        %v5363 = vld [vmem:[#allocation3 + $0x3f] sm:$0xff]
        %v5364 = vld [vmem:[#allocation3 + $0x47] sm:$0xff]
        %v5365 = vld [vmem:[%s1414] sm:$0xff]
        %v5366 = vld [vmem:[%s1414 + $0x8] sm:$0xff]
        %v5367 = vld [vmem:[%s1414 + $0x10] sm:$0xff]
        %v5368 = vld [vmem:[%s1414 + $0x18] sm:$0xff]
        %v5369 = vld [vmem:[%s1414 + $0x20] sm:$0xff]
        %v5370 = vld [vmem:[%s1414 + $0x28] sm:$0xff]
        %v5371 = vld [vmem:[%s1414 + $0x30] sm:$0xff]
        %v5372 = vld [vmem:[%s1414 + $0x38] sm:$0xff]
        %v5373 = vmul.f32 %v5357, %v5365
        %v5374 = vmul.f32 %v5358, %v5366
        %v5375 = vmul.f32 %v5359, %v5367
        %v5376 = vmul.f32 %v5360, %v5368
        %v5377 = vmul.f32 %v5361, %v5369
        %v5378 = vmul.f32 %v5362, %v5370
        %v5379 = vmul.f32 %v5363, %v5371
        %v5380 = vmul.f32 %v5364, %v5372
        %5389 = vrot.lane.b32.xlu0 %v5373, 96
        %v5390 = vpop.permute.xlu0 %5389
        %5391 = vrot.lane.b32.xlu0 %v5374, 96
        %v5392 = vpop.permute.xlu0 %5391
        %5393 = vrot.lane.b32.xlu0 %v5375, 96
        %v5394 = vpop.permute.xlu0 %5393
        %5395 = vrot.lane.b32.xlu0 %v5376, 96
        %v5396 = vpop.permute.xlu0 %5395
        %5397 = vrot.lane.b32.xlu0 %v5377, 96
        %v5398 = vpop.permute.xlu0 %5397
        %5399 = vrot.lane.b32.xlu0 %v5378, 96
        %v5400 = vpop.permute.xlu0 %5399
        %5401 = vrot.lane.b32.xlu0 %v5379, 96
        %v5402 = vpop.permute.xlu0 %5401
        %5403 = vrot.lane.b32.xlu0 %v5380, 96
        %v5404 = vpop.permute.xlu0 %5403
        %5413 = vst.msk [vmem:[#allocation5] sm:$0xff] %vm1463, %v5390
        %5414 = vst.msk [vmem:[#allocation5 + $0x18] sm:$0xff] %vm1463, %v5392
        %5415 = vst.msk [vmem:[#allocation5 + $0x30] sm:$0xff] %vm1463, %v5394
        %5416 = vst.msk [vmem:[#allocation5 + $0x48] sm:$0xff] %vm1463, %v5396
        %5417 = vst.msk [vmem:[#allocation5 + $0x60] sm:$0xff] %vm1463, %v5398
        %5418 = vst.msk [vmem:[#allocation5 + $0x78] sm:$0xff] %vm1463, %v5400
        %5419 = vst.msk [vmem:[#allocation5 + $0x90] sm:$0xff] %vm1463, %v5402
        %5420 = vst.msk [vmem:[#allocation5 + $0xa8] sm:$0xff] %vm1463, %v5404
        %v5421 = vld [vmem:[#allocation3 + $0x10] sm:$0xff]
        %v5422 = vld [vmem:[#allocation3 + $0x18] sm:$0xff]
        %v5423 = vld [vmem:[#allocation3 + $0x20] sm:$0xff]
        %v5424 = vld [vmem:[#allocation3 + $0x28] sm:$0xff]
        %v5425 = vld [vmem:[#allocation3 + $0x30] sm:$0xff]
        %v5426 = vld [vmem:[#allocation3 + $0x38] sm:$0xff]
        %v5427 = vld [vmem:[#allocation3 + $0x40] sm:$0xff]
        %v5428 = vld [vmem:[#allocation3 + $0x48] sm:$0xff]
        %5429 = vst.msk [vmem:[#allocation5 + $0x8] sm:$0xff] %vm350, %v5421
        %5430 = vst.msk [vmem:[#allocation5 + $0x20] sm:$0xff] %vm350, %v5422
        %5431 = vst.msk [vmem:[#allocation5 + $0x38] sm:$0xff] %vm350, %v5423
        %5432 = vst.msk [vmem:[#allocation5 + $0x50] sm:$0xff] %vm350, %v5424
        %5433 = vst.msk [vmem:[#allocation5 + $0x68] sm:$0xff] %vm350, %v5425
        %5434 = vst.msk [vmem:[#allocation5 + $0x80] sm:$0xff] %vm350, %v5426
        %5435 = vst.msk [vmem:[#allocation5 + $0x98] sm:$0xff] %vm350, %v5427
        %5436 = vst.msk [vmem:[#allocation5 + $0xb0] sm:$0xff] %vm350, %v5428
        %v5437 = vld [vmem:[#allocation3 + $0x11] sm:$0xff]
        %v5438 = vld [vmem:[#allocation3 + $0x19] sm:$0xff]
        %v5439 = vld [vmem:[#allocation3 + $0x21] sm:$0xff]
        %v5440 = vld [vmem:[#allocation3 + $0x29] sm:$0xff]
        %v5441 = vld [vmem:[#allocation3 + $0x31] sm:$0xff]
        %v5442 = vld [vmem:[#allocation3 + $0x39] sm:$0xff]
        %v5443 = vld [vmem:[#allocation3 + $0x41] sm:$0xff]
        %v5444 = vld [vmem:[#allocation3 + $0x49] sm:$0xff]
        %v5445 = vld [vmem:[%s1496] sm:$0xff]
        %v5446 = vld [vmem:[%s1496 + $0x8] sm:$0xff]
        %v5447 = vld [vmem:[%s1496 + $0x10] sm:$0xff]
        %v5448 = vld [vmem:[%s1496 + $0x18] sm:$0xff]
        %v5449 = vld [vmem:[%s1496 + $0x20] sm:$0xff]
        %v5450 = vld [vmem:[%s1496 + $0x28] sm:$0xff]
        %v5451 = vld [vmem:[%s1496 + $0x30] sm:$0xff]
        %v5452 = vld [vmem:[%s1496 + $0x38] sm:$0xff]
        %v5453 = vmul.f32 %v5437, %v5445
        %v5454 = vmul.f32 %v5438, %v5446
        %v5455 = vmul.f32 %v5439, %v5447
        %v5456 = vmul.f32 %v5440, %v5448
        %v5457 = vmul.f32 %v5441, %v5449
        %v5458 = vmul.f32 %v5442, %v5450
        %v5459 = vmul.f32 %v5443, %v5451
        %v5460 = vmul.f32 %v5444, %v5452
        %5469 = vrot.lane.b32.xlu0 %v5453, 32
        %v5470 = vpop.permute.xlu0 %5469
        %5471 = vrot.lane.b32.xlu0 %v5454, 32
        %v5472 = vpop.permute.xlu0 %5471
        %5473 = vrot.lane.b32.xlu0 %v5455, 32
        %v5474 = vpop.permute.xlu0 %5473
        %5475 = vrot.lane.b32.xlu0 %v5456, 32
        %v5476 = vpop.permute.xlu0 %5475
        %5477 = vrot.lane.b32.xlu0 %v5457, 32
        %v5478 = vpop.permute.xlu0 %5477
        %5479 = vrot.lane.b32.xlu0 %v5458, 32
        %v5480 = vpop.permute.xlu0 %5479
        %5481 = vrot.lane.b32.xlu0 %v5459, 32
        %v5482 = vpop.permute.xlu0 %5481
        %5483 = vrot.lane.b32.xlu0 %v5460, 32
        %v5484 = vpop.permute.xlu0 %5483
        %5493 = vst.msk [vmem:[#allocation5 + $0x8] sm:$0xff] %vm1331, %v5470
        %5494 = vst.msk [vmem:[#allocation5 + $0x20] sm:$0xff] %vm1331, %v5472
        %5495 = vst.msk [vmem:[#allocation5 + $0x38] sm:$0xff] %vm1331, %v5474
        %5496 = vst.msk [vmem:[#allocation5 + $0x50] sm:$0xff] %vm1331, %v5476
        %5497 = vst.msk [vmem:[#allocation5 + $0x68] sm:$0xff] %vm1331, %v5478
        %5498 = vst.msk [vmem:[#allocation5 + $0x80] sm:$0xff] %vm1331, %v5480
        %5499 = vst.msk [vmem:[#allocation5 + $0x98] sm:$0xff] %vm1331, %v5482
        %5500 = vst.msk [vmem:[#allocation5 + $0xb0] sm:$0xff] %vm1331, %v5484
        %v5501 = vld [vmem:[#allocation3 + $0x17] sm:$0xff]
        %v5502 = vld [vmem:[#allocation3 + $0x1f] sm:$0xff]
        %v5503 = vld [vmem:[#allocation3 + $0x27] sm:$0xff]
        %v5504 = vld [vmem:[#allocation3 + $0x2f] sm:$0xff]
        %v5505 = vld [vmem:[#allocation3 + $0x37] sm:$0xff]
        %v5506 = vld [vmem:[#allocation3 + $0x3f] sm:$0xff]
        %v5507 = vld [vmem:[#allocation3 + $0x47] sm:$0xff]
        %v5508 = vld [vmem:[#allocation3 + $0x4f] sm:$0xff]
        %v5509 = vld [vmem:[%s1561] sm:$0xff]
        %v5510 = vld [vmem:[%s1561 + $0x8] sm:$0xff]
        %v5511 = vld [vmem:[%s1561 + $0x10] sm:$0xff]
        %v5512 = vld [vmem:[%s1561 + $0x18] sm:$0xff]
        %v5513 = vld [vmem:[%s1561 + $0x20] sm:$0xff]
        %v5514 = vld [vmem:[%s1561 + $0x28] sm:$0xff]
        %v5515 = vld [vmem:[%s1561 + $0x30] sm:$0xff]
        %v5516 = vld [vmem:[%s1561 + $0x38] sm:$0xff]
        %v5517 = vmul.f32 %v5501, %v5509
        %v5518 = vmul.f32 %v5502, %v5510
        %v5519 = vmul.f32 %v5503, %v5511
        %v5520 = vmul.f32 %v5504, %v5512
        %v5521 = vmul.f32 %v5505, %v5513
        %v5522 = vmul.f32 %v5506, %v5514
        %v5523 = vmul.f32 %v5507, %v5515
        %v5524 = vmul.f32 %v5508, %v5516
        %5533 = vrot.lane.b32.xlu0 %v5517, 64
        %v5534 = vpop.permute.xlu0 %5533
        %5535 = vrot.lane.b32.xlu0 %v5518, 64
        %v5536 = vpop.permute.xlu0 %5535
        %5537 = vrot.lane.b32.xlu0 %v5519, 64
        %v5538 = vpop.permute.xlu0 %5537
        %5539 = vrot.lane.b32.xlu0 %v5520, 64
        %v5540 = vpop.permute.xlu0 %5539
        %5541 = vrot.lane.b32.xlu0 %v5521, 64
        %v5542 = vpop.permute.xlu0 %5541
        %5543 = vrot.lane.b32.xlu0 %v5522, 64
        %v5544 = vpop.permute.xlu0 %5543
        %5545 = vrot.lane.b32.xlu0 %v5523, 64
        %v5546 = vpop.permute.xlu0 %5545
        %5547 = vrot.lane.b32.xlu0 %v5524, 64
        %v5548 = vpop.permute.xlu0 %5547
        %5557 = vst.msk [vmem:[#allocation5 + $0x8] sm:$0xff] %vm1397, %v5534
        %5558 = vst.msk [vmem:[#allocation5 + $0x20] sm:$0xff] %vm1397, %v5536
        %5559 = vst.msk [vmem:[#allocation5 + $0x38] sm:$0xff] %vm1397, %v5538
        %5560 = vst.msk [vmem:[#allocation5 + $0x50] sm:$0xff] %vm1397, %v5540
        %5561 = vst.msk [vmem:[#allocation5 + $0x68] sm:$0xff] %vm1397, %v5542
        %5562 = vst.msk [vmem:[#allocation5 + $0x80] sm:$0xff] %vm1397, %v5544
        %5563 = vst.msk [vmem:[#allocation5 + $0x98] sm:$0xff] %vm1397, %v5546
        %5564 = vst.msk [vmem:[#allocation5 + $0xb0] sm:$0xff] %vm1397, %v5548
        %v5565 = vld [vmem:[#allocation3 + $0x18] sm:$0xff]
        %v5566 = vld [vmem:[#allocation3 + $0x20] sm:$0xff]
        %v5567 = vld [vmem:[#allocation3 + $0x28] sm:$0xff]
        %v5568 = vld [vmem:[#allocation3 + $0x30] sm:$0xff]
        %v5569 = vld [vmem:[#allocation3 + $0x38] sm:$0xff]
        %v5570 = vld [vmem:[#allocation3 + $0x40] sm:$0xff]
        %v5571 = vld [vmem:[#allocation3 + $0x48] sm:$0xff]
        %v5572 = vld [vmem:[#allocation3 + $0x50] sm:$0xff]
        %v5573 = vld [vmem:[%s1626] sm:$0xff]
        %v5574 = vld [vmem:[%s1626 + $0x8] sm:$0xff]
        %v5575 = vld [vmem:[%s1626 + $0x10] sm:$0xff]
        %v5576 = vld [vmem:[%s1626 + $0x18] sm:$0xff]
        %v5577 = vld [vmem:[%s1626 + $0x20] sm:$0xff]
        %v5578 = vld [vmem:[%s1626 + $0x28] sm:$0xff]
        %v5579 = vld [vmem:[%s1626 + $0x30] sm:$0xff]
        %v5580 = vld [vmem:[%s1626 + $0x38] sm:$0xff]
        %v5581 = vmul.f32 %v5565, %v5573
        %v5582 = vmul.f32 %v5566, %v5574
        %v5583 = vmul.f32 %v5567, %v5575
        %v5584 = vmul.f32 %v5568, %v5576
        %v5585 = vmul.f32 %v5569, %v5577
        %v5586 = vmul.f32 %v5570, %v5578
        %v5587 = vmul.f32 %v5571, %v5579
        %v5588 = vmul.f32 %v5572, %v5580
        %5597 = vrot.lane.b32.xlu0 %v5581, 96
        %v5598 = vpop.permute.xlu0 %5597
        %5599 = vrot.lane.b32.xlu0 %v5582, 96
        %v5600 = vpop.permute.xlu0 %5599
        %5601 = vrot.lane.b32.xlu0 %v5583, 96
        %v5602 = vpop.permute.xlu0 %5601
        %5603 = vrot.lane.b32.xlu0 %v5584, 96
        %v5604 = vpop.permute.xlu0 %5603
        %5605 = vrot.lane.b32.xlu0 %v5585, 96
        %v5606 = vpop.permute.xlu0 %5605
        %5607 = vrot.lane.b32.xlu0 %v5586, 96
        %v5608 = vpop.permute.xlu0 %5607
        %5609 = vrot.lane.b32.xlu0 %v5587, 96
        %v5610 = vpop.permute.xlu0 %5609
        %5611 = vrot.lane.b32.xlu0 %v5588, 96
        %v5612 = vpop.permute.xlu0 %5611
        %5621 = vst.msk [vmem:[#allocation5 + $0x8] sm:$0xff] %vm1463, %v5598
        %5622 = vst.msk [vmem:[#allocation5 + $0x20] sm:$0xff] %vm1463, %v5600
        %5623 = vst.msk [vmem:[#allocation5 + $0x38] sm:$0xff] %vm1463, %v5602
        %5624 = vst.msk [vmem:[#allocation5 + $0x50] sm:$0xff] %vm1463, %v5604
        %5625 = vst.msk [vmem:[#allocation5 + $0x68] sm:$0xff] %vm1463, %v5606
        %5626 = vst.msk [vmem:[#allocation5 + $0x80] sm:$0xff] %vm1463, %v5608
        %5627 = vst.msk [vmem:[#allocation5 + $0x98] sm:$0xff] %vm1463, %v5610
        %5628 = vst.msk [vmem:[#allocation5 + $0xb0] sm:$0xff] %vm1463, %v5612
        %v5629 = vld [vmem:[#allocation3 + $0x19] sm:$0xff]
        %v5630 = vld [vmem:[#allocation3 + $0x21] sm:$0xff]
        %v5631 = vld [vmem:[#allocation3 + $0x29] sm:$0xff]
        %v5632 = vld [vmem:[#allocation3 + $0x31] sm:$0xff]
        %v5633 = vld [vmem:[#allocation3 + $0x39] sm:$0xff]
        %v5634 = vld [vmem:[#allocation3 + $0x41] sm:$0xff]
        %v5635 = vld [vmem:[#allocation3 + $0x49] sm:$0xff]
        %v5636 = vld [vmem:[#allocation3 + $0x51] sm:$0xff]
        %v5637 = vld [vmem:[%s1691] sm:$0xff]
        %v5638 = vld [vmem:[%s1691 + $0x8] sm:$0xff]
        %v5639 = vld [vmem:[%s1691 + $0x10] sm:$0xff]
        %v5640 = vld [vmem:[%s1691 + $0x18] sm:$0xff]
        %v5641 = vld [vmem:[%s1691 + $0x20] sm:$0xff]
        %v5642 = vld [vmem:[%s1691 + $0x28] sm:$0xff]
        %v5643 = vld [vmem:[%s1691 + $0x30] sm:$0xff]
        %v5644 = vld [vmem:[%s1691 + $0x38] sm:$0xff]
        %v5645 = vmul.f32 %v5629, %v5637
        %v5646 = vmul.f32 %v5630, %v5638
        %v5647 = vmul.f32 %v5631, %v5639
        %v5648 = vmul.f32 %v5632, %v5640
        %v5649 = vmul.f32 %v5633, %v5641
        %v5650 = vmul.f32 %v5634, %v5642
        %v5651 = vmul.f32 %v5635, %v5643
        %v5652 = vmul.f32 %v5636, %v5644
        %5653 = vst.msk [vmem:[#allocation5 + $0x10] sm:$0xff] %vm350, %v5645
        %5654 = vst.msk [vmem:[#allocation5 + $0x28] sm:$0xff] %vm350, %v5646
        %5655 = vst.msk [vmem:[#allocation5 + $0x40] sm:$0xff] %vm350, %v5647
        %5656 = vst.msk [vmem:[#allocation5 + $0x58] sm:$0xff] %vm350, %v5648
        %5657 = vst.msk [vmem:[#allocation5 + $0x70] sm:$0xff] %vm350, %v5649
        %5658 = vst.msk [vmem:[#allocation5 + $0x88] sm:$0xff] %vm350, %v5650
        %5659 = vst.msk [vmem:[#allocation5 + $0xa0] sm:$0xff] %vm350, %v5651
        %5660 = vst.msk [vmem:[#allocation5 + $0xb8] sm:$0xff] %vm350, %v5652
        %v5661 = vld [vmem:[#allocation5] sm:$0xff]
        %v5662 = vld [vmem:[#allocation5 + $0x8] sm:$0xff]
        %v5663 = vld [vmem:[#allocation5 + $0x10] sm:$0xff]
        %v5664 = vld [vmem:[#allocation5 + $0x18] sm:$0xff]
        %v5665 = vld [vmem:[#allocation5 + $0x20] sm:$0xff]
        %v5666 = vld [vmem:[#allocation5 + $0x28] sm:$0xff]
        %v5667 = vld [vmem:[#allocation5 + $0x30] sm:$0xff]
        %v5668 = vld [vmem:[#allocation5 + $0x38] sm:$0xff]
        %v5669 = vld [vmem:[#allocation5 + $0x40] sm:$0xff]
        %v5670 = vld [vmem:[#allocation5 + $0x48] sm:$0xff]
        %v5671 = vld [vmem:[#allocation5 + $0x50] sm:$0xff]
        %v5672 = vld [vmem:[#allocation5 + $0x58] sm:$0xff]
        %v5673 = vld [vmem:[#allocation5 + $0x60] sm:$0xff]
        %v5674 = vld [vmem:[#allocation5 + $0x68] sm:$0xff]
        %v5675 = vld [vmem:[#allocation5 + $0x70] sm:$0xff]
        %v5676 = vld [vmem:[#allocation5 + $0x78] sm:$0xff]
        %v5677 = vld [vmem:[#allocation5 + $0x80] sm:$0xff]
        %v5678 = vld [vmem:[#allocation5 + $0x88] sm:$0xff]
        %v5679 = vld [vmem:[#allocation5 + $0x90] sm:$0xff]
        %v5680 = vld [vmem:[#allocation5 + $0x98] sm:$0xff]
        %v5681 = vld [vmem:[#allocation5 + $0xa0] sm:$0xff]
        %v5682 = vld [vmem:[#allocation5 + $0xa8] sm:$0xff]
        %v5683 = vld [vmem:[#allocation5 + $0xb0] sm:$0xff]
        %v5684 = vld [vmem:[#allocation5 + $0xb8] sm:$0xff]
        %s5685 = scalar_lea.vmem [#allocation7], 1440
        %v5686 = vld [vmem:[%s5685] sm:$0xff]
        %v5687 = vld [vmem:[%s5685 + $0x8] sm:$0xff]
        %v5688 = vld [vmem:[%s5685 + $0x10] sm:$0xff]
        %v5689 = vld [vmem:[%s5685 + $0x18] sm:$0xff]
        %v5690 = vld [vmem:[%s5685 + $0x20] sm:$0xff]
        %v5691 = vld [vmem:[%s5685 + $0x28] sm:$0xff]
        %v5692 = vld [vmem:[%s5685 + $0x30] sm:$0xff]
        %v5693 = vld [vmem:[%s5685 + $0x38] sm:$0xff]
        %v5694 = vld [vmem:[%s5685 + $0x40] sm:$0xff]
        %v5695 = vld [vmem:[%s5685 + $0x48] sm:$0xff]
        %v5696 = vld [vmem:[%s5685 + $0x50] sm:$0xff]
        %v5697 = vld [vmem:[%s5685 + $0x58] sm:$0xff]
        %v5698 = vld [vmem:[%s5685 + $0x60] sm:$0xff]
        %v5699 = vld [vmem:[%s5685 + $0x68] sm:$0xff]
        %v5700 = vld [vmem:[%s5685 + $0x70] sm:$0xff]
        %v5701 = vld [vmem:[%s5685 + $0x78] sm:$0xff]
        %v5702 = vld [vmem:[%s5685 + $0x80] sm:$0xff]
        %v5703 = vld [vmem:[%s5685 + $0x88] sm:$0xff]
        %v5704 = vld [vmem:[%s5685 + $0x90] sm:$0xff]
        %v5705 = vld [vmem:[%s5685 + $0x98] sm:$0xff]
        %v5706 = vld [vmem:[%s5685 + $0xa0] sm:$0xff]
        %v5707 = vld [vmem:[%s5685 + $0xa8] sm:$0xff]
        %v5708 = vld [vmem:[%s5685 + $0xb0] sm:$0xff]
        %v5709 = vld [vmem:[%s5685 + $0xb8] sm:$0xff]
        %v5710 = vld [vmem:[%s5685 + $0xc0] sm:$0xff]
        %v5711 = vld [vmem:[%s5685 + $0xc8] sm:$0xff]
        %v5712 = vld [vmem:[%s5685 + $0xd0] sm:$0xff]
        %v5713 = vld [vmem:[%s5685 + $0xd8] sm:$0xff]
        %v5714 = vld [vmem:[%s5685 + $0xe0] sm:$0xff]
        %v5715 = vld [vmem:[%s5685 + $0xe8] sm:$0xff]
        %v5716 = vld [vmem:[%s5685 + $0xf0] sm:$0xff]
        %v5717 = vld [vmem:[%s5685 + $0xf8] sm:$0xff]
        %v5718 = vld [vmem:[%s5685 + $0x100] sm:$0xff]
        %v5719 = vld [vmem:[%s5685 + $0x108] sm:$0xff]
        %v5720 = vld [vmem:[%s5685 + $0x110] sm:$0xff]
        %v5721 = vld [vmem:[%s5685 + $0x118] sm:$0xff]
        %s5722 = scalar_lea.vmem %s6, 5
        %v5723 = vld [vmem:[%s5722] sm:$0x1]
        %v5725 = vlaneseq
        %v5726 = vshrl.u32 %v5725, 7
        %v5727 = vsub.s32 0, %v5726
        %v5728 = vrot.slane %v5723, %v5727
        %v5731 = vsel %vm350, %v5663, 0
        %v5734 = vsel %vm350, %v5666, 0
        %v5737 = vsel %vm350, %v5669, 0
        %v5740 = vsel %vm350, %v5672, 0
        %v5743 = vsel %vm350, %v5675, 0
        %v5746 = vsel %vm350, %v5678, 0
        %v5749 = vsel %vm350, %v5681, 0
        %v5752 = vsel %vm350, %v5684, 0
        %5754 = vmatprep.subr.mxu0 0.0
        %5755 = vmatpush1.msra.mxu0 %v5686
        %5756 = vmatprep.subr.mxu0 0.0
        %5757 = vmatpush1.msra.mxu0 %v5687
        %5758 = vmatprep.subr.mxu0 0.0
        %5759 = vmatpush1.msra.mxu0 %v5688
        %5760 = vmatprep.subr.mxu0 0.0
        %5761 = vmatpush1.msra.mxu0 %v5689
        %5762 = vmatprep.subr.mxu0 0.0
        %5763 = vmatpush1.msra.mxu0 %v5690
        %5764 = vmatprep.subr.mxu0 0.0
        %5765 = vmatpush1.msra.mxu0 %v5691
        %5766 = vmatprep.subr.mxu0 0.0
        %5767 = vmatpush1.msra.mxu0 %v5692
        %5768 = vmatprep.subr.mxu0 0.0
        %5769 = vmatpush1.msra.mxu0 %v5693
        %5770 = vmatprep.subr.mxu0 0.0
        %5771 = vmatpush1.msra.mxu0 %v5694
        %5772 = vmatprep.subr.mxu0 0.0
        %5773 = vmatpush1.msra.mxu0 %v5695
        %5774 = vmatprep.subr.mxu0 0.0
        %5775 = vmatpush1.msra.mxu0 %v5696
        %5776 = vmatprep.subr.mxu0 0.0
        %5777 = vmatpush1.msra.mxu0 %v5697
        %5778 = vmatprep.subr.mxu0 0.0
        %5779 = vmatpush1.msra.mxu0 %v5698
        %5780 = vmatprep.subr.mxu0 0.0
        %5781 = vmatpush1.msra.mxu0 %v5699
        %5782 = vmatprep.subr.mxu0 0.0
        %5783 = vmatpush1.msra.mxu0 %v5700
        %5784 = vmatprep.subr.mxu0 0.0
        %5785 = vmatpush1.msra.mxu0 %v5701
        %5786 = vmatprep.subr.mxu0 0.0
        %5787 = vmatpush1.msra.mxu0 %v5702
        %5788 = vmatprep.subr.mxu0 0.0
        %5789 = vmatpush1.msra.mxu0 %v5703
        %5790 = vmatprep.subr.mxu0 0.0
        %5791 = vmatpush1.msra.mxu0 %v5704
        %5792 = vmatprep.subr.mxu0 0.0
        %5793 = vmatpush1.msra.mxu0 %v5705
        %5794 = vmatprep.subr.mxu0 0.0
        %5795 = vmatpush1.msra.mxu0 %v5706
        %5796 = vmatprep.subr.mxu0 0.0
        %5797 = vmatpush1.msra.mxu0 %v5707
        %5798 = vmatprep.subr.mxu0 0.0
        %5799 = vmatpush1.msra.mxu0 %v5708
        %5800 = vmatprep.subr.mxu0 0.0
        %5801 = vmatpush1.msra.mxu0 %v5709
        %5802 = vmatprep.subr.mxu0 0.0
        %5803 = vmatpush1.msra.mxu0 %v5710
        %5804 = vmatprep.subr.mxu0 0.0
        %5805 = vmatpush1.msra.mxu0 %v5711
        %5806 = vmatprep.subr.mxu0 0.0
        %5807 = vmatpush1.msra.mxu0 %v5712
        %5808 = vmatprep.subr.mxu0 0.0
        %5809 = vmatpush1.msra.mxu0 %v5713
        %5810 = vmatprep.subr.mxu0 0.0
        %5811 = vmatpush1.msra.mxu0 %v5714
        %5812 = vmatprep.subr.mxu0 0.0
        %5813 = vmatpush1.msra.mxu0 %v5715
        %5814 = vmatprep.subr.mxu0 0.0
        %5815 = vmatpush1.msra.mxu0 %v5716
        %5816 = vmatprep.subr.mxu0 0.0
        %5817 = vmatpush1.msra.mxu0 %v5717
        %5818 = vmatprep.mubr.f32.mxu0 %v5662
        %5819 = vmatmul.mubr.f32.gmra.mrb[0].mxu0 %v5661
        %v5820 = vpop.f32.mrb[0].mxu0
        %v5821 = vadd.f32 %v5728, %v5820
        %v5822 = vpop.f32.mrb[0].mxu0
        %5823 = vmatprep.mubr.f32.mxu0 %v5665
        %5824 = vmatmul.mubr.f32.gmra.mrb[0].mxu0 %v5664
        %v5825 = vpop.f32.mrb[0].mxu0
        %v5826 = vadd.f32 %v5728, %v5825
        %v5827 = vpop.f32.mrb[0].mxu0
        %5828 = vmatprep.mubr.f32.mxu0 %v5668
        %5829 = vmatmul.mubr.f32.gmra.mrb[0].mxu0 %v5667
        %v5830 = vpop.f32.mrb[0].mxu0
        %v5831 = vadd.f32 %v5728, %v5830
        %v5832 = vpop.f32.mrb[0].mxu0
        %5833 = vmatprep.mubr.f32.mxu0 %v5671
        %5834 = vmatmul.mubr.f32.gmra.mrb[0].mxu0 %v5670
        %v5835 = vpop.f32.mrb[0].mxu0
        %v5836 = vadd.f32 %v5728, %v5835
        %v5837 = vpop.f32.mrb[0].mxu0
        %5838 = vmatprep.mubr.f32.mxu0 %v5674
        %5839 = vmatmul.mubr.f32.gmra.mrb[0].mxu0 %v5673
        %v5840 = vpop.f32.mrb[0].mxu0
        %v5841 = vadd.f32 %v5728, %v5840
        %v5842 = vpop.f32.mrb[0].mxu0
        %5843 = vmatprep.mubr.f32.mxu0 %v5677
        %5844 = vmatmul.mubr.f32.gmra.mrb[0].mxu0 %v5676
        %v5845 = vpop.f32.mrb[0].mxu0
        %v5846 = vadd.f32 %v5728, %v5845
        %v5847 = vpop.f32.mrb[0].mxu0
        %5848 = vmatprep.mubr.f32.mxu0 %v5680
        %5849 = vmatmul.mubr.f32.gmra.mrb[0].mxu0 %v5679
        %v5850 = vpop.f32.mrb[0].mxu0
        %v5851 = vadd.f32 %v5728, %v5850
        %v5852 = vpop.f32.mrb[0].mxu0
        %5853 = vmatprep.mubr.f32.mxu0 %v5683
        %5854 = vmatmul.mubr.f32.gmra.mrb[0].mxu0 %v5682
        %v5855 = vpop.f32.mrb[0].mxu0
        %v5856 = vadd.f32 %v5728, %v5855
        %v5857 = vpop.f32.mrb[0].mxu0
        %5858 = vdwg.mxu0
        %5859 = vmatprep.subr.mxu0 0.0
        %5860 = vmatpush1.msra.mxu0 %v5718
        %5861 = vmatprep.subr.mxu0 0.0
        %5862 = vmatpush1.msra.mxu0 %v5719
        %5863 = vmatprep.subr.mxu0 0.0
        %5864 = vmatpush1.msra.mxu0 %v5720
        %5865 = vmatprep.subr.mxu0 0.0
        %5866 = vmatpush1.msra.mxu0 %v5721
        %5867 = vmatprep.subr.mxu0 0.0
        %5868 = vmatpush1.msra.mxu0 0.0
        %5869 = vmatprep.subr.mxu0 0.0
        %5870 = vmatpush1.msra.mxu0 0.0
        %5871 = vmatprep.subr.mxu0 0.0
        %5872 = vmatpush1.msra.mxu0 0.0
        %5873 = vmatprep.subr.mxu0 0.0
        %5874 = vmatpush1.msra.mxu0 0.0
        %5875 = vmatprep.subr.mxu0 0.0
        %5876 = vmatpush1.msra.mxu0 0.0
        %5877 = vmatprep.subr.mxu0 0.0
        %5878 = vmatpush1.msra.mxu0 0.0
        %5879 = vmatprep.subr.mxu0 0.0
        %5880 = vmatpush1.msra.mxu0 0.0
        %5881 = vmatprep.subr.mxu0 0.0
        %5882 = vmatpush1.msra.mxu0 0.0
        %5883 = vmatprep.subr.mxu0 0.0
        %5884 = vmatpush1.msra.mxu0 0.0
        %5885 = vmatprep.subr.mxu0 0.0
        %5886 = vmatpush1.msra.mxu0 0.0
        %5887 = vmatprep.subr.mxu0 0.0
        %5888 = vmatpush1.msra.mxu0 0.0
        %5889 = vmatprep.subr.mxu0 0.0
        %5890 = vmatpush1.msra.mxu0 0.0
        %5891 = vmatprep.subr.mxu0 0.0
        %5892 = vmatpush1.msra.mxu0 0.0
        %5893 = vmatprep.subr.mxu0 0.0
        %5894 = vmatpush1.msra.mxu0 0.0
        %5895 = vmatprep.subr.mxu0 0.0
        %5896 = vmatpush1.msra.mxu0 0.0
        %5897 = vmatprep.subr.mxu0 0.0
        %5898 = vmatpush1.msra.mxu0 0.0
        %5899 = vmatprep.subr.mxu0 0.0
        %5900 = vmatpush1.msra.mxu0 0.0
        %5901 = vmatprep.subr.mxu0 0.0
        %5902 = vmatpush1.msra.mxu0 0.0
        %5903 = vmatprep.subr.mxu0 0.0
        %5904 = vmatpush1.msra.mxu0 0.0
        %5905 = vmatprep.subr.mxu0 0.0
        %5906 = vmatpush1.msra.mxu0 0.0
        %5907 = vmatprep.subr.mxu0 0.0
        %5908 = vmatpush1.msra.mxu0 0.0
        %5909 = vmatprep.subr.mxu0 0.0
        %5910 = vmatpush1.msra.mxu0 0.0
        %5911 = vmatprep.subr.mxu0 0.0
        %5912 = vmatpush1.msra.mxu0 0.0
        %5913 = vmatprep.subr.mxu0 0.0
        %5914 = vmatpush1.msra.mxu0 0.0
        %5915 = vmatprep.subr.mxu0 0.0
        %5916 = vmatpush1.msra.mxu0 0.0
        %5917 = vmatprep.subr.mxu0 0.0
        %5918 = vmatpush1.msra.mxu0 0.0
        %5919 = vmatprep.subr.mxu0 0.0
        %5920 = vmatpush1.msra.mxu0 0.0
        %5921 = vmatprep.subr.mxu0 0.0
        %5922 = vmatpush1.msra.mxu0 0.0
        %5923 = vmatprep.mubr.f32.mxu0 0.0
        %5924 = vmatmul.mubr.f32.gmra.mrb[0].mxu0 %v5731
        %v5925 = vpop.f32.mrb[0].mxu0
        %v5926 = vadd.f32 %v5821, %v5925
        %v5927 = vpop.f32.mrb[0].mxu0
        %5928 = vmatprep.mubr.f32.mxu0 0.0
        %5929 = vmatmul.mubr.f32.gmra.mrb[0].mxu0 %v5734
        %v5930 = vpop.f32.mrb[0].mxu0
        %v5931 = vadd.f32 %v5826, %v5930
        %v5932 = vpop.f32.mrb[0].mxu0
        %5933 = vmatprep.mubr.f32.mxu0 0.0
        %5934 = vmatmul.mubr.f32.gmra.mrb[0].mxu0 %v5737
        %v5935 = vpop.f32.mrb[0].mxu0
        %v5936 = vadd.f32 %v5831, %v5935
        %v5937 = vpop.f32.mrb[0].mxu0
        %5938 = vmatprep.mubr.f32.mxu0 0.0
        %5939 = vmatmul.mubr.f32.gmra.mrb[0].mxu0 %v5740
        %v5940 = vpop.f32.mrb[0].mxu0
        %v5941 = vadd.f32 %v5836, %v5940
        %v5942 = vpop.f32.mrb[0].mxu0
        %5943 = vmatprep.mubr.f32.mxu0 0.0
        %5944 = vmatmul.mubr.f32.gmra.mrb[0].mxu0 %v5743
        %v5945 = vpop.f32.mrb[0].mxu0
        %v5946 = vadd.f32 %v5841, %v5945
        %v5947 = vpop.f32.mrb[0].mxu0
        %5948 = vmatprep.mubr.f32.mxu0 0.0
        %5949 = vmatmul.mubr.f32.gmra.mrb[0].mxu0 %v5746
        %v5950 = vpop.f32.mrb[0].mxu0
        %v5951 = vadd.f32 %v5846, %v5950
        %v5952 = vpop.f32.mrb[0].mxu0
        %5953 = vmatprep.mubr.f32.mxu0 0.0
        %5954 = vmatmul.mubr.f32.gmra.mrb[0].mxu0 %v5749
        %v5955 = vpop.f32.mrb[0].mxu0
        %v5956 = vadd.f32 %v5851, %v5955
        %v5957 = vpop.f32.mrb[0].mxu0
        %5958 = vmatprep.mubr.f32.mxu0 0.0
        %5959 = vmatmul.mubr.f32.gmra.mrb[0].mxu0 %v5752
        %v5960 = vpop.f32.mrb[0].mxu0
        %v5961 = vadd.f32 %v5856, %v5960
        %v5962 = vpop.f32.mrb[0].mxu0
        %5963 = vdwg.mxu0
        %v5964 = vld [vmem:[#allocation2 + $0x10] sm:$0xff]
        %v5965 = vld [vmem:[#allocation2 + $0x18] sm:$0xff]
        %v5966 = vld [vmem:[#allocation2 + $0x20] sm:$0xff]
        %v5967 = vld [vmem:[#allocation2 + $0x28] sm:$0xff]
        %v5968 = vld [vmem:[#allocation2 + $0x30] sm:$0xff]
        %v5969 = vld [vmem:[#allocation2 + $0x38] sm:$0xff]
        %v5970 = vld [vmem:[#allocation2 + $0x40] sm:$0xff]
        %v5971 = vld [vmem:[#allocation2 + $0x48] sm:$0xff]
        %v5972 = vadd.f32 %v5926, %v5964
        %v5973 = vadd.f32 %v5931, %v5965
        %v5974 = vadd.f32 %v5936, %v5966
        %v5975 = vadd.f32 %v5941, %v5967
        %v5976 = vadd.f32 %v5946, %v5968
        %v5977 = vadd.f32 %v5951, %v5969
        %v5978 = vadd.f32 %v5956, %v5970
        %v5979 = vadd.f32 %v5961, %v5971
        %v5980 = vmax.f32 %v5972, 0.0
        %v5981 = vmax.f32 %v5973, 0.0
        %v5982 = vmax.f32 %v5974, 0.0
        %v5983 = vmax.f32 %v5975, 0.0
        %v5984 = vmax.f32 %v5976, 0.0
        %v5985 = vmax.f32 %v5977, 0.0
        %v5986 = vmax.f32 %v5978, 0.0
        %v5987 = vmax.f32 %v5979, 0.0
        %5988 = vst.msk [vmem:[#allocation2 + $0x10] sm:$0xff] %vm350, %v5980
        %5989 = vst.msk [vmem:[#allocation2 + $0x18] sm:$0xff] %vm350, %v5981
        %5990 = vst.msk [vmem:[#allocation2 + $0x20] sm:$0xff] %vm350, %v5982
        %5991 = vst.msk [vmem:[#allocation2 + $0x28] sm:$0xff] %vm350, %v5983
        %5992 = vst.msk [vmem:[#allocation2 + $0x30] sm:$0xff] %vm350, %v5984
        %5993 = vst.msk [vmem:[#allocation2 + $0x38] sm:$0xff] %vm350, %v5985
        %5994 = vst.msk [vmem:[#allocation2 + $0x40] sm:$0xff] %vm350, %v5986
        %5995 = vst.msk [vmem:[#allocation2 + $0x48] sm:$0xff] %vm350, %v5987
        %v5996 = vld [vmem:[#allocation2 + $0x7] sm:$0xff]
        %v5997 = vld [vmem:[#allocation2 + $0xf] sm:$0xff]
        %v5998 = vld [vmem:[#allocation2 + $0x17] sm:$0xff]
        %v5999 = vld [vmem:[#allocation2 + $0x1f] sm:$0xff]
        %v6000 = vld [vmem:[#allocation2 + $0x27] sm:$0xff]
        %v6001 = vld [vmem:[#allocation2 + $0x2f] sm:$0xff]
        %v6002 = vld [vmem:[#allocation2 + $0x37] sm:$0xff]
        %v6003 = vld [vmem:[#allocation2 + $0x3f] sm:$0xff]
        %v6004 = vld [vmem:[%s2] sm:$0xff]
        %v6005 = vld [vmem:[%s2 + $0x8] sm:$0xff]
        %v6006 = vld [vmem:[%s2 + $0x10] sm:$0xff]
        %v6007 = vld [vmem:[%s2 + $0x18] sm:$0xff]
        %v6008 = vld [vmem:[%s2 + $0x20] sm:$0xff]
        %v6009 = vld [vmem:[%s2 + $0x28] sm:$0xff]
        %v6010 = vld [vmem:[%s2 + $0x30] sm:$0xff]
        %v6011 = vld [vmem:[%s2 + $0x38] sm:$0xff]
        %v6012 = vmul.f32 %v5996, %v6004
        %v6013 = vmul.f32 %v5997, %v6005
        %v6014 = vmul.f32 %v5998, %v6006
        %v6015 = vmul.f32 %v5999, %v6007
        %v6016 = vmul.f32 %v6000, %v6008
        %v6017 = vmul.f32 %v6001, %v6009
        %v6018 = vmul.f32 %v6002, %v6010
        %v6019 = vmul.f32 %v6003, %v6011
        %6020 = vst.msk [vmem:[#allocation5] sm:$0xff] %vm350, %v6012
        %6021 = vst.msk [vmem:[#allocation5 + $0x18] sm:$0xff] %vm350, %v6013
        %6022 = vst.msk [vmem:[#allocation5 + $0x30] sm:$0xff] %vm350, %v6014
        %6023 = vst.msk [vmem:[#allocation5 + $0x48] sm:$0xff] %vm350, %v6015
        %6024 = vst.msk [vmem:[#allocation5 + $0x60] sm:$0xff] %vm350, %v6016
        %6025 = vst.msk [vmem:[#allocation5 + $0x78] sm:$0xff] %vm350, %v6017
        %6026 = vst.msk [vmem:[#allocation5 + $0x90] sm:$0xff] %vm350, %v6018
        %6027 = vst.msk [vmem:[#allocation5 + $0xa8] sm:$0xff] %vm350, %v6019
        %v6028 = vld [vmem:[#allocation2 + $0x8] sm:$0xff]
        %v6029 = vld [vmem:[#allocation2 + $0x10] sm:$0xff]
        %v6030 = vld [vmem:[#allocation2 + $0x18] sm:$0xff]
        %v6031 = vld [vmem:[#allocation2 + $0x20] sm:$0xff]
        %v6032 = vld [vmem:[#allocation2 + $0x28] sm:$0xff]
        %v6033 = vld [vmem:[#allocation2 + $0x30] sm:$0xff]
        %v6034 = vld [vmem:[#allocation2 + $0x38] sm:$0xff]
        %v6035 = vld [vmem:[#allocation2 + $0x40] sm:$0xff]
        %v6036 = vld [vmem:[%s1282] sm:$0xff]
        %v6037 = vld [vmem:[%s1282 + $0x8] sm:$0xff]
        %v6038 = vld [vmem:[%s1282 + $0x10] sm:$0xff]
        %v6039 = vld [vmem:[%s1282 + $0x18] sm:$0xff]
        %v6040 = vld [vmem:[%s1282 + $0x20] sm:$0xff]
        %v6041 = vld [vmem:[%s1282 + $0x28] sm:$0xff]
        %v6042 = vld [vmem:[%s1282 + $0x30] sm:$0xff]
        %v6043 = vld [vmem:[%s1282 + $0x38] sm:$0xff]
        %v6044 = vmul.f32 %v6028, %v6036
        %v6045 = vmul.f32 %v6029, %v6037
        %v6046 = vmul.f32 %v6030, %v6038
        %v6047 = vmul.f32 %v6031, %v6039
        %v6048 = vmul.f32 %v6032, %v6040
        %v6049 = vmul.f32 %v6033, %v6041
        %v6050 = vmul.f32 %v6034, %v6042
        %v6051 = vmul.f32 %v6035, %v6043
        %6060 = vrot.lane.b32.xlu0 %v6044, 32
        %v6061 = vpop.permute.xlu0 %6060
        %6062 = vrot.lane.b32.xlu0 %v6045, 32
        %v6063 = vpop.permute.xlu0 %6062
        %6064 = vrot.lane.b32.xlu0 %v6046, 32
        %v6065 = vpop.permute.xlu0 %6064
        %6066 = vrot.lane.b32.xlu0 %v6047, 32
        %v6067 = vpop.permute.xlu0 %6066
        %6068 = vrot.lane.b32.xlu0 %v6048, 32
        %v6069 = vpop.permute.xlu0 %6068
        %6070 = vrot.lane.b32.xlu0 %v6049, 32
        %v6071 = vpop.permute.xlu0 %6070
        %6072 = vrot.lane.b32.xlu0 %v6050, 32
        %v6073 = vpop.permute.xlu0 %6072
        %6074 = vrot.lane.b32.xlu0 %v6051, 32
        %v6075 = vpop.permute.xlu0 %6074
        %6084 = vst.msk [vmem:[#allocation5] sm:$0xff] %vm1331, %v6061
        %6085 = vst.msk [vmem:[#allocation5 + $0x18] sm:$0xff] %vm1331, %v6063
        %6086 = vst.msk [vmem:[#allocation5 + $0x30] sm:$0xff] %vm1331, %v6065
        %6087 = vst.msk [vmem:[#allocation5 + $0x48] sm:$0xff] %vm1331, %v6067
        %6088 = vst.msk [vmem:[#allocation5 + $0x60] sm:$0xff] %vm1331, %v6069
        %6089 = vst.msk [vmem:[#allocation5 + $0x78] sm:$0xff] %vm1331, %v6071
        %6090 = vst.msk [vmem:[#allocation5 + $0x90] sm:$0xff] %vm1331, %v6073
        %6091 = vst.msk [vmem:[#allocation5 + $0xa8] sm:$0xff] %vm1331, %v6075
        %v6092 = vld [vmem:[#allocation2 + $0x9] sm:$0xff]
        %v6093 = vld [vmem:[#allocation2 + $0x11] sm:$0xff]
        %v6094 = vld [vmem:[#allocation2 + $0x19] sm:$0xff]
        %v6095 = vld [vmem:[#allocation2 + $0x21] sm:$0xff]
        %v6096 = vld [vmem:[#allocation2 + $0x29] sm:$0xff]
        %v6097 = vld [vmem:[#allocation2 + $0x31] sm:$0xff]
        %v6098 = vld [vmem:[#allocation2 + $0x39] sm:$0xff]
        %v6099 = vld [vmem:[#allocation2 + $0x41] sm:$0xff]
        %v6100 = vld [vmem:[%s1348] sm:$0xff]
        %v6101 = vld [vmem:[%s1348 + $0x8] sm:$0xff]
        %v6102 = vld [vmem:[%s1348 + $0x10] sm:$0xff]
        %v6103 = vld [vmem:[%s1348 + $0x18] sm:$0xff]
        %v6104 = vld [vmem:[%s1348 + $0x20] sm:$0xff]
        %v6105 = vld [vmem:[%s1348 + $0x28] sm:$0xff]
        %v6106 = vld [vmem:[%s1348 + $0x30] sm:$0xff]
        %v6107 = vld [vmem:[%s1348 + $0x38] sm:$0xff]
        %v6108 = vmul.f32 %v6092, %v6100
        %v6109 = vmul.f32 %v6093, %v6101
        %v6110 = vmul.f32 %v6094, %v6102
        %v6111 = vmul.f32 %v6095, %v6103
        %v6112 = vmul.f32 %v6096, %v6104
        %v6113 = vmul.f32 %v6097, %v6105
        %v6114 = vmul.f32 %v6098, %v6106
        %v6115 = vmul.f32 %v6099, %v6107
        %6124 = vrot.lane.b32.xlu0 %v6108, 64
        %v6125 = vpop.permute.xlu0 %6124
        %6126 = vrot.lane.b32.xlu0 %v6109, 64
        %v6127 = vpop.permute.xlu0 %6126
        %6128 = vrot.lane.b32.xlu0 %v6110, 64
        %v6129 = vpop.permute.xlu0 %6128
        %6130 = vrot.lane.b32.xlu0 %v6111, 64
        %v6131 = vpop.permute.xlu0 %6130
        %6132 = vrot.lane.b32.xlu0 %v6112, 64
        %v6133 = vpop.permute.xlu0 %6132
        %6134 = vrot.lane.b32.xlu0 %v6113, 64
        %v6135 = vpop.permute.xlu0 %6134
        %6136 = vrot.lane.b32.xlu0 %v6114, 64
        %v6137 = vpop.permute.xlu0 %6136
        %6138 = vrot.lane.b32.xlu0 %v6115, 64
        %v6139 = vpop.permute.xlu0 %6138
        %6148 = vst.msk [vmem:[#allocation5] sm:$0xff] %vm1397, %v6125
        %6149 = vst.msk [vmem:[#allocation5 + $0x18] sm:$0xff] %vm1397, %v6127
        %6150 = vst.msk [vmem:[#allocation5 + $0x30] sm:$0xff] %vm1397, %v6129
        %6151 = vst.msk [vmem:[#allocation5 + $0x48] sm:$0xff] %vm1397, %v6131
        %6152 = vst.msk [vmem:[#allocation5 + $0x60] sm:$0xff] %vm1397, %v6133
        %6153 = vst.msk [vmem:[#allocation5 + $0x78] sm:$0xff] %vm1397, %v6135
        %6154 = vst.msk [vmem:[#allocation5 + $0x90] sm:$0xff] %vm1397, %v6137
        %6155 = vst.msk [vmem:[#allocation5 + $0xa8] sm:$0xff] %vm1397, %v6139
        %v6156 = vld [vmem:[#allocation2 + $0xf] sm:$0xff]
        %v6157 = vld [vmem:[#allocation2 + $0x17] sm:$0xff]
        %v6158 = vld [vmem:[#allocation2 + $0x1f] sm:$0xff]
        %v6159 = vld [vmem:[#allocation2 + $0x27] sm:$0xff]
        %v6160 = vld [vmem:[#allocation2 + $0x2f] sm:$0xff]
        %v6161 = vld [vmem:[#allocation2 + $0x37] sm:$0xff]
        %v6162 = vld [vmem:[#allocation2 + $0x3f] sm:$0xff]
        %v6163 = vld [vmem:[#allocation2 + $0x47] sm:$0xff]
        %v6164 = vld [vmem:[%s1414] sm:$0xff]
        %v6165 = vld [vmem:[%s1414 + $0x8] sm:$0xff]
        %v6166 = vld [vmem:[%s1414 + $0x10] sm:$0xff]
        %v6167 = vld [vmem:[%s1414 + $0x18] sm:$0xff]
        %v6168 = vld [vmem:[%s1414 + $0x20] sm:$0xff]
        %v6169 = vld [vmem:[%s1414 + $0x28] sm:$0xff]
        %v6170 = vld [vmem:[%s1414 + $0x30] sm:$0xff]
        %v6171 = vld [vmem:[%s1414 + $0x38] sm:$0xff]
        %v6172 = vmul.f32 %v6156, %v6164
        %v6173 = vmul.f32 %v6157, %v6165
        %v6174 = vmul.f32 %v6158, %v6166
        %v6175 = vmul.f32 %v6159, %v6167
        %v6176 = vmul.f32 %v6160, %v6168
        %v6177 = vmul.f32 %v6161, %v6169
        %v6178 = vmul.f32 %v6162, %v6170
        %v6179 = vmul.f32 %v6163, %v6171
        %6188 = vrot.lane.b32.xlu0 %v6172, 96
        %v6189 = vpop.permute.xlu0 %6188
        %6190 = vrot.lane.b32.xlu0 %v6173, 96
        %v6191 = vpop.permute.xlu0 %6190
        %6192 = vrot.lane.b32.xlu0 %v6174, 96
        %v6193 = vpop.permute.xlu0 %6192
        %6194 = vrot.lane.b32.xlu0 %v6175, 96
        %v6195 = vpop.permute.xlu0 %6194
        %6196 = vrot.lane.b32.xlu0 %v6176, 96
        %v6197 = vpop.permute.xlu0 %6196
        %6198 = vrot.lane.b32.xlu0 %v6177, 96
        %v6199 = vpop.permute.xlu0 %6198
        %6200 = vrot.lane.b32.xlu0 %v6178, 96
        %v6201 = vpop.permute.xlu0 %6200
        %6202 = vrot.lane.b32.xlu0 %v6179, 96
        %v6203 = vpop.permute.xlu0 %6202
        %6212 = vst.msk [vmem:[#allocation5] sm:$0xff] %vm1463, %v6189
        %6213 = vst.msk [vmem:[#allocation5 + $0x18] sm:$0xff] %vm1463, %v6191
        %6214 = vst.msk [vmem:[#allocation5 + $0x30] sm:$0xff] %vm1463, %v6193
        %6215 = vst.msk [vmem:[#allocation5 + $0x48] sm:$0xff] %vm1463, %v6195
        %6216 = vst.msk [vmem:[#allocation5 + $0x60] sm:$0xff] %vm1463, %v6197
        %6217 = vst.msk [vmem:[#allocation5 + $0x78] sm:$0xff] %vm1463, %v6199
        %6218 = vst.msk [vmem:[#allocation5 + $0x90] sm:$0xff] %vm1463, %v6201
        %6219 = vst.msk [vmem:[#allocation5 + $0xa8] sm:$0xff] %vm1463, %v6203
        %v6220 = vld [vmem:[#allocation2 + $0x10] sm:$0xff]
        %v6221 = vld [vmem:[#allocation2 + $0x18] sm:$0xff]
        %v6222 = vld [vmem:[#allocation2 + $0x20] sm:$0xff]
        %v6223 = vld [vmem:[#allocation2 + $0x28] sm:$0xff]
        %v6224 = vld [vmem:[#allocation2 + $0x30] sm:$0xff]
        %v6225 = vld [vmem:[#allocation2 + $0x38] sm:$0xff]
        %v6226 = vld [vmem:[#allocation2 + $0x40] sm:$0xff]
        %v6227 = vld [vmem:[#allocation2 + $0x48] sm:$0xff]
        %6228 = vst.msk [vmem:[#allocation5 + $0x8] sm:$0xff] %vm350, %v6220
        %6229 = vst.msk [vmem:[#allocation5 + $0x20] sm:$0xff] %vm350, %v6221
        %6230 = vst.msk [vmem:[#allocation5 + $0x38] sm:$0xff] %vm350, %v6222
        %6231 = vst.msk [vmem:[#allocation5 + $0x50] sm:$0xff] %vm350, %v6223
        %6232 = vst.msk [vmem:[#allocation5 + $0x68] sm:$0xff] %vm350, %v6224
        %6233 = vst.msk [vmem:[#allocation5 + $0x80] sm:$0xff] %vm350, %v6225
        %6234 = vst.msk [vmem:[#allocation5 + $0x98] sm:$0xff] %vm350, %v6226
        %6235 = vst.msk [vmem:[#allocation5 + $0xb0] sm:$0xff] %vm350, %v6227
        %v6236 = vld [vmem:[#allocation2 + $0x11] sm:$0xff]
        %v6237 = vld [vmem:[#allocation2 + $0x19] sm:$0xff]
        %v6238 = vld [vmem:[#allocation2 + $0x21] sm:$0xff]
        %v6239 = vld [vmem:[#allocation2 + $0x29] sm:$0xff]
        %v6240 = vld [vmem:[#allocation2 + $0x31] sm:$0xff]
        %v6241 = vld [vmem:[#allocation2 + $0x39] sm:$0xff]
        %v6242 = vld [vmem:[#allocation2 + $0x41] sm:$0xff]
        %v6243 = vld [vmem:[#allocation2 + $0x49] sm:$0xff]
        %v6244 = vld [vmem:[%s1496] sm:$0xff]
        %v6245 = vld [vmem:[%s1496 + $0x8] sm:$0xff]
        %v6246 = vld [vmem:[%s1496 + $0x10] sm:$0xff]
        %v6247 = vld [vmem:[%s1496 + $0x18] sm:$0xff]
        %v6248 = vld [vmem:[%s1496 + $0x20] sm:$0xff]
        %v6249 = vld [vmem:[%s1496 + $0x28] sm:$0xff]
        %v6250 = vld [vmem:[%s1496 + $0x30] sm:$0xff]
        %v6251 = vld [vmem:[%s1496 + $0x38] sm:$0xff]
        %v6252 = vmul.f32 %v6236, %v6244
        %v6253 = vmul.f32 %v6237, %v6245
        %v6254 = vmul.f32 %v6238, %v6246
        %v6255 = vmul.f32 %v6239, %v6247
        %v6256 = vmul.f32 %v6240, %v6248
        %v6257 = vmul.f32 %v6241, %v6249
        %v6258 = vmul.f32 %v6242, %v6250
        %v6259 = vmul.f32 %v6243, %v6251
        %6268 = vrot.lane.b32.xlu0 %v6252, 32
        %v6269 = vpop.permute.xlu0 %6268
        %6270 = vrot.lane.b32.xlu0 %v6253, 32
        %v6271 = vpop.permute.xlu0 %6270
        %6272 = vrot.lane.b32.xlu0 %v6254, 32
        %v6273 = vpop.permute.xlu0 %6272
        %6274 = vrot.lane.b32.xlu0 %v6255, 32
        %v6275 = vpop.permute.xlu0 %6274
        %6276 = vrot.lane.b32.xlu0 %v6256, 32
        %v6277 = vpop.permute.xlu0 %6276
        %6278 = vrot.lane.b32.xlu0 %v6257, 32
        %v6279 = vpop.permute.xlu0 %6278
        %6280 = vrot.lane.b32.xlu0 %v6258, 32
        %v6281 = vpop.permute.xlu0 %6280
        %6282 = vrot.lane.b32.xlu0 %v6259, 32
        %v6283 = vpop.permute.xlu0 %6282
        %6292 = vst.msk [vmem:[#allocation5 + $0x8] sm:$0xff] %vm1331, %v6269
        %6293 = vst.msk [vmem:[#allocation5 + $0x20] sm:$0xff] %vm1331, %v6271
        %6294 = vst.msk [vmem:[#allocation5 + $0x38] sm:$0xff] %vm1331, %v6273
        %6295 = vst.msk [vmem:[#allocation5 + $0x50] sm:$0xff] %vm1331, %v6275
        %6296 = vst.msk [vmem:[#allocation5 + $0x68] sm:$0xff] %vm1331, %v6277
        %6297 = vst.msk [vmem:[#allocation5 + $0x80] sm:$0xff] %vm1331, %v6279
        %6298 = vst.msk [vmem:[#allocation5 + $0x98] sm:$0xff] %vm1331, %v6281
        %6299 = vst.msk [vmem:[#allocation5 + $0xb0] sm:$0xff] %vm1331, %v6283
        %v6300 = vld [vmem:[#allocation2 + $0x17] sm:$0xff]
        %v6301 = vld [vmem:[#allocation2 + $0x1f] sm:$0xff]
        %v6302 = vld [vmem:[#allocation2 + $0x27] sm:$0xff]
        %v6303 = vld [vmem:[#allocation2 + $0x2f] sm:$0xff]
        %v6304 = vld [vmem:[#allocation2 + $0x37] sm:$0xff]
        %v6305 = vld [vmem:[#allocation2 + $0x3f] sm:$0xff]
        %v6306 = vld [vmem:[#allocation2 + $0x47] sm:$0xff]
        %v6307 = vld [vmem:[#allocation2 + $0x4f] sm:$0xff]
        %v6308 = vld [vmem:[%s1561] sm:$0xff]
        %v6309 = vld [vmem:[%s1561 + $0x8] sm:$0xff]
        %v6310 = vld [vmem:[%s1561 + $0x10] sm:$0xff]
        %v6311 = vld [vmem:[%s1561 + $0x18] sm:$0xff]
        %v6312 = vld [vmem:[%s1561 + $0x20] sm:$0xff]
        %v6313 = vld [vmem:[%s1561 + $0x28] sm:$0xff]
        %v6314 = vld [vmem:[%s1561 + $0x30] sm:$0xff]
        %v6315 = vld [vmem:[%s1561 + $0x38] sm:$0xff]
        %v6316 = vmul.f32 %v6300, %v6308
        %v6317 = vmul.f32 %v6301, %v6309
        %v6318 = vmul.f32 %v6302, %v6310
        %v6319 = vmul.f32 %v6303, %v6311
        %v6320 = vmul.f32 %v6304, %v6312
        %v6321 = vmul.f32 %v6305, %v6313
        %v6322 = vmul.f32 %v6306, %v6314
        %v6323 = vmul.f32 %v6307, %v6315
        %6332 = vrot.lane.b32.xlu0 %v6316, 64
        %v6333 = vpop.permute.xlu0 %6332
        %6334 = vrot.lane.b32.xlu0 %v6317, 64
        %v6335 = vpop.permute.xlu0 %6334
        %6336 = vrot.lane.b32.xlu0 %v6318, 64
        %v6337 = vpop.permute.xlu0 %6336
        %6338 = vrot.lane.b32.xlu0 %v6319, 64
        %v6339 = vpop.permute.xlu0 %6338
        %6340 = vrot.lane.b32.xlu0 %v6320, 64
        %v6341 = vpop.permute.xlu0 %6340
        %6342 = vrot.lane.b32.xlu0 %v6321, 64
        %v6343 = vpop.permute.xlu0 %6342
        %6344 = vrot.lane.b32.xlu0 %v6322, 64
        %v6345 = vpop.permute.xlu0 %6344
        %6346 = vrot.lane.b32.xlu0 %v6323, 64
        %v6347 = vpop.permute.xlu0 %6346
        %6356 = vst.msk [vmem:[#allocation5 + $0x8] sm:$0xff] %vm1397, %v6333
        %6357 = vst.msk [vmem:[#allocation5 + $0x20] sm:$0xff] %vm1397, %v6335
        %6358 = vst.msk [vmem:[#allocation5 + $0x38] sm:$0xff] %vm1397, %v6337
        %6359 = vst.msk [vmem:[#allocation5 + $0x50] sm:$0xff] %vm1397, %v6339
        %6360 = vst.msk [vmem:[#allocation5 + $0x68] sm:$0xff] %vm1397, %v6341
        %6361 = vst.msk [vmem:[#allocation5 + $0x80] sm:$0xff] %vm1397, %v6343
        %6362 = vst.msk [vmem:[#allocation5 + $0x98] sm:$0xff] %vm1397, %v6345
        %6363 = vst.msk [vmem:[#allocation5 + $0xb0] sm:$0xff] %vm1397, %v6347
        %v6364 = vld [vmem:[#allocation2 + $0x18] sm:$0xff]
        %v6365 = vld [vmem:[#allocation2 + $0x20] sm:$0xff]
        %v6366 = vld [vmem:[#allocation2 + $0x28] sm:$0xff]
        %v6367 = vld [vmem:[#allocation2 + $0x30] sm:$0xff]
        %v6368 = vld [vmem:[#allocation2 + $0x38] sm:$0xff]
        %v6369 = vld [vmem:[#allocation2 + $0x40] sm:$0xff]
        %v6370 = vld [vmem:[#allocation2 + $0x48] sm:$0xff]
        %v6371 = vld [vmem:[#allocation2 + $0x50] sm:$0xff]
        %v6372 = vld [vmem:[%s1626] sm:$0xff]
        %v6373 = vld [vmem:[%s1626 + $0x8] sm:$0xff]
        %v6374 = vld [vmem:[%s1626 + $0x10] sm:$0xff]
        %v6375 = vld [vmem:[%s1626 + $0x18] sm:$0xff]
        %v6376 = vld [vmem:[%s1626 + $0x20] sm:$0xff]
        %v6377 = vld [vmem:[%s1626 + $0x28] sm:$0xff]
        %v6378 = vld [vmem:[%s1626 + $0x30] sm:$0xff]
        %v6379 = vld [vmem:[%s1626 + $0x38] sm:$0xff]
        %v6380 = vmul.f32 %v6364, %v6372
        %v6381 = vmul.f32 %v6365, %v6373
        %v6382 = vmul.f32 %v6366, %v6374
        %v6383 = vmul.f32 %v6367, %v6375
        %v6384 = vmul.f32 %v6368, %v6376
        %v6385 = vmul.f32 %v6369, %v6377
        %v6386 = vmul.f32 %v6370, %v6378
        %v6387 = vmul.f32 %v6371, %v6379
        %6396 = vrot.lane.b32.xlu0 %v6380, 96
        %v6397 = vpop.permute.xlu0 %6396
        %6398 = vrot.lane.b32.xlu0 %v6381, 96
        %v6399 = vpop.permute.xlu0 %6398
        %6400 = vrot.lane.b32.xlu0 %v6382, 96
        %v6401 = vpop.permute.xlu0 %6400
        %6402 = vrot.lane.b32.xlu0 %v6383, 96
        %v6403 = vpop.permute.xlu0 %6402
        %6404 = vrot.lane.b32.xlu0 %v6384, 96
        %v6405 = vpop.permute.xlu0 %6404
        %6406 = vrot.lane.b32.xlu0 %v6385, 96
        %v6407 = vpop.permute.xlu0 %6406
        %6408 = vrot.lane.b32.xlu0 %v6386, 96
        %v6409 = vpop.permute.xlu0 %6408
        %6410 = vrot.lane.b32.xlu0 %v6387, 96
        %v6411 = vpop.permute.xlu0 %6410
        %6420 = vst.msk [vmem:[#allocation5 + $0x8] sm:$0xff] %vm1463, %v6397
        %6421 = vst.msk [vmem:[#allocation5 + $0x20] sm:$0xff] %vm1463, %v6399
        %6422 = vst.msk [vmem:[#allocation5 + $0x38] sm:$0xff] %vm1463, %v6401
        %6423 = vst.msk [vmem:[#allocation5 + $0x50] sm:$0xff] %vm1463, %v6403
        %6424 = vst.msk [vmem:[#allocation5 + $0x68] sm:$0xff] %vm1463, %v6405
        %6425 = vst.msk [vmem:[#allocation5 + $0x80] sm:$0xff] %vm1463, %v6407
        %6426 = vst.msk [vmem:[#allocation5 + $0x98] sm:$0xff] %vm1463, %v6409
        %6427 = vst.msk [vmem:[#allocation5 + $0xb0] sm:$0xff] %vm1463, %v6411
        %v6428 = vld [vmem:[#allocation2 + $0x19] sm:$0xff]
        %v6429 = vld [vmem:[#allocation2 + $0x21] sm:$0xff]
        %v6430 = vld [vmem:[#allocation2 + $0x29] sm:$0xff]
        %v6431 = vld [vmem:[#allocation2 + $0x31] sm:$0xff]
        %v6432 = vld [vmem:[#allocation2 + $0x39] sm:$0xff]
        %v6433 = vld [vmem:[#allocation2 + $0x41] sm:$0xff]
        %v6434 = vld [vmem:[#allocation2 + $0x49] sm:$0xff]
        %v6435 = vld [vmem:[#allocation2 + $0x51] sm:$0xff]
        %v6436 = vld [vmem:[%s1691] sm:$0xff]
        %v6437 = vld [vmem:[%s1691 + $0x8] sm:$0xff]
        %v6438 = vld [vmem:[%s1691 + $0x10] sm:$0xff]
        %v6439 = vld [vmem:[%s1691 + $0x18] sm:$0xff]
        %v6440 = vld [vmem:[%s1691 + $0x20] sm:$0xff]
        %v6441 = vld [vmem:[%s1691 + $0x28] sm:$0xff]
        %v6442 = vld [vmem:[%s1691 + $0x30] sm:$0xff]
        %v6443 = vld [vmem:[%s1691 + $0x38] sm:$0xff]
        %v6444 = vmul.f32 %v6428, %v6436
        %v6445 = vmul.f32 %v6429, %v6437
        %v6446 = vmul.f32 %v6430, %v6438
        %v6447 = vmul.f32 %v6431, %v6439
        %v6448 = vmul.f32 %v6432, %v6440
        %v6449 = vmul.f32 %v6433, %v6441
        %v6450 = vmul.f32 %v6434, %v6442
        %v6451 = vmul.f32 %v6435, %v6443
        %6452 = vst.msk [vmem:[#allocation5 + $0x10] sm:$0xff] %vm350, %v6444
        %6453 = vst.msk [vmem:[#allocation5 + $0x28] sm:$0xff] %vm350, %v6445
        %6454 = vst.msk [vmem:[#allocation5 + $0x40] sm:$0xff] %vm350, %v6446
        %6455 = vst.msk [vmem:[#allocation5 + $0x58] sm:$0xff] %vm350, %v6447
        %6456 = vst.msk [vmem:[#allocation5 + $0x70] sm:$0xff] %vm350, %v6448
        %6457 = vst.msk [vmem:[#allocation5 + $0x88] sm:$0xff] %vm350, %v6449
        %6458 = vst.msk [vmem:[#allocation5 + $0xa0] sm:$0xff] %vm350, %v6450
        %6459 = vst.msk [vmem:[#allocation5 + $0xb8] sm:$0xff] %vm350, %v6451
        %v6460 = vld [vmem:[#allocation5] sm:$0xff]
        %v6461 = vld [vmem:[#allocation5 + $0x8] sm:$0xff]
        %v6462 = vld [vmem:[#allocation5 + $0x10] sm:$0xff]
        %v6463 = vld [vmem:[#allocation5 + $0x18] sm:$0xff]
        %v6464 = vld [vmem:[#allocation5 + $0x20] sm:$0xff]
        %v6465 = vld [vmem:[#allocation5 + $0x28] sm:$0xff]
        %v6466 = vld [vmem:[#allocation5 + $0x30] sm:$0xff]
        %v6467 = vld [vmem:[#allocation5 + $0x38] sm:$0xff]
        %v6468 = vld [vmem:[#allocation5 + $0x40] sm:$0xff]
        %v6469 = vld [vmem:[#allocation5 + $0x48] sm:$0xff]
        %v6470 = vld [vmem:[#allocation5 + $0x50] sm:$0xff]
        %v6471 = vld [vmem:[#allocation5 + $0x58] sm:$0xff]
        %v6472 = vld [vmem:[#allocation5 + $0x60] sm:$0xff]
        %v6473 = vld [vmem:[#allocation5 + $0x68] sm:$0xff]
        %v6474 = vld [vmem:[#allocation5 + $0x70] sm:$0xff]
        %v6475 = vld [vmem:[#allocation5 + $0x78] sm:$0xff]
        %v6476 = vld [vmem:[#allocation5 + $0x80] sm:$0xff]
        %v6477 = vld [vmem:[#allocation5 + $0x88] sm:$0xff]
        %v6478 = vld [vmem:[#allocation5 + $0x90] sm:$0xff]
        %v6479 = vld [vmem:[#allocation5 + $0x98] sm:$0xff]
        %v6480 = vld [vmem:[#allocation5 + $0xa0] sm:$0xff]
        %v6481 = vld [vmem:[#allocation5 + $0xa8] sm:$0xff]
        %v6482 = vld [vmem:[#allocation5 + $0xb0] sm:$0xff]
        %v6483 = vld [vmem:[#allocation5 + $0xb8] sm:$0xff]
        %v6484 = vld [vmem:[%s7] sm:$0xff]
        %v6485 = vld [vmem:[%s7 + $0x8] sm:$0xff]
        %v6486 = vld [vmem:[%s7 + $0x10] sm:$0xff]
        %v6487 = vld [vmem:[%s7 + $0x18] sm:$0xff]
        %v6488 = vld [vmem:[%s7 + $0x20] sm:$0xff]
        %v6489 = vld [vmem:[%s7 + $0x28] sm:$0xff]
        %v6490 = vld [vmem:[%s7 + $0x30] sm:$0xff]
        %v6491 = vld [vmem:[%s7 + $0x38] sm:$0xff]
        %v6492 = vld [vmem:[%s7 + $0x40] sm:$0xff]
        %v6493 = vld [vmem:[%s7 + $0x48] sm:$0xff]
        %v6494 = vld [vmem:[%s7 + $0x50] sm:$0xff]
        %v6495 = vld [vmem:[%s7 + $0x58] sm:$0xff]
        %v6496 = vld [vmem:[%s7 + $0x60] sm:$0xff]
        %v6497 = vld [vmem:[%s7 + $0x68] sm:$0xff]
        %v6498 = vld [vmem:[%s7 + $0x70] sm:$0xff]
        %v6499 = vld [vmem:[%s7 + $0x78] sm:$0xff]
        %v6500 = vld [vmem:[%s7 + $0x80] sm:$0xff]
        %v6501 = vld [vmem:[%s7 + $0x88] sm:$0xff]
        %v6502 = vld [vmem:[%s7 + $0x90] sm:$0xff]
        %v6503 = vld [vmem:[%s7 + $0x98] sm:$0xff]
        %v6504 = vld [vmem:[%s7 + $0xa0] sm:$0xff]
        %v6505 = vld [vmem:[%s7 + $0xa8] sm:$0xff]
        %v6506 = vld [vmem:[%s7 + $0xb0] sm:$0xff]
        %v6507 = vld [vmem:[%s7 + $0xb8] sm:$0xff]
        %v6508 = vld [vmem:[%s7 + $0xc0] sm:$0xff]
        %v6509 = vld [vmem:[%s7 + $0xc8] sm:$0xff]
        %v6510 = vld [vmem:[%s7 + $0xd0] sm:$0xff]
        %v6511 = vld [vmem:[%s7 + $0xd8] sm:$0xff]
        %v6512 = vld [vmem:[%s7 + $0xe0] sm:$0xff]
        %v6513 = vld [vmem:[%s7 + $0xe8] sm:$0xff]
        %v6514 = vld [vmem:[%s7 + $0xf0] sm:$0xff]
        %v6515 = vld [vmem:[%s7 + $0xf8] sm:$0xff]
        %v6516 = vld [vmem:[%s7 + $0x100] sm:$0xff]
        %v6517 = vld [vmem:[%s7 + $0x108] sm:$0xff]
        %v6518 = vld [vmem:[%s7 + $0x110] sm:$0xff]
        %v6519 = vld [vmem:[%s7 + $0x118] sm:$0xff]
        %v6520 = vld [vmem:[#allocation6] sm:$0x1]
        %v6522 = vlaneseq
        %v6523 = vshrl.u32 %v6522, 7
        %v6524 = vsub.s32 0, %v6523
        %v6525 = vrot.slane %v6520, %v6524
        %v6528 = vsel %vm350, %v6462, 0
        %v6531 = vsel %vm350, %v6465, 0
        %v6534 = vsel %vm350, %v6468, 0
        %v6537 = vsel %vm350, %v6471, 0
        %v6540 = vsel %vm350, %v6474, 0
        %v6543 = vsel %vm350, %v6477, 0
        %v6546 = vsel %vm350, %v6480, 0
        %v6549 = vsel %vm350, %v6483, 0
        %6551 = vmatprep.subr.mxu0 0.0
        %6552 = vmatpush1.msra.mxu0 %v6484
        %6553 = vmatprep.subr.mxu0 0.0
        %6554 = vmatpush1.msra.mxu0 %v6485
        %6555 = vmatprep.subr.mxu0 0.0
        %6556 = vmatpush1.msra.mxu0 %v6486
        %6557 = vmatprep.subr.mxu0 0.0
        %6558 = vmatpush1.msra.mxu0 %v6487
        %6559 = vmatprep.subr.mxu0 0.0
        %6560 = vmatpush1.msra.mxu0 %v6488
        %6561 = vmatprep.subr.mxu0 0.0
        %6562 = vmatpush1.msra.mxu0 %v6489
        %6563 = vmatprep.subr.mxu0 0.0
        %6564 = vmatpush1.msra.mxu0 %v6490
        %6565 = vmatprep.subr.mxu0 0.0
        %6566 = vmatpush1.msra.mxu0 %v6491
        %6567 = vmatprep.subr.mxu0 0.0
        %6568 = vmatpush1.msra.mxu0 %v6492
        %6569 = vmatprep.subr.mxu0 0.0
        %6570 = vmatpush1.msra.mxu0 %v6493
        %6571 = vmatprep.subr.mxu0 0.0
        %6572 = vmatpush1.msra.mxu0 %v6494
        %6573 = vmatprep.subr.mxu0 0.0
        %6574 = vmatpush1.msra.mxu0 %v6495
        %6575 = vmatprep.subr.mxu0 0.0
        %6576 = vmatpush1.msra.mxu0 %v6496
        %6577 = vmatprep.subr.mxu0 0.0
        %6578 = vmatpush1.msra.mxu0 %v6497
        %6579 = vmatprep.subr.mxu0 0.0
        %6580 = vmatpush1.msra.mxu0 %v6498
        %6581 = vmatprep.subr.mxu0 0.0
        %6582 = vmatpush1.msra.mxu0 %v6499
        %6583 = vmatprep.subr.mxu0 0.0
        %6584 = vmatpush1.msra.mxu0 %v6500
        %6585 = vmatprep.subr.mxu0 0.0
        %6586 = vmatpush1.msra.mxu0 %v6501
        %6587 = vmatprep.subr.mxu0 0.0
        %6588 = vmatpush1.msra.mxu0 %v6502
        %6589 = vmatprep.subr.mxu0 0.0
        %6590 = vmatpush1.msra.mxu0 %v6503
        %6591 = vmatprep.subr.mxu0 0.0
        %6592 = vmatpush1.msra.mxu0 %v6504
        %6593 = vmatprep.subr.mxu0 0.0
        %6594 = vmatpush1.msra.mxu0 %v6505
        %6595 = vmatprep.subr.mxu0 0.0
        %6596 = vmatpush1.msra.mxu0 %v6506
        %6597 = vmatprep.subr.mxu0 0.0
        %6598 = vmatpush1.msra.mxu0 %v6507
        %6599 = vmatprep.subr.mxu0 0.0
        %6600 = vmatpush1.msra.mxu0 %v6508
        %6601 = vmatprep.subr.mxu0 0.0
        %6602 = vmatpush1.msra.mxu0 %v6509
        %6603 = vmatprep.subr.mxu0 0.0
        %6604 = vmatpush1.msra.mxu0 %v6510
        %6605 = vmatprep.subr.mxu0 0.0
        %6606 = vmatpush1.msra.mxu0 %v6511
        %6607 = vmatprep.subr.mxu0 0.0
        %6608 = vmatpush1.msra.mxu0 %v6512
        %6609 = vmatprep.subr.mxu0 0.0
        %6610 = vmatpush1.msra.mxu0 %v6513
        %6611 = vmatprep.subr.mxu0 0.0
        %6612 = vmatpush1.msra.mxu0 %v6514
        %6613 = vmatprep.subr.mxu0 0.0
        %6614 = vmatpush1.msra.mxu0 %v6515
        %6615 = vmatprep.mubr.f32.mxu0 %v6461
        %6616 = vmatmul.mubr.f32.gmra.mrb[0].mxu0 %v6460
        %v6617 = vpop.f32.mrb[0].mxu0
        %v6618 = vadd.f32 %v6525, %v6617
        %v6619 = vpop.f32.mrb[0].mxu0
        %6620 = vmatprep.mubr.f32.mxu0 %v6464
        %6621 = vmatmul.mubr.f32.gmra.mrb[0].mxu0 %v6463
        %v6622 = vpop.f32.mrb[0].mxu0
        %v6623 = vadd.f32 %v6525, %v6622
        %v6624 = vpop.f32.mrb[0].mxu0
        %6625 = vmatprep.mubr.f32.mxu0 %v6467
        %6626 = vmatmul.mubr.f32.gmra.mrb[0].mxu0 %v6466
        %v6627 = vpop.f32.mrb[0].mxu0
        %v6628 = vadd.f32 %v6525, %v6627
        %v6629 = vpop.f32.mrb[0].mxu0
        %6630 = vmatprep.mubr.f32.mxu0 %v6470
        %6631 = vmatmul.mubr.f32.gmra.mrb[0].mxu0 %v6469
        %v6632 = vpop.f32.mrb[0].mxu0
        %v6633 = vadd.f32 %v6525, %v6632
        %v6634 = vpop.f32.mrb[0].mxu0
        %6635 = vmatprep.mubr.f32.mxu0 %v6473
        %6636 = vmatmul.mubr.f32.gmra.mrb[0].mxu0 %v6472
        %v6637 = vpop.f32.mrb[0].mxu0
        %v6638 = vadd.f32 %v6525, %v6637
        %v6639 = vpop.f32.mrb[0].mxu0
        %6640 = vmatprep.mubr.f32.mxu0 %v6476
        %6641 = vmatmul.mubr.f32.gmra.mrb[0].mxu0 %v6475
        %v6642 = vpop.f32.mrb[0].mxu0
        %v6643 = vadd.f32 %v6525, %v6642
        %v6644 = vpop.f32.mrb[0].mxu0
        %6645 = vmatprep.mubr.f32.mxu0 %v6479
        %6646 = vmatmul.mubr.f32.gmra.mrb[0].mxu0 %v6478
        %v6647 = vpop.f32.mrb[0].mxu0
        %v6648 = vadd.f32 %v6525, %v6647
        %v6649 = vpop.f32.mrb[0].mxu0
        %6650 = vmatprep.mubr.f32.mxu0 %v6482
        %6651 = vmatmul.mubr.f32.gmra.mrb[0].mxu0 %v6481
        %v6652 = vpop.f32.mrb[0].mxu0
        %v6653 = vadd.f32 %v6525, %v6652
        %v6654 = vpop.f32.mrb[0].mxu0
        %6655 = vdwg.mxu0
        %6656 = vmatprep.subr.mxu0 0.0
        %6657 = vmatpush1.msra.mxu0 %v6516
        %6658 = vmatprep.subr.mxu0 0.0
        %6659 = vmatpush1.msra.mxu0 %v6517
        %6660 = vmatprep.subr.mxu0 0.0
        %6661 = vmatpush1.msra.mxu0 %v6518
        %6662 = vmatprep.subr.mxu0 0.0
        %6663 = vmatpush1.msra.mxu0 %v6519
        %6664 = vmatprep.subr.mxu0 0.0
        %6665 = vmatpush1.msra.mxu0 0.0
        %6666 = vmatprep.subr.mxu0 0.0
        %6667 = vmatpush1.msra.mxu0 0.0
        %6668 = vmatprep.subr.mxu0 0.0
        %6669 = vmatpush1.msra.mxu0 0.0
        %6670 = vmatprep.subr.mxu0 0.0
        %6671 = vmatpush1.msra.mxu0 0.0
        %6672 = vmatprep.subr.mxu0 0.0
        %6673 = vmatpush1.msra.mxu0 0.0
        %6674 = vmatprep.subr.mxu0 0.0
        %6675 = vmatpush1.msra.mxu0 0.0
        %6676 = vmatprep.subr.mxu0 0.0
        %6677 = vmatpush1.msra.mxu0 0.0
        %6678 = vmatprep.subr.mxu0 0.0
        %6679 = vmatpush1.msra.mxu0 0.0
        %6680 = vmatprep.subr.mxu0 0.0
        %6681 = vmatpush1.msra.mxu0 0.0
        %6682 = vmatprep.subr.mxu0 0.0
        %6683 = vmatpush1.msra.mxu0 0.0
        %6684 = vmatprep.subr.mxu0 0.0
        %6685 = vmatpush1.msra.mxu0 0.0
        %6686 = vmatprep.subr.mxu0 0.0
        %6687 = vmatpush1.msra.mxu0 0.0
        %6688 = vmatprep.subr.mxu0 0.0
        %6689 = vmatpush1.msra.mxu0 0.0
        %6690 = vmatprep.subr.mxu0 0.0
        %6691 = vmatpush1.msra.mxu0 0.0
        %6692 = vmatprep.subr.mxu0 0.0
        %6693 = vmatpush1.msra.mxu0 0.0
        %6694 = vmatprep.subr.mxu0 0.0
        %6695 = vmatpush1.msra.mxu0 0.0
        %6696 = vmatprep.subr.mxu0 0.0
        %6697 = vmatpush1.msra.mxu0 0.0
        %6698 = vmatprep.subr.mxu0 0.0
        %6699 = vmatpush1.msra.mxu0 0.0
        %6700 = vmatprep.subr.mxu0 0.0
        %6701 = vmatpush1.msra.mxu0 0.0
        %6702 = vmatprep.subr.mxu0 0.0
        %6703 = vmatpush1.msra.mxu0 0.0
        %6704 = vmatprep.subr.mxu0 0.0
        %6705 = vmatpush1.msra.mxu0 0.0
        %6706 = vmatprep.subr.mxu0 0.0
        %6707 = vmatpush1.msra.mxu0 0.0
        %6708 = vmatprep.subr.mxu0 0.0
        %6709 = vmatpush1.msra.mxu0 0.0
        %6710 = vmatprep.subr.mxu0 0.0
        %6711 = vmatpush1.msra.mxu0 0.0
        %6712 = vmatprep.subr.mxu0 0.0
        %6713 = vmatpush1.msra.mxu0 0.0
        %6714 = vmatprep.subr.mxu0 0.0
        %6715 = vmatpush1.msra.mxu0 0.0
        %6716 = vmatprep.subr.mxu0 0.0
        %6717 = vmatpush1.msra.mxu0 0.0
        %6718 = vmatprep.subr.mxu0 0.0
        %6719 = vmatpush1.msra.mxu0 0.0
        %6720 = vmatprep.mubr.f32.mxu0 0.0
        %6721 = vmatmul.mubr.f32.gmra.mrb[0].mxu0 %v6528
        %v6722 = vpop.f32.mrb[0].mxu0
        %v6723 = vadd.f32 %v6618, %v6722
        %v6724 = vpop.f32.mrb[0].mxu0
        %6725 = vmatprep.mubr.f32.mxu0 0.0
        %6726 = vmatmul.mubr.f32.gmra.mrb[0].mxu0 %v6531
        %v6727 = vpop.f32.mrb[0].mxu0
        %v6728 = vadd.f32 %v6623, %v6727
        %v6729 = vpop.f32.mrb[0].mxu0
        %6730 = vmatprep.mubr.f32.mxu0 0.0
        %6731 = vmatmul.mubr.f32.gmra.mrb[0].mxu0 %v6534
        %v6732 = vpop.f32.mrb[0].mxu0
        %v6733 = vadd.f32 %v6628, %v6732
        %v6734 = vpop.f32.mrb[0].mxu0
        %6735 = vmatprep.mubr.f32.mxu0 0.0
        %6736 = vmatmul.mubr.f32.gmra.mrb[0].mxu0 %v6537
        %v6737 = vpop.f32.mrb[0].mxu0
        %v6738 = vadd.f32 %v6633, %v6737
        %v6739 = vpop.f32.mrb[0].mxu0
        %6740 = vmatprep.mubr.f32.mxu0 0.0
        %6741 = vmatmul.mubr.f32.gmra.mrb[0].mxu0 %v6540
        %v6742 = vpop.f32.mrb[0].mxu0
        %v6743 = vadd.f32 %v6638, %v6742
        %v6744 = vpop.f32.mrb[0].mxu0
        %6745 = vmatprep.mubr.f32.mxu0 0.0
        %6746 = vmatmul.mubr.f32.gmra.mrb[0].mxu0 %v6543
        %v6747 = vpop.f32.mrb[0].mxu0
        %v6748 = vadd.f32 %v6643, %v6747
        %v6749 = vpop.f32.mrb[0].mxu0
        %6750 = vmatprep.mubr.f32.mxu0 0.0
        %6751 = vmatmul.mubr.f32.gmra.mrb[0].mxu0 %v6546
        %v6752 = vpop.f32.mrb[0].mxu0
        %v6753 = vadd.f32 %v6648, %v6752
        %v6754 = vpop.f32.mrb[0].mxu0
        %6755 = vmatprep.mubr.f32.mxu0 0.0
        %6756 = vmatmul.mubr.f32.gmra.mrb[0].mxu0 %v6549
        %v6757 = vpop.f32.mrb[0].mxu0
        %v6758 = vadd.f32 %v6653, %v6757
        %v6759 = vpop.f32.mrb[0].mxu0
        %6760 = vdwg.mxu0
        %v6761 = vmax.f32 %v6723, 0.0
        %v6762 = vmax.f32 %v6728, 0.0
        %v6763 = vmax.f32 %v6733, 0.0
        %v6764 = vmax.f32 %v6738, 0.0
        %v6765 = vmax.f32 %v6743, 0.0
        %v6766 = vmax.f32 %v6748, 0.0
        %v6767 = vmax.f32 %v6753, 0.0
        %v6768 = vmax.f32 %v6758, 0.0
        %vm6769 = vcmask 7168
        %6770 = vst.msk [vmem:[%s349] sm:$0xff] %vm6769, %v6761
        %6771 = vst.msk [vmem:[%s349 + $0x8] sm:$0xff] %vm6769, %v6762
        %6772 = vst.msk [vmem:[%s349 + $0x10] sm:$0xff] %vm6769, %v6763
        %6773 = vst.msk [vmem:[%s349 + $0x18] sm:$0xff] %vm6769, %v6764
        %6774 = vst.msk [vmem:[%s349 + $0x20] sm:$0xff] %vm6769, %v6765
        %6775 = vst.msk [vmem:[%s349 + $0x28] sm:$0xff] %vm6769, %v6766
        %6776 = vst.msk [vmem:[%s349 + $0x30] sm:$0xff] %vm6769, %v6767
        %6777 = vst.msk [vmem:[%s349 + $0x38] sm:$0xff] %vm6769, %v6768
        %p6778 = scmp.lt.s32.totalorder %s23, 1
        %s6779 = scalar_select %p6778, %s23, 1
        %s6780 = smul.addr %s6779, 8
        %s6781 = smul.addr %s6780, 8
        %s6782 = scalar_lea.vmem %s9, %s6781
        // Predicated region
        $region61: #{netblock_forward.1} parent=55 // pred_check
          %p6783 = pneg %p235
        $region62: #{netblock_forward.1} parent=55 // pred_check_branch
          %6785 = sbr.rel (%p6783) target = $region64
        $region63: #{netblock_forward.1} parent=55 // pred_region
          _
        $region64: #{netblock_forward.1} parent=55 // pred_fallthru
          _
      $region56: #{netblock_forward.1} parent=5 // pred_fallthru
        _
      %p6786 = scmp.le.s32.totalorder 2, %s18
      // Predicated region
      $region65: #{netblock_forward.1} parent=5 // pred_check
        %p6787 = pneg %p6786
      $region66: #{netblock_forward.1} parent=5 // pred_check_branch
        %6789 = sbr.rel (%p6787) target = $region68
      $region67: #{netblock_forward.1} parent=5 // pred_region
        %s6790 = ssub.s32 %s18, 2
        // Predicated region
        $region69: #{netblock_forward.1} parent=67 // pred_check
          %p6791 = pneg %p241
        $region70: #{netblock_forward.1} parent=67 // pred_check_branch
          %6793 = sbr.rel (%p6791) target = $region72
        $region71: #{netblock_forward.1} parent=67 // pred_region
          %p6794 = scmp.lt.s32.totalorder %s24, 1
          %s6795 = scalar_select %p6794, %s24, 1
          %s6796 = smul.addr %s6795, 8
          %s6797 = smul.addr %s6796, 8
          %s6798 = scalar_lea.vmem %s9, %s6797
        $region72: #{netblock_forward.1} parent=67 // pred_fallthru
          _
      $region68: #{netblock_forward.1} parent=5 // pred_fallthru
        _
    $region6: #{netblock_forward.1} parent=1 // loop_footer
      %s22 = sadd.s32 1, %s18
    $region7: #{netblock_forward.1} parent=1 // loop_footer_branch
      %17 = sbr.rel target = $region3
    $region8: #{netblock_forward.1} parent=1 // loop_exit
      _
    %6799 = vsyncpa [#allocation8], 1
    %s6800 = scalar_lea.sflag [#allocation8], 1
    %6801 = vsyncpa %s6800, 1

</llo_original>
